<compile_context>
chip_gen: v7x
topology: tpu7x:2x2x1
jax: 0.10.0
libtpu: 0.0.40
codegen_flags: <defaults>
</compile_context>

<pallas_src>
import jax
import jax.numpy as jnp
import numpy as np
from jax.experimental import pallas as pl
from jax.experimental.pallas import tpu as pltpu

NUM_BLADES = 8  # 2**3 blades for metric (1,1,1); blade order = grade order, sizes (1,3,3,1)


def _scalar_blade_bias(b_vec, cout):
    # (8*Cout, 1) bias, nonzero only on the grade-0 (scalar) blade rows -> plain broadcast add.
    return jnp.zeros((NUM_BLADES * cout, 1), jnp.float32).at[:cout, 0].set(b_vec)


# ------------------------------- fused forward -------------------------------

def mvmlp_forward(x_bci, params, out_w_grades, out_b, batch_tile=512,
                  mxu_dtype=jnp.float32):
    """x_bci: PyTorch layout (B, C_in, 8). Returns (B, C_out, 8)."""
    B, cin0, nb = x_bci.shape
    assert nb == NUM_BLADES
    num_layers = len(params)

    # Batch tiling: lane-dense tiles; keep >= 2 "parallel" grid steps (v7x has 2 TensorCores).
    assert batch_tile % 128 == 0
    b128 = -(-B // 128) * 128
    tbl = min(batch_tile, b128)
    if b128 // tbl < 2 and b128 >= 256:
        tbl = max(128, (b128 // 2) // 128 * 128)
    b_pad = -(-B // tbl) * tbl
    n_tiles = b_pad // tbl

    # (B, C, 8) torch layout -> (8*C, B): batch on the 128-lane axis, blades folded into rows.
    # NOTE(perf): for production keep (8*C, B) as the persistent inter-op activation layout so
    # this transpose (and the one on the output) doesn't cost an extra HBM round trip.
    x = jnp.transpose(x_bci, (2, 1, 0)).reshape(NUM_BLADES * cin0, B)
    if b_pad != B:
        x = jnp.pad(x, ((0, 0), (0, b_pad - B)))

    eye8 = jnp.eye(NUM_BLADES, dtype=jnp.float32)

    ops = [x]
    in_specs = [pl.BlockSpec((NUM_BLADES * cin0, tbl), lambda i: (0, i))]
    for p in params:
        co = p["lin_w"].shape[0]
        wb = jnp.kron(eye8, p["lin_w"]).astype(mxu_dtype)    # (8*Co, 8*Ci) block-diag, shared W
        bf = _scalar_blade_bias(p["lin_b"], co)
        a1 = jnp.kron(eye8, p["act_w1"]).astype(mxu_dtype)
        a2 = jnp.kron(eye8, p["act_w2"]).astype(mxu_dtype)
        ops += [wb, bf, a1, a2]
        in_specs += [pl.BlockSpec(wb.shape, lambda i: (0, 0)),
                     pl.BlockSpec(bf.shape, lambda i: (0, 0)),
                     pl.BlockSpec(a1.shape, lambda i: (0, 0)),
                     pl.BlockSpec(a2.shape, lambda i: (0, 0))]

    # subspaces=True: per-grade weights -> per-blade weights (grade sizes (1,3,3,1)), then a
    # true block-diagonal (8*Cout, 8*Cin) so the last layer is also a single MXU dot.
    wb_final3 = jnp.repeat(out_w_grades, jnp.array([1, 3, 3, 1]), axis=0,
                           total_repeat_length=NUM_BLADES)   # (8, Cout, Cin)
    cout, cin_f = wb_final3.shape[1], wb_final3.shape[2]
    wf = jnp.einsum("bd,boi->bodi", eye8, wb_final3).reshape(
        NUM_BLADES * cout, NUM_BLADES * cin_f).astype(mxu_dtype)
    bff = _scalar_blade_bias(out_b, cout)
    ops += [wf, bff]
    in_specs += [pl.BlockSpec(wf.shape, lambda i: (0, 0)),
                 pl.BlockSpec(bff.shape, lambda i: (0, 0))]

    def kernel(*refs):
        x_ref, o_ref = refs[0], refs[-1]
        wrefs = refs[1:-1]

        xv = x_ref[...]                                       # (8*Cin, T) f32
        idx = 0
        for _ in range(num_layers):
            w, bf = wrefs[idx][...], wrefs[idx + 1][...]
            a1, a2 = wrefs[idx + 2][...], wrefs[idx + 3][...]
            idx += 4
            # MVLinear (subspaces=False): one block-diagonal dot + scalar-blade bias.
            y = jnp.dot(w, xv.astype(w.dtype),
                        preferred_element_type=jnp.float32) + bf          # (8H, T)
            # MVAct: q = lin1(y), k = lin2(y); gate per (channel, sample) on sign(<q,k>_blades).
            q = jnp.dot(a1, y.astype(a1.dtype), preferred_element_type=jnp.float32)
            k = jnp.dot(a2, y.astype(a2.dtype), preferred_element_type=jnp.float32)
            h, t = a1.shape[0] // NUM_BLADES, q.shape[-1]
            q3 = q.reshape(NUM_BLADES, h, t)                  # layout-free split (h % 8 == 0)
            k3 = k.reshape(NUM_BLADES, h, t)
            qk = jnp.sum(q3 * k3, axis=0)                     # (H, T) blade reduction (vadds)
            ksq = jnp.sum(k3 * k3, axis=0)
            # NOTE: matches PyTorch (no ksq==0 guard) — degenerate k==0 gives NaN in both.
            inv = qk * pl.reciprocal(ksq, approx=True)        # EUP slot
            coeff = jnp.where(qk > 0.0, 0.0, inv)             # == (1 - gate) * inv
            xv = (q3 - coeff[None] * k3).reshape(NUM_BLADES * h, t)

        # MVLinear (subspaces=True): single block-diagonal dot + scalar-blade bias.
        wfin, bfin = wrefs[idx][...], wrefs[idx + 1][...]
        o_ref[...] = (jnp.dot(wfin, xv.astype(wfin.dtype),
                              preferred_element_type=jnp.float32) + bfin
                      ).astype(o_ref.dtype)

    out = pl.pallas_call(
        kernel,
        out_shape=jax.ShapeDtypeStruct((NUM_BLADES * cout, b_pad), jnp.float32),
        grid=(n_tiles,),
        in_specs=in_specs,
        out_specs=pl.BlockSpec((NUM_BLADES * cout, tbl), lambda i: (0, i)),
        compiler_params=pltpu.CompilerParams(dimension_semantics=("parallel",)),
    )(*ops)

    # (8*Cout, B) -> (B, Cout, 8) torch layout.  NOTE(perf): fuse into the consumer in production.
    return jnp.transpose(out.reshape(NUM_BLADES, cout, b_pad)[:, :, :B], (2, 1, 0))


# ------------------------------- parameter init -------------------------------

def init_params(key, in_f, hid_f, out_f, num_layers):
    """Deterministic synthetic init (normal / sqrt(fan_in), small biases). torch (out, in) layout."""
    params = []
    for i in range(num_layers):
        cin = in_f if i == 0 else hid_f
        key, k1, k2, k3, k4 = jax.random.split(key, 5)
        params.append(dict(
            lin_w=jax.random.normal(k1, (hid_f, cin), jnp.float32) / np.sqrt(cin),
            lin_b=jax.random.normal(k2, (hid_f,), jnp.float32) * 0.1,
            act_w1=jax.random.normal(k3, (hid_f, hid_f), jnp.float32) / np.sqrt(hid_f),
            act_w2=jax.random.normal(k4, (hid_f, hid_f), jnp.float32) / np.sqrt(hid_f),
        ))
    key, k1, k2 = jax.random.split(key, 3)
    out_w_grades = jax.random.normal(k1, (4, out_f, hid_f), jnp.float32) / np.sqrt(hid_f)
    out_b = jax.random.normal(k2, (out_f,), jnp.float32) * 0.1
    return params, out_w_grades, out_b


# ------------------------------ pure-JAX reference ------------------------------

def _ref_forward(x, params, out_w_grades, out_b):
    # x: (B, C, 8) torch layout
    def lin(x, w, b=None):
        y = jnp.einsum("bmi,nm->bni", x, w)
        if b is not None:
            y = y.at[..., 0].add(b)
        return y

    def act(x, w1, w2):
        q = lin(x, w1)
        k = lin(x, w2)
        qk = jnp.sum(q * k, -1)
        ksq = jnp.sum(k * k, -1)
        inv = qk / ksq
        c2 = q - inv[..., None] * k
        gate = jnp.maximum(jnp.sign(qk)[..., None], 0.0)
        return gate * q + (1.0 - gate) * c2

    for p in params:
        x = lin(x, p["lin_w"], p["lin_b"])
        x = act(x, p["act_w1"], p["act_w2"])
    w_blades = jnp.repeat(out_w_grades, jnp.array([1, 3, 3, 1]), axis=0,
                          total_repeat_length=NUM_BLADES)     # (8, Cout, Cin)
    y = jnp.einsum("bmi,inm->bni", x, w_blades)
    return y.at[..., 0].add(out_b)


# ------------------------------------ main ------------------------------------

if __name__ == "__main__":
    # 2 lane-dense batch tiles of 512 samples: amortizes per-step overhead and keeps both
    # TensorCores busy on v7x via the "parallel" grid axis.
    B, in_f, hid_f, out_f, num_layers = 1024, 4, 32, 8, 2

    key = jax.random.PRNGKey(0)
    key, kx = jax.random.split(key)
    x = jax.random.normal(kx, (B, in_f, NUM_BLADES), jnp.float32)  # PyTorch layout (B, C, 8)

    params, out_w_grades, out_b = init_params(key, in_f, hid_f, out_f, num_layers)

    out = jax.jit(mvmlp_forward)(x, params, out_w_grades, out_b)
    out = jax.block_until_ready(out)

    ref = _ref_forward(x, params, out_w_grades, out_b)
    assert out.shape == (B, out_f, NUM_BLADES)
    np.testing.assert_allclose(np.asarray(out), np.asarray(ref), rtol=1e-2, atol=1e-2)

    print("KERNEL_OK")
</pallas_src>

<mosaic_0001>
module attributes {stable_mosaic.version = 11 : i64} {
  func.func @kernel(%arg0: i32, %arg1: memref<32x512xf32, #tpu.memory_space<vmem>>, %arg2: memref<256x32xf32, #tpu.memory_space<vmem>>, %arg3: memref<256x1xf32, #tpu.memory_space<vmem>>, %arg4: memref<256x256xf32, #tpu.memory_space<vmem>>, %arg5: memref<256x256xf32, #tpu.memory_space<vmem>>, %arg6: memref<256x256xf32, #tpu.memory_space<vmem>>, %arg7: memref<256x1xf32, #tpu.memory_space<vmem>>, %arg8: memref<256x256xf32, #tpu.memory_space<vmem>>, %arg9: memref<256x256xf32, #tpu.memory_space<vmem>>, %arg10: memref<64x256xf32, #tpu.memory_space<vmem>>, %arg11: memref<64x1xf32, #tpu.memory_space<vmem>>, %arg12: memref<64x512xf32, #tpu.memory_space<vmem>>) attributes {dimension_semantics = [#tpu.dimension_semantics<parallel>], iteration_bounds = array<i64: 2>, scalar_prefetch = 0 : i64, scratch_operands = 0 : i64, tpu.core_type = #tpu.core_type<tc>, window_params = [{transform_indices = @transform_0, window_bounds = array<i64: 32, 512>}, {pipeline_mode = #tpu.pipeline_mode<synchronous>, transform_indices = @transform_1, window_bounds = array<i64: 256, 32>}, {pipeline_mode = #tpu.pipeline_mode<synchronous>, transform_indices = @transform_2, window_bounds = array<i64: 256, 1>}, {pipeline_mode = #tpu.pipeline_mode<synchronous>, transform_indices = @transform_3, window_bounds = array<i64: 256, 256>}, {pipeline_mode = #tpu.pipeline_mode<synchronous>, transform_indices = @transform_4, window_bounds = array<i64: 256, 256>}, {pipeline_mode = #tpu.pipeline_mode<synchronous>, transform_indices = @transform_5, window_bounds = array<i64: 256, 256>}, {pipeline_mode = #tpu.pipeline_mode<synchronous>, transform_indices = @transform_6, window_bounds = array<i64: 256, 1>}, {pipeline_mode = #tpu.pipeline_mode<synchronous>, transform_indices = @transform_7, window_bounds = array<i64: 256, 256>}, {pipeline_mode = #tpu.pipeline_mode<synchronous>, transform_indices = @transform_8, window_bounds = array<i64: 256, 256>}, {pipeline_mode = #tpu.pipeline_mode<synchronous>, transform_indices = @transform_9, window_bounds = array<i64: 64, 256>}, {pipeline_mode = #tpu.pipeline_mode<synchronous>, transform_indices = @transform_10, window_bounds = array<i64: 64, 1>}, {transform_indices = @transform_11, window_bounds = array<i64: 64, 512>}]} {
    %c0 = arith.constant 0 : index
    %c0_0 = arith.constant 0 : index
    %0 = vector.load %arg1[%c0, %c0_0] : memref<32x512xf32, #tpu.memory_space<vmem>>, vector<32x512xf32>
    %c0_1 = arith.constant 0 : index
    %c0_2 = arith.constant 0 : index
    %1 = vector.load %arg2[%c0_1, %c0_2] : memref<256x32xf32, #tpu.memory_space<vmem>>, vector<256x32xf32>
    %c0_3 = arith.constant 0 : index
    %c0_4 = arith.constant 0 : index
    %2 = vector.load %arg3[%c0_3, %c0_4] : memref<256x1xf32, #tpu.memory_space<vmem>>, vector<256x1xf32>
    %c0_5 = arith.constant 0 : index
    %c0_6 = arith.constant 0 : index
    %3 = vector.load %arg4[%c0_5, %c0_6] : memref<256x256xf32, #tpu.memory_space<vmem>>, vector<256x256xf32>
    %c0_7 = arith.constant 0 : index
    %c0_8 = arith.constant 0 : index
    %4 = vector.load %arg5[%c0_7, %c0_8] : memref<256x256xf32, #tpu.memory_space<vmem>>, vector<256x256xf32>
    %cst = arith.constant dense<0.000000e+00> : vector<256x512xf32>
    %5 = tpu.matmul %1, %0, %cst {dimension_numbers = #tpu.dot_dimension_numbers<[1], [0], [0], [1], [0, 0, 1, 1], [], []>} : vector<256x32xf32>, vector<32x512xf32>, vector<256x512xf32> -> vector<256x512xf32>
    %6 = vector.broadcast %2 : vector<256x1xf32> to vector<256x512xf32>
    %7 = arith.addf %5, %6 : vector<256x512xf32>
    %cst_9 = arith.constant dense<0.000000e+00> : vector<256x512xf32>
    %8 = tpu.matmul %3, %7, %cst_9 {dimension_numbers = #tpu.dot_dimension_numbers<[1], [0], [0], [1], [0, 0, 1, 1], [], []>} : vector<256x256xf32>, vector<256x512xf32>, vector<256x512xf32> -> vector<256x512xf32>
    %cst_10 = arith.constant dense<0.000000e+00> : vector<256x512xf32>
    %9 = tpu.matmul %4, %7, %cst_10 {dimension_numbers = #tpu.dot_dimension_numbers<[1], [0], [0], [1], [0, 0, 1, 1], [], []>} : vector<256x256xf32>, vector<256x512xf32>, vector<256x512xf32> -> vector<256x512xf32>
    %10 = vector.shape_cast %8 : vector<256x512xf32> to vector<8x32x512xf32>
    %11 = vector.shape_cast %9 : vector<256x512xf32> to vector<8x32x512xf32>
    %12 = arith.mulf %10, %11 : vector<8x32x512xf32>
    %cst_11 = arith.constant dense<0.000000e+00> : vector<32x512xf32>
    %13 = vector.multi_reduction <add>, %12, %cst_11 [0] : vector<8x32x512xf32> to vector<32x512xf32>
    %14 = arith.mulf %11, %11 : vector<8x32x512xf32>
    %cst_12 = arith.constant dense<0.000000e+00> : vector<32x512xf32>
    %15 = vector.multi_reduction <add>, %14, %cst_12 [0] : vector<8x32x512xf32> to vector<32x512xf32>
    %16 = tpu.reciprocal %15 {approx = true} : vector<32x512xf32> -> vector<32x512xf32>
    %17 = arith.mulf %13, %16 : vector<32x512xf32>
    %cst_13 = arith.constant 0.000000e+00 : f32
    %18 = vector.broadcast %cst_13 : f32 to vector<32x512xf32>
    %19 = arith.cmpf ogt, %13, %18 : vector<32x512xf32>
    %cst_14 = arith.constant 0.000000e+00 : f32
    %20 = vector.broadcast %cst_14 : f32 to vector<32x512xf32>
    %21 = arith.select %19, %20, %17 : vector<32x512xi1>, vector<32x512xf32>
    %22 = vector.shape_cast %21 : vector<32x512xf32> to vector<1x32x512xf32>
    %23 = vector.broadcast %22 : vector<1x32x512xf32> to vector<8x32x512xf32>
    %24 = arith.mulf %23, %11 : vector<8x32x512xf32>
    %25 = arith.subf %10, %24 : vector<8x32x512xf32>
    %26 = vector.shape_cast %25 : vector<8x32x512xf32> to vector<256x512xf32>
    %c0_15 = arith.constant 0 : index
    %c0_16 = arith.constant 0 : index
    %27 = vector.load %arg6[%c0_15, %c0_16] : memref<256x256xf32, #tpu.memory_space<vmem>>, vector<256x256xf32>
    %c0_17 = arith.constant 0 : index
    %c0_18 = arith.constant 0 : index
    %28 = vector.load %arg7[%c0_17, %c0_18] : memref<256x1xf32, #tpu.memory_space<vmem>>, vector<256x1xf32>
    %c0_19 = arith.constant 0 : index
    %c0_20 = arith.constant 0 : index
    %29 = vector.load %arg8[%c0_19, %c0_20] : memref<256x256xf32, #tpu.memory_space<vmem>>, vector<256x256xf32>
    %c0_21 = arith.constant 0 : index
    %c0_22 = arith.constant 0 : index
    %30 = vector.load %arg9[%c0_21, %c0_22] : memref<256x256xf32, #tpu.memory_space<vmem>>, vector<256x256xf32>
    %cst_23 = arith.constant dense<0.000000e+00> : vector<256x512xf32>
    %31 = tpu.matmul %27, %26, %cst_23 {dimension_numbers = #tpu.dot_dimension_numbers<[1], [0], [0], [1], [0, 0, 1, 1], [], []>} : vector<256x256xf32>, vector<256x512xf32>, vector<256x512xf32> -> vector<256x512xf32>
    %32 = vector.broadcast %28 : vector<256x1xf32> to vector<256x512xf32>
    %33 = arith.addf %31, %32 : vector<256x512xf32>
    %cst_24 = arith.constant dense<0.000000e+00> : vector<256x512xf32>
    %34 = tpu.matmul %29, %33, %cst_24 {dimension_numbers = #tpu.dot_dimension_numbers<[1], [0], [0], [1], [0, 0, 1, 1], [], []>} : vector<256x256xf32>, vector<256x512xf32>, vector<256x512xf32> -> vector<256x512xf32>
    %cst_25 = arith.constant dense<0.000000e+00> : vector<256x512xf32>
    %35 = tpu.matmul %30, %33, %cst_25 {dimension_numbers = #tpu.dot_dimension_numbers<[1], [0], [0], [1], [0, 0, 1, 1], [], []>} : vector<256x256xf32>, vector<256x512xf32>, vector<256x512xf32> -> vector<256x512xf32>
    %36 = vector.shape_cast %34 : vector<256x512xf32> to vector<8x32x512xf32>
    %37 = vector.shape_cast %35 : vector<256x512xf32> to vector<8x32x512xf32>
    %38 = arith.mulf %36, %37 : vector<8x32x512xf32>
    %cst_26 = arith.constant dense<0.000000e+00> : vector<32x512xf32>
    %39 = vector.multi_reduction <add>, %38, %cst_26 [0] : vector<8x32x512xf32> to vector<32x512xf32>
    %40 = arith.mulf %37, %37 : vector<8x32x512xf32>
    %cst_27 = arith.constant dense<0.000000e+00> : vector<32x512xf32>
    %41 = vector.multi_reduction <add>, %40, %cst_27 [0] : vector<8x32x512xf32> to vector<32x512xf32>
    %42 = tpu.reciprocal %41 {approx = true} : vector<32x512xf32> -> vector<32x512xf32>
    %43 = arith.mulf %39, %42 : vector<32x512xf32>
    %cst_28 = arith.constant 0.000000e+00 : f32
    %44 = vector.broadcast %cst_28 : f32 to vector<32x512xf32>
    %45 = arith.cmpf ogt, %39, %44 : vector<32x512xf32>
    %cst_29 = arith.constant 0.000000e+00 : f32
    %46 = vector.broadcast %cst_29 : f32 to vector<32x512xf32>
    %47 = arith.select %45, %46, %43 : vector<32x512xi1>, vector<32x512xf32>
    %48 = vector.shape_cast %47 : vector<32x512xf32> to vector<1x32x512xf32>
    %49 = vector.broadcast %48 : vector<1x32x512xf32> to vector<8x32x512xf32>
    %50 = arith.mulf %49, %37 : vector<8x32x512xf32>
    %51 = arith.subf %36, %50 : vector<8x32x512xf32>
    %52 = vector.shape_cast %51 : vector<8x32x512xf32> to vector<256x512xf32>
    %c0_30 = arith.constant 0 : index
    %c0_31 = arith.constant 0 : index
    %53 = vector.load %arg10[%c0_30, %c0_31] : memref<64x256xf32, #tpu.memory_space<vmem>>, vector<64x256xf32>
    %c0_32 = arith.constant 0 : index
    %c0_33 = arith.constant 0 : index
    %54 = vector.load %arg11[%c0_32, %c0_33] : memref<64x1xf32, #tpu.memory_space<vmem>>, vector<64x1xf32>
    %cst_34 = arith.constant dense<0.000000e+00> : vector<64x512xf32>
    %55 = tpu.matmul %53, %52, %cst_34 {dimension_numbers = #tpu.dot_dimension_numbers<[1], [0], [0], [1], [0, 0, 1, 1], [], []>} : vector<64x256xf32>, vector<256x512xf32>, vector<64x512xf32> -> vector<64x512xf32>
    %56 = vector.broadcast %54 : vector<64x1xf32> to vector<64x512xf32>
    %57 = arith.addf %55, %56 : vector<64x512xf32>
    %c0_35 = arith.constant 0 : index
    %c0_36 = arith.constant 0 : index
    %58 = vector.load %arg12[%c0_35, %c0_36] : memref<64x512xf32, #tpu.memory_space<vmem>>, vector<64x512xf32>
    tpu.vector_store %arg12[%c0_35, %c0_36], %57 {strides = array<i32>} : memref<64x512xf32, #tpu.memory_space<vmem>>, vector<64x512xf32>,
    return
  }
  func.func @transform_0(%arg0: i32) -> (i32, i32) {
    %c0_i32 = arith.constant 0 : i32
    %c0_i32_0 = arith.constant 0 : i32
    return %c0_i32, %arg0 : i32, i32
  }
  func.func @transform_1(%arg0: i32) -> (i32, i32) {
    %c0_i32 = arith.constant 0 : i32
    %c0_i32_0 = arith.constant 0 : i32
    %c0_i32_1 = arith.constant 0 : i32
    return %c0_i32, %c0_i32_0 : i32, i32
  }
  func.func @transform_2(%arg0: i32) -> (i32, i32) {
    %c0_i32 = arith.constant 0 : i32
    %c0_i32_0 = arith.constant 0 : i32
    %c0_i32_1 = arith.constant 0 : i32
    return %c0_i32, %c0_i32_0 : i32, i32
  }
  func.func @transform_3(%arg0: i32) -> (i32, i32) {
    %c0_i32 = arith.constant 0 : i32
    %c0_i32_0 = arith.constant 0 : i32
    %c0_i32_1 = arith.constant 0 : i32
    return %c0_i32, %c0_i32_0 : i32, i32
  }
  func.func @transform_4(%arg0: i32) -> (i32, i32) {
    %c0_i32 = arith.constant 0 : i32
    %c0_i32_0 = arith.constant 0 : i32
    %c0_i32_1 = arith.constant 0 : i32
    return %c0_i32, %c0_i32_0 : i32, i32
  }
  func.func @transform_5(%arg0: i32) -> (i32, i32) {
    %c0_i32 = arith.constant 0 : i32
    %c0_i32_0 = arith.constant 0 : i32
    %c0_i32_1 = arith.constant 0 : i32
    return %c0_i32, %c0_i32_0 : i32, i32
  }
  func.func @transform_6(%arg0: i32) -> (i32, i32) {
    %c0_i32 = arith.constant 0 : i32
    %c0_i32_0 = arith.constant 0 : i32
    %c0_i32_1 = arith.constant 0 : i32
    return %c0_i32, %c0_i32_0 : i32, i32
  }
  func.func @transform_7(%arg0: i32) -> (i32, i32) {
    %c0_i32 = arith.constant 0 : i32
    %c0_i32_0 = arith.constant 0 : i32
    %c0_i32_1 = arith.constant 0 : i32
    return %c0_i32, %c0_i32_0 : i32, i32
  }
  func.func @transform_8(%arg0: i32) -> (i32, i32) {
    %c0_i32 = arith.constant 0 : i32
    %c0_i32_0 = arith.constant 0 : i32
    %c0_i32_1 = arith.constant 0 : i32
    return %c0_i32, %c0_i32_0 : i32, i32
  }
  func.func @transform_9(%arg0: i32) -> (i32, i32) {
    %c0_i32 = arith.constant 0 : i32
    %c0_i32_0 = arith.constant 0 : i32
    %c0_i32_1 = arith.constant 0 : i32
    return %c0_i32, %c0_i32_0 : i32, i32
  }
  func.func @transform_10(%arg0: i32) -> (i32, i32) {
    %c0_i32 = arith.constant 0 : i32
    %c0_i32_0 = arith.constant 0 : i32
    %c0_i32_1 = arith.constant 0 : i32
    return %c0_i32, %c0_i32_0 : i32, i32
  }
  func.func @transform_11(%arg0: i32) -> (i32, i32) {
    %c0_i32 = arith.constant 0 : i32
    %c0_i32_0 = arith.constant 0 : i32
    return %c0_i32, %arg0 : i32, i32
  }
}

</mosaic_0001>

<llo_original>
// kernel: mvmlp_forward.1
$region0: #{mvmlp_forward.1}
  #allocation0 [shape = 'u32[]', space=smem, size = 0x4, offset = 0x4, fixed_abs, tag = 'smem constant byte address 0x4 - core index']
  #allocation1 [shape = 'u32[144,128]{1,0:T(1,128)}', space=vmem, size = 0x12000, scoped, tag = 'internal scratch']
  %s0 = inlined_call_operand.vmem [shape: f32[32,1024], index: 0, kind: input, shape index: {}]
  %s1 = inlined_call_operand.vmem [shape: f32[256,32], index: 1, kind: input, shape index: {}]
  %s2 = inlined_call_operand.vmem [shape: f32[256,1], index: 2, kind: input, shape index: {}]
  %s3 = inlined_call_operand.vmem [shape: f32[256,256], index: 3, kind: input, shape index: {}]
  %s4 = inlined_call_operand.vmem [shape: f32[256,256], index: 4, kind: input, shape index: {}]
  %s5 = inlined_call_operand.vmem [shape: f32[256,256], index: 5, kind: input, shape index: {}]
  %s6 = inlined_call_operand.vmem [shape: f32[256,1], index: 6, kind: input, shape index: {}]
  %s7 = inlined_call_operand.vmem [shape: f32[256,256], index: 7, kind: input, shape index: {}]
  %s8 = inlined_call_operand.vmem [shape: f32[256,256], index: 8, kind: input, shape index: {}]
  %s9 = inlined_call_operand.vmem [shape: f32[64,256], index: 9, kind: input, shape index: {}]
  %s10 = inlined_call_operand.vmem [shape: f32[64,1], index: 10, kind: input, shape index: {}]
  %s11 = inlined_call_operand.vmem [shape: f32[64,1024], index: 11, kind: output, shape index: {}]
  %s12 = sld [smem:[#allocation0]]
  $region119: #{mvmlp_forward.1} parent=0
    _
  %s14 = ssub.s32 1, %s12
  %s15 = scalar_select 0, %s14, %s12
  $region1: #{mvmlp_forward.1} parent=0
    #allocation2 [shape = 'u8[131072]{0}', space=vmem, size = 0x20000, scoped, tag = 'input window, operand 0']
    #allocation3 [shape = 'u8[262144]{0}', space=vmem, size = 0x40000, scoped, tag = 'output window, operand 0']
    loop: start=0, step=1, limit=4
    $region2: #{mvmlp_forward.1} parent=1 // loop_pre_header
      _
    $region3: #{mvmlp_forward.1} parent=1 // loop_header
      %s17 = sphi 0, %s21
      %p18 = scmp.ge.s32.totalorder %s17, 4
      %s27 = sphi 0, %s29
      %s30 = sphi 0, %s27
      %s31 = sphi 0, %s30
      %s47 = sphi 0, %s31
      %s51 = sphi 0, %s51
      %s53 = sphi 0, %s51
      %s54 = sphi 0, %s53
      %s68 = sphi 0, %s54
      %s72 = sphi 0, %s72
      %s74 = sphi 0, %s72
      %s75 = sphi 0, %s74
      %s89 = sphi 0, %s75
      %s93 = sphi 0, %s93
      %s95 = sphi 0, %s93
      %s96 = sphi 0, %s95
      %s110 = sphi 0, %s96
      %s114 = sphi 0, %s114
      %s116 = sphi 0, %s114
      %s117 = sphi 0, %s116
      %s131 = sphi 0, %s117
      %s135 = sphi 0, %s135
      %s137 = sphi 0, %s135
      %s138 = sphi 0, %s137
      %s152 = sphi 0, %s138
      %s156 = sphi 0, %s156
      %s158 = sphi 0, %s156
      %s159 = sphi 0, %s158
      %s173 = sphi 0, %s159
      %s177 = sphi 0, %s177
      %s179 = sphi 0, %s177
      %s180 = sphi 0, %s179
      %s194 = sphi 0, %s180
      %s198 = sphi 0, %s198
      %s200 = sphi 0, %s198
      %s201 = sphi 0, %s200
      %s215 = sphi 0, %s201
      %s219 = sphi 0, %s219
      %s221 = sphi 0, %s219
      %s222 = sphi 0, %s221
      %s236 = sphi 0, %s222
      %s240 = sphi 0, %s240
      %s242 = sphi 0, %s240
      %s243 = sphi 0, %s242
      %s257 = sphi 0, %s243
      %s263 = sphi 0, %s265
      %s266 = sphi 0, %s263
      %s267 = sphi 0, %s266
      %s283 = sphi 0, %s267
    $region4: #{mvmlp_forward.1} parent=1 // loop_header_branch
      %20 = sbr.rel (%p18) target = $region8
    $region5: #{mvmlp_forward.1} parent=1 // loop_body
      %s22 = ssub.s32 %s17, 1
      %s23 = ssub.s32 %s17, 2
      %s24 = sadd.s32 %s17, 1
      %s25 = ssub.s32 %s17, %s24
      %p26 = scmp.eq.s32.totalorder %s25, 0
      %s28 = sadd.s32 %s27, 1
      %s29 = scalar_select %p26, %s27, %s28
      %p32 = pneg %p26
      %p33 = scmp.eq.s32.totalorder %s17, 1
      %p34 = por %p32, %p33
      %p35 = scmp.ne.s32.totalorder %s27, %s30
      %p36 = scmp.eq.s32.totalorder %s17, 0
      %p37 = por %p35, %p36
      %p38 = scmp.ne.s32.totalorder %s27, %s30
      %p39 = scmp.eq.s32.totalorder %s22, 1
      %p40 = por %p38, %p39
      %p41 = scmp.ne.s32.totalorder %s30, %s31
      %p42 = scmp.eq.s32.totalorder %s22, 0
      %p43 = por %p41, %p42
      %p44 = scmp.ne.s32.totalorder %s30, %s31
      %p45 = scmp.eq.s32.totalorder %s23, 1
      %p46 = por %p44, %p45
      %p48 = scmp.ne.s32.totalorder %s31, %s47
      %p49 = scmp.eq.s32.totalorder %s23, 0
      %p50 = por %p48, %p49
      %s52 = sadd.s32 %s51, 1
      %p55 = scmp.eq.s32.totalorder %s17, 1
      %p56 = scmp.ne.s32.totalorder %s51, %s53
      %p57 = scmp.eq.s32.totalorder %s17, 0
      %p58 = por %p56, %p57
      %p59 = scmp.ne.s32.totalorder %s51, %s53
      %p60 = scmp.eq.s32.totalorder %s22, 1
      %p61 = por %p59, %p60
      %p62 = scmp.ne.s32.totalorder %s53, %s54
      %p63 = scmp.eq.s32.totalorder %s22, 0
      %p64 = por %p62, %p63
      %p65 = scmp.ne.s32.totalorder %s53, %s54
      %p66 = scmp.eq.s32.totalorder %s23, 1
      %p67 = por %p65, %p66
      %p69 = scmp.ne.s32.totalorder %s54, %s68
      %p70 = scmp.eq.s32.totalorder %s23, 0
      %p71 = por %p69, %p70
      %s73 = sadd.s32 %s72, 1
      %p76 = scmp.eq.s32.totalorder %s17, 1
      %p77 = scmp.ne.s32.totalorder %s72, %s74
      %p78 = scmp.eq.s32.totalorder %s17, 0
      %p79 = por %p77, %p78
      %p80 = scmp.ne.s32.totalorder %s72, %s74
      %p81 = scmp.eq.s32.totalorder %s22, 1
      %p82 = por %p80, %p81
      %p83 = scmp.ne.s32.totalorder %s74, %s75
      %p84 = scmp.eq.s32.totalorder %s22, 0
      %p85 = por %p83, %p84
      %p86 = scmp.ne.s32.totalorder %s74, %s75
      %p87 = scmp.eq.s32.totalorder %s23, 1
      %p88 = por %p86, %p87
      %p90 = scmp.ne.s32.totalorder %s75, %s89
      %p91 = scmp.eq.s32.totalorder %s23, 0
      %p92 = por %p90, %p91
      %s94 = sadd.s32 %s93, 1
      %p97 = scmp.eq.s32.totalorder %s17, 1
      %p98 = scmp.ne.s32.totalorder %s93, %s95
      %p99 = scmp.eq.s32.totalorder %s17, 0
      %p100 = por %p98, %p99
      %p101 = scmp.ne.s32.totalorder %s93, %s95
      %p102 = scmp.eq.s32.totalorder %s22, 1
      %p103 = por %p101, %p102
      %p104 = scmp.ne.s32.totalorder %s95, %s96
      %p105 = scmp.eq.s32.totalorder %s22, 0
      %p106 = por %p104, %p105
      %p107 = scmp.ne.s32.totalorder %s95, %s96
      %p108 = scmp.eq.s32.totalorder %s23, 1
      %p109 = por %p107, %p108
      %p111 = scmp.ne.s32.totalorder %s96, %s110
      %p112 = scmp.eq.s32.totalorder %s23, 0
      %p113 = por %p111, %p112
      %s115 = sadd.s32 %s114, 1
      %p118 = scmp.eq.s32.totalorder %s17, 1
      %p119 = scmp.ne.s32.totalorder %s114, %s116
      %p120 = scmp.eq.s32.totalorder %s17, 0
      %p121 = por %p119, %p120
      %p122 = scmp.ne.s32.totalorder %s114, %s116
      %p123 = scmp.eq.s32.totalorder %s22, 1
      %p124 = por %p122, %p123
      %p125 = scmp.ne.s32.totalorder %s116, %s117
      %p126 = scmp.eq.s32.totalorder %s22, 0
      %p127 = por %p125, %p126
      %p128 = scmp.ne.s32.totalorder %s116, %s117
      %p129 = scmp.eq.s32.totalorder %s23, 1
      %p130 = por %p128, %p129
      %p132 = scmp.ne.s32.totalorder %s117, %s131
      %p133 = scmp.eq.s32.totalorder %s23, 0
      %p134 = por %p132, %p133
      %s136 = sadd.s32 %s135, 1
      %p139 = scmp.eq.s32.totalorder %s17, 1
      %p140 = scmp.ne.s32.totalorder %s135, %s137
      %p141 = scmp.eq.s32.totalorder %s17, 0
      %p142 = por %p140, %p141
      %p143 = scmp.ne.s32.totalorder %s135, %s137
      %p144 = scmp.eq.s32.totalorder %s22, 1
      %p145 = por %p143, %p144
      %p146 = scmp.ne.s32.totalorder %s137, %s138
      %p147 = scmp.eq.s32.totalorder %s22, 0
      %p148 = por %p146, %p147
      %p149 = scmp.ne.s32.totalorder %s137, %s138
      %p150 = scmp.eq.s32.totalorder %s23, 1
      %p151 = por %p149, %p150
      %p153 = scmp.ne.s32.totalorder %s138, %s152
      %p154 = scmp.eq.s32.totalorder %s23, 0
      %p155 = por %p153, %p154
      %s157 = sadd.s32 %s156, 1
      %p160 = scmp.eq.s32.totalorder %s17, 1
      %p161 = scmp.ne.s32.totalorder %s156, %s158
      %p162 = scmp.eq.s32.totalorder %s17, 0
      %p163 = por %p161, %p162
      %p164 = scmp.ne.s32.totalorder %s156, %s158
      %p165 = scmp.eq.s32.totalorder %s22, 1
      %p166 = por %p164, %p165
      %p167 = scmp.ne.s32.totalorder %s158, %s159
      %p168 = scmp.eq.s32.totalorder %s22, 0
      %p169 = por %p167, %p168
      %p170 = scmp.ne.s32.totalorder %s158, %s159
      %p171 = scmp.eq.s32.totalorder %s23, 1
      %p172 = por %p170, %p171
      %p174 = scmp.ne.s32.totalorder %s159, %s173
      %p175 = scmp.eq.s32.totalorder %s23, 0
      %p176 = por %p174, %p175
      %s178 = sadd.s32 %s177, 1
      %p181 = scmp.eq.s32.totalorder %s17, 1
      %p182 = scmp.ne.s32.totalorder %s177, %s179
      %p183 = scmp.eq.s32.totalorder %s17, 0
      %p184 = por %p182, %p183
      %p185 = scmp.ne.s32.totalorder %s177, %s179
      %p186 = scmp.eq.s32.totalorder %s22, 1
      %p187 = por %p185, %p186
      %p188 = scmp.ne.s32.totalorder %s179, %s180
      %p189 = scmp.eq.s32.totalorder %s22, 0
      %p190 = por %p188, %p189
      %p191 = scmp.ne.s32.totalorder %s179, %s180
      %p192 = scmp.eq.s32.totalorder %s23, 1
      %p193 = por %p191, %p192
      %p195 = scmp.ne.s32.totalorder %s180, %s194
      %p196 = scmp.eq.s32.totalorder %s23, 0
      %p197 = por %p195, %p196
      %s199 = sadd.s32 %s198, 1
      %p202 = scmp.eq.s32.totalorder %s17, 1
      %p203 = scmp.ne.s32.totalorder %s198, %s200
      %p204 = scmp.eq.s32.totalorder %s17, 0
      %p205 = por %p203, %p204
      %p206 = scmp.ne.s32.totalorder %s198, %s200
      %p207 = scmp.eq.s32.totalorder %s22, 1
      %p208 = por %p206, %p207
      %p209 = scmp.ne.s32.totalorder %s200, %s201
      %p210 = scmp.eq.s32.totalorder %s22, 0
      %p211 = por %p209, %p210
      %p212 = scmp.ne.s32.totalorder %s200, %s201
      %p213 = scmp.eq.s32.totalorder %s23, 1
      %p214 = por %p212, %p213
      %p216 = scmp.ne.s32.totalorder %s201, %s215
      %p217 = scmp.eq.s32.totalorder %s23, 0
      %p218 = por %p216, %p217
      %s220 = sadd.s32 %s219, 1
      %p223 = scmp.eq.s32.totalorder %s17, 1
      %p224 = scmp.ne.s32.totalorder %s219, %s221
      %p225 = scmp.eq.s32.totalorder %s17, 0
      %p226 = por %p224, %p225
      %p227 = scmp.ne.s32.totalorder %s219, %s221
      %p228 = scmp.eq.s32.totalorder %s22, 1
      %p229 = por %p227, %p228
      %p230 = scmp.ne.s32.totalorder %s221, %s222
      %p231 = scmp.eq.s32.totalorder %s22, 0
      %p232 = por %p230, %p231
      %p233 = scmp.ne.s32.totalorder %s221, %s222
      %p234 = scmp.eq.s32.totalorder %s23, 1
      %p235 = por %p233, %p234
      %p237 = scmp.ne.s32.totalorder %s222, %s236
      %p238 = scmp.eq.s32.totalorder %s23, 0
      %p239 = por %p237, %p238
      %s241 = sadd.s32 %s240, 1
      %p244 = scmp.eq.s32.totalorder %s17, 1
      %p245 = scmp.ne.s32.totalorder %s240, %s242
      %p246 = scmp.eq.s32.totalorder %s17, 0
      %p247 = por %p245, %p246
      %p248 = scmp.ne.s32.totalorder %s240, %s242
      %p249 = scmp.eq.s32.totalorder %s22, 1
      %p250 = por %p248, %p249
      %p251 = scmp.ne.s32.totalorder %s242, %s243
      %p252 = scmp.eq.s32.totalorder %s22, 0
      %p253 = por %p251, %p252
      %p254 = scmp.ne.s32.totalorder %s242, %s243
      %p255 = scmp.eq.s32.totalorder %s23, 1
      %p256 = por %p254, %p255
      %p258 = scmp.ne.s32.totalorder %s243, %s257
      %p259 = scmp.eq.s32.totalorder %s23, 0
      %p260 = por %p258, %p259
      %s261 = ssub.s32 %s17, %s24
      %p262 = scmp.eq.s32.totalorder %s261, 0
      %s264 = sadd.s32 %s263, 1
      %s265 = scalar_select %p262, %s263, %s264
      %p268 = pneg %p262
      %p269 = scmp.eq.s32.totalorder %s17, 1
      %p270 = por %p268, %p269
      %p271 = scmp.ne.s32.totalorder %s263, %s266
      %p272 = scmp.eq.s32.totalorder %s17, 0
      %p273 = por %p271, %p272
      %p274 = scmp.ne.s32.totalorder %s263, %s266
      %p275 = scmp.eq.s32.totalorder %s22, 1
      %p276 = por %p274, %p275
      %p277 = scmp.ne.s32.totalorder %s266, %s267
      %p278 = scmp.eq.s32.totalorder %s22, 0
      %p279 = por %p277, %p278
      %p280 = scmp.ne.s32.totalorder %s266, %s267
      %p281 = scmp.eq.s32.totalorder %s23, 1
      %p282 = por %p280, %p281
      %p284 = scmp.ne.s32.totalorder %s267, %s283
      %p285 = scmp.eq.s32.totalorder %s23, 0
      %p286 = por %p284, %p285
      %p287 = scmp.le.s32.totalorder 1, %s17
      %p288 = scmp.lt.s32.totalorder %s17, 3
      %p289 = pnand %p287, %p288
      %p290 = pneg %p289
      // Predicated region
      $region9: #{mvmlp_forward.1} parent=5 // pred_check
        _
      $region10: #{mvmlp_forward.1} parent=5 // pred_check_branch
        %292 = sbr.rel (%p289) target = $region12
      $region11: #{mvmlp_forward.1} parent=5 // pred_region
        %s293 = ssub.s32 %s17, 1
        // Predicated region
        $region13: #{mvmlp_forward.1} parent=11 // pred_check
          %p294 = pneg %p64
        $region14: #{mvmlp_forward.1} parent=11 // pred_check_branch
          %296 = sbr.rel (%p294) target = $region16
        $region15: #{mvmlp_forward.1} parent=11 // pred_region
          _
        $region16: #{mvmlp_forward.1} parent=11 // pred_fallthru
          _
        // Predicated region
        $region17: #{mvmlp_forward.1} parent=11 // pred_check
          %p297 = pneg %p85
        $region18: #{mvmlp_forward.1} parent=11 // pred_check_branch
          %299 = sbr.rel (%p297) target = $region20
        $region19: #{mvmlp_forward.1} parent=11 // pred_region
          _
        $region20: #{mvmlp_forward.1} parent=11 // pred_fallthru
          _
        // Predicated region
        $region21: #{mvmlp_forward.1} parent=11 // pred_check
          %p300 = pneg %p106
        $region22: #{mvmlp_forward.1} parent=11 // pred_check_branch
          %302 = sbr.rel (%p300) target = $region24
        $region23: #{mvmlp_forward.1} parent=11 // pred_region
          _
        $region24: #{mvmlp_forward.1} parent=11 // pred_fallthru
          _
        // Predicated region
        $region25: #{mvmlp_forward.1} parent=11 // pred_check
          %p303 = pneg %p127
        $region26: #{mvmlp_forward.1} parent=11 // pred_check_branch
          %305 = sbr.rel (%p303) target = $region28
        $region27: #{mvmlp_forward.1} parent=11 // pred_region
          _
        $region28: #{mvmlp_forward.1} parent=11 // pred_fallthru
          _
        // Predicated region
        $region29: #{mvmlp_forward.1} parent=11 // pred_check
          %p306 = pneg %p148
        $region30: #{mvmlp_forward.1} parent=11 // pred_check_branch
          %308 = sbr.rel (%p306) target = $region32
        $region31: #{mvmlp_forward.1} parent=11 // pred_region
          _
        $region32: #{mvmlp_forward.1} parent=11 // pred_fallthru
          _
        // Predicated region
        $region33: #{mvmlp_forward.1} parent=11 // pred_check
          %p309 = pneg %p169
        $region34: #{mvmlp_forward.1} parent=11 // pred_check_branch
          %311 = sbr.rel (%p309) target = $region36
        $region35: #{mvmlp_forward.1} parent=11 // pred_region
          _
        $region36: #{mvmlp_forward.1} parent=11 // pred_fallthru
          _
        // Predicated region
        $region37: #{mvmlp_forward.1} parent=11 // pred_check
          %p312 = pneg %p190
        $region38: #{mvmlp_forward.1} parent=11 // pred_check_branch
          %314 = sbr.rel (%p312) target = $region40
        $region39: #{mvmlp_forward.1} parent=11 // pred_region
          _
        $region40: #{mvmlp_forward.1} parent=11 // pred_fallthru
          _
        // Predicated region
        $region41: #{mvmlp_forward.1} parent=11 // pred_check
          %p315 = pneg %p211
        $region42: #{mvmlp_forward.1} parent=11 // pred_check_branch
          %317 = sbr.rel (%p315) target = $region44
        $region43: #{mvmlp_forward.1} parent=11 // pred_region
          _
        $region44: #{mvmlp_forward.1} parent=11 // pred_fallthru
          _
        // Predicated region
        $region45: #{mvmlp_forward.1} parent=11 // pred_check
          %p318 = pneg %p232
        $region46: #{mvmlp_forward.1} parent=11 // pred_check_branch
          %320 = sbr.rel (%p318) target = $region48
        $region47: #{mvmlp_forward.1} parent=11 // pred_region
          _
        $region48: #{mvmlp_forward.1} parent=11 // pred_fallthru
          _
        // Predicated region
        $region49: #{mvmlp_forward.1} parent=11 // pred_check
          %p321 = pneg %p253
        $region50: #{mvmlp_forward.1} parent=11 // pred_check_branch
          %323 = sbr.rel (%p321) target = $region52
        $region51: #{mvmlp_forward.1} parent=11 // pred_region
          _
        $region52: #{mvmlp_forward.1} parent=11 // pred_fallthru
          _
      $region12: #{mvmlp_forward.1} parent=5 // pred_fallthru
        _
      %p324 = scmp.lt.s32.totalorder %s17, 2
      // Predicated region
      $region53: #{mvmlp_forward.1} parent=5 // pred_check
        %p325 = pneg %p324
      $region54: #{mvmlp_forward.1} parent=5 // pred_check_branch
        %327 = sbr.rel (%p325) target = $region56
      $region55: #{mvmlp_forward.1} parent=5 // pred_region
        // Predicated region
        $region57: #{mvmlp_forward.1} parent=55 // pred_check
          %p328 = pneg %p37
        $region58: #{mvmlp_forward.1} parent=55 // pred_check_branch
          %330 = sbr.rel (%p328) target = $region60
        $region59: #{mvmlp_forward.1} parent=55 // pred_region
          %s331 = sand.u32 %s27, 1
          %s332 = sand.u32 %s27, 1
          %s333 = smul.addr %s332, 128
          %s334 = scalar_lea.vmem [#allocation2], %s333
          %s335 = smul.u32 4, %s17
          %s336 = smul.addr %s335, 8
          %s337 = scalar_lea.vmem %s0, %s336
          // Predicated region
          $region61: #{mvmlp_forward.1} parent=59 // pred_check
            _
          $region62: #{mvmlp_forward.1} parent=59 // pred_check_branch
            %339 = sbr.rel (0) target = $region64
          $region63: #{mvmlp_forward.1} parent=59 // pred_region
            // Predicated region
            $region65: #{mvmlp_forward.1} parent=63 // pred_check
              _
            $region66: #{mvmlp_forward.1} parent=63 // pred_check_branch
              %341 = sbr.rel (0) target = $region68
            $region67: #{mvmlp_forward.1} parent=63 // pred_region
              loop: start=0, step=1, limit=1
              $region69: #{mvmlp_forward.1} parent=67 // loop_pre_header
                _
              $region70: #{mvmlp_forward.1} parent=67 // loop_header
                %s343 = sphi 0, %s347
                %p344 = scmp.ge.s32.totalorder %s343, 1
                %s348 = sphi %s337, %s337
                %s349 = sphi %s334, %s334
              $region71: #{mvmlp_forward.1} parent=67 // loop_header_branch
                %346 = sbr.rel (%p344) target = $region75
              $region72: #{mvmlp_forward.1} parent=67 // loop_body
                %v350 = vld [vmem:[%s348] sm:$0xff]
                %351 = vst [vmem:[%s349] sm:$0xff] %v350
                %v352 = vld [vmem:[%s348 + $0x8] sm:$0xff]
                %353 = vst [vmem:[%s349 + $0x8] sm:$0xff] %v352
                %v354 = vld [vmem:[%s348 + $0x10] sm:$0xff]
                %355 = vst [vmem:[%s349 + $0x10] sm:$0xff] %v354
                %v356 = vld [vmem:[%s348 + $0x18] sm:$0xff]
                %357 = vst [vmem:[%s349 + $0x18] sm:$0xff] %v356
                %v358 = vld [vmem:[%s348 + $0x40] sm:$0xff]
                %359 = vst [vmem:[%s349 + $0x20] sm:$0xff] %v358
                %v360 = vld [vmem:[%s348 + $0x48] sm:$0xff]
                %361 = vst [vmem:[%s349 + $0x28] sm:$0xff] %v360
                %v362 = vld [vmem:[%s348 + $0x50] sm:$0xff]
                %363 = vst [vmem:[%s349 + $0x30] sm:$0xff] %v362
                %v364 = vld [vmem:[%s348 + $0x58] sm:$0xff]
                %365 = vst [vmem:[%s349 + $0x38] sm:$0xff] %v364
                %v366 = vld [vmem:[%s348 + $0x80] sm:$0xff]
                %367 = vst [vmem:[%s349 + $0x40] sm:$0xff] %v366
                %v368 = vld [vmem:[%s348 + $0x88] sm:$0xff]
                %369 = vst [vmem:[%s349 + $0x48] sm:$0xff] %v368
                %v370 = vld [vmem:[%s348 + $0x90] sm:$0xff]
                %371 = vst [vmem:[%s349 + $0x50] sm:$0xff] %v370
                %v372 = vld [vmem:[%s348 + $0x98] sm:$0xff]
                %373 = vst [vmem:[%s349 + $0x58] sm:$0xff] %v372
                %v374 = vld [vmem:[%s348 + $0xc0] sm:$0xff]
                %375 = vst [vmem:[%s349 + $0x60] sm:$0xff] %v374
                %v376 = vld [vmem:[%s348 + $0xc8] sm:$0xff]
                %377 = vst [vmem:[%s349 + $0x68] sm:$0xff] %v376
                %v378 = vld [vmem:[%s348 + $0xd0] sm:$0xff]
                %379 = vst [vmem:[%s349 + $0x70] sm:$0xff] %v378
                %v380 = vld [vmem:[%s348 + $0xd8] sm:$0xff]
                %381 = vst [vmem:[%s349 + $0x78] sm:$0xff] %v380
              $region73: #{mvmlp_forward.1} parent=67 // loop_footer
                %s347 = sadd.s32 1, %s343
              $region74: #{mvmlp_forward.1} parent=67 // loop_footer_branch
                %342 = sbr.rel target = $region70
              $region75: #{mvmlp_forward.1} parent=67 // loop_exit
                _
            $region68: #{mvmlp_forward.1} parent=63 // pred_fallthru
              _
            // Predicated region
            $region76: #{mvmlp_forward.1} parent=63 // pred_check
              _
            $region77: #{mvmlp_forward.1} parent=63 // pred_check_branch
              %383 = sbr.rel target = $region79
            $region78: #{mvmlp_forward.1} parent=63 // pred_region
              _
            $region79: #{mvmlp_forward.1} parent=63 // pred_fallthru
              _
          $region64: #{mvmlp_forward.1} parent=59 // pred_fallthru
            _
          %384 = vnop
        $region60: #{mvmlp_forward.1} parent=55 // pred_fallthru
          _
      $region56: #{mvmlp_forward.1} parent=5 // pred_fallthru
        _
      %p385 = scmp.le.s32.totalorder 1, %s17
      %p386 = scmp.lt.s32.totalorder %s17, 3
      %p387 = pnand %p385, %p386
      %p388 = pneg %p387
      // Predicated region
      $region80: #{mvmlp_forward.1} parent=5 // pred_check
        _
      $region81: #{mvmlp_forward.1} parent=5 // pred_check_branch
        %390 = sbr.rel (%p387) target = $region83
      $region82: #{mvmlp_forward.1} parent=5 // pred_region
        %s391 = ssub.s32 %s17, 1
        %s392 = sand.u32 %s30, 1
        %s393 = sand.u32 %s30, 1
        %s394 = smul.addr %s393, 128
        %s395 = scalar_lea.vmem [#allocation2], %s394
        // Predicated region
        $region84: #{mvmlp_forward.1} parent=82 // pred_check
          %p396 = pneg %p43
        $region85: #{mvmlp_forward.1} parent=82 // pred_check_branch
          %398 = sbr.rel (%p396) target = $region87
        $region86: #{mvmlp_forward.1} parent=82 // pred_region
          _
        $region87: #{mvmlp_forward.1} parent=82 // pred_fallthru
          _
        %s399 = sand.u32 %s30, 1
        %s400 = sand.u32 %s30, 1
        %s401 = smul.addr %s400, 128
        %s402 = scalar_lea.vmem [#allocation2], %s401
        %p403 = pneg %p43
        %p404 = pneg %p40
        %p405 = pneg %p64
        %p406 = pneg %p61
        %p407 = pneg %p85
        %p408 = pneg %p82
        %p409 = pneg %p106
        %p410 = pneg %p103
        %p411 = pneg %p127
        %p412 = pneg %p124
        %p413 = pneg %p148
        %p414 = pneg %p145
        %p415 = pneg %p169
        %p416 = pneg %p166
        %p417 = pneg %p190
        %p418 = pneg %p187
        %p419 = pneg %p211
        %p420 = pneg %p208
        %p421 = pneg %p232
        %p422 = pneg %p229
        %p423 = pneg %p253
        %p424 = pneg %p250
        %p425 = pneg %p279
        %p426 = pneg %p276
        %s427 = sand.u32 %s266, 1
        %s428 = sand.u32 %s266, 1
        %s429 = smul.addr %s428, 256
        %s430 = scalar_lea.vmem [#allocation3], %s429
        %s431 = smul.u32 4, %s22
        %s432 = smul.u32 4, %s22
        %v433 = vld [vmem:[%s395] sm:$0xff]
        %v434 = vld [vmem:[%s395 + $0x8] sm:$0xff]
        %v435 = vld [vmem:[%s395 + $0x10] sm:$0xff]
        %v436 = vld [vmem:[%s395 + $0x18] sm:$0xff]
        %v437 = vld [vmem:[%s395 + $0x20] sm:$0xff]
        %v438 = vld [vmem:[%s395 + $0x28] sm:$0xff]
        %v439 = vld [vmem:[%s395 + $0x30] sm:$0xff]
        %v440 = vld [vmem:[%s395 + $0x38] sm:$0xff]
        %v441 = vld [vmem:[%s395 + $0x40] sm:$0xff]
        %v442 = vld [vmem:[%s395 + $0x48] sm:$0xff]
        %v443 = vld [vmem:[%s395 + $0x50] sm:$0xff]
        %v444 = vld [vmem:[%s395 + $0x58] sm:$0xff]
        %v445 = vld [vmem:[%s395 + $0x60] sm:$0xff]
        %v446 = vld [vmem:[%s395 + $0x68] sm:$0xff]
        %v447 = vld [vmem:[%s395 + $0x70] sm:$0xff]
        %v448 = vld [vmem:[%s395 + $0x78] sm:$0xff]
        %v449 = vld [vmem:[%s1] sm:$0xff]
        %v450 = vld [vmem:[%s1 + $0x8] sm:$0xff]
        %v451 = vld [vmem:[%s1 + $0x10] sm:$0xff]
        %v452 = vld [vmem:[%s1 + $0x18] sm:$0xff]
        %v453 = vld [vmem:[%s1 + $0x20] sm:$0xff]
        %v454 = vld [vmem:[%s1 + $0x28] sm:$0xff]
        %v455 = vld [vmem:[%s1 + $0x30] sm:$0xff]
        %v456 = vld [vmem:[%s1 + $0x38] sm:$0xff]
        %v457 = vld [vmem:[%s1 + $0x40] sm:$0xff]
        %v458 = vld [vmem:[%s1 + $0x48] sm:$0xff]
        %v459 = vld [vmem:[%s1 + $0x50] sm:$0xff]
        %v460 = vld [vmem:[%s1 + $0x58] sm:$0xff]
        %v461 = vld [vmem:[%s1 + $0x60] sm:$0xff]
        %v462 = vld [vmem:[%s1 + $0x68] sm:$0xff]
        %v463 = vld [vmem:[%s1 + $0x70] sm:$0xff]
        %v464 = vld [vmem:[%s1 + $0x78] sm:$0xff]
        %v465 = vld [vmem:[%s1 + $0x80] sm:$0xff]
        %v466 = vld [vmem:[%s1 + $0x88] sm:$0xff]
        %v467 = vld [vmem:[%s1 + $0x90] sm:$0xff]
        %v468 = vld [vmem:[%s1 + $0x98] sm:$0xff]
        %v469 = vld [vmem:[%s1 + $0xa0] sm:$0xff]
        %v470 = vld [vmem:[%s1 + $0xa8] sm:$0xff]
        %v471 = vld [vmem:[%s1 + $0xb0] sm:$0xff]
        %v472 = vld [vmem:[%s1 + $0xb8] sm:$0xff]
        %v473 = vld [vmem:[%s1 + $0xc0] sm:$0xff]
        %v474 = vld [vmem:[%s1 + $0xc8] sm:$0xff]
        %v475 = vld [vmem:[%s1 + $0xd0] sm:$0xff]
        %v476 = vld [vmem:[%s1 + $0xd8] sm:$0xff]
        %v477 = vld [vmem:[%s1 + $0xe0] sm:$0xff]
        %v478 = vld [vmem:[%s1 + $0xe8] sm:$0xff]
        %v479 = vld [vmem:[%s1 + $0xf0] sm:$0xff]
        %v480 = vld [vmem:[%s1 + $0xf8] sm:$0xff]
        %v481 = vld [vmem:[%s2] sm:$0xff]
        %v482 = vld [vmem:[%s2 + $0x8] sm:$0xff]
        %v483 = vld [vmem:[%s2 + $0x10] sm:$0xff]
        %v484 = vld [vmem:[%s2 + $0x18] sm:$0xff]
        %v485 = vld [vmem:[%s2 + $0x20] sm:$0xff]
        %v486 = vld [vmem:[%s2 + $0x28] sm:$0xff]
        %v487 = vld [vmem:[%s2 + $0x30] sm:$0xff]
        %v488 = vld [vmem:[%s2 + $0x38] sm:$0xff]
        %v489 = vld [vmem:[%s2 + $0x40] sm:$0xff]
        %v490 = vld [vmem:[%s2 + $0x48] sm:$0xff]
        %v491 = vld [vmem:[%s2 + $0x50] sm:$0xff]
        %v492 = vld [vmem:[%s2 + $0x58] sm:$0xff]
        %v493 = vld [vmem:[%s2 + $0x60] sm:$0xff]
        %v494 = vld [vmem:[%s2 + $0x68] sm:$0xff]
        %v495 = vld [vmem:[%s2 + $0x70] sm:$0xff]
        %v496 = vld [vmem:[%s2 + $0x78] sm:$0xff]
        %v497 = vld [vmem:[%s2 + $0x80] sm:$0xff]
        %v498 = vld [vmem:[%s2 + $0x88] sm:$0xff]
        %v499 = vld [vmem:[%s2 + $0x90] sm:$0xff]
        %v500 = vld [vmem:[%s2 + $0x98] sm:$0xff]
        %v501 = vld [vmem:[%s2 + $0xa0] sm:$0xff]
        %v502 = vld [vmem:[%s2 + $0xa8] sm:$0xff]
        %v503 = vld [vmem:[%s2 + $0xb0] sm:$0xff]
        %v504 = vld [vmem:[%s2 + $0xb8] sm:$0xff]
        %v505 = vld [vmem:[%s2 + $0xc0] sm:$0xff]
        %v506 = vld [vmem:[%s2 + $0xc8] sm:$0xff]
        %v507 = vld [vmem:[%s2 + $0xd0] sm:$0xff]
        %v508 = vld [vmem:[%s2 + $0xd8] sm:$0xff]
        %v509 = vld [vmem:[%s2 + $0xe0] sm:$0xff]
        %v510 = vld [vmem:[%s2 + $0xe8] sm:$0xff]
        %v511 = vld [vmem:[%s2 + $0xf0] sm:$0xff]
        %v512 = vld [vmem:[%s2 + $0xf8] sm:$0xff]
        %v513 = vld [vmem:[%s3] sm:$0xff]
        %v514 = vld [vmem:[%s3 + $0x8] sm:$0xff]
        %v515 = vld [vmem:[%s3 + $0x10] sm:$0xff]
        %v516 = vld [vmem:[%s3 + $0x18] sm:$0xff]
        %v517 = vld [vmem:[%s3 + $0x20] sm:$0xff]
        %v518 = vld [vmem:[%s3 + $0x28] sm:$0xff]
        %v519 = vld [vmem:[%s3 + $0x30] sm:$0xff]
        %v520 = vld [vmem:[%s3 + $0x38] sm:$0xff]
        %v521 = vld [vmem:[%s3 + $0x40] sm:$0xff]
        %v522 = vld [vmem:[%s3 + $0x48] sm:$0xff]
        %v523 = vld [vmem:[%s3 + $0x50] sm:$0xff]
        %v524 = vld [vmem:[%s3 + $0x58] sm:$0xff]
        %v525 = vld [vmem:[%s3 + $0x60] sm:$0xff]
        %v526 = vld [vmem:[%s3 + $0x68] sm:$0xff]
        %v527 = vld [vmem:[%s3 + $0x70] sm:$0xff]
        %v528 = vld [vmem:[%s3 + $0x78] sm:$0xff]
        %v529 = vld [vmem:[%s3 + $0x80] sm:$0xff]
        %v530 = vld [vmem:[%s3 + $0x88] sm:$0xff]
        %v531 = vld [vmem:[%s3 + $0x90] sm:$0xff]
        %v532 = vld [vmem:[%s3 + $0x98] sm:$0xff]
        %v533 = vld [vmem:[%s3 + $0xa0] sm:$0xff]
        %v534 = vld [vmem:[%s3 + $0xa8] sm:$0xff]
        %v535 = vld [vmem:[%s3 + $0xb0] sm:$0xff]
        %v536 = vld [vmem:[%s3 + $0xb8] sm:$0xff]
        %v537 = vld [vmem:[%s3 + $0xc0] sm:$0xff]
        %v538 = vld [vmem:[%s3 + $0xc8] sm:$0xff]
        %v539 = vld [vmem:[%s3 + $0xd0] sm:$0xff]
        %v540 = vld [vmem:[%s3 + $0xd8] sm:$0xff]
        %v541 = vld [vmem:[%s3 + $0xe0] sm:$0xff]
        %v542 = vld [vmem:[%s3 + $0xe8] sm:$0xff]
        %v543 = vld [vmem:[%s3 + $0xf0] sm:$0xff]
        %v544 = vld [vmem:[%s3 + $0xf8] sm:$0xff]
        %v545 = vld [vmem:[%s3 + $0x100] sm:$0xff]
        %v546 = vld [vmem:[%s3 + $0x108] sm:$0xff]
        %v547 = vld [vmem:[%s3 + $0x110] sm:$0xff]
        %v548 = vld [vmem:[%s3 + $0x118] sm:$0xff]
        %v549 = vld [vmem:[%s3 + $0x120] sm:$0xff]
        %v550 = vld [vmem:[%s3 + $0x128] sm:$0xff]
        %v551 = vld [vmem:[%s3 + $0x130] sm:$0xff]
        %v552 = vld [vmem:[%s3 + $0x138] sm:$0xff]
        %v553 = vld [vmem:[%s3 + $0x140] sm:$0xff]
        %v554 = vld [vmem:[%s3 + $0x148] sm:$0xff]
        %v555 = vld [vmem:[%s3 + $0x150] sm:$0xff]
        %v556 = vld [vmem:[%s3 + $0x158] sm:$0xff]
        %v557 = vld [vmem:[%s3 + $0x160] sm:$0xff]
        %v558 = vld [vmem:[%s3 + $0x168] sm:$0xff]
        %v559 = vld [vmem:[%s3 + $0x170] sm:$0xff]
        %v560 = vld [vmem:[%s3 + $0x178] sm:$0xff]
        %v561 = vld [vmem:[%s3 + $0x180] sm:$0xff]
        %v562 = vld [vmem:[%s3 + $0x188] sm:$0xff]
        %v563 = vld [vmem:[%s3 + $0x190] sm:$0xff]
        %v564 = vld [vmem:[%s3 + $0x198] sm:$0xff]
        %v565 = vld [vmem:[%s3 + $0x1a0] sm:$0xff]
        %v566 = vld [vmem:[%s3 + $0x1a8] sm:$0xff]
        %v567 = vld [vmem:[%s3 + $0x1b0] sm:$0xff]
        %v568 = vld [vmem:[%s3 + $0x1b8] sm:$0xff]
        %v569 = vld [vmem:[%s3 + $0x1c0] sm:$0xff]
        %v570 = vld [vmem:[%s3 + $0x1c8] sm:$0xff]
        %v571 = vld [vmem:[%s3 + $0x1d0] sm:$0xff]
        %v572 = vld [vmem:[%s3 + $0x1d8] sm:$0xff]
        %v573 = vld [vmem:[%s3 + $0x1e0] sm:$0xff]
        %v574 = vld [vmem:[%s3 + $0x1e8] sm:$0xff]
        %v575 = vld [vmem:[%s3 + $0x1f0] sm:$0xff]
        %v576 = vld [vmem:[%s3 + $0x1f8] sm:$0xff]
        %v577 = vld [vmem:[%s4] sm:$0xff]
        %v578 = vld [vmem:[%s4 + $0x8] sm:$0xff]
        %v579 = vld [vmem:[%s4 + $0x10] sm:$0xff]
        %v580 = vld [vmem:[%s4 + $0x18] sm:$0xff]
        %v581 = vld [vmem:[%s4 + $0x20] sm:$0xff]
        %v582 = vld [vmem:[%s4 + $0x28] sm:$0xff]
        %v583 = vld [vmem:[%s4 + $0x30] sm:$0xff]
        %v584 = vld [vmem:[%s4 + $0x38] sm:$0xff]
        %v585 = vld [vmem:[%s4 + $0x40] sm:$0xff]
        %v586 = vld [vmem:[%s4 + $0x48] sm:$0xff]
        %v587 = vld [vmem:[%s4 + $0x50] sm:$0xff]
        %v588 = vld [vmem:[%s4 + $0x58] sm:$0xff]
        %v589 = vld [vmem:[%s4 + $0x60] sm:$0xff]
        %v590 = vld [vmem:[%s4 + $0x68] sm:$0xff]
        %v591 = vld [vmem:[%s4 + $0x70] sm:$0xff]
        %v592 = vld [vmem:[%s4 + $0x78] sm:$0xff]
        %v593 = vld [vmem:[%s4 + $0x80] sm:$0xff]
        %v594 = vld [vmem:[%s4 + $0x88] sm:$0xff]
        %v595 = vld [vmem:[%s4 + $0x90] sm:$0xff]
        %v596 = vld [vmem:[%s4 + $0x98] sm:$0xff]
        %v597 = vld [vmem:[%s4 + $0xa0] sm:$0xff]
        %v598 = vld [vmem:[%s4 + $0xa8] sm:$0xff]
        %v599 = vld [vmem:[%s4 + $0xb0] sm:$0xff]
        %v600 = vld [vmem:[%s4 + $0xb8] sm:$0xff]
        %v601 = vld [vmem:[%s4 + $0xc0] sm:$0xff]
        %v602 = vld [vmem:[%s4 + $0xc8] sm:$0xff]
        %v603 = vld [vmem:[%s4 + $0xd0] sm:$0xff]
        %v604 = vld [vmem:[%s4 + $0xd8] sm:$0xff]
        %v605 = vld [vmem:[%s4 + $0xe0] sm:$0xff]
        %v606 = vld [vmem:[%s4 + $0xe8] sm:$0xff]
        %v607 = vld [vmem:[%s4 + $0xf0] sm:$0xff]
        %v608 = vld [vmem:[%s4 + $0xf8] sm:$0xff]
        %v609 = vld [vmem:[%s4 + $0x100] sm:$0xff]
        %v610 = vld [vmem:[%s4 + $0x108] sm:$0xff]
        %v611 = vld [vmem:[%s4 + $0x110] sm:$0xff]
        %v612 = vld [vmem:[%s4 + $0x118] sm:$0xff]
        %v613 = vld [vmem:[%s4 + $0x120] sm:$0xff]
        %v614 = vld [vmem:[%s4 + $0x128] sm:$0xff]
        %v615 = vld [vmem:[%s4 + $0x130] sm:$0xff]
        %v616 = vld [vmem:[%s4 + $0x138] sm:$0xff]
        %v617 = vld [vmem:[%s4 + $0x140] sm:$0xff]
        %v618 = vld [vmem:[%s4 + $0x148] sm:$0xff]
        %v619 = vld [vmem:[%s4 + $0x150] sm:$0xff]
        %v620 = vld [vmem:[%s4 + $0x158] sm:$0xff]
        %v621 = vld [vmem:[%s4 + $0x160] sm:$0xff]
        %v622 = vld [vmem:[%s4 + $0x168] sm:$0xff]
        %v623 = vld [vmem:[%s4 + $0x170] sm:$0xff]
        %v624 = vld [vmem:[%s4 + $0x178] sm:$0xff]
        %v625 = vld [vmem:[%s4 + $0x180] sm:$0xff]
        %v626 = vld [vmem:[%s4 + $0x188] sm:$0xff]
        %v627 = vld [vmem:[%s4 + $0x190] sm:$0xff]
        %v628 = vld [vmem:[%s4 + $0x198] sm:$0xff]
        %v629 = vld [vmem:[%s4 + $0x1a0] sm:$0xff]
        %v630 = vld [vmem:[%s4 + $0x1a8] sm:$0xff]
        %v631 = vld [vmem:[%s4 + $0x1b0] sm:$0xff]
        %v632 = vld [vmem:[%s4 + $0x1b8] sm:$0xff]
        %v633 = vld [vmem:[%s4 + $0x1c0] sm:$0xff]
        %v634 = vld [vmem:[%s4 + $0x1c8] sm:$0xff]
        %v635 = vld [vmem:[%s4 + $0x1d0] sm:$0xff]
        %v636 = vld [vmem:[%s4 + $0x1d8] sm:$0xff]
        %v637 = vld [vmem:[%s4 + $0x1e0] sm:$0xff]
        %v638 = vld [vmem:[%s4 + $0x1e8] sm:$0xff]
        %v639 = vld [vmem:[%s4 + $0x1f0] sm:$0xff]
        %v640 = vld [vmem:[%s4 + $0x1f8] sm:$0xff]
        %642 = vset.pattern.permute.xlu0 0
        %643 = vperm.xlu0 %642, %v481
        %v644 = vpop.permute.xlu0 %643
        %647 = vset.pattern.permute.xlu0 0
        %648 = vperm.xlu0 %647, %v482
        %v649 = vpop.permute.xlu0 %648
        %652 = vset.pattern.permute.xlu0 0
        %653 = vperm.xlu0 %652, %v483
        %v654 = vpop.permute.xlu0 %653
        %657 = vset.pattern.permute.xlu0 0
        %658 = vperm.xlu0 %657, %v484
        %v659 = vpop.permute.xlu0 %658
        %662 = vset.pattern.permute.xlu0 0
        %663 = vperm.xlu0 %662, %v485
        %v664 = vpop.permute.xlu0 %663
        %667 = vset.pattern.permute.xlu0 0
        %668 = vperm.xlu0 %667, %v486
        %v669 = vpop.permute.xlu0 %668
        %672 = vset.pattern.permute.xlu0 0
        %673 = vperm.xlu0 %672, %v487
        %v674 = vpop.permute.xlu0 %673
        %677 = vset.pattern.permute.xlu0 0
        %678 = vperm.xlu0 %677, %v488
        %v679 = vpop.permute.xlu0 %678
        %682 = vset.pattern.permute.xlu0 0
        %683 = vperm.xlu0 %682, %v489
        %v684 = vpop.permute.xlu0 %683
        %687 = vset.pattern.permute.xlu0 0
        %688 = vperm.xlu0 %687, %v490
        %v689 = vpop.permute.xlu0 %688
        %692 = vset.pattern.permute.xlu0 0
        %693 = vperm.xlu0 %692, %v491
        %v694 = vpop.permute.xlu0 %693
        %697 = vset.pattern.permute.xlu0 0
        %698 = vperm.xlu0 %697, %v492
        %v699 = vpop.permute.xlu0 %698
        %702 = vset.pattern.permute.xlu0 0
        %703 = vperm.xlu0 %702, %v493
        %v704 = vpop.permute.xlu0 %703
        %707 = vset.pattern.permute.xlu0 0
        %708 = vperm.xlu0 %707, %v494
        %v709 = vpop.permute.xlu0 %708
        %712 = vset.pattern.permute.xlu0 0
        %713 = vperm.xlu0 %712, %v495
        %v714 = vpop.permute.xlu0 %713
        %717 = vset.pattern.permute.xlu0 0
        %718 = vperm.xlu0 %717, %v496
        %v719 = vpop.permute.xlu0 %718
        %722 = vset.pattern.permute.xlu0 0
        %723 = vperm.xlu0 %722, %v497
        %v724 = vpop.permute.xlu0 %723
        %727 = vset.pattern.permute.xlu0 0
        %728 = vperm.xlu0 %727, %v498
        %v729 = vpop.permute.xlu0 %728
        %732 = vset.pattern.permute.xlu0 0
        %733 = vperm.xlu0 %732, %v499
        %v734 = vpop.permute.xlu0 %733
        %737 = vset.pattern.permute.xlu0 0
        %738 = vperm.xlu0 %737, %v500
        %v739 = vpop.permute.xlu0 %738
        %742 = vset.pattern.permute.xlu0 0
        %743 = vperm.xlu0 %742, %v501
        %v744 = vpop.permute.xlu0 %743
        %747 = vset.pattern.permute.xlu0 0
        %748 = vperm.xlu0 %747, %v502
        %v749 = vpop.permute.xlu0 %748
        %752 = vset.pattern.permute.xlu0 0
        %753 = vperm.xlu0 %752, %v503
        %v754 = vpop.permute.xlu0 %753
        %757 = vset.pattern.permute.xlu0 0
        %758 = vperm.xlu0 %757, %v504
        %v759 = vpop.permute.xlu0 %758
        %762 = vset.pattern.permute.xlu0 0
        %763 = vperm.xlu0 %762, %v505
        %v764 = vpop.permute.xlu0 %763
        %767 = vset.pattern.permute.xlu0 0
        %768 = vperm.xlu0 %767, %v506
        %v769 = vpop.permute.xlu0 %768
        %772 = vset.pattern.permute.xlu0 0
        %773 = vperm.xlu0 %772, %v507
        %v774 = vpop.permute.xlu0 %773
        %777 = vset.pattern.permute.xlu0 0
        %778 = vperm.xlu0 %777, %v508
        %v779 = vpop.permute.xlu0 %778
        %782 = vset.pattern.permute.xlu0 0
        %783 = vperm.xlu0 %782, %v509
        %v784 = vpop.permute.xlu0 %783
        %787 = vset.pattern.permute.xlu0 0
        %788 = vperm.xlu0 %787, %v510
        %v789 = vpop.permute.xlu0 %788
        %792 = vset.pattern.permute.xlu0 0
        %793 = vperm.xlu0 %792, %v511
        %v794 = vpop.permute.xlu0 %793
        %797 = vset.pattern.permute.xlu0 0
        %798 = vperm.xlu0 %797, %v512
        %v799 = vpop.permute.xlu0 %798
        %vm801 = vcmask 261120
        %v803 = vsel %vm801, %v449, 0
        %v806 = vsel %vm801, %v450, 0
        %v809 = vsel %vm801, %v451, 0
        %v812 = vsel %vm801, %v452, 0
        %v815 = vsel %vm801, %v453, 0
        %v818 = vsel %vm801, %v454, 0
        %v821 = vsel %vm801, %v455, 0
        %v824 = vsel %vm801, %v456, 0
        %v827 = vsel %vm801, %v457, 0
        %v830 = vsel %vm801, %v458, 0
        %v833 = vsel %vm801, %v459, 0
        %v836 = vsel %vm801, %v460, 0
        %v839 = vsel %vm801, %v461, 0
        %v842 = vsel %vm801, %v462, 0
        %v845 = vsel %vm801, %v463, 0
        %v848 = vsel %vm801, %v464, 0
        %v851 = vsel %vm801, %v465, 0
        %v854 = vsel %vm801, %v466, 0
        %v857 = vsel %vm801, %v467, 0
        %v860 = vsel %vm801, %v468, 0
        %v863 = vsel %vm801, %v469, 0
        %v866 = vsel %vm801, %v470, 0
        %v869 = vsel %vm801, %v471, 0
        %v872 = vsel %vm801, %v472, 0
        %v875 = vsel %vm801, %v473, 0
        %v878 = vsel %vm801, %v474, 0
        %v881 = vsel %vm801, %v475, 0
        %v884 = vsel %vm801, %v476, 0
        %v887 = vsel %vm801, %v477, 0
        %v890 = vsel %vm801, %v478, 0
        %v893 = vsel %vm801, %v479, 0
        %v896 = vsel %vm801, %v480, 0
        %898 = vmatprep.subr.mxu0 %v434
        %899 = vmatpush1.msra.mxu0 %v433
        %900 = vmatprep.subr.mxu0 %v438
        %901 = vmatpush1.msra.mxu0 %v437
        %902 = vmatprep.subr.mxu0 %v442
        %903 = vmatpush1.msra.mxu0 %v441
        %904 = vmatprep.subr.mxu0 %v446
        %905 = vmatpush1.msra.mxu0 %v445
        %906 = vmatprep.subr.mxu0 0.0
        %907 = vmatpush1.msra.mxu0 0.0
        %908 = vmatprep.subr.mxu0 0.0
        %909 = vmatpush1.msra.mxu0 0.0
        %910 = vmatprep.subr.mxu0 0.0
        %911 = vmatpush1.msra.mxu0 0.0
        %912 = vmatprep.subr.mxu0 0.0
        %913 = vmatpush1.msra.mxu0 0.0
        %914 = vmatprep.subr.mxu0 0.0
        %915 = vmatpush1.msra.mxu0 0.0
        %916 = vmatprep.subr.mxu0 0.0
        %917 = vmatpush1.msra.mxu0 0.0
        %918 = vmatprep.subr.mxu0 0.0
        %919 = vmatpush1.msra.mxu0 0.0
        %920 = vmatprep.subr.mxu0 0.0
        %921 = vmatpush1.msra.mxu0 0.0
        %922 = vmatprep.subr.mxu0 0.0
        %923 = vmatpush1.msra.mxu0 0.0
        %924 = vmatprep.subr.mxu0 0.0
        %925 = vmatpush1.msra.mxu0 0.0
        %926 = vmatprep.subr.mxu0 0.0
        %927 = vmatpush1.msra.mxu0 0.0
        %928 = vmatprep.subr.mxu0 0.0
        %929 = vmatpush1.msra.mxu0 0.0
        %930 = vmatprep.subr.mxu0 0.0
        %931 = vmatpush1.msra.mxu0 0.0
        %932 = vmatprep.subr.mxu0 0.0
        %933 = vmatpush1.msra.mxu0 0.0
        %934 = vmatprep.subr.mxu0 0.0
        %935 = vmatpush1.msra.mxu0 0.0
        %936 = vmatprep.subr.mxu0 0.0
        %937 = vmatpush1.msra.mxu0 0.0
        %938 = vmatprep.subr.mxu0 0.0
        %939 = vmatpush1.msra.mxu0 0.0
        %940 = vmatprep.subr.mxu0 0.0
        %941 = vmatpush1.msra.mxu0 0.0
        %942 = vmatprep.subr.mxu0 0.0
        %943 = vmatpush1.msra.mxu0 0.0
        %944 = vmatprep.subr.mxu0 0.0
        %945 = vmatpush1.msra.mxu0 0.0
        %946 = vmatprep.subr.mxu0 0.0
        %947 = vmatpush1.msra.mxu0 0.0
        %948 = vmatprep.subr.mxu0 0.0
        %949 = vmatpush1.msra.mxu0 0.0
        %950 = vmatprep.subr.mxu0 0.0
        %951 = vmatpush1.msra.mxu0 0.0
        %952 = vmatprep.subr.mxu0 0.0
        %953 = vmatpush1.msra.mxu0 0.0
        %954 = vmatprep.subr.mxu0 0.0
        %955 = vmatpush1.msra.mxu0 0.0
        %956 = vmatprep.subr.mxu0 0.0
        %957 = vmatpush1.msra.mxu0 0.0
        %958 = vmatprep.subr.mxu0 0.0
        %959 = vmatpush1.msra.mxu0 0.0
        %960 = vmatprep.subr.mxu0 0.0
        %961 = vmatpush1.msra.mxu0 0.0
        %962 = vmatprep.mubr.f32.mxu0 0.0
        %963 = vmatmul.mubr.f32.gmra.mrb[0].mxu0 %v803
        %v964 = vpop.f32.mrb[0].mxu0
        %v965 = vadd.f32 %v644, %v964
        %v966 = vpop.f32.mrb[0].mxu0
        %v967 = vadd.f32 %v644, %v966
        %968 = vmatprep.mubr.f32.mxu0 0.0
        %969 = vmatmul.mubr.f32.gmra.mrb[0].mxu0 %v806
        %v970 = vpop.f32.mrb[0].mxu0
        %v971 = vadd.f32 %v649, %v970
        %v972 = vpop.f32.mrb[0].mxu0
        %v973 = vadd.f32 %v649, %v972
        %974 = vmatprep.mubr.f32.mxu0 0.0
        %975 = vmatmul.mubr.f32.gmra.mrb[0].mxu0 %v809
        %v976 = vpop.f32.mrb[0].mxu0
        %v977 = vadd.f32 %v654, %v976
        %v978 = vpop.f32.mrb[0].mxu0
        %v979 = vadd.f32 %v654, %v978
        %980 = vmatprep.mubr.f32.mxu0 0.0
        %981 = vmatmul.mubr.f32.gmra.mrb[0].mxu0 %v812
        %v982 = vpop.f32.mrb[0].mxu0
        %v983 = vadd.f32 %v659, %v982
        %v984 = vpop.f32.mrb[0].mxu0
        %v985 = vadd.f32 %v659, %v984
        %986 = vmatprep.mubr.f32.mxu0 0.0
        %987 = vmatmul.mubr.f32.gmra.mrb[0].mxu0 %v815
        %v988 = vpop.f32.mrb[0].mxu0
        %v989 = vadd.f32 %v664, %v988
        %v990 = vpop.f32.mrb[0].mxu0
        %v991 = vadd.f32 %v664, %v990
        %992 = vmatprep.mubr.f32.mxu0 0.0
        %993 = vmatmul.mubr.f32.gmra.mrb[0].mxu0 %v818
        %v994 = vpop.f32.mrb[0].mxu0
        %v995 = vadd.f32 %v669, %v994
        %v996 = vpop.f32.mrb[0].mxu0
        %v997 = vadd.f32 %v669, %v996
        %998 = vmatprep.mubr.f32.mxu0 0.0
        %999 = vmatmul.mubr.f32.gmra.mrb[0].mxu0 %v821
        %v1000 = vpop.f32.mrb[0].mxu0
        %v1001 = vadd.f32 %v674, %v1000
        %v1002 = vpop.f32.mrb[0].mxu0
        %v1003 = vadd.f32 %v674, %v1002
        %1004 = vmatprep.mubr.f32.mxu0 0.0
        %1005 = vmatmul.mubr.f32.gmra.mrb[0].mxu0 %v824
        %v1006 = vpop.f32.mrb[0].mxu0
        %v1007 = vadd.f32 %v679, %v1006
        %v1008 = vpop.f32.mrb[0].mxu0
        %v1009 = vadd.f32 %v679, %v1008
        %1010 = vmatprep.mubr.f32.mxu0 0.0
        %1011 = vmatmul.mubr.f32.gmra.mrb[0].mxu0 %v827
        %v1012 = vpop.f32.mrb[0].mxu0
        %v1013 = vadd.f32 %v684, %v1012
        %v1014 = vpop.f32.mrb[0].mxu0
        %v1015 = vadd.f32 %v684, %v1014
        %1016 = vmatprep.mubr.f32.mxu0 0.0
        %1017 = vmatmul.mubr.f32.gmra.mrb[0].mxu0 %v830
        %v1018 = vpop.f32.mrb[0].mxu0
        %v1019 = vadd.f32 %v689, %v1018
        %v1020 = vpop.f32.mrb[0].mxu0
        %v1021 = vadd.f32 %v689, %v1020
        %1022 = vmatprep.mubr.f32.mxu0 0.0
        %1023 = vmatmul.mubr.f32.gmra.mrb[0].mxu0 %v833
        %v1024 = vpop.f32.mrb[0].mxu0
        %v1025 = vadd.f32 %v694, %v1024
        %v1026 = vpop.f32.mrb[0].mxu0
        %v1027 = vadd.f32 %v694, %v1026
        %1028 = vmatprep.mubr.f32.mxu0 0.0
        %1029 = vmatmul.mubr.f32.gmra.mrb[0].mxu0 %v836
        %v1030 = vpop.f32.mrb[0].mxu0
        %v1031 = vadd.f32 %v699, %v1030
        %v1032 = vpop.f32.mrb[0].mxu0
        %v1033 = vadd.f32 %v699, %v1032
        %1034 = vmatprep.mubr.f32.mxu0 0.0
        %1035 = vmatmul.mubr.f32.gmra.mrb[0].mxu0 %v839
        %v1036 = vpop.f32.mrb[0].mxu0
        %v1037 = vadd.f32 %v704, %v1036
        %v1038 = vpop.f32.mrb[0].mxu0
        %v1039 = vadd.f32 %v704, %v1038
        %1040 = vmatprep.mubr.f32.mxu0 0.0
        %1041 = vmatmul.mubr.f32.gmra.mrb[0].mxu0 %v842
        %v1042 = vpop.f32.mrb[0].mxu0
        %v1043 = vadd.f32 %v709, %v1042
        %v1044 = vpop.f32.mrb[0].mxu0
        %v1045 = vadd.f32 %v709, %v1044
        %1046 = vmatprep.mubr.f32.mxu0 0.0
        %1047 = vmatmul.mubr.f32.gmra.mrb[0].mxu0 %v845
        %v1048 = vpop.f32.mrb[0].mxu0
        %v1049 = vadd.f32 %v714, %v1048
        %v1050 = vpop.f32.mrb[0].mxu0
        %v1051 = vadd.f32 %v714, %v1050
        %1052 = vmatprep.mubr.f32.mxu0 0.0
        %1053 = vmatmul.mubr.f32.gmra.mrb[0].mxu0 %v848
        %v1054 = vpop.f32.mrb[0].mxu0
        %v1055 = vadd.f32 %v719, %v1054
        %v1056 = vpop.f32.mrb[0].mxu0
        %v1057 = vadd.f32 %v719, %v1056
        %1058 = vmatprep.mubr.f32.mxu0 0.0
        %1059 = vmatmul.mubr.f32.gmra.mrb[0].mxu0 %v851
        %v1060 = vpop.f32.mrb[0].mxu0
        %v1061 = vadd.f32 %v724, %v1060
        %v1062 = vpop.f32.mrb[0].mxu0
        %v1063 = vadd.f32 %v724, %v1062
        %1064 = vmatprep.mubr.f32.mxu0 0.0
        %1065 = vmatmul.mubr.f32.gmra.mrb[0].mxu0 %v854
        %v1066 = vpop.f32.mrb[0].mxu0
        %v1067 = vadd.f32 %v729, %v1066
        %v1068 = vpop.f32.mrb[0].mxu0
        %v1069 = vadd.f32 %v729, %v1068
        %1070 = vmatprep.mubr.f32.mxu0 0.0
        %1071 = vmatmul.mubr.f32.gmra.mrb[0].mxu0 %v857
        %v1072 = vpop.f32.mrb[0].mxu0
        %v1073 = vadd.f32 %v734, %v1072
        %v1074 = vpop.f32.mrb[0].mxu0
        %v1075 = vadd.f32 %v734, %v1074
        %1076 = vmatprep.mubr.f32.mxu0 0.0
        %1077 = vmatmul.mubr.f32.gmra.mrb[0].mxu0 %v860
        %v1078 = vpop.f32.mrb[0].mxu0
        %v1079 = vadd.f32 %v739, %v1078
        %v1080 = vpop.f32.mrb[0].mxu0
        %v1081 = vadd.f32 %v739, %v1080
        %1082 = vmatprep.mubr.f32.mxu0 0.0
        %1083 = vmatmul.mubr.f32.gmra.mrb[0].mxu0 %v863
        %v1084 = vpop.f32.mrb[0].mxu0
        %v1085 = vadd.f32 %v744, %v1084
        %v1086 = vpop.f32.mrb[0].mxu0
        %v1087 = vadd.f32 %v744, %v1086
        %1088 = vmatprep.mubr.f32.mxu0 0.0
        %1089 = vmatmul.mubr.f32.gmra.mrb[0].mxu0 %v866
        %v1090 = vpop.f32.mrb[0].mxu0
        %v1091 = vadd.f32 %v749, %v1090
        %v1092 = vpop.f32.mrb[0].mxu0
        %v1093 = vadd.f32 %v749, %v1092
        %1094 = vmatprep.mubr.f32.mxu0 0.0
        %1095 = vmatmul.mubr.f32.gmra.mrb[0].mxu0 %v869
        %v1096 = vpop.f32.mrb[0].mxu0
        %v1097 = vadd.f32 %v754, %v1096
        %v1098 = vpop.f32.mrb[0].mxu0
        %v1099 = vadd.f32 %v754, %v1098
        %1100 = vmatprep.mubr.f32.mxu0 0.0
        %1101 = vmatmul.mubr.f32.gmra.mrb[0].mxu0 %v872
        %v1102 = vpop.f32.mrb[0].mxu0
        %v1103 = vadd.f32 %v759, %v1102
        %v1104 = vpop.f32.mrb[0].mxu0
        %v1105 = vadd.f32 %v759, %v1104
        %1106 = vmatprep.mubr.f32.mxu0 0.0
        %1107 = vmatmul.mubr.f32.gmra.mrb[0].mxu0 %v875
        %v1108 = vpop.f32.mrb[0].mxu0
        %v1109 = vadd.f32 %v764, %v1108
        %v1110 = vpop.f32.mrb[0].mxu0
        %v1111 = vadd.f32 %v764, %v1110
        %1112 = vmatprep.mubr.f32.mxu0 0.0
        %1113 = vmatmul.mubr.f32.gmra.mrb[0].mxu0 %v878
        %v1114 = vpop.f32.mrb[0].mxu0
        %v1115 = vadd.f32 %v769, %v1114
        %v1116 = vpop.f32.mrb[0].mxu0
        %v1117 = vadd.f32 %v769, %v1116
        %1118 = vmatprep.mubr.f32.mxu0 0.0
        %1119 = vmatmul.mubr.f32.gmra.mrb[0].mxu0 %v881
        %v1120 = vpop.f32.mrb[0].mxu0
        %v1121 = vadd.f32 %v774, %v1120
        %v1122 = vpop.f32.mrb[0].mxu0
        %v1123 = vadd.f32 %v774, %v1122
        %1124 = vmatprep.mubr.f32.mxu0 0.0
        %1125 = vmatmul.mubr.f32.gmra.mrb[0].mxu0 %v884
        %v1126 = vpop.f32.mrb[0].mxu0
        %v1127 = vadd.f32 %v779, %v1126
        %v1128 = vpop.f32.mrb[0].mxu0
        %v1129 = vadd.f32 %v779, %v1128
        %1130 = vmatprep.mubr.f32.mxu0 0.0
        %1131 = vmatmul.mubr.f32.gmra.mrb[0].mxu0 %v887
        %v1132 = vpop.f32.mrb[0].mxu0
        %v1133 = vadd.f32 %v784, %v1132
        %v1134 = vpop.f32.mrb[0].mxu0
        %v1135 = vadd.f32 %v784, %v1134
        %1136 = vmatprep.mubr.f32.mxu0 0.0
        %1137 = vmatmul.mubr.f32.gmra.mrb[0].mxu0 %v890
        %v1138 = vpop.f32.mrb[0].mxu0
        %v1139 = vadd.f32 %v789, %v1138
        %v1140 = vpop.f32.mrb[0].mxu0
        %v1141 = vadd.f32 %v789, %v1140
        %1142 = vmatprep.mubr.f32.mxu0 0.0
        %1143 = vmatmul.mubr.f32.gmra.mrb[0].mxu0 %v893
        %v1144 = vpop.f32.mrb[0].mxu0
        %v1145 = vadd.f32 %v794, %v1144
        %v1146 = vpop.f32.mrb[0].mxu0
        %v1147 = vadd.f32 %v794, %v1146
        %1148 = vmatprep.mubr.f32.mxu0 0.0
        %1149 = vmatmul.mubr.f32.gmra.mrb[0].mxu0 %v896
        %v1150 = vpop.f32.mrb[0].mxu0
        %v1151 = vadd.f32 %v799, %v1150
        %v1152 = vpop.f32.mrb[0].mxu0
        %v1153 = vadd.f32 %v799, %v1152
        %1154 = vdwg.mxu0
        %1155 = vmatprep.subr.mxu0 %v436
        %1156 = vmatpush1.msra.mxu0 %v435
        %1157 = vmatprep.subr.mxu0 %v440
        %1158 = vmatpush1.msra.mxu0 %v439
        %1159 = vmatprep.subr.mxu0 %v444
        %1160 = vmatpush1.msra.mxu0 %v443
        %1161 = vmatprep.subr.mxu0 %v448
        %1162 = vmatpush1.msra.mxu0 %v447
        %1163 = vmatprep.subr.mxu0 0.0
        %1164 = vmatpush1.msra.mxu0 0.0
        %1165 = vmatprep.subr.mxu0 0.0
        %1166 = vmatpush1.msra.mxu0 0.0
        %1167 = vmatprep.subr.mxu0 0.0
        %1168 = vmatpush1.msra.mxu0 0.0
        %1169 = vmatprep.subr.mxu0 0.0
        %1170 = vmatpush1.msra.mxu0 0.0
        %1171 = vmatprep.subr.mxu0 0.0
        %1172 = vmatpush1.msra.mxu0 0.0
        %1173 = vmatprep.subr.mxu0 0.0
        %1174 = vmatpush1.msra.mxu0 0.0
        %1175 = vmatprep.subr.mxu0 0.0
        %1176 = vmatpush1.msra.mxu0 0.0
        %1177 = vmatprep.subr.mxu0 0.0
        %1178 = vmatpush1.msra.mxu0 0.0
        %1179 = vmatprep.subr.mxu0 0.0
        %1180 = vmatpush1.msra.mxu0 0.0
        %1181 = vmatprep.subr.mxu0 0.0
        %1182 = vmatpush1.msra.mxu0 0.0
        %1183 = vmatprep.subr.mxu0 0.0
        %1184 = vmatpush1.msra.mxu0 0.0
        %1185 = vmatprep.subr.mxu0 0.0
        %1186 = vmatpush1.msra.mxu0 0.0
        %1187 = vmatprep.subr.mxu0 0.0
        %1188 = vmatpush1.msra.mxu0 0.0
        %1189 = vmatprep.subr.mxu0 0.0
        %1190 = vmatpush1.msra.mxu0 0.0
        %1191 = vmatprep.subr.mxu0 0.0
        %1192 = vmatpush1.msra.mxu0 0.0
        %1193 = vmatprep.subr.mxu0 0.0
        %1194 = vmatpush1.msra.mxu0 0.0
        %1195 = vmatprep.subr.mxu0 0.0
        %1196 = vmatpush1.msra.mxu0 0.0
        %1197 = vmatprep.subr.mxu0 0.0
        %1198 = vmatpush1.msra.mxu0 0.0
        %1199 = vmatprep.subr.mxu0 0.0
        %1200 = vmatpush1.msra.mxu0 0.0
        %1201 = vmatprep.subr.mxu0 0.0
        %1202 = vmatpush1.msra.mxu0 0.0
        %1203 = vmatprep.subr.mxu0 0.0
        %1204 = vmatpush1.msra.mxu0 0.0
        %1205 = vmatprep.subr.mxu0 0.0
        %1206 = vmatpush1.msra.mxu0 0.0
        %1207 = vmatprep.subr.mxu0 0.0
        %1208 = vmatpush1.msra.mxu0 0.0
        %1209 = vmatprep.subr.mxu0 0.0
        %1210 = vmatpush1.msra.mxu0 0.0
        %1211 = vmatprep.subr.mxu0 0.0
        %1212 = vmatpush1.msra.mxu0 0.0
        %1213 = vmatprep.subr.mxu0 0.0
        %1214 = vmatpush1.msra.mxu0 0.0
        %1215 = vmatprep.subr.mxu0 0.0
        %1216 = vmatpush1.msra.mxu0 0.0
        %1217 = vmatprep.subr.mxu0 0.0
        %1218 = vmatpush1.msra.mxu0 0.0
        %1219 = vmatprep.mubr.f32.mxu0 0.0
        %1220 = vmatmul.mubr.f32.gmra.mrb[0].mxu0 %v803
        %v1221 = vpop.f32.mrb[0].mxu0
        %v1222 = vadd.f32 %v644, %v1221
        %v1223 = vpop.f32.mrb[0].mxu0
        %v1224 = vadd.f32 %v644, %v1223
        %1225 = vmatprep.mubr.f32.mxu0 0.0
        %1226 = vmatmul.mubr.f32.gmra.mrb[0].mxu0 %v806
        %v1227 = vpop.f32.mrb[0].mxu0
        %v1228 = vadd.f32 %v649, %v1227
        %v1229 = vpop.f32.mrb[0].mxu0
        %v1230 = vadd.f32 %v649, %v1229
        %1231 = vmatprep.mubr.f32.mxu0 0.0
        %1232 = vmatmul.mubr.f32.gmra.mrb[0].mxu0 %v809
        %v1233 = vpop.f32.mrb[0].mxu0
        %v1234 = vadd.f32 %v654, %v1233
        %v1235 = vpop.f32.mrb[0].mxu0
        %v1236 = vadd.f32 %v654, %v1235
        %1237 = vmatprep.mubr.f32.mxu0 0.0
        %1238 = vmatmul.mubr.f32.gmra.mrb[0].mxu0 %v812
        %v1239 = vpop.f32.mrb[0].mxu0
        %v1240 = vadd.f32 %v659, %v1239
        %v1241 = vpop.f32.mrb[0].mxu0
        %v1242 = vadd.f32 %v659, %v1241
        %1243 = vmatprep.mubr.f32.mxu0 0.0
        %1244 = vmatmul.mubr.f32.gmra.mrb[0].mxu0 %v815
        %v1245 = vpop.f32.mrb[0].mxu0
        %v1246 = vadd.f32 %v664, %v1245
        %v1247 = vpop.f32.mrb[0].mxu0
        %v1248 = vadd.f32 %v664, %v1247
        %1249 = vmatprep.mubr.f32.mxu0 0.0
        %1250 = vmatmul.mubr.f32.gmra.mrb[0].mxu0 %v818
        %v1251 = vpop.f32.mrb[0].mxu0
        %v1252 = vadd.f32 %v669, %v1251
        %v1253 = vpop.f32.mrb[0].mxu0
        %v1254 = vadd.f32 %v669, %v1253
        %1255 = vmatprep.mubr.f32.mxu0 0.0
        %1256 = vmatmul.mubr.f32.gmra.mrb[0].mxu0 %v821
        %v1257 = vpop.f32.mrb[0].mxu0
        %v1258 = vadd.f32 %v674, %v1257
        %v1259 = vpop.f32.mrb[0].mxu0
        %v1260 = vadd.f32 %v674, %v1259
        %1261 = vmatprep.mubr.f32.mxu0 0.0
        %1262 = vmatmul.mubr.f32.gmra.mrb[0].mxu0 %v824
        %v1263 = vpop.f32.mrb[0].mxu0
        %v1264 = vadd.f32 %v679, %v1263
        %v1265 = vpop.f32.mrb[0].mxu0
        %v1266 = vadd.f32 %v679, %v1265
        %1267 = vmatprep.mubr.f32.mxu0 0.0
        %1268 = vmatmul.mubr.f32.gmra.mrb[0].mxu0 %v827
        %v1269 = vpop.f32.mrb[0].mxu0
        %v1270 = vadd.f32 %v684, %v1269
        %v1271 = vpop.f32.mrb[0].mxu0
        %v1272 = vadd.f32 %v684, %v1271
        %1273 = vmatprep.mubr.f32.mxu0 0.0
        %1274 = vmatmul.mubr.f32.gmra.mrb[0].mxu0 %v830
        %v1275 = vpop.f32.mrb[0].mxu0
        %v1276 = vadd.f32 %v689, %v1275
        %v1277 = vpop.f32.mrb[0].mxu0
        %v1278 = vadd.f32 %v689, %v1277
        %1279 = vmatprep.mubr.f32.mxu0 0.0
        %1280 = vmatmul.mubr.f32.gmra.mrb[0].mxu0 %v833
        %v1281 = vpop.f32.mrb[0].mxu0
        %v1282 = vadd.f32 %v694, %v1281
        %v1283 = vpop.f32.mrb[0].mxu0
        %v1284 = vadd.f32 %v694, %v1283
        %1285 = vmatprep.mubr.f32.mxu0 0.0
        %1286 = vmatmul.mubr.f32.gmra.mrb[0].mxu0 %v836
        %v1287 = vpop.f32.mrb[0].mxu0
        %v1288 = vadd.f32 %v699, %v1287
        %v1289 = vpop.f32.mrb[0].mxu0
        %v1290 = vadd.f32 %v699, %v1289
        %1291 = vmatprep.mubr.f32.mxu0 0.0
        %1292 = vmatmul.mubr.f32.gmra.mrb[0].mxu0 %v839
        %v1293 = vpop.f32.mrb[0].mxu0
        %v1294 = vadd.f32 %v704, %v1293
        %v1295 = vpop.f32.mrb[0].mxu0
        %v1296 = vadd.f32 %v704, %v1295
        %1297 = vmatprep.mubr.f32.mxu0 0.0
        %1298 = vmatmul.mubr.f32.gmra.mrb[0].mxu0 %v842
        %v1299 = vpop.f32.mrb[0].mxu0
        %v1300 = vadd.f32 %v709, %v1299
        %v1301 = vpop.f32.mrb[0].mxu0
        %v1302 = vadd.f32 %v709, %v1301
        %1303 = vmatprep.mubr.f32.mxu0 0.0
        %1304 = vmatmul.mubr.f32.gmra.mrb[0].mxu0 %v845
        %v1305 = vpop.f32.mrb[0].mxu0
        %v1306 = vadd.f32 %v714, %v1305
        %v1307 = vpop.f32.mrb[0].mxu0
        %v1308 = vadd.f32 %v714, %v1307
        %1309 = vmatprep.mubr.f32.mxu0 0.0
        %1310 = vmatmul.mubr.f32.gmra.mrb[0].mxu0 %v848
        %v1311 = vpop.f32.mrb[0].mxu0
        %v1312 = vadd.f32 %v719, %v1311
        %v1313 = vpop.f32.mrb[0].mxu0
        %v1314 = vadd.f32 %v719, %v1313
        %1315 = vmatprep.mubr.f32.mxu0 0.0
        %1316 = vmatmul.mubr.f32.gmra.mrb[0].mxu0 %v851
        %v1317 = vpop.f32.mrb[0].mxu0
        %v1318 = vadd.f32 %v724, %v1317
        %v1319 = vpop.f32.mrb[0].mxu0
        %v1320 = vadd.f32 %v724, %v1319
        %1321 = vmatprep.mubr.f32.mxu0 0.0
        %1322 = vmatmul.mubr.f32.gmra.mrb[0].mxu0 %v854
        %v1323 = vpop.f32.mrb[0].mxu0
        %v1324 = vadd.f32 %v729, %v1323
        %v1325 = vpop.f32.mrb[0].mxu0
        %v1326 = vadd.f32 %v729, %v1325
        %1327 = vmatprep.mubr.f32.mxu0 0.0
        %1328 = vmatmul.mubr.f32.gmra.mrb[0].mxu0 %v857
        %v1329 = vpop.f32.mrb[0].mxu0
        %v1330 = vadd.f32 %v734, %v1329
        %v1331 = vpop.f32.mrb[0].mxu0
        %v1332 = vadd.f32 %v734, %v1331
        %1333 = vmatprep.mubr.f32.mxu0 0.0
        %1334 = vmatmul.mubr.f32.gmra.mrb[0].mxu0 %v860
        %v1335 = vpop.f32.mrb[0].mxu0
        %v1336 = vadd.f32 %v739, %v1335
        %v1337 = vpop.f32.mrb[0].mxu0
        %v1338 = vadd.f32 %v739, %v1337
        %1339 = vmatprep.mubr.f32.mxu0 0.0
        %1340 = vmatmul.mubr.f32.gmra.mrb[0].mxu0 %v863
        %v1341 = vpop.f32.mrb[0].mxu0
        %v1342 = vadd.f32 %v744, %v1341
        %v1343 = vpop.f32.mrb[0].mxu0
        %v1344 = vadd.f32 %v744, %v1343
        %1345 = vmatprep.mubr.f32.mxu0 0.0
        %1346 = vmatmul.mubr.f32.gmra.mrb[0].mxu0 %v866
        %v1347 = vpop.f32.mrb[0].mxu0
        %v1348 = vadd.f32 %v749, %v1347
        %v1349 = vpop.f32.mrb[0].mxu0
        %v1350 = vadd.f32 %v749, %v1349
        %1351 = vmatprep.mubr.f32.mxu0 0.0
        %1352 = vmatmul.mubr.f32.gmra.mrb[0].mxu0 %v869
        %v1353 = vpop.f32.mrb[0].mxu0
        %v1354 = vadd.f32 %v754, %v1353
        %v1355 = vpop.f32.mrb[0].mxu0
        %v1356 = vadd.f32 %v754, %v1355
        %1357 = vmatprep.mubr.f32.mxu0 0.0
        %1358 = vmatmul.mubr.f32.gmra.mrb[0].mxu0 %v872
        %v1359 = vpop.f32.mrb[0].mxu0
        %v1360 = vadd.f32 %v759, %v1359
        %v1361 = vpop.f32.mrb[0].mxu0
        %v1362 = vadd.f32 %v759, %v1361
        %1363 = vmatprep.mubr.f32.mxu0 0.0
        %1364 = vmatmul.mubr.f32.gmra.mrb[0].mxu0 %v875
        %v1365 = vpop.f32.mrb[0].mxu0
        %v1366 = vadd.f32 %v764, %v1365
        %v1367 = vpop.f32.mrb[0].mxu0
        %v1368 = vadd.f32 %v764, %v1367
        %1369 = vmatprep.mubr.f32.mxu0 0.0
        %1370 = vmatmul.mubr.f32.gmra.mrb[0].mxu0 %v878
        %v1371 = vpop.f32.mrb[0].mxu0
        %v1372 = vadd.f32 %v769, %v1371
        %v1373 = vpop.f32.mrb[0].mxu0
        %v1374 = vadd.f32 %v769, %v1373
        %1375 = vmatprep.mubr.f32.mxu0 0.0
        %1376 = vmatmul.mubr.f32.gmra.mrb[0].mxu0 %v881
        %v1377 = vpop.f32.mrb[0].mxu0
        %v1378 = vadd.f32 %v774, %v1377
        %v1379 = vpop.f32.mrb[0].mxu0
        %v1380 = vadd.f32 %v774, %v1379
        %1381 = vmatprep.mubr.f32.mxu0 0.0
        %1382 = vmatmul.mubr.f32.gmra.mrb[0].mxu0 %v884
        %v1383 = vpop.f32.mrb[0].mxu0
        %v1384 = vadd.f32 %v779, %v1383
        %v1385 = vpop.f32.mrb[0].mxu0
        %v1386 = vadd.f32 %v779, %v1385
        %1387 = vmatprep.mubr.f32.mxu0 0.0
        %1388 = vmatmul.mubr.f32.gmra.mrb[0].mxu0 %v887
        %v1389 = vpop.f32.mrb[0].mxu0
        %v1390 = vadd.f32 %v784, %v1389
        %v1391 = vpop.f32.mrb[0].mxu0
        %v1392 = vadd.f32 %v784, %v1391
        %1393 = vmatprep.mubr.f32.mxu0 0.0
        %1394 = vmatmul.mubr.f32.gmra.mrb[0].mxu0 %v890
        %v1395 = vpop.f32.mrb[0].mxu0
        %v1396 = vadd.f32 %v789, %v1395
        %v1397 = vpop.f32.mrb[0].mxu0
        %v1398 = vadd.f32 %v789, %v1397
        %1399 = vmatprep.mubr.f32.mxu0 0.0
        %1400 = vmatmul.mubr.f32.gmra.mrb[0].mxu0 %v893
        %v1401 = vpop.f32.mrb[0].mxu0
        %v1402 = vadd.f32 %v794, %v1401
        %v1403 = vpop.f32.mrb[0].mxu0
        %v1404 = vadd.f32 %v794, %v1403
        %1405 = vmatprep.mubr.f32.mxu0 0.0
        %1406 = vmatmul.mubr.f32.gmra.mrb[0].mxu0 %v896
        %v1407 = vpop.f32.mrb[0].mxu0
        %v1408 = vadd.f32 %v799, %v1407
        %v1409 = vpop.f32.mrb[0].mxu0
        %v1410 = vadd.f32 %v799, %v1409
        %1411 = vdwg.mxu0
        %1412 = vmatprep.subr.mxu0 %v967
        %1413 = vmatpush1.msra.mxu0 %v965
        %1414 = vmatprep.subr.mxu0 %v973
        %1415 = vmatpush1.msra.mxu0 %v971
        %1416 = vmatprep.subr.mxu0 %v979
        %1417 = vmatpush1.msra.mxu0 %v977
        %1418 = vmatprep.subr.mxu0 %v985
        %1419 = vmatpush1.msra.mxu0 %v983
        %1420 = vmatprep.subr.mxu0 %v991
        %1421 = vmatpush1.msra.mxu0 %v989
        %1422 = vmatprep.subr.mxu0 %v997
        %1423 = vmatpush1.msra.mxu0 %v995
        %1424 = vmatprep.subr.mxu0 %v1003
        %1425 = vmatpush1.msra.mxu0 %v1001
        %1426 = vmatprep.subr.mxu0 %v1009
        %1427 = vmatpush1.msra.mxu0 %v1007
        %1428 = vmatprep.subr.mxu0 %v1015
        %1429 = vmatpush1.msra.mxu0 %v1013
        %1430 = vmatprep.subr.mxu0 %v1021
        %1431 = vmatpush1.msra.mxu0 %v1019
        %1432 = vmatprep.subr.mxu0 %v1027
        %1433 = vmatpush1.msra.mxu0 %v1025
        %1434 = vmatprep.subr.mxu0 %v1033
        %1435 = vmatpush1.msra.mxu0 %v1031
        %1436 = vmatprep.subr.mxu0 %v1039
        %1437 = vmatpush1.msra.mxu0 %v1037
        %1438 = vmatprep.subr.mxu0 %v1045
        %1439 = vmatpush1.msra.mxu0 %v1043
        %1440 = vmatprep.subr.mxu0 %v1051
        %1441 = vmatpush1.msra.mxu0 %v1049
        %1442 = vmatprep.subr.mxu0 %v1057
        %1443 = vmatpush1.msra.mxu0 %v1055
        %1444 = vmatprep.subr.mxu0 %v1063
        %1445 = vmatpush1.msra.mxu0 %v1061
        %1446 = vmatprep.subr.mxu0 %v1069
        %1447 = vmatpush1.msra.mxu0 %v1067
        %1448 = vmatprep.subr.mxu0 %v1075
        %1449 = vmatpush1.msra.mxu0 %v1073
        %1450 = vmatprep.subr.mxu0 %v1081
        %1451 = vmatpush1.msra.mxu0 %v1079
        %1452 = vmatprep.subr.mxu0 %v1087
        %1453 = vmatpush1.msra.mxu0 %v1085
        %1454 = vmatprep.subr.mxu0 %v1093
        %1455 = vmatpush1.msra.mxu0 %v1091
        %1456 = vmatprep.subr.mxu0 %v1099
        %1457 = vmatpush1.msra.mxu0 %v1097
        %1458 = vmatprep.subr.mxu0 %v1105
        %1459 = vmatpush1.msra.mxu0 %v1103
        %1460 = vmatprep.subr.mxu0 %v1111
        %1461 = vmatpush1.msra.mxu0 %v1109
        %1462 = vmatprep.subr.mxu0 %v1117
        %1463 = vmatpush1.msra.mxu0 %v1115
        %1464 = vmatprep.subr.mxu0 %v1123
        %1465 = vmatpush1.msra.mxu0 %v1121
        %1466 = vmatprep.subr.mxu0 %v1129
        %1467 = vmatpush1.msra.mxu0 %v1127
        %1468 = vmatprep.subr.mxu0 %v1135
        %1469 = vmatpush1.msra.mxu0 %v1133
        %1470 = vmatprep.subr.mxu0 %v1141
        %1471 = vmatpush1.msra.mxu0 %v1139
        %1472 = vmatprep.subr.mxu0 %v1147
        %1473 = vmatpush1.msra.mxu0 %v1145
        %1474 = vmatprep.subr.mxu0 %v1153
        %1475 = vmatpush1.msra.mxu0 %v1151
        %1476 = vmatprep.mubr.f32.mxu0 %v514
        %1477 = vmatmul.mubr.f32.gmra.mrb[0].mxu0 %v513
        %v1478 = vpop.f32.mrb[0].mxu0
        %v1479 = vadd.f32 0.0, %v1478
        %v1480 = vpop.f32.mrb[0].mxu0
        %v1481 = vadd.f32 0.0, %v1480
        %1482 = vmatprep.mubr.f32.mxu0 %v516
        %1483 = vmatmul.mubr.f32.gmra.mrb[0].mxu0 %v515
        %v1484 = vpop.f32.mrb[0].mxu0
        %v1485 = vadd.f32 0.0, %v1484
        %v1486 = vpop.f32.mrb[0].mxu0
        %v1487 = vadd.f32 0.0, %v1486
        %1488 = vmatprep.mubr.f32.mxu0 %v518
        %1489 = vmatmul.mubr.f32.gmra.mrb[0].mxu0 %v517
        %v1490 = vpop.f32.mrb[0].mxu0
        %v1491 = vadd.f32 0.0, %v1490
        %v1492 = vpop.f32.mrb[0].mxu0
        %v1493 = vadd.f32 0.0, %v1492
        %1494 = vmatprep.mubr.f32.mxu0 %v520
        %1495 = vmatmul.mubr.f32.gmra.mrb[0].mxu0 %v519
        %v1496 = vpop.f32.mrb[0].mxu0
        %v1497 = vadd.f32 0.0, %v1496
        %v1498 = vpop.f32.mrb[0].mxu0
        %v1499 = vadd.f32 0.0, %v1498
        %1500 = vmatprep.mubr.f32.mxu0 %v522
        %1501 = vmatmul.mubr.f32.gmra.mrb[0].mxu0 %v521
        %v1502 = vpop.f32.mrb[0].mxu0
        %v1503 = vadd.f32 0.0, %v1502
        %v1504 = vpop.f32.mrb[0].mxu0
        %v1505 = vadd.f32 0.0, %v1504
        %1506 = vmatprep.mubr.f32.mxu0 %v524
        %1507 = vmatmul.mubr.f32.gmra.mrb[0].mxu0 %v523
        %v1508 = vpop.f32.mrb[0].mxu0
        %v1509 = vadd.f32 0.0, %v1508
        %v1510 = vpop.f32.mrb[0].mxu0
        %v1511 = vadd.f32 0.0, %v1510
        %1512 = vmatprep.mubr.f32.mxu0 %v526
        %1513 = vmatmul.mubr.f32.gmra.mrb[0].mxu0 %v525
        %v1514 = vpop.f32.mrb[0].mxu0
        %v1515 = vadd.f32 0.0, %v1514
        %v1516 = vpop.f32.mrb[0].mxu0
        %v1517 = vadd.f32 0.0, %v1516
        %1518 = vmatprep.mubr.f32.mxu0 %v528
        %1519 = vmatmul.mubr.f32.gmra.mrb[0].mxu0 %v527
        %v1520 = vpop.f32.mrb[0].mxu0
        %v1521 = vadd.f32 0.0, %v1520
        %v1522 = vpop.f32.mrb[0].mxu0
        %v1523 = vadd.f32 0.0, %v1522
        %1524 = vmatprep.mubr.f32.mxu0 %v530
        %1525 = vmatmul.mubr.f32.gmra.mrb[0].mxu0 %v529
        %v1526 = vpop.f32.mrb[0].mxu0
        %v1527 = vadd.f32 0.0, %v1526
        %v1528 = vpop.f32.mrb[0].mxu0
        %v1529 = vadd.f32 0.0, %v1528
        %1530 = vmatprep.mubr.f32.mxu0 %v532
        %1531 = vmatmul.mubr.f32.gmra.mrb[0].mxu0 %v531
        %v1532 = vpop.f32.mrb[0].mxu0
        %v1533 = vadd.f32 0.0, %v1532
        %v1534 = vpop.f32.mrb[0].mxu0
        %v1535 = vadd.f32 0.0, %v1534
        %1536 = vmatprep.mubr.f32.mxu0 %v534
        %1537 = vmatmul.mubr.f32.gmra.mrb[0].mxu0 %v533
        %v1538 = vpop.f32.mrb[0].mxu0
        %v1539 = vadd.f32 0.0, %v1538
        %v1540 = vpop.f32.mrb[0].mxu0
        %v1541 = vadd.f32 0.0, %v1540
        %1542 = vmatprep.mubr.f32.mxu0 %v536
        %1543 = vmatmul.mubr.f32.gmra.mrb[0].mxu0 %v535
        %v1544 = vpop.f32.mrb[0].mxu0
        %v1545 = vadd.f32 0.0, %v1544
        %v1546 = vpop.f32.mrb[0].mxu0
        %v1547 = vadd.f32 0.0, %v1546
        %1548 = vmatprep.mubr.f32.mxu0 %v538
        %1549 = vmatmul.mubr.f32.gmra.mrb[0].mxu0 %v537
        %v1550 = vpop.f32.mrb[0].mxu0
        %v1551 = vadd.f32 0.0, %v1550
        %v1552 = vpop.f32.mrb[0].mxu0
        %v1553 = vadd.f32 0.0, %v1552
        %1554 = vmatprep.mubr.f32.mxu0 %v540
        %1555 = vmatmul.mubr.f32.gmra.mrb[0].mxu0 %v539
        %v1556 = vpop.f32.mrb[0].mxu0
        %v1557 = vadd.f32 0.0, %v1556
        %v1558 = vpop.f32.mrb[0].mxu0
        %v1559 = vadd.f32 0.0, %v1558
        %1560 = vmatprep.mubr.f32.mxu0 %v542
        %1561 = vmatmul.mubr.f32.gmra.mrb[0].mxu0 %v541
        %v1562 = vpop.f32.mrb[0].mxu0
        %v1563 = vadd.f32 0.0, %v1562
        %v1564 = vpop.f32.mrb[0].mxu0
        %v1565 = vadd.f32 0.0, %v1564
        %1566 = vmatprep.mubr.f32.mxu0 %v544
        %1567 = vmatmul.mubr.f32.gmra.mrb[0].mxu0 %v543
        %v1568 = vpop.f32.mrb[0].mxu0
        %v1569 = vadd.f32 0.0, %v1568
        %v1570 = vpop.f32.mrb[0].mxu0
        %v1571 = vadd.f32 0.0, %v1570
        %1572 = vmatprep.mubr.f32.mxu0 %v546
        %1573 = vmatmul.mubr.f32.gmra.mrb[0].mxu0 %v545
        %v1574 = vpop.f32.mrb[0].mxu0
        %v1575 = vadd.f32 0.0, %v1574
        %v1576 = vpop.f32.mrb[0].mxu0
        %v1577 = vadd.f32 0.0, %v1576
        %1578 = vmatprep.mubr.f32.mxu0 %v548
        %1579 = vmatmul.mubr.f32.gmra.mrb[0].mxu0 %v547
        %v1580 = vpop.f32.mrb[0].mxu0
        %v1581 = vadd.f32 0.0, %v1580
        %v1582 = vpop.f32.mrb[0].mxu0
        %v1583 = vadd.f32 0.0, %v1582
        %1584 = vmatprep.mubr.f32.mxu0 %v550
        %1585 = vmatmul.mubr.f32.gmra.mrb[0].mxu0 %v549
        %v1586 = vpop.f32.mrb[0].mxu0
        %v1587 = vadd.f32 0.0, %v1586
        %v1588 = vpop.f32.mrb[0].mxu0
        %v1589 = vadd.f32 0.0, %v1588
        %1590 = vmatprep.mubr.f32.mxu0 %v552
        %1591 = vmatmul.mubr.f32.gmra.mrb[0].mxu0 %v551
        %v1592 = vpop.f32.mrb[0].mxu0
        %v1593 = vadd.f32 0.0, %v1592
        %v1594 = vpop.f32.mrb[0].mxu0
        %v1595 = vadd.f32 0.0, %v1594
        %1596 = vmatprep.mubr.f32.mxu0 %v554
        %1597 = vmatmul.mubr.f32.gmra.mrb[0].mxu0 %v553
        %v1598 = vpop.f32.mrb[0].mxu0
        %v1599 = vadd.f32 0.0, %v1598
        %v1600 = vpop.f32.mrb[0].mxu0
        %v1601 = vadd.f32 0.0, %v1600
        %1602 = vmatprep.mubr.f32.mxu0 %v556
        %1603 = vmatmul.mubr.f32.gmra.mrb[0].mxu0 %v555
        %v1604 = vpop.f32.mrb[0].mxu0
        %v1605 = vadd.f32 0.0, %v1604
        %v1606 = vpop.f32.mrb[0].mxu0
        %v1607 = vadd.f32 0.0, %v1606
        %1608 = vmatprep.mubr.f32.mxu0 %v558
        %1609 = vmatmul.mubr.f32.gmra.mrb[0].mxu0 %v557
        %v1610 = vpop.f32.mrb[0].mxu0
        %v1611 = vadd.f32 0.0, %v1610
        %v1612 = vpop.f32.mrb[0].mxu0
        %v1613 = vadd.f32 0.0, %v1612
        %1614 = vmatprep.mubr.f32.mxu0 %v560
        %1615 = vmatmul.mubr.f32.gmra.mrb[0].mxu0 %v559
        %v1616 = vpop.f32.mrb[0].mxu0
        %v1617 = vadd.f32 0.0, %v1616
        %v1618 = vpop.f32.mrb[0].mxu0
        %v1619 = vadd.f32 0.0, %v1618
        %1620 = vmatprep.mubr.f32.mxu0 %v562
        %1621 = vmatmul.mubr.f32.gmra.mrb[0].mxu0 %v561
        %v1622 = vpop.f32.mrb[0].mxu0
        %v1623 = vadd.f32 0.0, %v1622
        %v1624 = vpop.f32.mrb[0].mxu0
        %v1625 = vadd.f32 0.0, %v1624
        %1626 = vmatprep.mubr.f32.mxu0 %v564
        %1627 = vmatmul.mubr.f32.gmra.mrb[0].mxu0 %v563
        %v1628 = vpop.f32.mrb[0].mxu0
        %v1629 = vadd.f32 0.0, %v1628
        %v1630 = vpop.f32.mrb[0].mxu0
        %v1631 = vadd.f32 0.0, %v1630
        %1632 = vmatprep.mubr.f32.mxu0 %v566
        %1633 = vmatmul.mubr.f32.gmra.mrb[0].mxu0 %v565
        %v1634 = vpop.f32.mrb[0].mxu0
        %v1635 = vadd.f32 0.0, %v1634
        %v1636 = vpop.f32.mrb[0].mxu0
        %v1637 = vadd.f32 0.0, %v1636
        %1638 = vmatprep.mubr.f32.mxu0 %v568
        %1639 = vmatmul.mubr.f32.gmra.mrb[0].mxu0 %v567
        %v1640 = vpop.f32.mrb[0].mxu0
        %v1641 = vadd.f32 0.0, %v1640
        %v1642 = vpop.f32.mrb[0].mxu0
        %v1643 = vadd.f32 0.0, %v1642
        %1644 = vmatprep.mubr.f32.mxu0 %v570
        %1645 = vmatmul.mubr.f32.gmra.mrb[0].mxu0 %v569
        %v1646 = vpop.f32.mrb[0].mxu0
        %v1647 = vadd.f32 0.0, %v1646
        %v1648 = vpop.f32.mrb[0].mxu0
        %v1649 = vadd.f32 0.0, %v1648
        %1650 = vmatprep.mubr.f32.mxu0 %v572
        %1651 = vmatmul.mubr.f32.gmra.mrb[0].mxu0 %v571
        %v1652 = vpop.f32.mrb[0].mxu0
        %v1653 = vadd.f32 0.0, %v1652
        %v1654 = vpop.f32.mrb[0].mxu0
        %v1655 = vadd.f32 0.0, %v1654
        %1656 = vmatprep.mubr.f32.mxu0 %v574
        %1657 = vmatmul.mubr.f32.gmra.mrb[0].mxu0 %v573
        %v1658 = vpop.f32.mrb[0].mxu0
        %v1659 = vadd.f32 0.0, %v1658
        %v1660 = vpop.f32.mrb[0].mxu0
        %v1661 = vadd.f32 0.0, %v1660
        %1662 = vmatprep.mubr.f32.mxu0 %v576
        %1663 = vmatmul.mubr.f32.gmra.mrb[0].mxu0 %v575
        %v1664 = vpop.f32.mrb[0].mxu0
        %v1665 = vadd.f32 0.0, %v1664
        %v1666 = vpop.f32.mrb[0].mxu0
        %v1667 = vadd.f32 0.0, %v1666
        %1668 = vdwg.mxu0
        %1669 = vmatprep.subr.mxu0 %v1224
        %1670 = vmatpush1.msra.mxu0 %v1222
        %1671 = vmatprep.subr.mxu0 %v1230
        %1672 = vmatpush1.msra.mxu0 %v1228
        %1673 = vmatprep.subr.mxu0 %v1236
        %1674 = vmatpush1.msra.mxu0 %v1234
        %1675 = vmatprep.subr.mxu0 %v1242
        %1676 = vmatpush1.msra.mxu0 %v1240
        %1677 = vmatprep.subr.mxu0 %v1248
        %1678 = vmatpush1.msra.mxu0 %v1246
        %1679 = vmatprep.subr.mxu0 %v1254
        %1680 = vmatpush1.msra.mxu0 %v1252
        %1681 = vmatprep.subr.mxu0 %v1260
        %1682 = vmatpush1.msra.mxu0 %v1258
        %1683 = vmatprep.subr.mxu0 %v1266
        %1684 = vmatpush1.msra.mxu0 %v1264
        %1685 = vmatprep.subr.mxu0 %v1272
        %1686 = vmatpush1.msra.mxu0 %v1270
        %1687 = vmatprep.subr.mxu0 %v1278
        %1688 = vmatpush1.msra.mxu0 %v1276
        %1689 = vmatprep.subr.mxu0 %v1284
        %1690 = vmatpush1.msra.mxu0 %v1282
        %1691 = vmatprep.subr.mxu0 %v1290
        %1692 = vmatpush1.msra.mxu0 %v1288
        %1693 = vmatprep.subr.mxu0 %v1296
        %1694 = vmatpush1.msra.mxu0 %v1294
        %1695 = vmatprep.subr.mxu0 %v1302
        %1696 = vmatpush1.msra.mxu0 %v1300
        %1697 = vmatprep.subr.mxu0 %v1308
        %1698 = vmatpush1.msra.mxu0 %v1306
        %1699 = vmatprep.subr.mxu0 %v1314
        %1700 = vmatpush1.msra.mxu0 %v1312
        %1701 = vmatprep.subr.mxu0 %v1320
        %1702 = vmatpush1.msra.mxu0 %v1318
        %1703 = vmatprep.subr.mxu0 %v1326
        %1704 = vmatpush1.msra.mxu0 %v1324
        %1705 = vmatprep.subr.mxu0 %v1332
        %1706 = vmatpush1.msra.mxu0 %v1330
        %1707 = vmatprep.subr.mxu0 %v1338
        %1708 = vmatpush1.msra.mxu0 %v1336
        %1709 = vmatprep.subr.mxu0 %v1344
        %1710 = vmatpush1.msra.mxu0 %v1342
        %1711 = vmatprep.subr.mxu0 %v1350
        %1712 = vmatpush1.msra.mxu0 %v1348
        %1713 = vmatprep.subr.mxu0 %v1356
        %1714 = vmatpush1.msra.mxu0 %v1354
        %1715 = vmatprep.subr.mxu0 %v1362
        %1716 = vmatpush1.msra.mxu0 %v1360
        %1717 = vmatprep.subr.mxu0 %v1368
        %1718 = vmatpush1.msra.mxu0 %v1366
        %1719 = vmatprep.subr.mxu0 %v1374
        %1720 = vmatpush1.msra.mxu0 %v1372
        %1721 = vmatprep.subr.mxu0 %v1380
        %1722 = vmatpush1.msra.mxu0 %v1378
        %1723 = vmatprep.subr.mxu0 %v1386
        %1724 = vmatpush1.msra.mxu0 %v1384
        %1725 = vmatprep.subr.mxu0 %v1392
        %1726 = vmatpush1.msra.mxu0 %v1390
        %1727 = vmatprep.subr.mxu0 %v1398
        %1728 = vmatpush1.msra.mxu0 %v1396
        %1729 = vmatprep.subr.mxu0 %v1404
        %1730 = vmatpush1.msra.mxu0 %v1402
        %1731 = vmatprep.subr.mxu0 %v1410
        %1732 = vmatpush1.msra.mxu0 %v1408
        %1733 = vmatprep.mubr.f32.mxu0 %v514
        %1734 = vmatmul.mubr.f32.gmra.mrb[0].mxu0 %v513
        %v1735 = vpop.f32.mrb[0].mxu0
        %v1736 = vadd.f32 0.0, %v1735
        %v1737 = vpop.f32.mrb[0].mxu0
        %v1738 = vadd.f32 0.0, %v1737
        %1739 = vmatprep.mubr.f32.mxu0 %v516
        %1740 = vmatmul.mubr.f32.gmra.mrb[0].mxu0 %v515
        %v1741 = vpop.f32.mrb[0].mxu0
        %v1742 = vadd.f32 0.0, %v1741
        %v1743 = vpop.f32.mrb[0].mxu0
        %v1744 = vadd.f32 0.0, %v1743
        %1745 = vmatprep.mubr.f32.mxu0 %v518
        %1746 = vmatmul.mubr.f32.gmra.mrb[0].mxu0 %v517
        %v1747 = vpop.f32.mrb[0].mxu0
        %v1748 = vadd.f32 0.0, %v1747
        %v1749 = vpop.f32.mrb[0].mxu0
        %v1750 = vadd.f32 0.0, %v1749
        %1751 = vmatprep.mubr.f32.mxu0 %v520
        %1752 = vmatmul.mubr.f32.gmra.mrb[0].mxu0 %v519
        %v1753 = vpop.f32.mrb[0].mxu0
        %v1754 = vadd.f32 0.0, %v1753
        %v1755 = vpop.f32.mrb[0].mxu0
        %v1756 = vadd.f32 0.0, %v1755
        %1757 = vmatprep.mubr.f32.mxu0 %v522
        %1758 = vmatmul.mubr.f32.gmra.mrb[0].mxu0 %v521
        %v1759 = vpop.f32.mrb[0].mxu0
        %v1760 = vadd.f32 0.0, %v1759
        %v1761 = vpop.f32.mrb[0].mxu0
        %v1762 = vadd.f32 0.0, %v1761
        %1763 = vmatprep.mubr.f32.mxu0 %v524
        %1764 = vmatmul.mubr.f32.gmra.mrb[0].mxu0 %v523
        %v1765 = vpop.f32.mrb[0].mxu0
        %v1766 = vadd.f32 0.0, %v1765
        %v1767 = vpop.f32.mrb[0].mxu0
        %v1768 = vadd.f32 0.0, %v1767
        %1769 = vmatprep.mubr.f32.mxu0 %v526
        %1770 = vmatmul.mubr.f32.gmra.mrb[0].mxu0 %v525
        %v1771 = vpop.f32.mrb[0].mxu0
        %v1772 = vadd.f32 0.0, %v1771
        %v1773 = vpop.f32.mrb[0].mxu0
        %v1774 = vadd.f32 0.0, %v1773
        %1775 = vmatprep.mubr.f32.mxu0 %v528
        %1776 = vmatmul.mubr.f32.gmra.mrb[0].mxu0 %v527
        %v1777 = vpop.f32.mrb[0].mxu0
        %v1778 = vadd.f32 0.0, %v1777
        %v1779 = vpop.f32.mrb[0].mxu0
        %v1780 = vadd.f32 0.0, %v1779
        %1781 = vmatprep.mubr.f32.mxu0 %v530
        %1782 = vmatmul.mubr.f32.gmra.mrb[0].mxu0 %v529
        %v1783 = vpop.f32.mrb[0].mxu0
        %v1784 = vadd.f32 0.0, %v1783
        %v1785 = vpop.f32.mrb[0].mxu0
        %v1786 = vadd.f32 0.0, %v1785
        %1787 = vmatprep.mubr.f32.mxu0 %v532
        %1788 = vmatmul.mubr.f32.gmra.mrb[0].mxu0 %v531
        %v1789 = vpop.f32.mrb[0].mxu0
        %v1790 = vadd.f32 0.0, %v1789
        %v1791 = vpop.f32.mrb[0].mxu0
        %v1792 = vadd.f32 0.0, %v1791
        %1793 = vmatprep.mubr.f32.mxu0 %v534
        %1794 = vmatmul.mubr.f32.gmra.mrb[0].mxu0 %v533
        %v1795 = vpop.f32.mrb[0].mxu0
        %v1796 = vadd.f32 0.0, %v1795
        %v1797 = vpop.f32.mrb[0].mxu0
        %v1798 = vadd.f32 0.0, %v1797
        %1799 = vmatprep.mubr.f32.mxu0 %v536
        %1800 = vmatmul.mubr.f32.gmra.mrb[0].mxu0 %v535
        %v1801 = vpop.f32.mrb[0].mxu0
        %v1802 = vadd.f32 0.0, %v1801
        %v1803 = vpop.f32.mrb[0].mxu0
        %v1804 = vadd.f32 0.0, %v1803
        %1805 = vmatprep.mubr.f32.mxu0 %v538
        %1806 = vmatmul.mubr.f32.gmra.mrb[0].mxu0 %v537
        %v1807 = vpop.f32.mrb[0].mxu0
        %v1808 = vadd.f32 0.0, %v1807
        %v1809 = vpop.f32.mrb[0].mxu0
        %v1810 = vadd.f32 0.0, %v1809
        %1811 = vmatprep.mubr.f32.mxu0 %v540
        %1812 = vmatmul.mubr.f32.gmra.mrb[0].mxu0 %v539
        %v1813 = vpop.f32.mrb[0].mxu0
        %v1814 = vadd.f32 0.0, %v1813
        %v1815 = vpop.f32.mrb[0].mxu0
        %v1816 = vadd.f32 0.0, %v1815
        %1817 = vmatprep.mubr.f32.mxu0 %v542
        %1818 = vmatmul.mubr.f32.gmra.mrb[0].mxu0 %v541
        %v1819 = vpop.f32.mrb[0].mxu0
        %v1820 = vadd.f32 0.0, %v1819
        %v1821 = vpop.f32.mrb[0].mxu0
        %v1822 = vadd.f32 0.0, %v1821
        %1823 = vmatprep.mubr.f32.mxu0 %v544
        %1824 = vmatmul.mubr.f32.gmra.mrb[0].mxu0 %v543
        %v1825 = vpop.f32.mrb[0].mxu0
        %v1826 = vadd.f32 0.0, %v1825
        %v1827 = vpop.f32.mrb[0].mxu0
        %v1828 = vadd.f32 0.0, %v1827
        %1829 = vmatprep.mubr.f32.mxu0 %v546
        %1830 = vmatmul.mubr.f32.gmra.mrb[0].mxu0 %v545
        %v1831 = vpop.f32.mrb[0].mxu0
        %v1832 = vadd.f32 0.0, %v1831
        %v1833 = vpop.f32.mrb[0].mxu0
        %v1834 = vadd.f32 0.0, %v1833
        %1835 = vmatprep.mubr.f32.mxu0 %v548
        %1836 = vmatmul.mubr.f32.gmra.mrb[0].mxu0 %v547
        %v1837 = vpop.f32.mrb[0].mxu0
        %v1838 = vadd.f32 0.0, %v1837
        %v1839 = vpop.f32.mrb[0].mxu0
        %v1840 = vadd.f32 0.0, %v1839
        %1841 = vmatprep.mubr.f32.mxu0 %v550
        %1842 = vmatmul.mubr.f32.gmra.mrb[0].mxu0 %v549
        %v1843 = vpop.f32.mrb[0].mxu0
        %v1844 = vadd.f32 0.0, %v1843
        %v1845 = vpop.f32.mrb[0].mxu0
        %v1846 = vadd.f32 0.0, %v1845
        %1847 = vmatprep.mubr.f32.mxu0 %v552
        %1848 = vmatmul.mubr.f32.gmra.mrb[0].mxu0 %v551
        %v1849 = vpop.f32.mrb[0].mxu0
        %v1850 = vadd.f32 0.0, %v1849
        %v1851 = vpop.f32.mrb[0].mxu0
        %v1852 = vadd.f32 0.0, %v1851
        %1853 = vmatprep.mubr.f32.mxu0 %v554
        %1854 = vmatmul.mubr.f32.gmra.mrb[0].mxu0 %v553
        %v1855 = vpop.f32.mrb[0].mxu0
        %v1856 = vadd.f32 0.0, %v1855
        %v1857 = vpop.f32.mrb[0].mxu0
        %v1858 = vadd.f32 0.0, %v1857
        %1859 = vmatprep.mubr.f32.mxu0 %v556
        %1860 = vmatmul.mubr.f32.gmra.mrb[0].mxu0 %v555
        %v1861 = vpop.f32.mrb[0].mxu0
        %v1862 = vadd.f32 0.0, %v1861
        %v1863 = vpop.f32.mrb[0].mxu0
        %v1864 = vadd.f32 0.0, %v1863
        %1865 = vmatprep.mubr.f32.mxu0 %v558
        %1866 = vmatmul.mubr.f32.gmra.mrb[0].mxu0 %v557
        %v1867 = vpop.f32.mrb[0].mxu0
        %v1868 = vadd.f32 0.0, %v1867
        %v1869 = vpop.f32.mrb[0].mxu0
        %v1870 = vadd.f32 0.0, %v1869
        %1871 = vmatprep.mubr.f32.mxu0 %v560
        %1872 = vmatmul.mubr.f32.gmra.mrb[0].mxu0 %v559
        %v1873 = vpop.f32.mrb[0].mxu0
        %v1874 = vadd.f32 0.0, %v1873
        %v1875 = vpop.f32.mrb[0].mxu0
        %v1876 = vadd.f32 0.0, %v1875
        %1877 = vmatprep.mubr.f32.mxu0 %v562
        %1878 = vmatmul.mubr.f32.gmra.mrb[0].mxu0 %v561
        %v1879 = vpop.f32.mrb[0].mxu0
        %v1880 = vadd.f32 0.0, %v1879
        %v1881 = vpop.f32.mrb[0].mxu0
        %v1882 = vadd.f32 0.0, %v1881
        %1883 = vmatprep.mubr.f32.mxu0 %v564
        %1884 = vmatmul.mubr.f32.gmra.mrb[0].mxu0 %v563
        %v1885 = vpop.f32.mrb[0].mxu0
        %v1886 = vadd.f32 0.0, %v1885
        %v1887 = vpop.f32.mrb[0].mxu0
        %v1888 = vadd.f32 0.0, %v1887
        %1889 = vmatprep.mubr.f32.mxu0 %v566
        %1890 = vmatmul.mubr.f32.gmra.mrb[0].mxu0 %v565
        %v1891 = vpop.f32.mrb[0].mxu0
        %v1892 = vadd.f32 0.0, %v1891
        %v1893 = vpop.f32.mrb[0].mxu0
        %v1894 = vadd.f32 0.0, %v1893
        %1895 = vmatprep.mubr.f32.mxu0 %v568
        %1896 = vmatmul.mubr.f32.gmra.mrb[0].mxu0 %v567
        %v1897 = vpop.f32.mrb[0].mxu0
        %v1898 = vadd.f32 0.0, %v1897
        %v1899 = vpop.f32.mrb[0].mxu0
        %v1900 = vadd.f32 0.0, %v1899
        %1901 = vmatprep.mubr.f32.mxu0 %v570
        %1902 = vmatmul.mubr.f32.gmra.mrb[0].mxu0 %v569
        %v1903 = vpop.f32.mrb[0].mxu0
        %v1904 = vadd.f32 0.0, %v1903
        %v1905 = vpop.f32.mrb[0].mxu0
        %v1906 = vadd.f32 0.0, %v1905
        %1907 = vmatprep.mubr.f32.mxu0 %v572
        %1908 = vmatmul.mubr.f32.gmra.mrb[0].mxu0 %v571
        %v1909 = vpop.f32.mrb[0].mxu0
        %v1910 = vadd.f32 0.0, %v1909
        %v1911 = vpop.f32.mrb[0].mxu0
        %v1912 = vadd.f32 0.0, %v1911
        %1913 = vmatprep.mubr.f32.mxu0 %v574
        %1914 = vmatmul.mubr.f32.gmra.mrb[0].mxu0 %v573
        %v1915 = vpop.f32.mrb[0].mxu0
        %v1916 = vadd.f32 0.0, %v1915
        %v1917 = vpop.f32.mrb[0].mxu0
        %v1918 = vadd.f32 0.0, %v1917
        %1919 = vmatprep.mubr.f32.mxu0 %v576
        %1920 = vmatmul.mubr.f32.gmra.mrb[0].mxu0 %v575
        %v1921 = vpop.f32.mrb[0].mxu0
        %v1922 = vadd.f32 0.0, %v1921
        %v1923 = vpop.f32.mrb[0].mxu0
        %v1924 = vadd.f32 0.0, %v1923
        %1925 = vdwg.mxu0
        %1926 = vmatprep.subr.mxu0 %v967
        %1927 = vmatpush1.msra.mxu0 %v965
        %1928 = vmatprep.subr.mxu0 %v973
        %1929 = vmatpush1.msra.mxu0 %v971
        %1930 = vmatprep.subr.mxu0 %v979
        %1931 = vmatpush1.msra.mxu0 %v977
        %1932 = vmatprep.subr.mxu0 %v985
        %1933 = vmatpush1.msra.mxu0 %v983
        %1934 = vmatprep.subr.mxu0 %v991
        %1935 = vmatpush1.msra.mxu0 %v989
        %1936 = vmatprep.subr.mxu0 %v997
        %1937 = vmatpush1.msra.mxu0 %v995
        %1938 = vmatprep.subr.mxu0 %v1003
        %1939 = vmatpush1.msra.mxu0 %v1001
        %1940 = vmatprep.subr.mxu0 %v1009
        %1941 = vmatpush1.msra.mxu0 %v1007
        %1942 = vmatprep.subr.mxu0 %v1015
        %1943 = vmatpush1.msra.mxu0 %v1013
        %1944 = vmatprep.subr.mxu0 %v1021
        %1945 = vmatpush1.msra.mxu0 %v1019
        %1946 = vmatprep.subr.mxu0 %v1027
        %1947 = vmatpush1.msra.mxu0 %v1025
        %1948 = vmatprep.subr.mxu0 %v1033
        %1949 = vmatpush1.msra.mxu0 %v1031
        %1950 = vmatprep.subr.mxu0 %v1039
        %1951 = vmatpush1.msra.mxu0 %v1037
        %1952 = vmatprep.subr.mxu0 %v1045
        %1953 = vmatpush1.msra.mxu0 %v1043
        %1954 = vmatprep.subr.mxu0 %v1051
        %1955 = vmatpush1.msra.mxu0 %v1049
        %1956 = vmatprep.subr.mxu0 %v1057
        %1957 = vmatpush1.msra.mxu0 %v1055
        %1958 = vmatprep.subr.mxu0 %v1063
        %1959 = vmatpush1.msra.mxu0 %v1061
        %1960 = vmatprep.subr.mxu0 %v1069
        %1961 = vmatpush1.msra.mxu0 %v1067
        %1962 = vmatprep.subr.mxu0 %v1075
        %1963 = vmatpush1.msra.mxu0 %v1073
        %1964 = vmatprep.subr.mxu0 %v1081
        %1965 = vmatpush1.msra.mxu0 %v1079
        %1966 = vmatprep.subr.mxu0 %v1087
        %1967 = vmatpush1.msra.mxu0 %v1085
        %1968 = vmatprep.subr.mxu0 %v1093
        %1969 = vmatpush1.msra.mxu0 %v1091
        %1970 = vmatprep.subr.mxu0 %v1099
        %1971 = vmatpush1.msra.mxu0 %v1097
        %1972 = vmatprep.subr.mxu0 %v1105
        %1973 = vmatpush1.msra.mxu0 %v1103
        %1974 = vmatprep.subr.mxu0 %v1111
        %1975 = vmatpush1.msra.mxu0 %v1109
        %1976 = vmatprep.subr.mxu0 %v1117
        %1977 = vmatpush1.msra.mxu0 %v1115
        %1978 = vmatprep.subr.mxu0 %v1123
        %1979 = vmatpush1.msra.mxu0 %v1121
        %1980 = vmatprep.subr.mxu0 %v1129
        %1981 = vmatpush1.msra.mxu0 %v1127
        %1982 = vmatprep.subr.mxu0 %v1135
        %1983 = vmatpush1.msra.mxu0 %v1133
        %1984 = vmatprep.subr.mxu0 %v1141
        %1985 = vmatpush1.msra.mxu0 %v1139
        %1986 = vmatprep.subr.mxu0 %v1147
        %1987 = vmatpush1.msra.mxu0 %v1145
        %1988 = vmatprep.subr.mxu0 %v1153
        %1989 = vmatpush1.msra.mxu0 %v1151
        %1990 = vmatprep.mubr.f32.mxu0 %v578
        %1991 = vmatmul.mubr.f32.gmra.mrb[0].mxu0 %v577
        %v1992 = vpop.f32.mrb[0].mxu0
        %v1993 = vadd.f32 0.0, %v1992
        %v1994 = vpop.f32.mrb[0].mxu0
        %v1995 = vadd.f32 0.0, %v1994
        %1996 = vmatprep.mubr.f32.mxu0 %v580
        %1997 = vmatmul.mubr.f32.gmra.mrb[0].mxu0 %v579
        %v1998 = vpop.f32.mrb[0].mxu0
        %v1999 = vadd.f32 0.0, %v1998
        %v2000 = vpop.f32.mrb[0].mxu0
        %v2001 = vadd.f32 0.0, %v2000
        %2002 = vmatprep.mubr.f32.mxu0 %v582
        %2003 = vmatmul.mubr.f32.gmra.mrb[0].mxu0 %v581
        %v2004 = vpop.f32.mrb[0].mxu0
        %v2005 = vadd.f32 0.0, %v2004
        %v2006 = vpop.f32.mrb[0].mxu0
        %v2007 = vadd.f32 0.0, %v2006
        %2008 = vmatprep.mubr.f32.mxu0 %v584
        %2009 = vmatmul.mubr.f32.gmra.mrb[0].mxu0 %v583
        %v2010 = vpop.f32.mrb[0].mxu0
        %v2011 = vadd.f32 0.0, %v2010
        %v2012 = vpop.f32.mrb[0].mxu0
        %v2013 = vadd.f32 0.0, %v2012
        %2014 = vmatprep.mubr.f32.mxu0 %v586
        %2015 = vmatmul.mubr.f32.gmra.mrb[0].mxu0 %v585
        %v2016 = vpop.f32.mrb[0].mxu0
        %v2017 = vadd.f32 0.0, %v2016
        %v2018 = vpop.f32.mrb[0].mxu0
        %v2019 = vadd.f32 0.0, %v2018
        %2020 = vmatprep.mubr.f32.mxu0 %v588
        %2021 = vmatmul.mubr.f32.gmra.mrb[0].mxu0 %v587
        %v2022 = vpop.f32.mrb[0].mxu0
        %v2023 = vadd.f32 0.0, %v2022
        %v2024 = vpop.f32.mrb[0].mxu0
        %v2025 = vadd.f32 0.0, %v2024
        %2026 = vmatprep.mubr.f32.mxu0 %v590
        %2027 = vmatmul.mubr.f32.gmra.mrb[0].mxu0 %v589
        %v2028 = vpop.f32.mrb[0].mxu0
        %v2029 = vadd.f32 0.0, %v2028
        %v2030 = vpop.f32.mrb[0].mxu0
        %v2031 = vadd.f32 0.0, %v2030
        %2032 = vmatprep.mubr.f32.mxu0 %v592
        %2033 = vmatmul.mubr.f32.gmra.mrb[0].mxu0 %v591
        %v2034 = vpop.f32.mrb[0].mxu0
        %v2035 = vadd.f32 0.0, %v2034
        %v2036 = vpop.f32.mrb[0].mxu0
        %v2037 = vadd.f32 0.0, %v2036
        %2038 = vmatprep.mubr.f32.mxu0 %v594
        %2039 = vmatmul.mubr.f32.gmra.mrb[0].mxu0 %v593
        %v2040 = vpop.f32.mrb[0].mxu0
        %v2041 = vadd.f32 0.0, %v2040
        %v2042 = vpop.f32.mrb[0].mxu0
        %v2043 = vadd.f32 0.0, %v2042
        %2044 = vmatprep.mubr.f32.mxu0 %v596
        %2045 = vmatmul.mubr.f32.gmra.mrb[0].mxu0 %v595
        %v2046 = vpop.f32.mrb[0].mxu0
        %v2047 = vadd.f32 0.0, %v2046
        %v2048 = vpop.f32.mrb[0].mxu0
        %v2049 = vadd.f32 0.0, %v2048
        %2050 = vmatprep.mubr.f32.mxu0 %v598
        %2051 = vmatmul.mubr.f32.gmra.mrb[0].mxu0 %v597
        %v2052 = vpop.f32.mrb[0].mxu0
        %v2053 = vadd.f32 0.0, %v2052
        %v2054 = vpop.f32.mrb[0].mxu0
        %v2055 = vadd.f32 0.0, %v2054
        %2056 = vmatprep.mubr.f32.mxu0 %v600
        %2057 = vmatmul.mubr.f32.gmra.mrb[0].mxu0 %v599
        %v2058 = vpop.f32.mrb[0].mxu0
        %v2059 = vadd.f32 0.0, %v2058
        %v2060 = vpop.f32.mrb[0].mxu0
        %v2061 = vadd.f32 0.0, %v2060
        %2062 = vmatprep.mubr.f32.mxu0 %v602
        %2063 = vmatmul.mubr.f32.gmra.mrb[0].mxu0 %v601
        %v2064 = vpop.f32.mrb[0].mxu0
        %v2065 = vadd.f32 0.0, %v2064
        %v2066 = vpop.f32.mrb[0].mxu0
        %v2067 = vadd.f32 0.0, %v2066
        %2068 = vmatprep.mubr.f32.mxu0 %v604
        %2069 = vmatmul.mubr.f32.gmra.mrb[0].mxu0 %v603
        %v2070 = vpop.f32.mrb[0].mxu0
        %v2071 = vadd.f32 0.0, %v2070
        %v2072 = vpop.f32.mrb[0].mxu0
        %v2073 = vadd.f32 0.0, %v2072
        %2074 = vmatprep.mubr.f32.mxu0 %v606
        %2075 = vmatmul.mubr.f32.gmra.mrb[0].mxu0 %v605
        %v2076 = vpop.f32.mrb[0].mxu0
        %v2077 = vadd.f32 0.0, %v2076
        %v2078 = vpop.f32.mrb[0].mxu0
        %v2079 = vadd.f32 0.0, %v2078
        %2080 = vmatprep.mubr.f32.mxu0 %v608
        %2081 = vmatmul.mubr.f32.gmra.mrb[0].mxu0 %v607
        %v2082 = vpop.f32.mrb[0].mxu0
        %v2083 = vadd.f32 0.0, %v2082
        %v2084 = vpop.f32.mrb[0].mxu0
        %v2085 = vadd.f32 0.0, %v2084
        %2086 = vmatprep.mubr.f32.mxu0 %v610
        %2087 = vmatmul.mubr.f32.gmra.mrb[0].mxu0 %v609
        %v2088 = vpop.f32.mrb[0].mxu0
        %v2089 = vadd.f32 0.0, %v2088
        %v2090 = vpop.f32.mrb[0].mxu0
        %v2091 = vadd.f32 0.0, %v2090
        %2092 = vmatprep.mubr.f32.mxu0 %v612
        %2093 = vmatmul.mubr.f32.gmra.mrb[0].mxu0 %v611
        %v2094 = vpop.f32.mrb[0].mxu0
        %v2095 = vadd.f32 0.0, %v2094
        %v2096 = vpop.f32.mrb[0].mxu0
        %v2097 = vadd.f32 0.0, %v2096
        %2098 = vmatprep.mubr.f32.mxu0 %v614
        %2099 = vmatmul.mubr.f32.gmra.mrb[0].mxu0 %v613
        %v2100 = vpop.f32.mrb[0].mxu0
        %v2101 = vadd.f32 0.0, %v2100
        %v2102 = vpop.f32.mrb[0].mxu0
        %v2103 = vadd.f32 0.0, %v2102
        %2104 = vmatprep.mubr.f32.mxu0 %v616
        %2105 = vmatmul.mubr.f32.gmra.mrb[0].mxu0 %v615
        %v2106 = vpop.f32.mrb[0].mxu0
        %v2107 = vadd.f32 0.0, %v2106
        %v2108 = vpop.f32.mrb[0].mxu0
        %v2109 = vadd.f32 0.0, %v2108
        %2110 = vmatprep.mubr.f32.mxu0 %v618
        %2111 = vmatmul.mubr.f32.gmra.mrb[0].mxu0 %v617
        %v2112 = vpop.f32.mrb[0].mxu0
        %v2113 = vadd.f32 0.0, %v2112
        %v2114 = vpop.f32.mrb[0].mxu0
        %v2115 = vadd.f32 0.0, %v2114
        %2116 = vmatprep.mubr.f32.mxu0 %v620
        %2117 = vmatmul.mubr.f32.gmra.mrb[0].mxu0 %v619
        %v2118 = vpop.f32.mrb[0].mxu0
        %v2119 = vadd.f32 0.0, %v2118
        %v2120 = vpop.f32.mrb[0].mxu0
        %v2121 = vadd.f32 0.0, %v2120
        %2122 = vmatprep.mubr.f32.mxu0 %v622
        %2123 = vmatmul.mubr.f32.gmra.mrb[0].mxu0 %v621
        %v2124 = vpop.f32.mrb[0].mxu0
        %v2125 = vadd.f32 0.0, %v2124
        %v2126 = vpop.f32.mrb[0].mxu0
        %v2127 = vadd.f32 0.0, %v2126
        %2128 = vmatprep.mubr.f32.mxu0 %v624
        %2129 = vmatmul.mubr.f32.gmra.mrb[0].mxu0 %v623
        %v2130 = vpop.f32.mrb[0].mxu0
        %v2131 = vadd.f32 0.0, %v2130
        %v2132 = vpop.f32.mrb[0].mxu0
        %v2133 = vadd.f32 0.0, %v2132
        %2134 = vmatprep.mubr.f32.mxu0 %v626
        %2135 = vmatmul.mubr.f32.gmra.mrb[0].mxu0 %v625
        %v2136 = vpop.f32.mrb[0].mxu0
        %v2137 = vadd.f32 0.0, %v2136
        %v2138 = vpop.f32.mrb[0].mxu0
        %v2139 = vadd.f32 0.0, %v2138
        %2140 = vmatprep.mubr.f32.mxu0 %v628
        %2141 = vmatmul.mubr.f32.gmra.mrb[0].mxu0 %v627
        %v2142 = vpop.f32.mrb[0].mxu0
        %v2143 = vadd.f32 0.0, %v2142
        %v2144 = vpop.f32.mrb[0].mxu0
        %v2145 = vadd.f32 0.0, %v2144
        %2146 = vmatprep.mubr.f32.mxu0 %v630
        %2147 = vmatmul.mubr.f32.gmra.mrb[0].mxu0 %v629
        %v2148 = vpop.f32.mrb[0].mxu0
        %v2149 = vadd.f32 0.0, %v2148
        %v2150 = vpop.f32.mrb[0].mxu0
        %v2151 = vadd.f32 0.0, %v2150
        %2152 = vmatprep.mubr.f32.mxu0 %v632
        %2153 = vmatmul.mubr.f32.gmra.mrb[0].mxu0 %v631
        %v2154 = vpop.f32.mrb[0].mxu0
        %v2155 = vadd.f32 0.0, %v2154
        %v2156 = vpop.f32.mrb[0].mxu0
        %v2157 = vadd.f32 0.0, %v2156
        %2158 = vmatprep.mubr.f32.mxu0 %v634
        %2159 = vmatmul.mubr.f32.gmra.mrb[0].mxu0 %v633
        %v2160 = vpop.f32.mrb[0].mxu0
        %v2161 = vadd.f32 0.0, %v2160
        %v2162 = vpop.f32.mrb[0].mxu0
        %v2163 = vadd.f32 0.0, %v2162
        %2164 = vmatprep.mubr.f32.mxu0 %v636
        %2165 = vmatmul.mubr.f32.gmra.mrb[0].mxu0 %v635
        %v2166 = vpop.f32.mrb[0].mxu0
        %v2167 = vadd.f32 0.0, %v2166
        %v2168 = vpop.f32.mrb[0].mxu0
        %v2169 = vadd.f32 0.0, %v2168
        %2170 = vmatprep.mubr.f32.mxu0 %v638
        %2171 = vmatmul.mubr.f32.gmra.mrb[0].mxu0 %v637
        %v2172 = vpop.f32.mrb[0].mxu0
        %v2173 = vadd.f32 0.0, %v2172
        %v2174 = vpop.f32.mrb[0].mxu0
        %v2175 = vadd.f32 0.0, %v2174
        %2176 = vmatprep.mubr.f32.mxu0 %v640
        %2177 = vmatmul.mubr.f32.gmra.mrb[0].mxu0 %v639
        %v2178 = vpop.f32.mrb[0].mxu0
        %v2179 = vadd.f32 0.0, %v2178
        %v2180 = vpop.f32.mrb[0].mxu0
        %v2181 = vadd.f32 0.0, %v2180
        %2182 = vdwg.mxu0
        %2183 = vmatprep.subr.mxu0 %v1224
        %2184 = vmatpush1.msra.mxu0 %v1222
        %2185 = vmatprep.subr.mxu0 %v1230
        %2186 = vmatpush1.msra.mxu0 %v1228
        %2187 = vmatprep.subr.mxu0 %v1236
        %2188 = vmatpush1.msra.mxu0 %v1234
        %2189 = vmatprep.subr.mxu0 %v1242
        %2190 = vmatpush1.msra.mxu0 %v1240
        %2191 = vmatprep.subr.mxu0 %v1248
        %2192 = vmatpush1.msra.mxu0 %v1246
        %2193 = vmatprep.subr.mxu0 %v1254
        %2194 = vmatpush1.msra.mxu0 %v1252
        %2195 = vmatprep.subr.mxu0 %v1260
        %2196 = vmatpush1.msra.mxu0 %v1258
        %2197 = vmatprep.subr.mxu0 %v1266
        %2198 = vmatpush1.msra.mxu0 %v1264
        %2199 = vmatprep.subr.mxu0 %v1272
        %2200 = vmatpush1.msra.mxu0 %v1270
        %2201 = vmatprep.subr.mxu0 %v1278
        %2202 = vmatpush1.msra.mxu0 %v1276
        %2203 = vmatprep.subr.mxu0 %v1284
        %2204 = vmatpush1.msra.mxu0 %v1282
        %2205 = vmatprep.subr.mxu0 %v1290
        %2206 = vmatpush1.msra.mxu0 %v1288
        %2207 = vmatprep.subr.mxu0 %v1296
        %2208 = vmatpush1.msra.mxu0 %v1294
        %2209 = vmatprep.subr.mxu0 %v1302
        %2210 = vmatpush1.msra.mxu0 %v1300
        %2211 = vmatprep.subr.mxu0 %v1308
        %2212 = vmatpush1.msra.mxu0 %v1306
        %2213 = vmatprep.subr.mxu0 %v1314
        %2214 = vmatpush1.msra.mxu0 %v1312
        %2215 = vmatprep.subr.mxu0 %v1320
        %2216 = vmatpush1.msra.mxu0 %v1318
        %2217 = vmatprep.subr.mxu0 %v1326
        %2218 = vmatpush1.msra.mxu0 %v1324
        %2219 = vmatprep.subr.mxu0 %v1332
        %2220 = vmatpush1.msra.mxu0 %v1330
        %2221 = vmatprep.subr.mxu0 %v1338
        %2222 = vmatpush1.msra.mxu0 %v1336
        %2223 = vmatprep.subr.mxu0 %v1344
        %2224 = vmatpush1.msra.mxu0 %v1342
        %2225 = vmatprep.subr.mxu0 %v1350
        %2226 = vmatpush1.msra.mxu0 %v1348
        %2227 = vmatprep.subr.mxu0 %v1356
        %2228 = vmatpush1.msra.mxu0 %v1354
        %2229 = vmatprep.subr.mxu0 %v1362
        %2230 = vmatpush1.msra.mxu0 %v1360
        %2231 = vmatprep.subr.mxu0 %v1368
        %2232 = vmatpush1.msra.mxu0 %v1366
        %2233 = vmatprep.subr.mxu0 %v1374
        %2234 = vmatpush1.msra.mxu0 %v1372
        %2235 = vmatprep.subr.mxu0 %v1380
        %2236 = vmatpush1.msra.mxu0 %v1378
        %2237 = vmatprep.subr.mxu0 %v1386
        %2238 = vmatpush1.msra.mxu0 %v1384
        %2239 = vmatprep.subr.mxu0 %v1392
        %2240 = vmatpush1.msra.mxu0 %v1390
        %2241 = vmatprep.subr.mxu0 %v1398
        %2242 = vmatpush1.msra.mxu0 %v1396
        %2243 = vmatprep.subr.mxu0 %v1404
        %2244 = vmatpush1.msra.mxu0 %v1402
        %2245 = vmatprep.subr.mxu0 %v1410
        %2246 = vmatpush1.msra.mxu0 %v1408
        %2247 = vmatprep.mubr.f32.mxu0 %v578
        %2248 = vmatmul.mubr.f32.gmra.mrb[0].mxu0 %v577
        %v2249 = vpop.f32.mrb[0].mxu0
        %v2250 = vadd.f32 0.0, %v2249
        %v2251 = vpop.f32.mrb[0].mxu0
        %v2252 = vadd.f32 0.0, %v2251
        %2253 = vmatprep.mubr.f32.mxu0 %v580
        %2254 = vmatmul.mubr.f32.gmra.mrb[0].mxu0 %v579
        %v2255 = vpop.f32.mrb[0].mxu0
        %v2256 = vadd.f32 0.0, %v2255
        %v2257 = vpop.f32.mrb[0].mxu0
        %v2258 = vadd.f32 0.0, %v2257
        %2259 = vmatprep.mubr.f32.mxu0 %v582
        %2260 = vmatmul.mubr.f32.gmra.mrb[0].mxu0 %v581
        %v2261 = vpop.f32.mrb[0].mxu0
        %v2262 = vadd.f32 0.0, %v2261
        %v2263 = vpop.f32.mrb[0].mxu0
        %v2264 = vadd.f32 0.0, %v2263
        %2265 = vmatprep.mubr.f32.mxu0 %v584
        %2266 = vmatmul.mubr.f32.gmra.mrb[0].mxu0 %v583
        %v2267 = vpop.f32.mrb[0].mxu0
        %v2268 = vadd.f32 0.0, %v2267
        %v2269 = vpop.f32.mrb[0].mxu0
        %v2270 = vadd.f32 0.0, %v2269
        %2271 = vmatprep.mubr.f32.mxu0 %v586
        %2272 = vmatmul.mubr.f32.gmra.mrb[0].mxu0 %v585
        %v2273 = vpop.f32.mrb[0].mxu0
        %v2274 = vadd.f32 0.0, %v2273
        %v2275 = vpop.f32.mrb[0].mxu0
        %v2276 = vadd.f32 0.0, %v2275
        %2277 = vmatprep.mubr.f32.mxu0 %v588
        %2278 = vmatmul.mubr.f32.gmra.mrb[0].mxu0 %v587
        %v2279 = vpop.f32.mrb[0].mxu0
        %v2280 = vadd.f32 0.0, %v2279
        %v2281 = vpop.f32.mrb[0].mxu0
        %v2282 = vadd.f32 0.0, %v2281
        %2283 = vmatprep.mubr.f32.mxu0 %v590
        %2284 = vmatmul.mubr.f32.gmra.mrb[0].mxu0 %v589
        %v2285 = vpop.f32.mrb[0].mxu0
        %v2286 = vadd.f32 0.0, %v2285
        %v2287 = vpop.f32.mrb[0].mxu0
        %v2288 = vadd.f32 0.0, %v2287
        %2289 = vmatprep.mubr.f32.mxu0 %v592
        %2290 = vmatmul.mubr.f32.gmra.mrb[0].mxu0 %v591
        %v2291 = vpop.f32.mrb[0].mxu0
        %v2292 = vadd.f32 0.0, %v2291
        %v2293 = vpop.f32.mrb[0].mxu0
        %v2294 = vadd.f32 0.0, %v2293
        %2295 = vmatprep.mubr.f32.mxu0 %v594
        %2296 = vmatmul.mubr.f32.gmra.mrb[0].mxu0 %v593
        %v2297 = vpop.f32.mrb[0].mxu0
        %v2298 = vadd.f32 0.0, %v2297
        %v2299 = vpop.f32.mrb[0].mxu0
        %v2300 = vadd.f32 0.0, %v2299
        %2301 = vmatprep.mubr.f32.mxu0 %v596
        %2302 = vmatmul.mubr.f32.gmra.mrb[0].mxu0 %v595
        %v2303 = vpop.f32.mrb[0].mxu0
        %v2304 = vadd.f32 0.0, %v2303
        %v2305 = vpop.f32.mrb[0].mxu0
        %v2306 = vadd.f32 0.0, %v2305
        %2307 = vmatprep.mubr.f32.mxu0 %v598
        %2308 = vmatmul.mubr.f32.gmra.mrb[0].mxu0 %v597
        %v2309 = vpop.f32.mrb[0].mxu0
        %v2310 = vadd.f32 0.0, %v2309
        %v2311 = vpop.f32.mrb[0].mxu0
        %v2312 = vadd.f32 0.0, %v2311
        %2313 = vmatprep.mubr.f32.mxu0 %v600
        %2314 = vmatmul.mubr.f32.gmra.mrb[0].mxu0 %v599
        %v2315 = vpop.f32.mrb[0].mxu0
        %v2316 = vadd.f32 0.0, %v2315
        %v2317 = vpop.f32.mrb[0].mxu0
        %v2318 = vadd.f32 0.0, %v2317
        %2319 = vmatprep.mubr.f32.mxu0 %v602
        %2320 = vmatmul.mubr.f32.gmra.mrb[0].mxu0 %v601
        %v2321 = vpop.f32.mrb[0].mxu0
        %v2322 = vadd.f32 0.0, %v2321
        %v2323 = vpop.f32.mrb[0].mxu0
        %v2324 = vadd.f32 0.0, %v2323
        %2325 = vmatprep.mubr.f32.mxu0 %v604
        %2326 = vmatmul.mubr.f32.gmra.mrb[0].mxu0 %v603
        %v2327 = vpop.f32.mrb[0].mxu0
        %v2328 = vadd.f32 0.0, %v2327
        %v2329 = vpop.f32.mrb[0].mxu0
        %v2330 = vadd.f32 0.0, %v2329
        %2331 = vmatprep.mubr.f32.mxu0 %v606
        %2332 = vmatmul.mubr.f32.gmra.mrb[0].mxu0 %v605
        %v2333 = vpop.f32.mrb[0].mxu0
        %v2334 = vadd.f32 0.0, %v2333
        %v2335 = vpop.f32.mrb[0].mxu0
        %v2336 = vadd.f32 0.0, %v2335
        %2337 = vmatprep.mubr.f32.mxu0 %v608
        %2338 = vmatmul.mubr.f32.gmra.mrb[0].mxu0 %v607
        %v2339 = vpop.f32.mrb[0].mxu0
        %v2340 = vadd.f32 0.0, %v2339
        %v2341 = vpop.f32.mrb[0].mxu0
        %v2342 = vadd.f32 0.0, %v2341
        %2343 = vmatprep.mubr.f32.mxu0 %v610
        %2344 = vmatmul.mubr.f32.gmra.mrb[0].mxu0 %v609
        %v2345 = vpop.f32.mrb[0].mxu0
        %v2346 = vadd.f32 0.0, %v2345
        %v2347 = vpop.f32.mrb[0].mxu0
        %v2348 = vadd.f32 0.0, %v2347
        %2349 = vmatprep.mubr.f32.mxu0 %v612
        %2350 = vmatmul.mubr.f32.gmra.mrb[0].mxu0 %v611
        %v2351 = vpop.f32.mrb[0].mxu0
        %v2352 = vadd.f32 0.0, %v2351
        %v2353 = vpop.f32.mrb[0].mxu0
        %v2354 = vadd.f32 0.0, %v2353
        %2355 = vmatprep.mubr.f32.mxu0 %v614
        %2356 = vmatmul.mubr.f32.gmra.mrb[0].mxu0 %v613
        %v2357 = vpop.f32.mrb[0].mxu0
        %v2358 = vadd.f32 0.0, %v2357
        %v2359 = vpop.f32.mrb[0].mxu0
        %v2360 = vadd.f32 0.0, %v2359
        %2361 = vmatprep.mubr.f32.mxu0 %v616
        %2362 = vmatmul.mubr.f32.gmra.mrb[0].mxu0 %v615
        %v2363 = vpop.f32.mrb[0].mxu0
        %v2364 = vadd.f32 0.0, %v2363
        %v2365 = vpop.f32.mrb[0].mxu0
        %v2366 = vadd.f32 0.0, %v2365
        %2367 = vmatprep.mubr.f32.mxu0 %v618
        %2368 = vmatmul.mubr.f32.gmra.mrb[0].mxu0 %v617
        %v2369 = vpop.f32.mrb[0].mxu0
        %v2370 = vadd.f32 0.0, %v2369
        %v2371 = vpop.f32.mrb[0].mxu0
        %v2372 = vadd.f32 0.0, %v2371
        %2373 = vmatprep.mubr.f32.mxu0 %v620
        %2374 = vmatmul.mubr.f32.gmra.mrb[0].mxu0 %v619
        %v2375 = vpop.f32.mrb[0].mxu0
        %v2376 = vadd.f32 0.0, %v2375
        %v2377 = vpop.f32.mrb[0].mxu0
        %v2378 = vadd.f32 0.0, %v2377
        %2379 = vmatprep.mubr.f32.mxu0 %v622
        %2380 = vmatmul.mubr.f32.gmra.mrb[0].mxu0 %v621
        %v2381 = vpop.f32.mrb[0].mxu0
        %v2382 = vadd.f32 0.0, %v2381
        %v2383 = vpop.f32.mrb[0].mxu0
        %v2384 = vadd.f32 0.0, %v2383
        %2385 = vmatprep.mubr.f32.mxu0 %v624
        %2386 = vmatmul.mubr.f32.gmra.mrb[0].mxu0 %v623
        %v2387 = vpop.f32.mrb[0].mxu0
        %v2388 = vadd.f32 0.0, %v2387
        %v2389 = vpop.f32.mrb[0].mxu0
        %v2390 = vadd.f32 0.0, %v2389
        %2391 = vmatprep.mubr.f32.mxu0 %v626
        %2392 = vmatmul.mubr.f32.gmra.mrb[0].mxu0 %v625
        %v2393 = vpop.f32.mrb[0].mxu0
        %v2394 = vadd.f32 0.0, %v2393
        %v2395 = vpop.f32.mrb[0].mxu0
        %v2396 = vadd.f32 0.0, %v2395
        %2397 = vmatprep.mubr.f32.mxu0 %v628
        %2398 = vmatmul.mubr.f32.gmra.mrb[0].mxu0 %v627
        %v2399 = vpop.f32.mrb[0].mxu0
        %v2400 = vadd.f32 0.0, %v2399
        %v2401 = vpop.f32.mrb[0].mxu0
        %v2402 = vadd.f32 0.0, %v2401
        %2403 = vmatprep.mubr.f32.mxu0 %v630
        %2404 = vmatmul.mubr.f32.gmra.mrb[0].mxu0 %v629
        %v2405 = vpop.f32.mrb[0].mxu0
        %v2406 = vadd.f32 0.0, %v2405
        %v2407 = vpop.f32.mrb[0].mxu0
        %v2408 = vadd.f32 0.0, %v2407
        %2409 = vmatprep.mubr.f32.mxu0 %v632
        %2410 = vmatmul.mubr.f32.gmra.mrb[0].mxu0 %v631
        %v2411 = vpop.f32.mrb[0].mxu0
        %v2412 = vadd.f32 0.0, %v2411
        %v2413 = vpop.f32.mrb[0].mxu0
        %v2414 = vadd.f32 0.0, %v2413
        %2415 = vmatprep.mubr.f32.mxu0 %v634
        %2416 = vmatmul.mubr.f32.gmra.mrb[0].mxu0 %v633
        %v2417 = vpop.f32.mrb[0].mxu0
        %v2418 = vadd.f32 0.0, %v2417
        %v2419 = vpop.f32.mrb[0].mxu0
        %v2420 = vadd.f32 0.0, %v2419
        %2421 = vmatprep.mubr.f32.mxu0 %v636
        %2422 = vmatmul.mubr.f32.gmra.mrb[0].mxu0 %v635
        %v2423 = vpop.f32.mrb[0].mxu0
        %v2424 = vadd.f32 0.0, %v2423
        %v2425 = vpop.f32.mrb[0].mxu0
        %v2426 = vadd.f32 0.0, %v2425
        %2427 = vmatprep.mubr.f32.mxu0 %v638
        %2428 = vmatmul.mubr.f32.gmra.mrb[0].mxu0 %v637
        %v2429 = vpop.f32.mrb[0].mxu0
        %v2430 = vadd.f32 0.0, %v2429
        %v2431 = vpop.f32.mrb[0].mxu0
        %v2432 = vadd.f32 0.0, %v2431
        %2433 = vmatprep.mubr.f32.mxu0 %v640
        %2434 = vmatmul.mubr.f32.gmra.mrb[0].mxu0 %v639
        %v2435 = vpop.f32.mrb[0].mxu0
        %v2436 = vadd.f32 0.0, %v2435
        %v2437 = vpop.f32.mrb[0].mxu0
        %v2438 = vadd.f32 0.0, %v2437
        %2439 = vdwg.mxu0
        %v2440 = vmul.f32 %v1479, %v1993
        %v2441 = vmul.f32 %v1481, %v1995
        %v2442 = vmul.f32 %v1736, %v2250
        %v2443 = vmul.f32 %v1738, %v2252
        %v2444 = vmul.f32 %v1485, %v1999
        %v2445 = vmul.f32 %v1487, %v2001
        %v2446 = vmul.f32 %v1742, %v2256
        %v2447 = vmul.f32 %v1744, %v2258
        %v2448 = vmul.f32 %v1491, %v2005
        %v2449 = vmul.f32 %v1493, %v2007
        %v2450 = vmul.f32 %v1748, %v2262
        %v2451 = vmul.f32 %v1750, %v2264
        %v2452 = vmul.f32 %v1497, %v2011
        %v2453 = vmul.f32 %v1499, %v2013
        %v2454 = vmul.f32 %v1754, %v2268
        %v2455 = vmul.f32 %v1756, %v2270
        %v2456 = vmul.f32 %v1503, %v2017
        %v2457 = vmul.f32 %v1505, %v2019
        %v2458 = vmul.f32 %v1760, %v2274
        %v2459 = vmul.f32 %v1762, %v2276
        %v2460 = vmul.f32 %v1509, %v2023
        %v2461 = vmul.f32 %v1511, %v2025
        %v2462 = vmul.f32 %v1766, %v2280
        %v2463 = vmul.f32 %v1768, %v2282
        %v2464 = vmul.f32 %v1515, %v2029
        %v2465 = vmul.f32 %v1517, %v2031
        %v2466 = vmul.f32 %v1772, %v2286
        %v2467 = vmul.f32 %v1774, %v2288
        %v2468 = vmul.f32 %v1521, %v2035
        %v2469 = vmul.f32 %v1523, %v2037
        %v2470 = vmul.f32 %v1778, %v2292
        %v2471 = vmul.f32 %v1780, %v2294
        %v2472 = vmul.f32 %v1527, %v2041
        %v2473 = vmul.f32 %v1529, %v2043
        %v2474 = vmul.f32 %v1784, %v2298
        %v2475 = vmul.f32 %v1786, %v2300
        %v2476 = vmul.f32 %v1533, %v2047
        %v2477 = vmul.f32 %v1535, %v2049
        %v2478 = vmul.f32 %v1790, %v2304
        %v2479 = vmul.f32 %v1792, %v2306
        %v2480 = vmul.f32 %v1539, %v2053
        %v2481 = vmul.f32 %v1541, %v2055
        %v2482 = vmul.f32 %v1796, %v2310
        %v2483 = vmul.f32 %v1798, %v2312
        %v2484 = vmul.f32 %v1545, %v2059
        %v2485 = vmul.f32 %v1547, %v2061
        %v2486 = vmul.f32 %v1802, %v2316
        %v2487 = vmul.f32 %v1804, %v2318
        %v2488 = vmul.f32 %v1551, %v2065
        %v2489 = vmul.f32 %v1553, %v2067
        %v2490 = vmul.f32 %v1808, %v2322
        %v2491 = vmul.f32 %v1810, %v2324
        %v2492 = vmul.f32 %v1557, %v2071
        %v2493 = vmul.f32 %v1559, %v2073
        %v2494 = vmul.f32 %v1814, %v2328
        %v2495 = vmul.f32 %v1816, %v2330
        %v2496 = vmul.f32 %v1563, %v2077
        %v2497 = vmul.f32 %v1565, %v2079
        %v2498 = vmul.f32 %v1820, %v2334
        %v2499 = vmul.f32 %v1822, %v2336
        %v2500 = vmul.f32 %v1569, %v2083
        %v2501 = vmul.f32 %v1571, %v2085
        %v2502 = vmul.f32 %v1826, %v2340
        %v2503 = vmul.f32 %v1828, %v2342
        %v2504 = vmul.f32 %v1575, %v2089
        %v2505 = vmul.f32 %v1577, %v2091
        %v2506 = vmul.f32 %v1832, %v2346
        %v2507 = vmul.f32 %v1834, %v2348
        %v2508 = vmul.f32 %v1581, %v2095
        %v2509 = vmul.f32 %v1583, %v2097
        %v2510 = vmul.f32 %v1838, %v2352
        %v2511 = vmul.f32 %v1840, %v2354
        %v2512 = vmul.f32 %v1587, %v2101
        %v2513 = vmul.f32 %v1589, %v2103
        %v2514 = vmul.f32 %v1844, %v2358
        %v2515 = vmul.f32 %v1846, %v2360
        %v2516 = vmul.f32 %v1593, %v2107
        %v2517 = vmul.f32 %v1595, %v2109
        %v2518 = vmul.f32 %v1850, %v2364
        %v2519 = vmul.f32 %v1852, %v2366
        %v2520 = vmul.f32 %v1599, %v2113
        %v2521 = vmul.f32 %v1601, %v2115
        %v2522 = vmul.f32 %v1856, %v2370
        %v2523 = vmul.f32 %v1858, %v2372
        %v2524 = vmul.f32 %v1605, %v2119
        %v2525 = vmul.f32 %v1607, %v2121
        %v2526 = vmul.f32 %v1862, %v2376
        %v2527 = vmul.f32 %v1864, %v2378
        %v2528 = vmul.f32 %v1611, %v2125
        %v2529 = vmul.f32 %v1613, %v2127
        %v2530 = vmul.f32 %v1868, %v2382
        %v2531 = vmul.f32 %v1870, %v2384
        %v2532 = vmul.f32 %v1617, %v2131
        %v2533 = vmul.f32 %v1619, %v2133
        %v2534 = vmul.f32 %v1874, %v2388
        %v2535 = vmul.f32 %v1876, %v2390
        %v2536 = vmul.f32 %v1623, %v2137
        %v2537 = vmul.f32 %v1625, %v2139
        %v2538 = vmul.f32 %v1880, %v2394
        %v2539 = vmul.f32 %v1882, %v2396
        %v2540 = vmul.f32 %v1629, %v2143
        %v2541 = vmul.f32 %v1631, %v2145
        %v2542 = vmul.f32 %v1886, %v2400
        %v2543 = vmul.f32 %v1888, %v2402
        %v2544 = vmul.f32 %v1635, %v2149
        %v2545 = vmul.f32 %v1637, %v2151
        %v2546 = vmul.f32 %v1892, %v2406
        %v2547 = vmul.f32 %v1894, %v2408
        %v2548 = vmul.f32 %v1641, %v2155
        %v2549 = vmul.f32 %v1643, %v2157
        %v2550 = vmul.f32 %v1898, %v2412
        %v2551 = vmul.f32 %v1900, %v2414
        %v2552 = vmul.f32 %v1647, %v2161
        %v2553 = vmul.f32 %v1649, %v2163
        %v2554 = vmul.f32 %v1904, %v2418
        %v2555 = vmul.f32 %v1906, %v2420
        %v2556 = vmul.f32 %v1653, %v2167
        %v2557 = vmul.f32 %v1655, %v2169
        %v2558 = vmul.f32 %v1910, %v2424
        %v2559 = vmul.f32 %v1912, %v2426
        %v2560 = vmul.f32 %v1659, %v2173
        %v2561 = vmul.f32 %v1661, %v2175
        %v2562 = vmul.f32 %v1916, %v2430
        %v2563 = vmul.f32 %v1918, %v2432
        %v2564 = vmul.f32 %v1665, %v2179
        %v2565 = vmul.f32 %v1667, %v2181
        %v2566 = vmul.f32 %v1922, %v2436
        %v2567 = vmul.f32 %v1924, %v2438
        %v2568 = vadd.f32 %v2440, %v2456
        %v2569 = vadd.f32 %v2568, %v2472
        %v2570 = vadd.f32 %v2569, %v2488
        %v2571 = vadd.f32 %v2570, %v2504
        %v2572 = vadd.f32 %v2571, %v2520
        %v2573 = vadd.f32 %v2572, %v2536
        %v2574 = vadd.f32 %v2573, %v2552
        %v2575 = vadd.f32 %v2441, %v2457
        %v2576 = vadd.f32 %v2575, %v2473
        %v2577 = vadd.f32 %v2576, %v2489
        %v2578 = vadd.f32 %v2577, %v2505
        %v2579 = vadd.f32 %v2578, %v2521
        %v2580 = vadd.f32 %v2579, %v2537
        %v2581 = vadd.f32 %v2580, %v2553
        %v2582 = vadd.f32 %v2442, %v2458
        %v2583 = vadd.f32 %v2582, %v2474
        %v2584 = vadd.f32 %v2583, %v2490
        %v2585 = vadd.f32 %v2584, %v2506
        %v2586 = vadd.f32 %v2585, %v2522
        %v2587 = vadd.f32 %v2586, %v2538
        %v2588 = vadd.f32 %v2587, %v2554
        %v2589 = vadd.f32 %v2443, %v2459
        %v2590 = vadd.f32 %v2589, %v2475
        %v2591 = vadd.f32 %v2590, %v2491
        %v2592 = vadd.f32 %v2591, %v2507
        %v2593 = vadd.f32 %v2592, %v2523
        %v2594 = vadd.f32 %v2593, %v2539
        %v2595 = vadd.f32 %v2594, %v2555
        %v2596 = vadd.f32 %v2444, %v2460
        %v2597 = vadd.f32 %v2596, %v2476
        %v2598 = vadd.f32 %v2597, %v2492
        %v2599 = vadd.f32 %v2598, %v2508
        %v2600 = vadd.f32 %v2599, %v2524
        %v2601 = vadd.f32 %v2600, %v2540
        %v2602 = vadd.f32 %v2601, %v2556
        %v2603 = vadd.f32 %v2445, %v2461
        %v2604 = vadd.f32 %v2603, %v2477
        %v2605 = vadd.f32 %v2604, %v2493
        %v2606 = vadd.f32 %v2605, %v2509
        %v2607 = vadd.f32 %v2606, %v2525
        %v2608 = vadd.f32 %v2607, %v2541
        %v2609 = vadd.f32 %v2608, %v2557
        %v2610 = vadd.f32 %v2446, %v2462
        %v2611 = vadd.f32 %v2610, %v2478
        %v2612 = vadd.f32 %v2611, %v2494
        %v2613 = vadd.f32 %v2612, %v2510
        %v2614 = vadd.f32 %v2613, %v2526
        %v2615 = vadd.f32 %v2614, %v2542
        %v2616 = vadd.f32 %v2615, %v2558
        %v2617 = vadd.f32 %v2447, %v2463
        %v2618 = vadd.f32 %v2617, %v2479
        %v2619 = vadd.f32 %v2618, %v2495
        %v2620 = vadd.f32 %v2619, %v2511
        %v2621 = vadd.f32 %v2620, %v2527
        %v2622 = vadd.f32 %v2621, %v2543
        %v2623 = vadd.f32 %v2622, %v2559
        %v2624 = vadd.f32 %v2448, %v2464
        %v2625 = vadd.f32 %v2624, %v2480
        %v2626 = vadd.f32 %v2625, %v2496
        %v2627 = vadd.f32 %v2626, %v2512
        %v2628 = vadd.f32 %v2627, %v2528
        %v2629 = vadd.f32 %v2628, %v2544
        %v2630 = vadd.f32 %v2629, %v2560
        %v2631 = vadd.f32 %v2449, %v2465
        %v2632 = vadd.f32 %v2631, %v2481
        %v2633 = vadd.f32 %v2632, %v2497
        %v2634 = vadd.f32 %v2633, %v2513
        %v2635 = vadd.f32 %v2634, %v2529
        %v2636 = vadd.f32 %v2635, %v2545
        %v2637 = vadd.f32 %v2636, %v2561
        %v2638 = vadd.f32 %v2450, %v2466
        %v2639 = vadd.f32 %v2638, %v2482
        %v2640 = vadd.f32 %v2639, %v2498
        %v2641 = vadd.f32 %v2640, %v2514
        %v2642 = vadd.f32 %v2641, %v2530
        %v2643 = vadd.f32 %v2642, %v2546
        %v2644 = vadd.f32 %v2643, %v2562
        %v2645 = vadd.f32 %v2451, %v2467
        %v2646 = vadd.f32 %v2645, %v2483
        %v2647 = vadd.f32 %v2646, %v2499
        %v2648 = vadd.f32 %v2647, %v2515
        %v2649 = vadd.f32 %v2648, %v2531
        %v2650 = vadd.f32 %v2649, %v2547
        %v2651 = vadd.f32 %v2650, %v2563
        %v2652 = vadd.f32 %v2452, %v2468
        %v2653 = vadd.f32 %v2652, %v2484
        %v2654 = vadd.f32 %v2653, %v2500
        %v2655 = vadd.f32 %v2654, %v2516
        %v2656 = vadd.f32 %v2655, %v2532
        %v2657 = vadd.f32 %v2656, %v2548
        %v2658 = vadd.f32 %v2657, %v2564
        %v2659 = vadd.f32 %v2453, %v2469
        %v2660 = vadd.f32 %v2659, %v2485
        %v2661 = vadd.f32 %v2660, %v2501
        %v2662 = vadd.f32 %v2661, %v2517
        %v2663 = vadd.f32 %v2662, %v2533
        %v2664 = vadd.f32 %v2663, %v2549
        %v2665 = vadd.f32 %v2664, %v2565
        %v2666 = vadd.f32 %v2454, %v2470
        %v2667 = vadd.f32 %v2666, %v2486
        %v2668 = vadd.f32 %v2667, %v2502
        %v2669 = vadd.f32 %v2668, %v2518
        %v2670 = vadd.f32 %v2669, %v2534
        %v2671 = vadd.f32 %v2670, %v2550
        %v2672 = vadd.f32 %v2671, %v2566
        %v2673 = vadd.f32 %v2455, %v2471
        %v2674 = vadd.f32 %v2673, %v2487
        %v2675 = vadd.f32 %v2674, %v2503
        %v2676 = vadd.f32 %v2675, %v2519
        %v2677 = vadd.f32 %v2676, %v2535
        %v2678 = vadd.f32 %v2677, %v2551
        %v2679 = vadd.f32 %v2678, %v2567
        %v2680 = vmul.f32 %v1993, %v1993
        %v2681 = vmul.f32 %v1995, %v1995
        %v2682 = vmul.f32 %v2250, %v2250
        %v2683 = vmul.f32 %v2252, %v2252
        %v2684 = vmul.f32 %v1999, %v1999
        %v2685 = vmul.f32 %v2001, %v2001
        %v2686 = vmul.f32 %v2256, %v2256
        %v2687 = vmul.f32 %v2258, %v2258
        %v2688 = vmul.f32 %v2005, %v2005
        %v2689 = vmul.f32 %v2007, %v2007
        %v2690 = vmul.f32 %v2262, %v2262
        %v2691 = vmul.f32 %v2264, %v2264
        %v2692 = vmul.f32 %v2011, %v2011
        %v2693 = vmul.f32 %v2013, %v2013
        %v2694 = vmul.f32 %v2268, %v2268
        %v2695 = vmul.f32 %v2270, %v2270
        %v2696 = vmul.f32 %v2017, %v2017
        %v2697 = vmul.f32 %v2019, %v2019
        %v2698 = vmul.f32 %v2274, %v2274
        %v2699 = vmul.f32 %v2276, %v2276
        %v2700 = vmul.f32 %v2023, %v2023
        %v2701 = vmul.f32 %v2025, %v2025
        %v2702 = vmul.f32 %v2280, %v2280
        %v2703 = vmul.f32 %v2282, %v2282
        %v2704 = vmul.f32 %v2029, %v2029
        %v2705 = vmul.f32 %v2031, %v2031
        %v2706 = vmul.f32 %v2286, %v2286
        %v2707 = vmul.f32 %v2288, %v2288
        %v2708 = vmul.f32 %v2035, %v2035
        %v2709 = vmul.f32 %v2037, %v2037
        %v2710 = vmul.f32 %v2292, %v2292
        %v2711 = vmul.f32 %v2294, %v2294
        %v2712 = vmul.f32 %v2041, %v2041
        %v2713 = vmul.f32 %v2043, %v2043
        %v2714 = vmul.f32 %v2298, %v2298
        %v2715 = vmul.f32 %v2300, %v2300
        %v2716 = vmul.f32 %v2047, %v2047
        %v2717 = vmul.f32 %v2049, %v2049
        %v2718 = vmul.f32 %v2304, %v2304
        %v2719 = vmul.f32 %v2306, %v2306
        %v2720 = vmul.f32 %v2053, %v2053
        %v2721 = vmul.f32 %v2055, %v2055
        %v2722 = vmul.f32 %v2310, %v2310
        %v2723 = vmul.f32 %v2312, %v2312
        %v2724 = vmul.f32 %v2059, %v2059
        %v2725 = vmul.f32 %v2061, %v2061
        %v2726 = vmul.f32 %v2316, %v2316
        %v2727 = vmul.f32 %v2318, %v2318
        %v2728 = vmul.f32 %v2065, %v2065
        %v2729 = vmul.f32 %v2067, %v2067
        %v2730 = vmul.f32 %v2322, %v2322
        %v2731 = vmul.f32 %v2324, %v2324
        %v2732 = vmul.f32 %v2071, %v2071
        %v2733 = vmul.f32 %v2073, %v2073
        %v2734 = vmul.f32 %v2328, %v2328
        %v2735 = vmul.f32 %v2330, %v2330
        %v2736 = vmul.f32 %v2077, %v2077
        %v2737 = vmul.f32 %v2079, %v2079
        %v2738 = vmul.f32 %v2334, %v2334
        %v2739 = vmul.f32 %v2336, %v2336
        %v2740 = vmul.f32 %v2083, %v2083
        %v2741 = vmul.f32 %v2085, %v2085
        %v2742 = vmul.f32 %v2340, %v2340
        %v2743 = vmul.f32 %v2342, %v2342
        %v2744 = vmul.f32 %v2089, %v2089
        %v2745 = vmul.f32 %v2091, %v2091
        %v2746 = vmul.f32 %v2346, %v2346
        %v2747 = vmul.f32 %v2348, %v2348
        %v2748 = vmul.f32 %v2095, %v2095
        %v2749 = vmul.f32 %v2097, %v2097
        %v2750 = vmul.f32 %v2352, %v2352
        %v2751 = vmul.f32 %v2354, %v2354
        %v2752 = vmul.f32 %v2101, %v2101
        %v2753 = vmul.f32 %v2103, %v2103
        %v2754 = vmul.f32 %v2358, %v2358
        %v2755 = vmul.f32 %v2360, %v2360
        %v2756 = vmul.f32 %v2107, %v2107
        %v2757 = vmul.f32 %v2109, %v2109
        %v2758 = vmul.f32 %v2364, %v2364
        %v2759 = vmul.f32 %v2366, %v2366
        %v2760 = vmul.f32 %v2113, %v2113
        %v2761 = vmul.f32 %v2115, %v2115
        %v2762 = vmul.f32 %v2370, %v2370
        %v2763 = vmul.f32 %v2372, %v2372
        %v2764 = vmul.f32 %v2119, %v2119
        %v2765 = vmul.f32 %v2121, %v2121
        %v2766 = vmul.f32 %v2376, %v2376
        %v2767 = vmul.f32 %v2378, %v2378
        %v2768 = vmul.f32 %v2125, %v2125
        %v2769 = vmul.f32 %v2127, %v2127
        %v2770 = vmul.f32 %v2382, %v2382
        %v2771 = vmul.f32 %v2384, %v2384
        %v2772 = vmul.f32 %v2131, %v2131
        %v2773 = vmul.f32 %v2133, %v2133
        %v2774 = vmul.f32 %v2388, %v2388
        %v2775 = vmul.f32 %v2390, %v2390
        %v2776 = vmul.f32 %v2137, %v2137
        %v2777 = vmul.f32 %v2139, %v2139
        %v2778 = vmul.f32 %v2394, %v2394
        %v2779 = vmul.f32 %v2396, %v2396
        %v2780 = vmul.f32 %v2143, %v2143
        %v2781 = vmul.f32 %v2145, %v2145
        %v2782 = vmul.f32 %v2400, %v2400
        %v2783 = vmul.f32 %v2402, %v2402
        %v2784 = vmul.f32 %v2149, %v2149
        %v2785 = vmul.f32 %v2151, %v2151
        %v2786 = vmul.f32 %v2406, %v2406
        %v2787 = vmul.f32 %v2408, %v2408
        %v2788 = vmul.f32 %v2155, %v2155
        %v2789 = vmul.f32 %v2157, %v2157
        %v2790 = vmul.f32 %v2412, %v2412
        %v2791 = vmul.f32 %v2414, %v2414
        %v2792 = vmul.f32 %v2161, %v2161
        %v2793 = vmul.f32 %v2163, %v2163
        %v2794 = vmul.f32 %v2418, %v2418
        %v2795 = vmul.f32 %v2420, %v2420
        %v2796 = vmul.f32 %v2167, %v2167
        %v2797 = vmul.f32 %v2169, %v2169
        %v2798 = vmul.f32 %v2424, %v2424
        %v2799 = vmul.f32 %v2426, %v2426
        %v2800 = vmul.f32 %v2173, %v2173
        %v2801 = vmul.f32 %v2175, %v2175
        %v2802 = vmul.f32 %v2430, %v2430
        %v2803 = vmul.f32 %v2432, %v2432
        %v2804 = vmul.f32 %v2179, %v2179
        %v2805 = vmul.f32 %v2181, %v2181
        %v2806 = vmul.f32 %v2436, %v2436
        %v2807 = vmul.f32 %v2438, %v2438
        %v2808 = vadd.f32 %v2680, %v2696
        %v2809 = vadd.f32 %v2808, %v2712
        %v2810 = vadd.f32 %v2809, %v2728
        %v2811 = vadd.f32 %v2810, %v2744
        %v2812 = vadd.f32 %v2811, %v2760
        %v2813 = vadd.f32 %v2812, %v2776
        %v2814 = vadd.f32 %v2813, %v2792
        %v2815 = vadd.f32 %v2681, %v2697
        %v2816 = vadd.f32 %v2815, %v2713
        %v2817 = vadd.f32 %v2816, %v2729
        %v2818 = vadd.f32 %v2817, %v2745
        %v2819 = vadd.f32 %v2818, %v2761
        %v2820 = vadd.f32 %v2819, %v2777
        %v2821 = vadd.f32 %v2820, %v2793
        %v2822 = vadd.f32 %v2682, %v2698
        %v2823 = vadd.f32 %v2822, %v2714
        %v2824 = vadd.f32 %v2823, %v2730
        %v2825 = vadd.f32 %v2824, %v2746
        %v2826 = vadd.f32 %v2825, %v2762
        %v2827 = vadd.f32 %v2826, %v2778
        %v2828 = vadd.f32 %v2827, %v2794
        %v2829 = vadd.f32 %v2683, %v2699
        %v2830 = vadd.f32 %v2829, %v2715
        %v2831 = vadd.f32 %v2830, %v2731
        %v2832 = vadd.f32 %v2831, %v2747
        %v2833 = vadd.f32 %v2832, %v2763
        %v2834 = vadd.f32 %v2833, %v2779
        %v2835 = vadd.f32 %v2834, %v2795
        %v2836 = vadd.f32 %v2684, %v2700
        %v2837 = vadd.f32 %v2836, %v2716
        %v2838 = vadd.f32 %v2837, %v2732
        %v2839 = vadd.f32 %v2838, %v2748
        %v2840 = vadd.f32 %v2839, %v2764
        %v2841 = vadd.f32 %v2840, %v2780
        %v2842 = vadd.f32 %v2841, %v2796
        %v2843 = vadd.f32 %v2685, %v2701
        %v2844 = vadd.f32 %v2843, %v2717
        %v2845 = vadd.f32 %v2844, %v2733
        %v2846 = vadd.f32 %v2845, %v2749
        %v2847 = vadd.f32 %v2846, %v2765
        %v2848 = vadd.f32 %v2847, %v2781
        %v2849 = vadd.f32 %v2848, %v2797
        %v2850 = vadd.f32 %v2686, %v2702
        %v2851 = vadd.f32 %v2850, %v2718
        %v2852 = vadd.f32 %v2851, %v2734
        %v2853 = vadd.f32 %v2852, %v2750
        %v2854 = vadd.f32 %v2853, %v2766
        %v2855 = vadd.f32 %v2854, %v2782
        %v2856 = vadd.f32 %v2855, %v2798
        %v2857 = vadd.f32 %v2687, %v2703
        %v2858 = vadd.f32 %v2857, %v2719
        %v2859 = vadd.f32 %v2858, %v2735
        %v2860 = vadd.f32 %v2859, %v2751
        %v2861 = vadd.f32 %v2860, %v2767
        %v2862 = vadd.f32 %v2861, %v2783
        %v2863 = vadd.f32 %v2862, %v2799
        %v2864 = vadd.f32 %v2688, %v2704
        %v2865 = vadd.f32 %v2864, %v2720
        %v2866 = vadd.f32 %v2865, %v2736
        %v2867 = vadd.f32 %v2866, %v2752
        %v2868 = vadd.f32 %v2867, %v2768
        %v2869 = vadd.f32 %v2868, %v2784
        %v2870 = vadd.f32 %v2869, %v2800
        %v2871 = vadd.f32 %v2689, %v2705
        %v2872 = vadd.f32 %v2871, %v2721
        %v2873 = vadd.f32 %v2872, %v2737
        %v2874 = vadd.f32 %v2873, %v2753
        %v2875 = vadd.f32 %v2874, %v2769
        %v2876 = vadd.f32 %v2875, %v2785
        %v2877 = vadd.f32 %v2876, %v2801
        %v2878 = vadd.f32 %v2690, %v2706
        %v2879 = vadd.f32 %v2878, %v2722
        %v2880 = vadd.f32 %v2879, %v2738
        %v2881 = vadd.f32 %v2880, %v2754
        %v2882 = vadd.f32 %v2881, %v2770
        %v2883 = vadd.f32 %v2882, %v2786
        %v2884 = vadd.f32 %v2883, %v2802
        %v2885 = vadd.f32 %v2691, %v2707
        %v2886 = vadd.f32 %v2885, %v2723
        %v2887 = vadd.f32 %v2886, %v2739
        %v2888 = vadd.f32 %v2887, %v2755
        %v2889 = vadd.f32 %v2888, %v2771
        %v2890 = vadd.f32 %v2889, %v2787
        %v2891 = vadd.f32 %v2890, %v2803
        %v2892 = vadd.f32 %v2692, %v2708
        %v2893 = vadd.f32 %v2892, %v2724
        %v2894 = vadd.f32 %v2893, %v2740
        %v2895 = vadd.f32 %v2894, %v2756
        %v2896 = vadd.f32 %v2895, %v2772
        %v2897 = vadd.f32 %v2896, %v2788
        %v2898 = vadd.f32 %v2897, %v2804
        %v2899 = vadd.f32 %v2693, %v2709
        %v2900 = vadd.f32 %v2899, %v2725
        %v2901 = vadd.f32 %v2900, %v2741
        %v2902 = vadd.f32 %v2901, %v2757
        %v2903 = vadd.f32 %v2902, %v2773
        %v2904 = vadd.f32 %v2903, %v2789
        %v2905 = vadd.f32 %v2904, %v2805
        %v2906 = vadd.f32 %v2694, %v2710
        %v2907 = vadd.f32 %v2906, %v2726
        %v2908 = vadd.f32 %v2907, %v2742
        %v2909 = vadd.f32 %v2908, %v2758
        %v2910 = vadd.f32 %v2909, %v2774
        %v2911 = vadd.f32 %v2910, %v2790
        %v2912 = vadd.f32 %v2911, %v2806
        %v2913 = vadd.f32 %v2695, %v2711
        %v2914 = vadd.f32 %v2913, %v2727
        %v2915 = vadd.f32 %v2914, %v2743
        %v2916 = vadd.f32 %v2915, %v2759
        %v2917 = vadd.f32 %v2916, %v2775
        %v2918 = vadd.f32 %v2917, %v2791
        %v2919 = vadd.f32 %v2918, %v2807
        %v2920 = vrcp.pop %v2814
        %v2921 = vrcp.pop %v2821
        %v2922 = vrcp.pop %v2828
        %v2923 = vrcp.pop %v2835
        %v2924 = vrcp.pop %v2842
        %v2925 = vrcp.pop %v2849
        %v2926 = vrcp.pop %v2856
        %v2927 = vrcp.pop %v2863
        %v2928 = vrcp.pop %v2870
        %v2929 = vrcp.pop %v2877
        %v2930 = vrcp.pop %v2884
        %v2931 = vrcp.pop %v2891
        %v2932 = vrcp.pop %v2898
        %v2933 = vrcp.pop %v2905
        %v2934 = vrcp.pop %v2912
        %v2935 = vrcp.pop %v2919
        %v2936 = vmul.f32 %v2574, %v2920
        %v2937 = vmul.f32 %v2581, %v2921
        %v2938 = vmul.f32 %v2588, %v2922
        %v2939 = vmul.f32 %v2595, %v2923
        %v2940 = vmul.f32 %v2602, %v2924
        %v2941 = vmul.f32 %v2609, %v2925
        %v2942 = vmul.f32 %v2616, %v2926
        %v2943 = vmul.f32 %v2623, %v2927
        %v2944 = vmul.f32 %v2630, %v2928
        %v2945 = vmul.f32 %v2637, %v2929
        %v2946 = vmul.f32 %v2644, %v2930
        %v2947 = vmul.f32 %v2651, %v2931
        %v2948 = vmul.f32 %v2658, %v2932
        %v2949 = vmul.f32 %v2665, %v2933
        %v2950 = vmul.f32 %v2672, %v2934
        %v2951 = vmul.f32 %v2679, %v2935
        %vm2952 = vcmp.gt.f32.partialorder %v2574, 0.0
        %vm2953 = vcmp.gt.f32.partialorder %v2581, 0.0
        %vm2954 = vcmp.gt.f32.partialorder %v2588, 0.0
        %vm2955 = vcmp.gt.f32.partialorder %v2595, 0.0
        %vm2956 = vcmp.gt.f32.partialorder %v2602, 0.0
        %vm2957 = vcmp.gt.f32.partialorder %v2609, 0.0
        %vm2958 = vcmp.gt.f32.partialorder %v2616, 0.0
        %vm2959 = vcmp.gt.f32.partialorder %v2623, 0.0
        %vm2960 = vcmp.gt.f32.partialorder %v2630, 0.0
        %vm2961 = vcmp.gt.f32.partialorder %v2637, 0.0
        %vm2962 = vcmp.gt.f32.partialorder %v2644, 0.0
        %vm2963 = vcmp.gt.f32.partialorder %v2651, 0.0
        %vm2964 = vcmp.gt.f32.partialorder %v2658, 0.0
        %vm2965 = vcmp.gt.f32.partialorder %v2665, 0.0
        %vm2966 = vcmp.gt.f32.partialorder %v2672, 0.0
        %vm2967 = vcmp.gt.f32.partialorder %v2679, 0.0
        %v2968 = vsel %vm2952, 0.0, %v2936
        %v2969 = vsel %vm2953, 0.0, %v2937
        %v2970 = vsel %vm2954, 0.0, %v2938
        %v2971 = vsel %vm2955, 0.0, %v2939
        %v2972 = vsel %vm2956, 0.0, %v2940
        %v2973 = vsel %vm2957, 0.0, %v2941
        %v2974 = vsel %vm2958, 0.0, %v2942
        %v2975 = vsel %vm2959, 0.0, %v2943
        %v2976 = vsel %vm2960, 0.0, %v2944
        %v2977 = vsel %vm2961, 0.0, %v2945
        %v2978 = vsel %vm2962, 0.0, %v2946
        %v2979 = vsel %vm2963, 0.0, %v2947
        %v2980 = vsel %vm2964, 0.0, %v2948
        %v2981 = vsel %vm2965, 0.0, %v2949
        %v2982 = vsel %vm2966, 0.0, %v2950
        %v2983 = vsel %vm2967, 0.0, %v2951
        %v2984 = vmul.f32 %v2968, %v1993
        %v2985 = vmul.f32 %v2969, %v1995
        %v2986 = vmul.f32 %v2970, %v2250
        %v2987 = vmul.f32 %v2971, %v2252
        %v2988 = vmul.f32 %v2972, %v1999
        %v2989 = vmul.f32 %v2973, %v2001
        %v2990 = vmul.f32 %v2974, %v2256
        %v2991 = vmul.f32 %v2975, %v2258
        %v2992 = vmul.f32 %v2976, %v2005
        %v2993 = vmul.f32 %v2977, %v2007
        %v2994 = vmul.f32 %v2978, %v2262
        %v2995 = vmul.f32 %v2979, %v2264
        %v2996 = vmul.f32 %v2980, %v2011
        %v2997 = vmul.f32 %v2981, %v2013
        %v2998 = vmul.f32 %v2982, %v2268
        %v2999 = vmul.f32 %v2983, %v2270
        %v3000 = vmul.f32 %v2968, %v2017
        %v3001 = vmul.f32 %v2969, %v2019
        %v3002 = vmul.f32 %v2970, %v2274
        %v3003 = vmul.f32 %v2971, %v2276
        %v3004 = vmul.f32 %v2972, %v2023
        %v3005 = vmul.f32 %v2973, %v2025
        %v3006 = vmul.f32 %v2974, %v2280
        %v3007 = vmul.f32 %v2975, %v2282
        %v3008 = vmul.f32 %v2976, %v2029
        %v3009 = vmul.f32 %v2977, %v2031
        %v3010 = vmul.f32 %v2978, %v2286
        %v3011 = vmul.f32 %v2979, %v2288
        %v3012 = vmul.f32 %v2980, %v2035
        %v3013 = vmul.f32 %v2981, %v2037
        %v3014 = vmul.f32 %v2982, %v2292
        %v3015 = vmul.f32 %v2983, %v2294
        %v3016 = vmul.f32 %v2968, %v2041
        %v3017 = vmul.f32 %v2969, %v2043
        %v3018 = vmul.f32 %v2970, %v2298
        %v3019 = vmul.f32 %v2971, %v2300
        %v3020 = vmul.f32 %v2972, %v2047
        %v3021 = vmul.f32 %v2973, %v2049
        %v3022 = vmul.f32 %v2974, %v2304
        %v3023 = vmul.f32 %v2975, %v2306
        %v3024 = vmul.f32 %v2976, %v2053
        %v3025 = vmul.f32 %v2977, %v2055
        %v3026 = vmul.f32 %v2978, %v2310
        %v3027 = vmul.f32 %v2979, %v2312
        %v3028 = vmul.f32 %v2980, %v2059
        %v3029 = vmul.f32 %v2981, %v2061
        %v3030 = vmul.f32 %v2982, %v2316
        %v3031 = vmul.f32 %v2983, %v2318
        %v3032 = vmul.f32 %v2968, %v2065
        %v3033 = vmul.f32 %v2969, %v2067
        %v3034 = vmul.f32 %v2970, %v2322
        %v3035 = vmul.f32 %v2971, %v2324
        %v3036 = vmul.f32 %v2972, %v2071
        %v3037 = vmul.f32 %v2973, %v2073
        %v3038 = vmul.f32 %v2974, %v2328
        %v3039 = vmul.f32 %v2975, %v2330
        %v3040 = vmul.f32 %v2976, %v2077
        %v3041 = vmul.f32 %v2977, %v2079
        %v3042 = vmul.f32 %v2978, %v2334
        %v3043 = vmul.f32 %v2979, %v2336
        %v3044 = vmul.f32 %v2980, %v2083
        %v3045 = vmul.f32 %v2981, %v2085
        %v3046 = vmul.f32 %v2982, %v2340
        %v3047 = vmul.f32 %v2983, %v2342
        %v3048 = vmul.f32 %v2968, %v2089
        %v3049 = vmul.f32 %v2969, %v2091
        %v3050 = vmul.f32 %v2970, %v2346
        %v3051 = vmul.f32 %v2971, %v2348
        %v3052 = vmul.f32 %v2972, %v2095
        %v3053 = vmul.f32 %v2973, %v2097
        %v3054 = vmul.f32 %v2974, %v2352
        %v3055 = vmul.f32 %v2975, %v2354
        %v3056 = vmul.f32 %v2976, %v2101
        %v3057 = vmul.f32 %v2977, %v2103
        %v3058 = vmul.f32 %v2978, %v2358
        %v3059 = vmul.f32 %v2979, %v2360
        %v3060 = vmul.f32 %v2980, %v2107
        %v3061 = vmul.f32 %v2981, %v2109
        %v3062 = vmul.f32 %v2982, %v2364
        %v3063 = vmul.f32 %v2983, %v2366
        %v3064 = vmul.f32 %v2968, %v2113
        %v3065 = vmul.f32 %v2969, %v2115
        %v3066 = vmul.f32 %v2970, %v2370
        %v3067 = vmul.f32 %v2971, %v2372
        %v3068 = vmul.f32 %v2972, %v2119
        %v3069 = vmul.f32 %v2973, %v2121
        %v3070 = vmul.f32 %v2974, %v2376
        %v3071 = vmul.f32 %v2975, %v2378
        %v3072 = vmul.f32 %v2976, %v2125
        %v3073 = vmul.f32 %v2977, %v2127
        %v3074 = vmul.f32 %v2978, %v2382
        %v3075 = vmul.f32 %v2979, %v2384
        %v3076 = vmul.f32 %v2980, %v2131
        %v3077 = vmul.f32 %v2981, %v2133
        %v3078 = vmul.f32 %v2982, %v2388
        %v3079 = vmul.f32 %v2983, %v2390
        %v3080 = vmul.f32 %v2968, %v2137
        %v3081 = vmul.f32 %v2969, %v2139
        %v3082 = vmul.f32 %v2970, %v2394
        %v3083 = vmul.f32 %v2971, %v2396
        %v3084 = vmul.f32 %v2972, %v2143
        %v3085 = vmul.f32 %v2973, %v2145
        %v3086 = vmul.f32 %v2974, %v2400
        %v3087 = vmul.f32 %v2975, %v2402
        %v3088 = vmul.f32 %v2976, %v2149
        %v3089 = vmul.f32 %v2977, %v2151
        %v3090 = vmul.f32 %v2978, %v2406
        %v3091 = vmul.f32 %v2979, %v2408
        %v3092 = vmul.f32 %v2980, %v2155
        %v3093 = vmul.f32 %v2981, %v2157
        %v3094 = vmul.f32 %v2982, %v2412
        %v3095 = vmul.f32 %v2983, %v2414
        %v3096 = vmul.f32 %v2968, %v2161
        %v3097 = vmul.f32 %v2969, %v2163
        %v3098 = vmul.f32 %v2970, %v2418
        %v3099 = vmul.f32 %v2971, %v2420
        %v3100 = vmul.f32 %v2972, %v2167
        %v3101 = vmul.f32 %v2973, %v2169
        %v3102 = vmul.f32 %v2974, %v2424
        %v3103 = vmul.f32 %v2975, %v2426
        %v3104 = vmul.f32 %v2976, %v2173
        %v3105 = vmul.f32 %v2977, %v2175
        %v3106 = vmul.f32 %v2978, %v2430
        %v3107 = vmul.f32 %v2979, %v2432
        %v3108 = vmul.f32 %v2980, %v2179
        %v3109 = vmul.f32 %v2981, %v2181
        %v3110 = vmul.f32 %v2982, %v2436
        %v3111 = vmul.f32 %v2983, %v2438
        %v3112 = vsub.f32 %v1479, %v2984
        %v3113 = vsub.f32 %v1481, %v2985
        %v3114 = vsub.f32 %v1736, %v2986
        %v3115 = vsub.f32 %v1738, %v2987
        %v3116 = vsub.f32 %v1485, %v2988
        %v3117 = vsub.f32 %v1487, %v2989
        %v3118 = vsub.f32 %v1742, %v2990
        %v3119 = vsub.f32 %v1744, %v2991
        %v3120 = vsub.f32 %v1491, %v2992
        %v3121 = vsub.f32 %v1493, %v2993
        %v3122 = vsub.f32 %v1748, %v2994
        %v3123 = vsub.f32 %v1750, %v2995
        %v3124 = vsub.f32 %v1497, %v2996
        %v3125 = vsub.f32 %v1499, %v2997
        %v3126 = vsub.f32 %v1754, %v2998
        %v3127 = vsub.f32 %v1756, %v2999
        %v3128 = vsub.f32 %v1503, %v3000
        %v3129 = vsub.f32 %v1505, %v3001
        %v3130 = vsub.f32 %v1760, %v3002
        %v3131 = vsub.f32 %v1762, %v3003
        %v3132 = vsub.f32 %v1509, %v3004
        %v3133 = vsub.f32 %v1511, %v3005
        %v3134 = vsub.f32 %v1766, %v3006
        %v3135 = vsub.f32 %v1768, %v3007
        %v3136 = vsub.f32 %v1515, %v3008
        %v3137 = vsub.f32 %v1517, %v3009
        %v3138 = vsub.f32 %v1772, %v3010
        %v3139 = vsub.f32 %v1774, %v3011
        %v3140 = vsub.f32 %v1521, %v3012
        %v3141 = vsub.f32 %v1523, %v3013
        %v3142 = vsub.f32 %v1778, %v3014
        %v3143 = vsub.f32 %v1780, %v3015
        %v3144 = vsub.f32 %v1527, %v3016
        %v3145 = vsub.f32 %v1529, %v3017
        %v3146 = vsub.f32 %v1784, %v3018
        %v3147 = vsub.f32 %v1786, %v3019
        %v3148 = vsub.f32 %v1533, %v3020
        %v3149 = vsub.f32 %v1535, %v3021
        %v3150 = vsub.f32 %v1790, %v3022
        %v3151 = vsub.f32 %v1792, %v3023
        %v3152 = vsub.f32 %v1539, %v3024
        %v3153 = vsub.f32 %v1541, %v3025
        %v3154 = vsub.f32 %v1796, %v3026
        %v3155 = vsub.f32 %v1798, %v3027
        %v3156 = vsub.f32 %v1545, %v3028
        %v3157 = vsub.f32 %v1547, %v3029
        %v3158 = vsub.f32 %v1802, %v3030
        %v3159 = vsub.f32 %v1804, %v3031
        %v3160 = vsub.f32 %v1551, %v3032
        %v3161 = vsub.f32 %v1553, %v3033
        %v3162 = vsub.f32 %v1808, %v3034
        %v3163 = vsub.f32 %v1810, %v3035
        %v3164 = vsub.f32 %v1557, %v3036
        %v3165 = vsub.f32 %v1559, %v3037
        %v3166 = vsub.f32 %v1814, %v3038
        %v3167 = vsub.f32 %v1816, %v3039
        %v3168 = vsub.f32 %v1563, %v3040
        %v3169 = vsub.f32 %v1565, %v3041
        %v3170 = vsub.f32 %v1820, %v3042
        %v3171 = vsub.f32 %v1822, %v3043
        %v3172 = vsub.f32 %v1569, %v3044
        %v3173 = vsub.f32 %v1571, %v3045
        %v3174 = vsub.f32 %v1826, %v3046
        %v3175 = vsub.f32 %v1828, %v3047
        %v3176 = vsub.f32 %v1575, %v3048
        %v3177 = vsub.f32 %v1577, %v3049
        %v3178 = vsub.f32 %v1832, %v3050
        %v3179 = vsub.f32 %v1834, %v3051
        %v3180 = vsub.f32 %v1581, %v3052
        %v3181 = vsub.f32 %v1583, %v3053
        %v3182 = vsub.f32 %v1838, %v3054
        %v3183 = vsub.f32 %v1840, %v3055
        %v3184 = vsub.f32 %v1587, %v3056
        %v3185 = vsub.f32 %v1589, %v3057
        %v3186 = vsub.f32 %v1844, %v3058
        %v3187 = vsub.f32 %v1846, %v3059
        %v3188 = vsub.f32 %v1593, %v3060
        %v3189 = vsub.f32 %v1595, %v3061
        %v3190 = vsub.f32 %v1850, %v3062
        %v3191 = vsub.f32 %v1852, %v3063
        %v3192 = vsub.f32 %v1599, %v3064
        %v3193 = vsub.f32 %v1601, %v3065
        %v3194 = vsub.f32 %v1856, %v3066
        %v3195 = vsub.f32 %v1858, %v3067
        %v3196 = vsub.f32 %v1605, %v3068
        %v3197 = vsub.f32 %v1607, %v3069
        %v3198 = vsub.f32 %v1862, %v3070
        %v3199 = vsub.f32 %v1864, %v3071
        %v3200 = vsub.f32 %v1611, %v3072
        %v3201 = vsub.f32 %v1613, %v3073
        %v3202 = vsub.f32 %v1868, %v3074
        %v3203 = vsub.f32 %v1870, %v3075
        %v3204 = vsub.f32 %v1617, %v3076
        %v3205 = vsub.f32 %v1619, %v3077
        %v3206 = vsub.f32 %v1874, %v3078
        %v3207 = vsub.f32 %v1876, %v3079
        %v3208 = vsub.f32 %v1623, %v3080
        %v3209 = vsub.f32 %v1625, %v3081
        %v3210 = vsub.f32 %v1880, %v3082
        %v3211 = vsub.f32 %v1882, %v3083
        %v3212 = vsub.f32 %v1629, %v3084
        %v3213 = vsub.f32 %v1631, %v3085
        %v3214 = vsub.f32 %v1886, %v3086
        %v3215 = vsub.f32 %v1888, %v3087
        %v3216 = vsub.f32 %v1635, %v3088
        %v3217 = vsub.f32 %v1637, %v3089
        %v3218 = vsub.f32 %v1892, %v3090
        %v3219 = vsub.f32 %v1894, %v3091
        %v3220 = vsub.f32 %v1641, %v3092
        %v3221 = vsub.f32 %v1643, %v3093
        %v3222 = vsub.f32 %v1898, %v3094
        %v3223 = vsub.f32 %v1900, %v3095
        %v3224 = vsub.f32 %v1647, %v3096
        %v3225 = vsub.f32 %v1649, %v3097
        %v3226 = vsub.f32 %v1904, %v3098
        %v3227 = vsub.f32 %v1906, %v3099
        %v3228 = vsub.f32 %v1653, %v3100
        %v3229 = vsub.f32 %v1655, %v3101
        %v3230 = vsub.f32 %v1910, %v3102
        %v3231 = vsub.f32 %v1912, %v3103
        %v3232 = vsub.f32 %v1659, %v3104
        %v3233 = vsub.f32 %v1661, %v3105
        %v3234 = vsub.f32 %v1916, %v3106
        %v3235 = vsub.f32 %v1918, %v3107
        %v3236 = vsub.f32 %v1665, %v3108
        %v3237 = vsub.f32 %v1667, %v3109
        %v3238 = vsub.f32 %v1922, %v3110
        %v3239 = vsub.f32 %v1924, %v3111
        %v3240 = vld [vmem:[%s5] sm:$0xff]
        %v3241 = vld [vmem:[%s5 + $0x8] sm:$0xff]
        %v3242 = vld [vmem:[%s5 + $0x10] sm:$0xff]
        %v3243 = vld [vmem:[%s5 + $0x18] sm:$0xff]
        %v3244 = vld [vmem:[%s5 + $0x20] sm:$0xff]
        %v3245 = vld [vmem:[%s5 + $0x28] sm:$0xff]
        %v3246 = vld [vmem:[%s5 + $0x30] sm:$0xff]
        %v3247 = vld [vmem:[%s5 + $0x38] sm:$0xff]
        %v3248 = vld [vmem:[%s5 + $0x40] sm:$0xff]
        %v3249 = vld [vmem:[%s5 + $0x48] sm:$0xff]
        %v3250 = vld [vmem:[%s5 + $0x50] sm:$0xff]
        %v3251 = vld [vmem:[%s5 + $0x58] sm:$0xff]
        %v3252 = vld [vmem:[%s5 + $0x60] sm:$0xff]
        %v3253 = vld [vmem:[%s5 + $0x68] sm:$0xff]
        %v3254 = vld [vmem:[%s5 + $0x70] sm:$0xff]
        %v3255 = vld [vmem:[%s5 + $0x78] sm:$0xff]
        %v3256 = vld [vmem:[%s5 + $0x80] sm:$0xff]
        %v3257 = vld [vmem:[%s5 + $0x88] sm:$0xff]
        %v3258 = vld [vmem:[%s5 + $0x90] sm:$0xff]
        %v3259 = vld [vmem:[%s5 + $0x98] sm:$0xff]
        %v3260 = vld [vmem:[%s5 + $0xa0] sm:$0xff]
        %v3261 = vld [vmem:[%s5 + $0xa8] sm:$0xff]
        %v3262 = vld [vmem:[%s5 + $0xb0] sm:$0xff]
        %v3263 = vld [vmem:[%s5 + $0xb8] sm:$0xff]
        %v3264 = vld [vmem:[%s5 + $0xc0] sm:$0xff]
        %v3265 = vld [vmem:[%s5 + $0xc8] sm:$0xff]
        %v3266 = vld [vmem:[%s5 + $0xd0] sm:$0xff]
        %v3267 = vld [vmem:[%s5 + $0xd8] sm:$0xff]
        %v3268 = vld [vmem:[%s5 + $0xe0] sm:$0xff]
        %v3269 = vld [vmem:[%s5 + $0xe8] sm:$0xff]
        %v3270 = vld [vmem:[%s5 + $0xf0] sm:$0xff]
        %v3271 = vld [vmem:[%s5 + $0xf8] sm:$0xff]
        %v3272 = vld [vmem:[%s5 + $0x100] sm:$0xff]
        %v3273 = vld [vmem:[%s5 + $0x108] sm:$0xff]
        %v3274 = vld [vmem:[%s5 + $0x110] sm:$0xff]
        %v3275 = vld [vmem:[%s5 + $0x118] sm:$0xff]
        %v3276 = vld [vmem:[%s5 + $0x120] sm:$0xff]
        %v3277 = vld [vmem:[%s5 + $0x128] sm:$0xff]
        %v3278 = vld [vmem:[%s5 + $0x130] sm:$0xff]
        %v3279 = vld [vmem:[%s5 + $0x138] sm:$0xff]
        %v3280 = vld [vmem:[%s5 + $0x140] sm:$0xff]
        %v3281 = vld [vmem:[%s5 + $0x148] sm:$0xff]
        %v3282 = vld [vmem:[%s5 + $0x150] sm:$0xff]
        %v3283 = vld [vmem:[%s5 + $0x158] sm:$0xff]
        %v3284 = vld [vmem:[%s5 + $0x160] sm:$0xff]
        %v3285 = vld [vmem:[%s5 + $0x168] sm:$0xff]
        %v3286 = vld [vmem:[%s5 + $0x170] sm:$0xff]
        %v3287 = vld [vmem:[%s5 + $0x178] sm:$0xff]
        %v3288 = vld [vmem:[%s5 + $0x180] sm:$0xff]
        %v3289 = vld [vmem:[%s5 + $0x188] sm:$0xff]
        %v3290 = vld [vmem:[%s5 + $0x190] sm:$0xff]
        %v3291 = vld [vmem:[%s5 + $0x198] sm:$0xff]
        %v3292 = vld [vmem:[%s5 + $0x1a0] sm:$0xff]
        %v3293 = vld [vmem:[%s5 + $0x1a8] sm:$0xff]
        %v3294 = vld [vmem:[%s5 + $0x1b0] sm:$0xff]
        %v3295 = vld [vmem:[%s5 + $0x1b8] sm:$0xff]
        %v3296 = vld [vmem:[%s5 + $0x1c0] sm:$0xff]
        %v3297 = vld [vmem:[%s5 + $0x1c8] sm:$0xff]
        %v3298 = vld [vmem:[%s5 + $0x1d0] sm:$0xff]
        %v3299 = vld [vmem:[%s5 + $0x1d8] sm:$0xff]
        %v3300 = vld [vmem:[%s5 + $0x1e0] sm:$0xff]
        %v3301 = vld [vmem:[%s5 + $0x1e8] sm:$0xff]
        %v3302 = vld [vmem:[%s5 + $0x1f0] sm:$0xff]
        %v3303 = vld [vmem:[%s5 + $0x1f8] sm:$0xff]
        %v3304 = vld [vmem:[%s6] sm:$0xff]
        %v3305 = vld [vmem:[%s6 + $0x8] sm:$0xff]
        %v3306 = vld [vmem:[%s6 + $0x10] sm:$0xff]
        %v3307 = vld [vmem:[%s6 + $0x18] sm:$0xff]
        %v3308 = vld [vmem:[%s6 + $0x20] sm:$0xff]
        %v3309 = vld [vmem:[%s6 + $0x28] sm:$0xff]
        %v3310 = vld [vmem:[%s6 + $0x30] sm:$0xff]
        %v3311 = vld [vmem:[%s6 + $0x38] sm:$0xff]
        %v3312 = vld [vmem:[%s6 + $0x40] sm:$0xff]
        %v3313 = vld [vmem:[%s6 + $0x48] sm:$0xff]
        %v3314 = vld [vmem:[%s6 + $0x50] sm:$0xff]
        %v3315 = vld [vmem:[%s6 + $0x58] sm:$0xff]
        %v3316 = vld [vmem:[%s6 + $0x60] sm:$0xff]
        %v3317 = vld [vmem:[%s6 + $0x68] sm:$0xff]
        %v3318 = vld [vmem:[%s6 + $0x70] sm:$0xff]
        %v3319 = vld [vmem:[%s6 + $0x78] sm:$0xff]
        %v3320 = vld [vmem:[%s6 + $0x80] sm:$0xff]
        %v3321 = vld [vmem:[%s6 + $0x88] sm:$0xff]
        %v3322 = vld [vmem:[%s6 + $0x90] sm:$0xff]
        %v3323 = vld [vmem:[%s6 + $0x98] sm:$0xff]
        %v3324 = vld [vmem:[%s6 + $0xa0] sm:$0xff]
        %v3325 = vld [vmem:[%s6 + $0xa8] sm:$0xff]
        %v3326 = vld [vmem:[%s6 + $0xb0] sm:$0xff]
        %v3327 = vld [vmem:[%s6 + $0xb8] sm:$0xff]
        %v3328 = vld [vmem:[%s6 + $0xc0] sm:$0xff]
        %v3329 = vld [vmem:[%s6 + $0xc8] sm:$0xff]
        %v3330 = vld [vmem:[%s6 + $0xd0] sm:$0xff]
        %v3331 = vld [vmem:[%s6 + $0xd8] sm:$0xff]
        %v3332 = vld [vmem:[%s6 + $0xe0] sm:$0xff]
        %v3333 = vld [vmem:[%s6 + $0xe8] sm:$0xff]
        %v3334 = vld [vmem:[%s6 + $0xf0] sm:$0xff]
        %v3335 = vld [vmem:[%s6 + $0xf8] sm:$0xff]
        %v3336 = vld [vmem:[%s7] sm:$0xff]
        %v3337 = vld [vmem:[%s7 + $0x8] sm:$0xff]
        %v3338 = vld [vmem:[%s7 + $0x10] sm:$0xff]
        %v3339 = vld [vmem:[%s7 + $0x18] sm:$0xff]
        %v3340 = vld [vmem:[%s7 + $0x20] sm:$0xff]
        %v3341 = vld [vmem:[%s7 + $0x28] sm:$0xff]
        %v3342 = vld [vmem:[%s7 + $0x30] sm:$0xff]
        %v3343 = vld [vmem:[%s7 + $0x38] sm:$0xff]
        %v3344 = vld [vmem:[%s7 + $0x40] sm:$0xff]
        %v3345 = vld [vmem:[%s7 + $0x48] sm:$0xff]
        %v3346 = vld [vmem:[%s7 + $0x50] sm:$0xff]
        %v3347 = vld [vmem:[%s7 + $0x58] sm:$0xff]
        %v3348 = vld [vmem:[%s7 + $0x60] sm:$0xff]
        %v3349 = vld [vmem:[%s7 + $0x68] sm:$0xff]
        %v3350 = vld [vmem:[%s7 + $0x70] sm:$0xff]
        %v3351 = vld [vmem:[%s7 + $0x78] sm:$0xff]
        %v3352 = vld [vmem:[%s7 + $0x80] sm:$0xff]
        %v3353 = vld [vmem:[%s7 + $0x88] sm:$0xff]
        %v3354 = vld [vmem:[%s7 + $0x90] sm:$0xff]
        %v3355 = vld [vmem:[%s7 + $0x98] sm:$0xff]
        %v3356 = vld [vmem:[%s7 + $0xa0] sm:$0xff]
        %v3357 = vld [vmem:[%s7 + $0xa8] sm:$0xff]
        %v3358 = vld [vmem:[%s7 + $0xb0] sm:$0xff]
        %v3359 = vld [vmem:[%s7 + $0xb8] sm:$0xff]
        %v3360 = vld [vmem:[%s7 + $0xc0] sm:$0xff]
        %v3361 = vld [vmem:[%s7 + $0xc8] sm:$0xff]
        %v3362 = vld [vmem:[%s7 + $0xd0] sm:$0xff]
        %v3363 = vld [vmem:[%s7 + $0xd8] sm:$0xff]
        %v3364 = vld [vmem:[%s7 + $0xe0] sm:$0xff]
        %v3365 = vld [vmem:[%s7 + $0xe8] sm:$0xff]
        %v3366 = vld [vmem:[%s7 + $0xf0] sm:$0xff]
        %v3367 = vld [vmem:[%s7 + $0xf8] sm:$0xff]
        %v3368 = vld [vmem:[%s7 + $0x100] sm:$0xff]
        %v3369 = vld [vmem:[%s7 + $0x108] sm:$0xff]
        %v3370 = vld [vmem:[%s7 + $0x110] sm:$0xff]
        %v3371 = vld [vmem:[%s7 + $0x118] sm:$0xff]
        %v3372 = vld [vmem:[%s7 + $0x120] sm:$0xff]
        %v3373 = vld [vmem:[%s7 + $0x128] sm:$0xff]
        %v3374 = vld [vmem:[%s7 + $0x130] sm:$0xff]
        %v3375 = vld [vmem:[%s7 + $0x138] sm:$0xff]
        %v3376 = vld [vmem:[%s7 + $0x140] sm:$0xff]
        %v3377 = vld [vmem:[%s7 + $0x148] sm:$0xff]
        %v3378 = vld [vmem:[%s7 + $0x150] sm:$0xff]
        %v3379 = vld [vmem:[%s7 + $0x158] sm:$0xff]
        %v3380 = vld [vmem:[%s7 + $0x160] sm:$0xff]
        %v3381 = vld [vmem:[%s7 + $0x168] sm:$0xff]
        %v3382 = vld [vmem:[%s7 + $0x170] sm:$0xff]
        %v3383 = vld [vmem:[%s7 + $0x178] sm:$0xff]
        %v3384 = vld [vmem:[%s7 + $0x180] sm:$0xff]
        %v3385 = vld [vmem:[%s7 + $0x188] sm:$0xff]
        %v3386 = vld [vmem:[%s7 + $0x190] sm:$0xff]
        %v3387 = vld [vmem:[%s7 + $0x198] sm:$0xff]
        %v3388 = vld [vmem:[%s7 + $0x1a0] sm:$0xff]
        %v3389 = vld [vmem:[%s7 + $0x1a8] sm:$0xff]
        %v3390 = vld [vmem:[%s7 + $0x1b0] sm:$0xff]
        %v3391 = vld [vmem:[%s7 + $0x1b8] sm:$0xff]
        %v3392 = vld [vmem:[%s7 + $0x1c0] sm:$0xff]
        %v3393 = vld [vmem:[%s7 + $0x1c8] sm:$0xff]
        %v3394 = vld [vmem:[%s7 + $0x1d0] sm:$0xff]
        %v3395 = vld [vmem:[%s7 + $0x1d8] sm:$0xff]
        %v3396 = vld [vmem:[%s7 + $0x1e0] sm:$0xff]
        %v3397 = vld [vmem:[%s7 + $0x1e8] sm:$0xff]
        %v3398 = vld [vmem:[%s7 + $0x1f0] sm:$0xff]
        %v3399 = vld [vmem:[%s7 + $0x1f8] sm:$0xff]
        %v3400 = vld [vmem:[%s8] sm:$0xff]
        %v3401 = vld [vmem:[%s8 + $0x8] sm:$0xff]
        %v3402 = vld [vmem:[%s8 + $0x10] sm:$0xff]
        %v3403 = vld [vmem:[%s8 + $0x18] sm:$0xff]
        %v3404 = vld [vmem:[%s8 + $0x20] sm:$0xff]
        %v3405 = vld [vmem:[%s8 + $0x28] sm:$0xff]
        %v3406 = vld [vmem:[%s8 + $0x30] sm:$0xff]
        %v3407 = vld [vmem:[%s8 + $0x38] sm:$0xff]
        %v3408 = vld [vmem:[%s8 + $0x40] sm:$0xff]
        %v3409 = vld [vmem:[%s8 + $0x48] sm:$0xff]
        %v3410 = vld [vmem:[%s8 + $0x50] sm:$0xff]
        %v3411 = vld [vmem:[%s8 + $0x58] sm:$0xff]
        %v3412 = vld [vmem:[%s8 + $0x60] sm:$0xff]
        %v3413 = vld [vmem:[%s8 + $0x68] sm:$0xff]
        %v3414 = vld [vmem:[%s8 + $0x70] sm:$0xff]
        %v3415 = vld [vmem:[%s8 + $0x78] sm:$0xff]
        %v3416 = vld [vmem:[%s8 + $0x80] sm:$0xff]
        %v3417 = vld [vmem:[%s8 + $0x88] sm:$0xff]
        %v3418 = vld [vmem:[%s8 + $0x90] sm:$0xff]
        %v3419 = vld [vmem:[%s8 + $0x98] sm:$0xff]
        %v3420 = vld [vmem:[%s8 + $0xa0] sm:$0xff]
        %v3421 = vld [vmem:[%s8 + $0xa8] sm:$0xff]
        %v3422 = vld [vmem:[%s8 + $0xb0] sm:$0xff]
        %v3423 = vld [vmem:[%s8 + $0xb8] sm:$0xff]
        %v3424 = vld [vmem:[%s8 + $0xc0] sm:$0xff]
        %v3425 = vld [vmem:[%s8 + $0xc8] sm:$0xff]
        %v3426 = vld [vmem:[%s8 + $0xd0] sm:$0xff]
        %v3427 = vld [vmem:[%s8 + $0xd8] sm:$0xff]
        %v3428 = vld [vmem:[%s8 + $0xe0] sm:$0xff]
        %v3429 = vld [vmem:[%s8 + $0xe8] sm:$0xff]
        %v3430 = vld [vmem:[%s8 + $0xf0] sm:$0xff]
        %v3431 = vld [vmem:[%s8 + $0xf8] sm:$0xff]
        %v3432 = vld [vmem:[%s8 + $0x100] sm:$0xff]
        %v3433 = vld [vmem:[%s8 + $0x108] sm:$0xff]
        %v3434 = vld [vmem:[%s8 + $0x110] sm:$0xff]
        %v3435 = vld [vmem:[%s8 + $0x118] sm:$0xff]
        %v3436 = vld [vmem:[%s8 + $0x120] sm:$0xff]
        %v3437 = vld [vmem:[%s8 + $0x128] sm:$0xff]
        %v3438 = vld [vmem:[%s8 + $0x130] sm:$0xff]
        %v3439 = vld [vmem:[%s8 + $0x138] sm:$0xff]
        %v3440 = vld [vmem:[%s8 + $0x140] sm:$0xff]
        %v3441 = vld [vmem:[%s8 + $0x148] sm:$0xff]
        %v3442 = vld [vmem:[%s8 + $0x150] sm:$0xff]
        %v3443 = vld [vmem:[%s8 + $0x158] sm:$0xff]
        %v3444 = vld [vmem:[%s8 + $0x160] sm:$0xff]
        %v3445 = vld [vmem:[%s8 + $0x168] sm:$0xff]
        %v3446 = vld [vmem:[%s8 + $0x170] sm:$0xff]
        %v3447 = vld [vmem:[%s8 + $0x178] sm:$0xff]
        %v3448 = vld [vmem:[%s8 + $0x180] sm:$0xff]
        %v3449 = vld [vmem:[%s8 + $0x188] sm:$0xff]
        %v3450 = vld [vmem:[%s8 + $0x190] sm:$0xff]
        %v3451 = vld [vmem:[%s8 + $0x198] sm:$0xff]
        %v3452 = vld [vmem:[%s8 + $0x1a0] sm:$0xff]
        %v3453 = vld [vmem:[%s8 + $0x1a8] sm:$0xff]
        %v3454 = vld [vmem:[%s8 + $0x1b0] sm:$0xff]
        %v3455 = vld [vmem:[%s8 + $0x1b8] sm:$0xff]
        %v3456 = vld [vmem:[%s8 + $0x1c0] sm:$0xff]
        %v3457 = vld [vmem:[%s8 + $0x1c8] sm:$0xff]
        %v3458 = vld [vmem:[%s8 + $0x1d0] sm:$0xff]
        %v3459 = vld [vmem:[%s8 + $0x1d8] sm:$0xff]
        %v3460 = vld [vmem:[%s8 + $0x1e0] sm:$0xff]
        %v3461 = vld [vmem:[%s8 + $0x1e8] sm:$0xff]
        %v3462 = vld [vmem:[%s8 + $0x1f0] sm:$0xff]
        %v3463 = vld [vmem:[%s8 + $0x1f8] sm:$0xff]
        %3465 = vset.pattern.permute.xlu0 0
        %3466 = vperm.xlu0 %3465, %v3304
        %v3467 = vpop.permute.xlu0 %3466
        %3470 = vset.pattern.permute.xlu0 0
        %3471 = vperm.xlu0 %3470, %v3305
        %v3472 = vpop.permute.xlu0 %3471
        %3475 = vset.pattern.permute.xlu0 0
        %3476 = vperm.xlu0 %3475, %v3306
        %v3477 = vpop.permute.xlu0 %3476
        %3480 = vset.pattern.permute.xlu0 0
        %3481 = vperm.xlu0 %3480, %v3307
        %v3482 = vpop.permute.xlu0 %3481
        %3485 = vset.pattern.permute.xlu0 0
        %3486 = vperm.xlu0 %3485, %v3308
        %v3487 = vpop.permute.xlu0 %3486
        %3490 = vset.pattern.permute.xlu0 0
        %3491 = vperm.xlu0 %3490, %v3309
        %v3492 = vpop.permute.xlu0 %3491
        %3495 = vset.pattern.permute.xlu0 0
        %3496 = vperm.xlu0 %3495, %v3310
        %v3497 = vpop.permute.xlu0 %3496
        %3500 = vset.pattern.permute.xlu0 0
        %3501 = vperm.xlu0 %3500, %v3311
        %v3502 = vpop.permute.xlu0 %3501
        %3505 = vset.pattern.permute.xlu0 0
        %3506 = vperm.xlu0 %3505, %v3312
        %v3507 = vpop.permute.xlu0 %3506
        %3510 = vset.pattern.permute.xlu0 0
        %3511 = vperm.xlu0 %3510, %v3313
        %v3512 = vpop.permute.xlu0 %3511
        %3515 = vset.pattern.permute.xlu0 0
        %3516 = vperm.xlu0 %3515, %v3314
        %v3517 = vpop.permute.xlu0 %3516
        %3520 = vset.pattern.permute.xlu0 0
        %3521 = vperm.xlu0 %3520, %v3315
        %v3522 = vpop.permute.xlu0 %3521
        %3525 = vset.pattern.permute.xlu0 0
        %3526 = vperm.xlu0 %3525, %v3316
        %v3527 = vpop.permute.xlu0 %3526
        %3530 = vset.pattern.permute.xlu0 0
        %3531 = vperm.xlu0 %3530, %v3317
        %v3532 = vpop.permute.xlu0 %3531
        %3535 = vset.pattern.permute.xlu0 0
        %3536 = vperm.xlu0 %3535, %v3318
        %v3537 = vpop.permute.xlu0 %3536
        %3540 = vset.pattern.permute.xlu0 0
        %3541 = vperm.xlu0 %3540, %v3319
        %v3542 = vpop.permute.xlu0 %3541
        %3545 = vset.pattern.permute.xlu0 0
        %3546 = vperm.xlu0 %3545, %v3320
        %v3547 = vpop.permute.xlu0 %3546
        %3550 = vset.pattern.permute.xlu0 0
        %3551 = vperm.xlu0 %3550, %v3321
        %v3552 = vpop.permute.xlu0 %3551
        %3555 = vset.pattern.permute.xlu0 0
        %3556 = vperm.xlu0 %3555, %v3322
        %v3557 = vpop.permute.xlu0 %3556
        %3560 = vset.pattern.permute.xlu0 0
        %3561 = vperm.xlu0 %3560, %v3323
        %v3562 = vpop.permute.xlu0 %3561
        %3565 = vset.pattern.permute.xlu0 0
        %3566 = vperm.xlu0 %3565, %v3324
        %v3567 = vpop.permute.xlu0 %3566
        %3570 = vset.pattern.permute.xlu0 0
        %3571 = vperm.xlu0 %3570, %v3325
        %v3572 = vpop.permute.xlu0 %3571
        %3575 = vset.pattern.permute.xlu0 0
        %3576 = vperm.xlu0 %3575, %v3326
        %v3577 = vpop.permute.xlu0 %3576
        %3580 = vset.pattern.permute.xlu0 0
        %3581 = vperm.xlu0 %3580, %v3327
        %v3582 = vpop.permute.xlu0 %3581
        %3585 = vset.pattern.permute.xlu0 0
        %3586 = vperm.xlu0 %3585, %v3328
        %v3587 = vpop.permute.xlu0 %3586
        %3590 = vset.pattern.permute.xlu0 0
        %3591 = vperm.xlu0 %3590, %v3329
        %v3592 = vpop.permute.xlu0 %3591
        %3595 = vset.pattern.permute.xlu0 0
        %3596 = vperm.xlu0 %3595, %v3330
        %v3597 = vpop.permute.xlu0 %3596
        %3600 = vset.pattern.permute.xlu0 0
        %3601 = vperm.xlu0 %3600, %v3331
        %v3602 = vpop.permute.xlu0 %3601
        %3605 = vset.pattern.permute.xlu0 0
        %3606 = vperm.xlu0 %3605, %v3332
        %v3607 = vpop.permute.xlu0 %3606
        %3610 = vset.pattern.permute.xlu0 0
        %3611 = vperm.xlu0 %3610, %v3333
        %v3612 = vpop.permute.xlu0 %3611
        %3615 = vset.pattern.permute.xlu0 0
        %3616 = vperm.xlu0 %3615, %v3334
        %v3617 = vpop.permute.xlu0 %3616
        %3620 = vset.pattern.permute.xlu0 0
        %3621 = vperm.xlu0 %3620, %v3335
        %v3622 = vpop.permute.xlu0 %3621
        %3624 = vmatprep.subr.mxu0 %v3113
        %3625 = vmatpush1.msra.mxu0 %v3112
        %3626 = vmatprep.subr.mxu0 %v3117
        %3627 = vmatpush1.msra.mxu0 %v3116
        %3628 = vmatprep.subr.mxu0 %v3121
        %3629 = vmatpush1.msra.mxu0 %v3120
        %3630 = vmatprep.subr.mxu0 %v3125
        %3631 = vmatpush1.msra.mxu0 %v3124
        %3632 = vmatprep.subr.mxu0 %v3129
        %3633 = vmatpush1.msra.mxu0 %v3128
        %3634 = vmatprep.subr.mxu0 %v3133
        %3635 = vmatpush1.msra.mxu0 %v3132
        %3636 = vmatprep.subr.mxu0 %v3137
        %3637 = vmatpush1.msra.mxu0 %v3136
        %3638 = vmatprep.subr.mxu0 %v3141
        %3639 = vmatpush1.msra.mxu0 %v3140
        %3640 = vmatprep.subr.mxu0 %v3145
        %3641 = vmatpush1.msra.mxu0 %v3144
        %3642 = vmatprep.subr.mxu0 %v3149
        %3643 = vmatpush1.msra.mxu0 %v3148
        %3644 = vmatprep.subr.mxu0 %v3153
        %3645 = vmatpush1.msra.mxu0 %v3152
        %3646 = vmatprep.subr.mxu0 %v3157
        %3647 = vmatpush1.msra.mxu0 %v3156
        %3648 = vmatprep.subr.mxu0 %v3161
        %3649 = vmatpush1.msra.mxu0 %v3160
        %3650 = vmatprep.subr.mxu0 %v3165
        %3651 = vmatpush1.msra.mxu0 %v3164
        %3652 = vmatprep.subr.mxu0 %v3169
        %3653 = vmatpush1.msra.mxu0 %v3168
        %3654 = vmatprep.subr.mxu0 %v3173
        %3655 = vmatpush1.msra.mxu0 %v3172
        %3656 = vmatprep.subr.mxu0 %v3177
        %3657 = vmatpush1.msra.mxu0 %v3176
        %3658 = vmatprep.subr.mxu0 %v3181
        %3659 = vmatpush1.msra.mxu0 %v3180
        %3660 = vmatprep.subr.mxu0 %v3185
        %3661 = vmatpush1.msra.mxu0 %v3184
        %3662 = vmatprep.subr.mxu0 %v3189
        %3663 = vmatpush1.msra.mxu0 %v3188
        %3664 = vmatprep.subr.mxu0 %v3193
        %3665 = vmatpush1.msra.mxu0 %v3192
        %3666 = vmatprep.subr.mxu0 %v3197
        %3667 = vmatpush1.msra.mxu0 %v3196
        %3668 = vmatprep.subr.mxu0 %v3201
        %3669 = vmatpush1.msra.mxu0 %v3200
        %3670 = vmatprep.subr.mxu0 %v3205
        %3671 = vmatpush1.msra.mxu0 %v3204
        %3672 = vmatprep.subr.mxu0 %v3209
        %3673 = vmatpush1.msra.mxu0 %v3208
        %3674 = vmatprep.subr.mxu0 %v3213
        %3675 = vmatpush1.msra.mxu0 %v3212
        %3676 = vmatprep.subr.mxu0 %v3217
        %3677 = vmatpush1.msra.mxu0 %v3216
        %3678 = vmatprep.subr.mxu0 %v3221
        %3679 = vmatpush1.msra.mxu0 %v3220
        %3680 = vmatprep.subr.mxu0 %v3225
        %3681 = vmatpush1.msra.mxu0 %v3224
        %3682 = vmatprep.subr.mxu0 %v3229
        %3683 = vmatpush1.msra.mxu0 %v3228
        %3684 = vmatprep.subr.mxu0 %v3233
        %3685 = vmatpush1.msra.mxu0 %v3232
        %3686 = vmatprep.subr.mxu0 %v3237
        %3687 = vmatpush1.msra.mxu0 %v3236
        %3688 = vmatprep.mubr.f32.mxu0 %v3241
        %3689 = vmatmul.mubr.f32.gmra.mrb[0].mxu0 %v3240
        %v3690 = vpop.f32.mrb[0].mxu0
        %v3691 = vadd.f32 %v3467, %v3690
        %v3692 = vpop.f32.mrb[0].mxu0
        %v3693 = vadd.f32 %v3467, %v3692
        %3694 = vmatprep.mubr.f32.mxu0 %v3243
        %3695 = vmatmul.mubr.f32.gmra.mrb[0].mxu0 %v3242
        %v3696 = vpop.f32.mrb[0].mxu0
        %v3697 = vadd.f32 %v3472, %v3696
        %v3698 = vpop.f32.mrb[0].mxu0
        %v3699 = vadd.f32 %v3472, %v3698
        %3700 = vmatprep.mubr.f32.mxu0 %v3245
        %3701 = vmatmul.mubr.f32.gmra.mrb[0].mxu0 %v3244
        %v3702 = vpop.f32.mrb[0].mxu0
        %v3703 = vadd.f32 %v3477, %v3702
        %v3704 = vpop.f32.mrb[0].mxu0
        %v3705 = vadd.f32 %v3477, %v3704
        %3706 = vmatprep.mubr.f32.mxu0 %v3247
        %3707 = vmatmul.mubr.f32.gmra.mrb[0].mxu0 %v3246
        %v3708 = vpop.f32.mrb[0].mxu0
        %v3709 = vadd.f32 %v3482, %v3708
        %v3710 = vpop.f32.mrb[0].mxu0
        %v3711 = vadd.f32 %v3482, %v3710
        %3712 = vmatprep.mubr.f32.mxu0 %v3249
        %3713 = vmatmul.mubr.f32.gmra.mrb[0].mxu0 %v3248
        %v3714 = vpop.f32.mrb[0].mxu0
        %v3715 = vadd.f32 %v3487, %v3714
        %v3716 = vpop.f32.mrb[0].mxu0
        %v3717 = vadd.f32 %v3487, %v3716
        %3718 = vmatprep.mubr.f32.mxu0 %v3251
        %3719 = vmatmul.mubr.f32.gmra.mrb[0].mxu0 %v3250
        %v3720 = vpop.f32.mrb[0].mxu0
        %v3721 = vadd.f32 %v3492, %v3720
        %v3722 = vpop.f32.mrb[0].mxu0
        %v3723 = vadd.f32 %v3492, %v3722
        %3724 = vmatprep.mubr.f32.mxu0 %v3253
        %3725 = vmatmul.mubr.f32.gmra.mrb[0].mxu0 %v3252
        %v3726 = vpop.f32.mrb[0].mxu0
        %v3727 = vadd.f32 %v3497, %v3726
        %v3728 = vpop.f32.mrb[0].mxu0
        %v3729 = vadd.f32 %v3497, %v3728
        %3730 = vmatprep.mubr.f32.mxu0 %v3255
        %3731 = vmatmul.mubr.f32.gmra.mrb[0].mxu0 %v3254
        %v3732 = vpop.f32.mrb[0].mxu0
        %v3733 = vadd.f32 %v3502, %v3732
        %v3734 = vpop.f32.mrb[0].mxu0
        %v3735 = vadd.f32 %v3502, %v3734
        %3736 = vmatprep.mubr.f32.mxu0 %v3257
        %3737 = vmatmul.mubr.f32.gmra.mrb[0].mxu0 %v3256
        %v3738 = vpop.f32.mrb[0].mxu0
        %v3739 = vadd.f32 %v3507, %v3738
        %v3740 = vpop.f32.mrb[0].mxu0
        %v3741 = vadd.f32 %v3507, %v3740
        %3742 = vmatprep.mubr.f32.mxu0 %v3259
        %3743 = vmatmul.mubr.f32.gmra.mrb[0].mxu0 %v3258
        %v3744 = vpop.f32.mrb[0].mxu0
        %v3745 = vadd.f32 %v3512, %v3744
        %v3746 = vpop.f32.mrb[0].mxu0
        %v3747 = vadd.f32 %v3512, %v3746
        %3748 = vmatprep.mubr.f32.mxu0 %v3261
        %3749 = vmatmul.mubr.f32.gmra.mrb[0].mxu0 %v3260
        %v3750 = vpop.f32.mrb[0].mxu0
        %v3751 = vadd.f32 %v3517, %v3750
        %v3752 = vpop.f32.mrb[0].mxu0
        %v3753 = vadd.f32 %v3517, %v3752
        %3754 = vmatprep.mubr.f32.mxu0 %v3263
        %3755 = vmatmul.mubr.f32.gmra.mrb[0].mxu0 %v3262
        %v3756 = vpop.f32.mrb[0].mxu0
        %v3757 = vadd.f32 %v3522, %v3756
        %v3758 = vpop.f32.mrb[0].mxu0
        %v3759 = vadd.f32 %v3522, %v3758
        %3760 = vmatprep.mubr.f32.mxu0 %v3265
        %3761 = vmatmul.mubr.f32.gmra.mrb[0].mxu0 %v3264
        %v3762 = vpop.f32.mrb[0].mxu0
        %v3763 = vadd.f32 %v3527, %v3762
        %v3764 = vpop.f32.mrb[0].mxu0
        %v3765 = vadd.f32 %v3527, %v3764
        %3766 = vmatprep.mubr.f32.mxu0 %v3267
        %3767 = vmatmul.mubr.f32.gmra.mrb[0].mxu0 %v3266
        %v3768 = vpop.f32.mrb[0].mxu0
        %v3769 = vadd.f32 %v3532, %v3768
        %v3770 = vpop.f32.mrb[0].mxu0
        %v3771 = vadd.f32 %v3532, %v3770
        %3772 = vmatprep.mubr.f32.mxu0 %v3269
        %3773 = vmatmul.mubr.f32.gmra.mrb[0].mxu0 %v3268
        %v3774 = vpop.f32.mrb[0].mxu0
        %v3775 = vadd.f32 %v3537, %v3774
        %v3776 = vpop.f32.mrb[0].mxu0
        %v3777 = vadd.f32 %v3537, %v3776
        %3778 = vmatprep.mubr.f32.mxu0 %v3271
        %3779 = vmatmul.mubr.f32.gmra.mrb[0].mxu0 %v3270
        %v3780 = vpop.f32.mrb[0].mxu0
        %v3781 = vadd.f32 %v3542, %v3780
        %v3782 = vpop.f32.mrb[0].mxu0
        %v3783 = vadd.f32 %v3542, %v3782
        %3784 = vmatprep.mubr.f32.mxu0 %v3273
        %3785 = vmatmul.mubr.f32.gmra.mrb[0].mxu0 %v3272
        %v3786 = vpop.f32.mrb[0].mxu0
        %v3787 = vadd.f32 %v3547, %v3786
        %v3788 = vpop.f32.mrb[0].mxu0
        %v3789 = vadd.f32 %v3547, %v3788
        %3790 = vmatprep.mubr.f32.mxu0 %v3275
        %3791 = vmatmul.mubr.f32.gmra.mrb[0].mxu0 %v3274
        %v3792 = vpop.f32.mrb[0].mxu0
        %v3793 = vadd.f32 %v3552, %v3792
        %v3794 = vpop.f32.mrb[0].mxu0
        %v3795 = vadd.f32 %v3552, %v3794
        %3796 = vmatprep.mubr.f32.mxu0 %v3277
        %3797 = vmatmul.mubr.f32.gmra.mrb[0].mxu0 %v3276
        %v3798 = vpop.f32.mrb[0].mxu0
        %v3799 = vadd.f32 %v3557, %v3798
        %v3800 = vpop.f32.mrb[0].mxu0
        %v3801 = vadd.f32 %v3557, %v3800
        %3802 = vmatprep.mubr.f32.mxu0 %v3279
        %3803 = vmatmul.mubr.f32.gmra.mrb[0].mxu0 %v3278
        %v3804 = vpop.f32.mrb[0].mxu0
        %v3805 = vadd.f32 %v3562, %v3804
        %v3806 = vpop.f32.mrb[0].mxu0
        %v3807 = vadd.f32 %v3562, %v3806
        %3808 = vmatprep.mubr.f32.mxu0 %v3281
        %3809 = vmatmul.mubr.f32.gmra.mrb[0].mxu0 %v3280
        %v3810 = vpop.f32.mrb[0].mxu0
        %v3811 = vadd.f32 %v3567, %v3810
        %v3812 = vpop.f32.mrb[0].mxu0
        %v3813 = vadd.f32 %v3567, %v3812
        %3814 = vmatprep.mubr.f32.mxu0 %v3283
        %3815 = vmatmul.mubr.f32.gmra.mrb[0].mxu0 %v3282
        %v3816 = vpop.f32.mrb[0].mxu0
        %v3817 = vadd.f32 %v3572, %v3816
        %v3818 = vpop.f32.mrb[0].mxu0
        %v3819 = vadd.f32 %v3572, %v3818
        %3820 = vmatprep.mubr.f32.mxu0 %v3285
        %3821 = vmatmul.mubr.f32.gmra.mrb[0].mxu0 %v3284
        %v3822 = vpop.f32.mrb[0].mxu0
        %v3823 = vadd.f32 %v3577, %v3822
        %v3824 = vpop.f32.mrb[0].mxu0
        %v3825 = vadd.f32 %v3577, %v3824
        %3826 = vmatprep.mubr.f32.mxu0 %v3287
        %3827 = vmatmul.mubr.f32.gmra.mrb[0].mxu0 %v3286
        %v3828 = vpop.f32.mrb[0].mxu0
        %v3829 = vadd.f32 %v3582, %v3828
        %v3830 = vpop.f32.mrb[0].mxu0
        %v3831 = vadd.f32 %v3582, %v3830
        %3832 = vmatprep.mubr.f32.mxu0 %v3289
        %3833 = vmatmul.mubr.f32.gmra.mrb[0].mxu0 %v3288
        %v3834 = vpop.f32.mrb[0].mxu0
        %v3835 = vadd.f32 %v3587, %v3834
        %v3836 = vpop.f32.mrb[0].mxu0
        %v3837 = vadd.f32 %v3587, %v3836
        %3838 = vmatprep.mubr.f32.mxu0 %v3291
        %3839 = vmatmul.mubr.f32.gmra.mrb[0].mxu0 %v3290
        %v3840 = vpop.f32.mrb[0].mxu0
        %v3841 = vadd.f32 %v3592, %v3840
        %v3842 = vpop.f32.mrb[0].mxu0
        %v3843 = vadd.f32 %v3592, %v3842
        %3844 = vmatprep.mubr.f32.mxu0 %v3293
        %3845 = vmatmul.mubr.f32.gmra.mrb[0].mxu0 %v3292
        %v3846 = vpop.f32.mrb[0].mxu0
        %v3847 = vadd.f32 %v3597, %v3846
        %v3848 = vpop.f32.mrb[0].mxu0
        %v3849 = vadd.f32 %v3597, %v3848
        %3850 = vmatprep.mubr.f32.mxu0 %v3295
        %3851 = vmatmul.mubr.f32.gmra.mrb[0].mxu0 %v3294
        %v3852 = vpop.f32.mrb[0].mxu0
        %v3853 = vadd.f32 %v3602, %v3852
        %v3854 = vpop.f32.mrb[0].mxu0
        %v3855 = vadd.f32 %v3602, %v3854
        %3856 = vmatprep.mubr.f32.mxu0 %v3297
        %3857 = vmatmul.mubr.f32.gmra.mrb[0].mxu0 %v3296
        %v3858 = vpop.f32.mrb[0].mxu0
        %v3859 = vadd.f32 %v3607, %v3858
        %v3860 = vpop.f32.mrb[0].mxu0
        %v3861 = vadd.f32 %v3607, %v3860
        %3862 = vmatprep.mubr.f32.mxu0 %v3299
        %3863 = vmatmul.mubr.f32.gmra.mrb[0].mxu0 %v3298
        %v3864 = vpop.f32.mrb[0].mxu0
        %v3865 = vadd.f32 %v3612, %v3864
        %v3866 = vpop.f32.mrb[0].mxu0
        %v3867 = vadd.f32 %v3612, %v3866
        %3868 = vmatprep.mubr.f32.mxu0 %v3301
        %3869 = vmatmul.mubr.f32.gmra.mrb[0].mxu0 %v3300
        %v3870 = vpop.f32.mrb[0].mxu0
        %v3871 = vadd.f32 %v3617, %v3870
        %v3872 = vpop.f32.mrb[0].mxu0
        %v3873 = vadd.f32 %v3617, %v3872
        %3874 = vmatprep.mubr.f32.mxu0 %v3303
        %3875 = vmatmul.mubr.f32.gmra.mrb[0].mxu0 %v3302
        %v3876 = vpop.f32.mrb[0].mxu0
        %v3877 = vadd.f32 %v3622, %v3876
        %v3878 = vpop.f32.mrb[0].mxu0
        %v3879 = vadd.f32 %v3622, %v3878
        %3880 = vdwg.mxu0
        %3881 = vmatprep.subr.mxu0 %v3115
        %3882 = vmatpush1.msra.mxu0 %v3114
        %3883 = vmatprep.subr.mxu0 %v3119
        %3884 = vmatpush1.msra.mxu0 %v3118
        %3885 = vmatprep.subr.mxu0 %v3123
        %3886 = vmatpush1.msra.mxu0 %v3122
        %3887 = vmatprep.subr.mxu0 %v3127
        %3888 = vmatpush1.msra.mxu0 %v3126
        %3889 = vmatprep.subr.mxu0 %v3131
        %3890 = vmatpush1.msra.mxu0 %v3130
        %3891 = vmatprep.subr.mxu0 %v3135
        %3892 = vmatpush1.msra.mxu0 %v3134
        %3893 = vmatprep.subr.mxu0 %v3139
        %3894 = vmatpush1.msra.mxu0 %v3138
        %3895 = vmatprep.subr.mxu0 %v3143
        %3896 = vmatpush1.msra.mxu0 %v3142
        %3897 = vmatprep.subr.mxu0 %v3147
        %3898 = vmatpush1.msra.mxu0 %v3146
        %3899 = vmatprep.subr.mxu0 %v3151
        %3900 = vmatpush1.msra.mxu0 %v3150
        %3901 = vmatprep.subr.mxu0 %v3155
        %3902 = vmatpush1.msra.mxu0 %v3154
        %3903 = vmatprep.subr.mxu0 %v3159
        %3904 = vmatpush1.msra.mxu0 %v3158
        %3905 = vmatprep.subr.mxu0 %v3163
        %3906 = vmatpush1.msra.mxu0 %v3162
        %3907 = vmatprep.subr.mxu0 %v3167
        %3908 = vmatpush1.msra.mxu0 %v3166
        %3909 = vmatprep.subr.mxu0 %v3171
        %3910 = vmatpush1.msra.mxu0 %v3170
        %3911 = vmatprep.subr.mxu0 %v3175
        %3912 = vmatpush1.msra.mxu0 %v3174
        %3913 = vmatprep.subr.mxu0 %v3179
        %3914 = vmatpush1.msra.mxu0 %v3178
        %3915 = vmatprep.subr.mxu0 %v3183
        %3916 = vmatpush1.msra.mxu0 %v3182
        %3917 = vmatprep.subr.mxu0 %v3187
        %3918 = vmatpush1.msra.mxu0 %v3186
        %3919 = vmatprep.subr.mxu0 %v3191
        %3920 = vmatpush1.msra.mxu0 %v3190
        %3921 = vmatprep.subr.mxu0 %v3195
        %3922 = vmatpush1.msra.mxu0 %v3194
        %3923 = vmatprep.subr.mxu0 %v3199
        %3924 = vmatpush1.msra.mxu0 %v3198
        %3925 = vmatprep.subr.mxu0 %v3203
        %3926 = vmatpush1.msra.mxu0 %v3202
        %3927 = vmatprep.subr.mxu0 %v3207
        %3928 = vmatpush1.msra.mxu0 %v3206
        %3929 = vmatprep.subr.mxu0 %v3211
        %3930 = vmatpush1.msra.mxu0 %v3210
        %3931 = vmatprep.subr.mxu0 %v3215
        %3932 = vmatpush1.msra.mxu0 %v3214
        %3933 = vmatprep.subr.mxu0 %v3219
        %3934 = vmatpush1.msra.mxu0 %v3218
        %3935 = vmatprep.subr.mxu0 %v3223
        %3936 = vmatpush1.msra.mxu0 %v3222
        %3937 = vmatprep.subr.mxu0 %v3227
        %3938 = vmatpush1.msra.mxu0 %v3226
        %3939 = vmatprep.subr.mxu0 %v3231
        %3940 = vmatpush1.msra.mxu0 %v3230
        %3941 = vmatprep.subr.mxu0 %v3235
        %3942 = vmatpush1.msra.mxu0 %v3234
        %3943 = vmatprep.subr.mxu0 %v3239
        %3944 = vmatpush1.msra.mxu0 %v3238
        %3945 = vmatprep.mubr.f32.mxu0 %v3241
        %3946 = vmatmul.mubr.f32.gmra.mrb[0].mxu0 %v3240
        %v3947 = vpop.f32.mrb[0].mxu0
        %v3948 = vadd.f32 %v3467, %v3947
        %v3949 = vpop.f32.mrb[0].mxu0
        %v3950 = vadd.f32 %v3467, %v3949
        %3951 = vmatprep.mubr.f32.mxu0 %v3243
        %3952 = vmatmul.mubr.f32.gmra.mrb[0].mxu0 %v3242
        %v3953 = vpop.f32.mrb[0].mxu0
        %v3954 = vadd.f32 %v3472, %v3953
        %v3955 = vpop.f32.mrb[0].mxu0
        %v3956 = vadd.f32 %v3472, %v3955
        %3957 = vmatprep.mubr.f32.mxu0 %v3245
        %3958 = vmatmul.mubr.f32.gmra.mrb[0].mxu0 %v3244
        %v3959 = vpop.f32.mrb[0].mxu0
        %v3960 = vadd.f32 %v3477, %v3959
        %v3961 = vpop.f32.mrb[0].mxu0
        %v3962 = vadd.f32 %v3477, %v3961
        %3963 = vmatprep.mubr.f32.mxu0 %v3247
        %3964 = vmatmul.mubr.f32.gmra.mrb[0].mxu0 %v3246
        %v3965 = vpop.f32.mrb[0].mxu0
        %v3966 = vadd.f32 %v3482, %v3965
        %v3967 = vpop.f32.mrb[0].mxu0
        %v3968 = vadd.f32 %v3482, %v3967
        %3969 = vmatprep.mubr.f32.mxu0 %v3249
        %3970 = vmatmul.mubr.f32.gmra.mrb[0].mxu0 %v3248
        %v3971 = vpop.f32.mrb[0].mxu0
        %v3972 = vadd.f32 %v3487, %v3971
        %v3973 = vpop.f32.mrb[0].mxu0
        %v3974 = vadd.f32 %v3487, %v3973
        %3975 = vmatprep.mubr.f32.mxu0 %v3251
        %3976 = vmatmul.mubr.f32.gmra.mrb[0].mxu0 %v3250
        %v3977 = vpop.f32.mrb[0].mxu0
        %v3978 = vadd.f32 %v3492, %v3977
        %v3979 = vpop.f32.mrb[0].mxu0
        %v3980 = vadd.f32 %v3492, %v3979
        %3981 = vmatprep.mubr.f32.mxu0 %v3253
        %3982 = vmatmul.mubr.f32.gmra.mrb[0].mxu0 %v3252
        %v3983 = vpop.f32.mrb[0].mxu0
        %v3984 = vadd.f32 %v3497, %v3983
        %v3985 = vpop.f32.mrb[0].mxu0
        %v3986 = vadd.f32 %v3497, %v3985
        %3987 = vmatprep.mubr.f32.mxu0 %v3255
        %3988 = vmatmul.mubr.f32.gmra.mrb[0].mxu0 %v3254
        %v3989 = vpop.f32.mrb[0].mxu0
        %v3990 = vadd.f32 %v3502, %v3989
        %v3991 = vpop.f32.mrb[0].mxu0
        %v3992 = vadd.f32 %v3502, %v3991
        %3993 = vmatprep.mubr.f32.mxu0 %v3257
        %3994 = vmatmul.mubr.f32.gmra.mrb[0].mxu0 %v3256
        %v3995 = vpop.f32.mrb[0].mxu0
        %v3996 = vadd.f32 %v3507, %v3995
        %v3997 = vpop.f32.mrb[0].mxu0
        %v3998 = vadd.f32 %v3507, %v3997
        %3999 = vmatprep.mubr.f32.mxu0 %v3259
        %4000 = vmatmul.mubr.f32.gmra.mrb[0].mxu0 %v3258
        %v4001 = vpop.f32.mrb[0].mxu0
        %v4002 = vadd.f32 %v3512, %v4001
        %v4003 = vpop.f32.mrb[0].mxu0
        %v4004 = vadd.f32 %v3512, %v4003
        %4005 = vmatprep.mubr.f32.mxu0 %v3261
        %4006 = vmatmul.mubr.f32.gmra.mrb[0].mxu0 %v3260
        %v4007 = vpop.f32.mrb[0].mxu0
        %v4008 = vadd.f32 %v3517, %v4007
        %v4009 = vpop.f32.mrb[0].mxu0
        %v4010 = vadd.f32 %v3517, %v4009
        %4011 = vmatprep.mubr.f32.mxu0 %v3263
        %4012 = vmatmul.mubr.f32.gmra.mrb[0].mxu0 %v3262
        %v4013 = vpop.f32.mrb[0].mxu0
        %v4014 = vadd.f32 %v3522, %v4013
        %v4015 = vpop.f32.mrb[0].mxu0
        %v4016 = vadd.f32 %v3522, %v4015
        %4017 = vmatprep.mubr.f32.mxu0 %v3265
        %4018 = vmatmul.mubr.f32.gmra.mrb[0].mxu0 %v3264
        %v4019 = vpop.f32.mrb[0].mxu0
        %v4020 = vadd.f32 %v3527, %v4019
        %v4021 = vpop.f32.mrb[0].mxu0
        %v4022 = vadd.f32 %v3527, %v4021
        %4023 = vmatprep.mubr.f32.mxu0 %v3267
        %4024 = vmatmul.mubr.f32.gmra.mrb[0].mxu0 %v3266
        %v4025 = vpop.f32.mrb[0].mxu0
        %v4026 = vadd.f32 %v3532, %v4025
        %v4027 = vpop.f32.mrb[0].mxu0
        %v4028 = vadd.f32 %v3532, %v4027
        %4029 = vmatprep.mubr.f32.mxu0 %v3269
        %4030 = vmatmul.mubr.f32.gmra.mrb[0].mxu0 %v3268
        %v4031 = vpop.f32.mrb[0].mxu0
        %v4032 = vadd.f32 %v3537, %v4031
        %v4033 = vpop.f32.mrb[0].mxu0
        %v4034 = vadd.f32 %v3537, %v4033
        %4035 = vmatprep.mubr.f32.mxu0 %v3271
        %4036 = vmatmul.mubr.f32.gmra.mrb[0].mxu0 %v3270
        %v4037 = vpop.f32.mrb[0].mxu0
        %v4038 = vadd.f32 %v3542, %v4037
        %v4039 = vpop.f32.mrb[0].mxu0
        %v4040 = vadd.f32 %v3542, %v4039
        %4041 = vmatprep.mubr.f32.mxu0 %v3273
        %4042 = vmatmul.mubr.f32.gmra.mrb[0].mxu0 %v3272
        %v4043 = vpop.f32.mrb[0].mxu0
        %v4044 = vadd.f32 %v3547, %v4043
        %v4045 = vpop.f32.mrb[0].mxu0
        %v4046 = vadd.f32 %v3547, %v4045
        %4047 = vmatprep.mubr.f32.mxu0 %v3275
        %4048 = vmatmul.mubr.f32.gmra.mrb[0].mxu0 %v3274
        %v4049 = vpop.f32.mrb[0].mxu0
        %v4050 = vadd.f32 %v3552, %v4049
        %v4051 = vpop.f32.mrb[0].mxu0
        %v4052 = vadd.f32 %v3552, %v4051
        %4053 = vmatprep.mubr.f32.mxu0 %v3277
        %4054 = vmatmul.mubr.f32.gmra.mrb[0].mxu0 %v3276
        %v4055 = vpop.f32.mrb[0].mxu0
        %v4056 = vadd.f32 %v3557, %v4055
        %v4057 = vpop.f32.mrb[0].mxu0
        %v4058 = vadd.f32 %v3557, %v4057
        %4059 = vmatprep.mubr.f32.mxu0 %v3279
        %4060 = vmatmul.mubr.f32.gmra.mrb[0].mxu0 %v3278
        %v4061 = vpop.f32.mrb[0].mxu0
        %v4062 = vadd.f32 %v3562, %v4061
        %v4063 = vpop.f32.mrb[0].mxu0
        %v4064 = vadd.f32 %v3562, %v4063
        %4065 = vmatprep.mubr.f32.mxu0 %v3281
        %4066 = vmatmul.mubr.f32.gmra.mrb[0].mxu0 %v3280
        %v4067 = vpop.f32.mrb[0].mxu0
        %v4068 = vadd.f32 %v3567, %v4067
        %v4069 = vpop.f32.mrb[0].mxu0
        %v4070 = vadd.f32 %v3567, %v4069
        %4071 = vmatprep.mubr.f32.mxu0 %v3283
        %4072 = vmatmul.mubr.f32.gmra.mrb[0].mxu0 %v3282
        %v4073 = vpop.f32.mrb[0].mxu0
        %v4074 = vadd.f32 %v3572, %v4073
        %v4075 = vpop.f32.mrb[0].mxu0
        %v4076 = vadd.f32 %v3572, %v4075
        %4077 = vmatprep.mubr.f32.mxu0 %v3285
        %4078 = vmatmul.mubr.f32.gmra.mrb[0].mxu0 %v3284
        %v4079 = vpop.f32.mrb[0].mxu0
        %v4080 = vadd.f32 %v3577, %v4079
        %v4081 = vpop.f32.mrb[0].mxu0
        %v4082 = vadd.f32 %v3577, %v4081
        %4083 = vmatprep.mubr.f32.mxu0 %v3287
        %4084 = vmatmul.mubr.f32.gmra.mrb[0].mxu0 %v3286
        %v4085 = vpop.f32.mrb[0].mxu0
        %v4086 = vadd.f32 %v3582, %v4085
        %v4087 = vpop.f32.mrb[0].mxu0
        %v4088 = vadd.f32 %v3582, %v4087
        %4089 = vmatprep.mubr.f32.mxu0 %v3289
        %4090 = vmatmul.mubr.f32.gmra.mrb[0].mxu0 %v3288
        %v4091 = vpop.f32.mrb[0].mxu0
        %v4092 = vadd.f32 %v3587, %v4091
        %v4093 = vpop.f32.mrb[0].mxu0
        %v4094 = vadd.f32 %v3587, %v4093
        %4095 = vmatprep.mubr.f32.mxu0 %v3291
        %4096 = vmatmul.mubr.f32.gmra.mrb[0].mxu0 %v3290
        %v4097 = vpop.f32.mrb[0].mxu0
        %v4098 = vadd.f32 %v3592, %v4097
        %v4099 = vpop.f32.mrb[0].mxu0
        %v4100 = vadd.f32 %v3592, %v4099
        %4101 = vmatprep.mubr.f32.mxu0 %v3293
        %4102 = vmatmul.mubr.f32.gmra.mrb[0].mxu0 %v3292
        %v4103 = vpop.f32.mrb[0].mxu0
        %v4104 = vadd.f32 %v3597, %v4103
        %v4105 = vpop.f32.mrb[0].mxu0
        %v4106 = vadd.f32 %v3597, %v4105
        %4107 = vmatprep.mubr.f32.mxu0 %v3295
        %4108 = vmatmul.mubr.f32.gmra.mrb[0].mxu0 %v3294
        %v4109 = vpop.f32.mrb[0].mxu0
        %v4110 = vadd.f32 %v3602, %v4109
        %v4111 = vpop.f32.mrb[0].mxu0
        %v4112 = vadd.f32 %v3602, %v4111
        %4113 = vmatprep.mubr.f32.mxu0 %v3297
        %4114 = vmatmul.mubr.f32.gmra.mrb[0].mxu0 %v3296
        %v4115 = vpop.f32.mrb[0].mxu0
        %v4116 = vadd.f32 %v3607, %v4115
        %v4117 = vpop.f32.mrb[0].mxu0
        %v4118 = vadd.f32 %v3607, %v4117
        %4119 = vmatprep.mubr.f32.mxu0 %v3299
        %4120 = vmatmul.mubr.f32.gmra.mrb[0].mxu0 %v3298
        %v4121 = vpop.f32.mrb[0].mxu0
        %v4122 = vadd.f32 %v3612, %v4121
        %v4123 = vpop.f32.mrb[0].mxu0
        %v4124 = vadd.f32 %v3612, %v4123
        %4125 = vmatprep.mubr.f32.mxu0 %v3301
        %4126 = vmatmul.mubr.f32.gmra.mrb[0].mxu0 %v3300
        %v4127 = vpop.f32.mrb[0].mxu0
        %v4128 = vadd.f32 %v3617, %v4127
        %v4129 = vpop.f32.mrb[0].mxu0
        %v4130 = vadd.f32 %v3617, %v4129
        %4131 = vmatprep.mubr.f32.mxu0 %v3303
        %4132 = vmatmul.mubr.f32.gmra.mrb[0].mxu0 %v3302
        %v4133 = vpop.f32.mrb[0].mxu0
        %v4134 = vadd.f32 %v3622, %v4133
        %v4135 = vpop.f32.mrb[0].mxu0
        %v4136 = vadd.f32 %v3622, %v4135
        %4137 = vdwg.mxu0
        %4138 = vmatprep.subr.mxu0 %v3693
        %4139 = vmatpush1.msra.mxu0 %v3691
        %4140 = vmatprep.subr.mxu0 %v3699
        %4141 = vmatpush1.msra.mxu0 %v3697
        %4142 = vmatprep.subr.mxu0 %v3705
        %4143 = vmatpush1.msra.mxu0 %v3703
        %4144 = vmatprep.subr.mxu0 %v3711
        %4145 = vmatpush1.msra.mxu0 %v3709
        %4146 = vmatprep.subr.mxu0 %v3717
        %4147 = vmatpush1.msra.mxu0 %v3715
        %4148 = vmatprep.subr.mxu0 %v3723
        %4149 = vmatpush1.msra.mxu0 %v3721
        %4150 = vmatprep.subr.mxu0 %v3729
        %4151 = vmatpush1.msra.mxu0 %v3727
        %4152 = vmatprep.subr.mxu0 %v3735
        %4153 = vmatpush1.msra.mxu0 %v3733
        %4154 = vmatprep.subr.mxu0 %v3741
        %4155 = vmatpush1.msra.mxu0 %v3739
        %4156 = vmatprep.subr.mxu0 %v3747
        %4157 = vmatpush1.msra.mxu0 %v3745
        %4158 = vmatprep.subr.mxu0 %v3753
        %4159 = vmatpush1.msra.mxu0 %v3751
        %4160 = vmatprep.subr.mxu0 %v3759
        %4161 = vmatpush1.msra.mxu0 %v3757
        %4162 = vmatprep.subr.mxu0 %v3765
        %4163 = vmatpush1.msra.mxu0 %v3763
        %4164 = vmatprep.subr.mxu0 %v3771
        %4165 = vmatpush1.msra.mxu0 %v3769
        %4166 = vmatprep.subr.mxu0 %v3777
        %4167 = vmatpush1.msra.mxu0 %v3775
        %4168 = vmatprep.subr.mxu0 %v3783
        %4169 = vmatpush1.msra.mxu0 %v3781
        %4170 = vmatprep.subr.mxu0 %v3789
        %4171 = vmatpush1.msra.mxu0 %v3787
        %4172 = vmatprep.subr.mxu0 %v3795
        %4173 = vmatpush1.msra.mxu0 %v3793
        %4174 = vmatprep.subr.mxu0 %v3801
        %4175 = vmatpush1.msra.mxu0 %v3799
        %4176 = vmatprep.subr.mxu0 %v3807
        %4177 = vmatpush1.msra.mxu0 %v3805
        %4178 = vmatprep.subr.mxu0 %v3813
        %4179 = vmatpush1.msra.mxu0 %v3811
        %4180 = vmatprep.subr.mxu0 %v3819
        %4181 = vmatpush1.msra.mxu0 %v3817
        %4182 = vmatprep.subr.mxu0 %v3825
        %4183 = vmatpush1.msra.mxu0 %v3823
        %4184 = vmatprep.subr.mxu0 %v3831
        %4185 = vmatpush1.msra.mxu0 %v3829
        %4186 = vmatprep.subr.mxu0 %v3837
        %4187 = vmatpush1.msra.mxu0 %v3835
        %4188 = vmatprep.subr.mxu0 %v3843
        %4189 = vmatpush1.msra.mxu0 %v3841
        %4190 = vmatprep.subr.mxu0 %v3849
        %4191 = vmatpush1.msra.mxu0 %v3847
        %4192 = vmatprep.subr.mxu0 %v3855
        %4193 = vmatpush1.msra.mxu0 %v3853
        %4194 = vmatprep.subr.mxu0 %v3861
        %4195 = vmatpush1.msra.mxu0 %v3859
        %4196 = vmatprep.subr.mxu0 %v3867
        %4197 = vmatpush1.msra.mxu0 %v3865
        %4198 = vmatprep.subr.mxu0 %v3873
        %4199 = vmatpush1.msra.mxu0 %v3871
        %4200 = vmatprep.subr.mxu0 %v3879
        %4201 = vmatpush1.msra.mxu0 %v3877
        %4202 = vmatprep.mubr.f32.mxu0 %v3337
        %4203 = vmatmul.mubr.f32.gmra.mrb[0].mxu0 %v3336
        %v4204 = vpop.f32.mrb[0].mxu0
        %v4205 = vadd.f32 0.0, %v4204
        %v4206 = vpop.f32.mrb[0].mxu0
        %v4207 = vadd.f32 0.0, %v4206
        %4208 = vmatprep.mubr.f32.mxu0 %v3339
        %4209 = vmatmul.mubr.f32.gmra.mrb[0].mxu0 %v3338
        %v4210 = vpop.f32.mrb[0].mxu0
        %v4211 = vadd.f32 0.0, %v4210
        %v4212 = vpop.f32.mrb[0].mxu0
        %v4213 = vadd.f32 0.0, %v4212
        %4214 = vmatprep.mubr.f32.mxu0 %v3341
        %4215 = vmatmul.mubr.f32.gmra.mrb[0].mxu0 %v3340
        %v4216 = vpop.f32.mrb[0].mxu0
        %v4217 = vadd.f32 0.0, %v4216
        %v4218 = vpop.f32.mrb[0].mxu0
        %v4219 = vadd.f32 0.0, %v4218
        %4220 = vmatprep.mubr.f32.mxu0 %v3343
        %4221 = vmatmul.mubr.f32.gmra.mrb[0].mxu0 %v3342
        %v4222 = vpop.f32.mrb[0].mxu0
        %v4223 = vadd.f32 0.0, %v4222
        %v4224 = vpop.f32.mrb[0].mxu0
        %v4225 = vadd.f32 0.0, %v4224
        %4226 = vmatprep.mubr.f32.mxu0 %v3345
        %4227 = vmatmul.mubr.f32.gmra.mrb[0].mxu0 %v3344
        %v4228 = vpop.f32.mrb[0].mxu0
        %v4229 = vadd.f32 0.0, %v4228
        %v4230 = vpop.f32.mrb[0].mxu0
        %v4231 = vadd.f32 0.0, %v4230
        %4232 = vmatprep.mubr.f32.mxu0 %v3347
        %4233 = vmatmul.mubr.f32.gmra.mrb[0].mxu0 %v3346
        %v4234 = vpop.f32.mrb[0].mxu0
        %v4235 = vadd.f32 0.0, %v4234
        %v4236 = vpop.f32.mrb[0].mxu0
        %v4237 = vadd.f32 0.0, %v4236
        %4238 = vmatprep.mubr.f32.mxu0 %v3349
        %4239 = vmatmul.mubr.f32.gmra.mrb[0].mxu0 %v3348
        %v4240 = vpop.f32.mrb[0].mxu0
        %v4241 = vadd.f32 0.0, %v4240
        %v4242 = vpop.f32.mrb[0].mxu0
        %v4243 = vadd.f32 0.0, %v4242
        %4244 = vmatprep.mubr.f32.mxu0 %v3351
        %4245 = vmatmul.mubr.f32.gmra.mrb[0].mxu0 %v3350
        %v4246 = vpop.f32.mrb[0].mxu0
        %v4247 = vadd.f32 0.0, %v4246
        %v4248 = vpop.f32.mrb[0].mxu0
        %v4249 = vadd.f32 0.0, %v4248
        %4250 = vmatprep.mubr.f32.mxu0 %v3353
        %4251 = vmatmul.mubr.f32.gmra.mrb[0].mxu0 %v3352
        %v4252 = vpop.f32.mrb[0].mxu0
        %v4253 = vadd.f32 0.0, %v4252
        %v4254 = vpop.f32.mrb[0].mxu0
        %v4255 = vadd.f32 0.0, %v4254
        %4256 = vmatprep.mubr.f32.mxu0 %v3355
        %4257 = vmatmul.mubr.f32.gmra.mrb[0].mxu0 %v3354
        %v4258 = vpop.f32.mrb[0].mxu0
        %v4259 = vadd.f32 0.0, %v4258
        %v4260 = vpop.f32.mrb[0].mxu0
        %v4261 = vadd.f32 0.0, %v4260
        %4262 = vmatprep.mubr.f32.mxu0 %v3357
        %4263 = vmatmul.mubr.f32.gmra.mrb[0].mxu0 %v3356
        %v4264 = vpop.f32.mrb[0].mxu0
        %v4265 = vadd.f32 0.0, %v4264
        %v4266 = vpop.f32.mrb[0].mxu0
        %v4267 = vadd.f32 0.0, %v4266
        %4268 = vmatprep.mubr.f32.mxu0 %v3359
        %4269 = vmatmul.mubr.f32.gmra.mrb[0].mxu0 %v3358
        %v4270 = vpop.f32.mrb[0].mxu0
        %v4271 = vadd.f32 0.0, %v4270
        %v4272 = vpop.f32.mrb[0].mxu0
        %v4273 = vadd.f32 0.0, %v4272
        %4274 = vmatprep.mubr.f32.mxu0 %v3361
        %4275 = vmatmul.mubr.f32.gmra.mrb[0].mxu0 %v3360
        %v4276 = vpop.f32.mrb[0].mxu0
        %v4277 = vadd.f32 0.0, %v4276
        %v4278 = vpop.f32.mrb[0].mxu0
        %v4279 = vadd.f32 0.0, %v4278
        %4280 = vmatprep.mubr.f32.mxu0 %v3363
        %4281 = vmatmul.mubr.f32.gmra.mrb[0].mxu0 %v3362
        %v4282 = vpop.f32.mrb[0].mxu0
        %v4283 = vadd.f32 0.0, %v4282
        %v4284 = vpop.f32.mrb[0].mxu0
        %v4285 = vadd.f32 0.0, %v4284
        %4286 = vmatprep.mubr.f32.mxu0 %v3365
        %4287 = vmatmul.mubr.f32.gmra.mrb[0].mxu0 %v3364
        %v4288 = vpop.f32.mrb[0].mxu0
        %v4289 = vadd.f32 0.0, %v4288
        %v4290 = vpop.f32.mrb[0].mxu0
        %v4291 = vadd.f32 0.0, %v4290
        %4292 = vmatprep.mubr.f32.mxu0 %v3367
        %4293 = vmatmul.mubr.f32.gmra.mrb[0].mxu0 %v3366
        %v4294 = vpop.f32.mrb[0].mxu0
        %v4295 = vadd.f32 0.0, %v4294
        %v4296 = vpop.f32.mrb[0].mxu0
        %v4297 = vadd.f32 0.0, %v4296
        %4298 = vmatprep.mubr.f32.mxu0 %v3369
        %4299 = vmatmul.mubr.f32.gmra.mrb[0].mxu0 %v3368
        %v4300 = vpop.f32.mrb[0].mxu0
        %v4301 = vadd.f32 0.0, %v4300
        %v4302 = vpop.f32.mrb[0].mxu0
        %v4303 = vadd.f32 0.0, %v4302
        %4304 = vmatprep.mubr.f32.mxu0 %v3371
        %4305 = vmatmul.mubr.f32.gmra.mrb[0].mxu0 %v3370
        %v4306 = vpop.f32.mrb[0].mxu0
        %v4307 = vadd.f32 0.0, %v4306
        %v4308 = vpop.f32.mrb[0].mxu0
        %v4309 = vadd.f32 0.0, %v4308
        %4310 = vmatprep.mubr.f32.mxu0 %v3373
        %4311 = vmatmul.mubr.f32.gmra.mrb[0].mxu0 %v3372
        %v4312 = vpop.f32.mrb[0].mxu0
        %v4313 = vadd.f32 0.0, %v4312
        %v4314 = vpop.f32.mrb[0].mxu0
        %v4315 = vadd.f32 0.0, %v4314
        %4316 = vmatprep.mubr.f32.mxu0 %v3375
        %4317 = vmatmul.mubr.f32.gmra.mrb[0].mxu0 %v3374
        %v4318 = vpop.f32.mrb[0].mxu0
        %v4319 = vadd.f32 0.0, %v4318
        %v4320 = vpop.f32.mrb[0].mxu0
        %v4321 = vadd.f32 0.0, %v4320
        %4322 = vmatprep.mubr.f32.mxu0 %v3377
        %4323 = vmatmul.mubr.f32.gmra.mrb[0].mxu0 %v3376
        %v4324 = vpop.f32.mrb[0].mxu0
        %v4325 = vadd.f32 0.0, %v4324
        %v4326 = vpop.f32.mrb[0].mxu0
        %v4327 = vadd.f32 0.0, %v4326
        %4328 = vmatprep.mubr.f32.mxu0 %v3379
        %4329 = vmatmul.mubr.f32.gmra.mrb[0].mxu0 %v3378
        %v4330 = vpop.f32.mrb[0].mxu0
        %v4331 = vadd.f32 0.0, %v4330
        %v4332 = vpop.f32.mrb[0].mxu0
        %v4333 = vadd.f32 0.0, %v4332
        %4334 = vmatprep.mubr.f32.mxu0 %v3381
        %4335 = vmatmul.mubr.f32.gmra.mrb[0].mxu0 %v3380
        %v4336 = vpop.f32.mrb[0].mxu0
        %v4337 = vadd.f32 0.0, %v4336
        %v4338 = vpop.f32.mrb[0].mxu0
        %v4339 = vadd.f32 0.0, %v4338
        %4340 = vmatprep.mubr.f32.mxu0 %v3383
        %4341 = vmatmul.mubr.f32.gmra.mrb[0].mxu0 %v3382
        %v4342 = vpop.f32.mrb[0].mxu0
        %v4343 = vadd.f32 0.0, %v4342
        %v4344 = vpop.f32.mrb[0].mxu0
        %v4345 = vadd.f32 0.0, %v4344
        %4346 = vmatprep.mubr.f32.mxu0 %v3385
        %4347 = vmatmul.mubr.f32.gmra.mrb[0].mxu0 %v3384
        %v4348 = vpop.f32.mrb[0].mxu0
        %v4349 = vadd.f32 0.0, %v4348
        %v4350 = vpop.f32.mrb[0].mxu0
        %v4351 = vadd.f32 0.0, %v4350
        %4352 = vmatprep.mubr.f32.mxu0 %v3387
        %4353 = vmatmul.mubr.f32.gmra.mrb[0].mxu0 %v3386
        %v4354 = vpop.f32.mrb[0].mxu0
        %v4355 = vadd.f32 0.0, %v4354
        %v4356 = vpop.f32.mrb[0].mxu0
        %v4357 = vadd.f32 0.0, %v4356
        %4358 = vmatprep.mubr.f32.mxu0 %v3389
        %4359 = vmatmul.mubr.f32.gmra.mrb[0].mxu0 %v3388
        %v4360 = vpop.f32.mrb[0].mxu0
        %v4361 = vadd.f32 0.0, %v4360
        %v4362 = vpop.f32.mrb[0].mxu0
        %v4363 = vadd.f32 0.0, %v4362
        %4364 = vmatprep.mubr.f32.mxu0 %v3391
        %4365 = vmatmul.mubr.f32.gmra.mrb[0].mxu0 %v3390
        %v4366 = vpop.f32.mrb[0].mxu0
        %v4367 = vadd.f32 0.0, %v4366
        %v4368 = vpop.f32.mrb[0].mxu0
        %v4369 = vadd.f32 0.0, %v4368
        %4370 = vmatprep.mubr.f32.mxu0 %v3393
        %4371 = vmatmul.mubr.f32.gmra.mrb[0].mxu0 %v3392
        %v4372 = vpop.f32.mrb[0].mxu0
        %v4373 = vadd.f32 0.0, %v4372
        %v4374 = vpop.f32.mrb[0].mxu0
        %v4375 = vadd.f32 0.0, %v4374
        %4376 = vmatprep.mubr.f32.mxu0 %v3395
        %4377 = vmatmul.mubr.f32.gmra.mrb[0].mxu0 %v3394
        %v4378 = vpop.f32.mrb[0].mxu0
        %v4379 = vadd.f32 0.0, %v4378
        %v4380 = vpop.f32.mrb[0].mxu0
        %v4381 = vadd.f32 0.0, %v4380
        %4382 = vmatprep.mubr.f32.mxu0 %v3397
        %4383 = vmatmul.mubr.f32.gmra.mrb[0].mxu0 %v3396
        %v4384 = vpop.f32.mrb[0].mxu0
        %v4385 = vadd.f32 0.0, %v4384
        %v4386 = vpop.f32.mrb[0].mxu0
        %v4387 = vadd.f32 0.0, %v4386
        %4388 = vmatprep.mubr.f32.mxu0 %v3399
        %4389 = vmatmul.mubr.f32.gmra.mrb[0].mxu0 %v3398
        %v4390 = vpop.f32.mrb[0].mxu0
        %v4391 = vadd.f32 0.0, %v4390
        %v4392 = vpop.f32.mrb[0].mxu0
        %v4393 = vadd.f32 0.0, %v4392
        %4394 = vdwg.mxu0
        %4395 = vmatprep.subr.mxu0 %v3950
        %4396 = vmatpush1.msra.mxu0 %v3948
        %4397 = vmatprep.subr.mxu0 %v3956
        %4398 = vmatpush1.msra.mxu0 %v3954
        %4399 = vmatprep.subr.mxu0 %v3962
        %4400 = vmatpush1.msra.mxu0 %v3960
        %4401 = vmatprep.subr.mxu0 %v3968
        %4402 = vmatpush1.msra.mxu0 %v3966
        %4403 = vmatprep.subr.mxu0 %v3974
        %4404 = vmatpush1.msra.mxu0 %v3972
        %4405 = vmatprep.subr.mxu0 %v3980
        %4406 = vmatpush1.msra.mxu0 %v3978
        %4407 = vmatprep.subr.mxu0 %v3986
        %4408 = vmatpush1.msra.mxu0 %v3984
        %4409 = vmatprep.subr.mxu0 %v3992
        %4410 = vmatpush1.msra.mxu0 %v3990
        %4411 = vmatprep.subr.mxu0 %v3998
        %4412 = vmatpush1.msra.mxu0 %v3996
        %4413 = vmatprep.subr.mxu0 %v4004
        %4414 = vmatpush1.msra.mxu0 %v4002
        %4415 = vmatprep.subr.mxu0 %v4010
        %4416 = vmatpush1.msra.mxu0 %v4008
        %4417 = vmatprep.subr.mxu0 %v4016
        %4418 = vmatpush1.msra.mxu0 %v4014
        %4419 = vmatprep.subr.mxu0 %v4022
        %4420 = vmatpush1.msra.mxu0 %v4020
        %4421 = vmatprep.subr.mxu0 %v4028
        %4422 = vmatpush1.msra.mxu0 %v4026
        %4423 = vmatprep.subr.mxu0 %v4034
        %4424 = vmatpush1.msra.mxu0 %v4032
        %4425 = vmatprep.subr.mxu0 %v4040
        %4426 = vmatpush1.msra.mxu0 %v4038
        %4427 = vmatprep.subr.mxu0 %v4046
        %4428 = vmatpush1.msra.mxu0 %v4044
        %4429 = vmatprep.subr.mxu0 %v4052
        %4430 = vmatpush1.msra.mxu0 %v4050
        %4431 = vmatprep.subr.mxu0 %v4058
        %4432 = vmatpush1.msra.mxu0 %v4056
        %4433 = vmatprep.subr.mxu0 %v4064
        %4434 = vmatpush1.msra.mxu0 %v4062
        %4435 = vmatprep.subr.mxu0 %v4070
        %4436 = vmatpush1.msra.mxu0 %v4068
        %4437 = vmatprep.subr.mxu0 %v4076
        %4438 = vmatpush1.msra.mxu0 %v4074
        %4439 = vmatprep.subr.mxu0 %v4082
        %4440 = vmatpush1.msra.mxu0 %v4080
        %4441 = vmatprep.subr.mxu0 %v4088
        %4442 = vmatpush1.msra.mxu0 %v4086
        %4443 = vmatprep.subr.mxu0 %v4094
        %4444 = vmatpush1.msra.mxu0 %v4092
        %4445 = vmatprep.subr.mxu0 %v4100
        %4446 = vmatpush1.msra.mxu0 %v4098
        %4447 = vmatprep.subr.mxu0 %v4106
        %4448 = vmatpush1.msra.mxu0 %v4104
        %4449 = vmatprep.subr.mxu0 %v4112
        %4450 = vmatpush1.msra.mxu0 %v4110
        %4451 = vmatprep.subr.mxu0 %v4118
        %4452 = vmatpush1.msra.mxu0 %v4116
        %4453 = vmatprep.subr.mxu0 %v4124
        %4454 = vmatpush1.msra.mxu0 %v4122
        %4455 = vmatprep.subr.mxu0 %v4130
        %4456 = vmatpush1.msra.mxu0 %v4128
        %4457 = vmatprep.subr.mxu0 %v4136
        %4458 = vmatpush1.msra.mxu0 %v4134
        %4459 = vmatprep.mubr.f32.mxu0 %v3337
        %4460 = vmatmul.mubr.f32.gmra.mrb[0].mxu0 %v3336
        %v4461 = vpop.f32.mrb[0].mxu0
        %v4462 = vadd.f32 0.0, %v4461
        %v4463 = vpop.f32.mrb[0].mxu0
        %v4464 = vadd.f32 0.0, %v4463
        %4465 = vmatprep.mubr.f32.mxu0 %v3339
        %4466 = vmatmul.mubr.f32.gmra.mrb[0].mxu0 %v3338
        %v4467 = vpop.f32.mrb[0].mxu0
        %v4468 = vadd.f32 0.0, %v4467
        %v4469 = vpop.f32.mrb[0].mxu0
        %v4470 = vadd.f32 0.0, %v4469
        %4471 = vmatprep.mubr.f32.mxu0 %v3341
        %4472 = vmatmul.mubr.f32.gmra.mrb[0].mxu0 %v3340
        %v4473 = vpop.f32.mrb[0].mxu0
        %v4474 = vadd.f32 0.0, %v4473
        %v4475 = vpop.f32.mrb[0].mxu0
        %v4476 = vadd.f32 0.0, %v4475
        %4477 = vmatprep.mubr.f32.mxu0 %v3343
        %4478 = vmatmul.mubr.f32.gmra.mrb[0].mxu0 %v3342
        %v4479 = vpop.f32.mrb[0].mxu0
        %v4480 = vadd.f32 0.0, %v4479
        %v4481 = vpop.f32.mrb[0].mxu0
        %v4482 = vadd.f32 0.0, %v4481
        %4483 = vmatprep.mubr.f32.mxu0 %v3345
        %4484 = vmatmul.mubr.f32.gmra.mrb[0].mxu0 %v3344
        %v4485 = vpop.f32.mrb[0].mxu0
        %v4486 = vadd.f32 0.0, %v4485
        %v4487 = vpop.f32.mrb[0].mxu0
        %v4488 = vadd.f32 0.0, %v4487
        %4489 = vmatprep.mubr.f32.mxu0 %v3347
        %4490 = vmatmul.mubr.f32.gmra.mrb[0].mxu0 %v3346
        %v4491 = vpop.f32.mrb[0].mxu0
        %v4492 = vadd.f32 0.0, %v4491
        %v4493 = vpop.f32.mrb[0].mxu0
        %v4494 = vadd.f32 0.0, %v4493
        %4495 = vmatprep.mubr.f32.mxu0 %v3349
        %4496 = vmatmul.mubr.f32.gmra.mrb[0].mxu0 %v3348
        %v4497 = vpop.f32.mrb[0].mxu0
        %v4498 = vadd.f32 0.0, %v4497
        %v4499 = vpop.f32.mrb[0].mxu0
        %v4500 = vadd.f32 0.0, %v4499
        %4501 = vmatprep.mubr.f32.mxu0 %v3351
        %4502 = vmatmul.mubr.f32.gmra.mrb[0].mxu0 %v3350
        %v4503 = vpop.f32.mrb[0].mxu0
        %v4504 = vadd.f32 0.0, %v4503
        %v4505 = vpop.f32.mrb[0].mxu0
        %v4506 = vadd.f32 0.0, %v4505
        %4507 = vmatprep.mubr.f32.mxu0 %v3353
        %4508 = vmatmul.mubr.f32.gmra.mrb[0].mxu0 %v3352
        %v4509 = vpop.f32.mrb[0].mxu0
        %v4510 = vadd.f32 0.0, %v4509
        %v4511 = vpop.f32.mrb[0].mxu0
        %v4512 = vadd.f32 0.0, %v4511
        %4513 = vmatprep.mubr.f32.mxu0 %v3355
        %4514 = vmatmul.mubr.f32.gmra.mrb[0].mxu0 %v3354
        %v4515 = vpop.f32.mrb[0].mxu0
        %v4516 = vadd.f32 0.0, %v4515
        %v4517 = vpop.f32.mrb[0].mxu0
        %v4518 = vadd.f32 0.0, %v4517
        %4519 = vmatprep.mubr.f32.mxu0 %v3357
        %4520 = vmatmul.mubr.f32.gmra.mrb[0].mxu0 %v3356
        %v4521 = vpop.f32.mrb[0].mxu0
        %v4522 = vadd.f32 0.0, %v4521
        %v4523 = vpop.f32.mrb[0].mxu0
        %v4524 = vadd.f32 0.0, %v4523
        %4525 = vmatprep.mubr.f32.mxu0 %v3359
        %4526 = vmatmul.mubr.f32.gmra.mrb[0].mxu0 %v3358
        %v4527 = vpop.f32.mrb[0].mxu0
        %v4528 = vadd.f32 0.0, %v4527
        %v4529 = vpop.f32.mrb[0].mxu0
        %v4530 = vadd.f32 0.0, %v4529
        %4531 = vmatprep.mubr.f32.mxu0 %v3361
        %4532 = vmatmul.mubr.f32.gmra.mrb[0].mxu0 %v3360
        %v4533 = vpop.f32.mrb[0].mxu0
        %v4534 = vadd.f32 0.0, %v4533
        %v4535 = vpop.f32.mrb[0].mxu0
        %v4536 = vadd.f32 0.0, %v4535
        %4537 = vmatprep.mubr.f32.mxu0 %v3363
        %4538 = vmatmul.mubr.f32.gmra.mrb[0].mxu0 %v3362
        %v4539 = vpop.f32.mrb[0].mxu0
        %v4540 = vadd.f32 0.0, %v4539
        %v4541 = vpop.f32.mrb[0].mxu0
        %v4542 = vadd.f32 0.0, %v4541
        %4543 = vmatprep.mubr.f32.mxu0 %v3365
        %4544 = vmatmul.mubr.f32.gmra.mrb[0].mxu0 %v3364
        %v4545 = vpop.f32.mrb[0].mxu0
        %v4546 = vadd.f32 0.0, %v4545
        %v4547 = vpop.f32.mrb[0].mxu0
        %v4548 = vadd.f32 0.0, %v4547
        %4549 = vmatprep.mubr.f32.mxu0 %v3367
        %4550 = vmatmul.mubr.f32.gmra.mrb[0].mxu0 %v3366
        %v4551 = vpop.f32.mrb[0].mxu0
        %v4552 = vadd.f32 0.0, %v4551
        %v4553 = vpop.f32.mrb[0].mxu0
        %v4554 = vadd.f32 0.0, %v4553
        %4555 = vmatprep.mubr.f32.mxu0 %v3369
        %4556 = vmatmul.mubr.f32.gmra.mrb[0].mxu0 %v3368
        %v4557 = vpop.f32.mrb[0].mxu0
        %v4558 = vadd.f32 0.0, %v4557
        %v4559 = vpop.f32.mrb[0].mxu0
        %v4560 = vadd.f32 0.0, %v4559
        %4561 = vmatprep.mubr.f32.mxu0 %v3371
        %4562 = vmatmul.mubr.f32.gmra.mrb[0].mxu0 %v3370
        %v4563 = vpop.f32.mrb[0].mxu0
        %v4564 = vadd.f32 0.0, %v4563
        %v4565 = vpop.f32.mrb[0].mxu0
        %v4566 = vadd.f32 0.0, %v4565
        %4567 = vmatprep.mubr.f32.mxu0 %v3373
        %4568 = vmatmul.mubr.f32.gmra.mrb[0].mxu0 %v3372
        %v4569 = vpop.f32.mrb[0].mxu0
        %v4570 = vadd.f32 0.0, %v4569
        %v4571 = vpop.f32.mrb[0].mxu0
        %v4572 = vadd.f32 0.0, %v4571
        %4573 = vmatprep.mubr.f32.mxu0 %v3375
        %4574 = vmatmul.mubr.f32.gmra.mrb[0].mxu0 %v3374
        %v4575 = vpop.f32.mrb[0].mxu0
        %v4576 = vadd.f32 0.0, %v4575
        %v4577 = vpop.f32.mrb[0].mxu0
        %v4578 = vadd.f32 0.0, %v4577
        %4579 = vmatprep.mubr.f32.mxu0 %v3377
        %4580 = vmatmul.mubr.f32.gmra.mrb[0].mxu0 %v3376
        %v4581 = vpop.f32.mrb[0].mxu0
        %v4582 = vadd.f32 0.0, %v4581
        %v4583 = vpop.f32.mrb[0].mxu0
        %v4584 = vadd.f32 0.0, %v4583
        %4585 = vmatprep.mubr.f32.mxu0 %v3379
        %4586 = vmatmul.mubr.f32.gmra.mrb[0].mxu0 %v3378
        %v4587 = vpop.f32.mrb[0].mxu0
        %v4588 = vadd.f32 0.0, %v4587
        %v4589 = vpop.f32.mrb[0].mxu0
        %v4590 = vadd.f32 0.0, %v4589
        %4591 = vmatprep.mubr.f32.mxu0 %v3381
        %4592 = vmatmul.mubr.f32.gmra.mrb[0].mxu0 %v3380
        %v4593 = vpop.f32.mrb[0].mxu0
        %v4594 = vadd.f32 0.0, %v4593
        %v4595 = vpop.f32.mrb[0].mxu0
        %v4596 = vadd.f32 0.0, %v4595
        %4597 = vmatprep.mubr.f32.mxu0 %v3383
        %4598 = vmatmul.mubr.f32.gmra.mrb[0].mxu0 %v3382
        %v4599 = vpop.f32.mrb[0].mxu0
        %v4600 = vadd.f32 0.0, %v4599
        %v4601 = vpop.f32.mrb[0].mxu0
        %v4602 = vadd.f32 0.0, %v4601
        %4603 = vmatprep.mubr.f32.mxu0 %v3385
        %4604 = vmatmul.mubr.f32.gmra.mrb[0].mxu0 %v3384
        %v4605 = vpop.f32.mrb[0].mxu0
        %v4606 = vadd.f32 0.0, %v4605
        %v4607 = vpop.f32.mrb[0].mxu0
        %v4608 = vadd.f32 0.0, %v4607
        %4609 = vmatprep.mubr.f32.mxu0 %v3387
        %4610 = vmatmul.mubr.f32.gmra.mrb[0].mxu0 %v3386
        %v4611 = vpop.f32.mrb[0].mxu0
        %v4612 = vadd.f32 0.0, %v4611
        %v4613 = vpop.f32.mrb[0].mxu0
        %v4614 = vadd.f32 0.0, %v4613
        %4615 = vmatprep.mubr.f32.mxu0 %v3389
        %4616 = vmatmul.mubr.f32.gmra.mrb[0].mxu0 %v3388
        %v4617 = vpop.f32.mrb[0].mxu0
        %v4618 = vadd.f32 0.0, %v4617
        %v4619 = vpop.f32.mrb[0].mxu0
        %v4620 = vadd.f32 0.0, %v4619
        %4621 = vmatprep.mubr.f32.mxu0 %v3391
        %4622 = vmatmul.mubr.f32.gmra.mrb[0].mxu0 %v3390
        %v4623 = vpop.f32.mrb[0].mxu0
        %v4624 = vadd.f32 0.0, %v4623
        %v4625 = vpop.f32.mrb[0].mxu0
        %v4626 = vadd.f32 0.0, %v4625
        %4627 = vmatprep.mubr.f32.mxu0 %v3393
        %4628 = vmatmul.mubr.f32.gmra.mrb[0].mxu0 %v3392
        %v4629 = vpop.f32.mrb[0].mxu0
        %v4630 = vadd.f32 0.0, %v4629
        %v4631 = vpop.f32.mrb[0].mxu0
        %v4632 = vadd.f32 0.0, %v4631
        %4633 = vmatprep.mubr.f32.mxu0 %v3395
        %4634 = vmatmul.mubr.f32.gmra.mrb[0].mxu0 %v3394
        %v4635 = vpop.f32.mrb[0].mxu0
        %v4636 = vadd.f32 0.0, %v4635
        %v4637 = vpop.f32.mrb[0].mxu0
        %v4638 = vadd.f32 0.0, %v4637
        %4639 = vmatprep.mubr.f32.mxu0 %v3397
        %4640 = vmatmul.mubr.f32.gmra.mrb[0].mxu0 %v3396
        %v4641 = vpop.f32.mrb[0].mxu0
        %v4642 = vadd.f32 0.0, %v4641
        %v4643 = vpop.f32.mrb[0].mxu0
        %v4644 = vadd.f32 0.0, %v4643
        %4645 = vmatprep.mubr.f32.mxu0 %v3399
        %4646 = vmatmul.mubr.f32.gmra.mrb[0].mxu0 %v3398
        %v4647 = vpop.f32.mrb[0].mxu0
        %v4648 = vadd.f32 0.0, %v4647
        %v4649 = vpop.f32.mrb[0].mxu0
        %v4650 = vadd.f32 0.0, %v4649
        %4651 = vdwg.mxu0
        %4652 = vmatprep.subr.mxu0 %v3693
        %4653 = vmatpush1.msra.mxu0 %v3691
        %4654 = vmatprep.subr.mxu0 %v3699
        %4655 = vmatpush1.msra.mxu0 %v3697
        %4656 = vmatprep.subr.mxu0 %v3705
        %4657 = vmatpush1.msra.mxu0 %v3703
        %4658 = vmatprep.subr.mxu0 %v3711
        %4659 = vmatpush1.msra.mxu0 %v3709
        %4660 = vmatprep.subr.mxu0 %v3717
        %4661 = vmatpush1.msra.mxu0 %v3715
        %4662 = vmatprep.subr.mxu0 %v3723
        %4663 = vmatpush1.msra.mxu0 %v3721
        %4664 = vmatprep.subr.mxu0 %v3729
        %4665 = vmatpush1.msra.mxu0 %v3727
        %4666 = vmatprep.subr.mxu0 %v3735
        %4667 = vmatpush1.msra.mxu0 %v3733
        %4668 = vmatprep.subr.mxu0 %v3741
        %4669 = vmatpush1.msra.mxu0 %v3739
        %4670 = vmatprep.subr.mxu0 %v3747
        %4671 = vmatpush1.msra.mxu0 %v3745
        %4672 = vmatprep.subr.mxu0 %v3753
        %4673 = vmatpush1.msra.mxu0 %v3751
        %4674 = vmatprep.subr.mxu0 %v3759
        %4675 = vmatpush1.msra.mxu0 %v3757
        %4676 = vmatprep.subr.mxu0 %v3765
        %4677 = vmatpush1.msra.mxu0 %v3763
        %4678 = vmatprep.subr.mxu0 %v3771
        %4679 = vmatpush1.msra.mxu0 %v3769
        %4680 = vmatprep.subr.mxu0 %v3777
        %4681 = vmatpush1.msra.mxu0 %v3775
        %4682 = vmatprep.subr.mxu0 %v3783
        %4683 = vmatpush1.msra.mxu0 %v3781
        %4684 = vmatprep.subr.mxu0 %v3789
        %4685 = vmatpush1.msra.mxu0 %v3787
        %4686 = vmatprep.subr.mxu0 %v3795
        %4687 = vmatpush1.msra.mxu0 %v3793
        %4688 = vmatprep.subr.mxu0 %v3801
        %4689 = vmatpush1.msra.mxu0 %v3799
        %4690 = vmatprep.subr.mxu0 %v3807
        %4691 = vmatpush1.msra.mxu0 %v3805
        %4692 = vmatprep.subr.mxu0 %v3813
        %4693 = vmatpush1.msra.mxu0 %v3811
        %4694 = vmatprep.subr.mxu0 %v3819
        %4695 = vmatpush1.msra.mxu0 %v3817
        %4696 = vmatprep.subr.mxu0 %v3825
        %4697 = vmatpush1.msra.mxu0 %v3823
        %4698 = vmatprep.subr.mxu0 %v3831
        %4699 = vmatpush1.msra.mxu0 %v3829
        %4700 = vmatprep.subr.mxu0 %v3837
        %4701 = vmatpush1.msra.mxu0 %v3835
        %4702 = vmatprep.subr.mxu0 %v3843
        %4703 = vmatpush1.msra.mxu0 %v3841
        %4704 = vmatprep.subr.mxu0 %v3849
        %4705 = vmatpush1.msra.mxu0 %v3847
        %4706 = vmatprep.subr.mxu0 %v3855
        %4707 = vmatpush1.msra.mxu0 %v3853
        %4708 = vmatprep.subr.mxu0 %v3861
        %4709 = vmatpush1.msra.mxu0 %v3859
        %4710 = vmatprep.subr.mxu0 %v3867
        %4711 = vmatpush1.msra.mxu0 %v3865
        %4712 = vmatprep.subr.mxu0 %v3873
        %4713 = vmatpush1.msra.mxu0 %v3871
        %4714 = vmatprep.subr.mxu0 %v3879
        %4715 = vmatpush1.msra.mxu0 %v3877
        %4716 = vmatprep.mubr.f32.mxu0 %v3401
        %4717 = vmatmul.mubr.f32.gmra.mrb[0].mxu0 %v3400
        %v4718 = vpop.f32.mrb[0].mxu0
        %v4719 = vadd.f32 0.0, %v4718
        %v4720 = vpop.f32.mrb[0].mxu0
        %v4721 = vadd.f32 0.0, %v4720
        %4722 = vmatprep.mubr.f32.mxu0 %v3403
        %4723 = vmatmul.mubr.f32.gmra.mrb[0].mxu0 %v3402
        %v4724 = vpop.f32.mrb[0].mxu0
        %v4725 = vadd.f32 0.0, %v4724
        %v4726 = vpop.f32.mrb[0].mxu0
        %v4727 = vadd.f32 0.0, %v4726
        %4728 = vmatprep.mubr.f32.mxu0 %v3405
        %4729 = vmatmul.mubr.f32.gmra.mrb[0].mxu0 %v3404
        %v4730 = vpop.f32.mrb[0].mxu0
        %v4731 = vadd.f32 0.0, %v4730
        %v4732 = vpop.f32.mrb[0].mxu0
        %v4733 = vadd.f32 0.0, %v4732
        %4734 = vmatprep.mubr.f32.mxu0 %v3407
        %4735 = vmatmul.mubr.f32.gmra.mrb[0].mxu0 %v3406
        %v4736 = vpop.f32.mrb[0].mxu0
        %v4737 = vadd.f32 0.0, %v4736
        %v4738 = vpop.f32.mrb[0].mxu0
        %v4739 = vadd.f32 0.0, %v4738
        %4740 = vmatprep.mubr.f32.mxu0 %v3409
        %4741 = vmatmul.mubr.f32.gmra.mrb[0].mxu0 %v3408
        %v4742 = vpop.f32.mrb[0].mxu0
        %v4743 = vadd.f32 0.0, %v4742
        %v4744 = vpop.f32.mrb[0].mxu0
        %v4745 = vadd.f32 0.0, %v4744
        %4746 = vmatprep.mubr.f32.mxu0 %v3411
        %4747 = vmatmul.mubr.f32.gmra.mrb[0].mxu0 %v3410
        %v4748 = vpop.f32.mrb[0].mxu0
        %v4749 = vadd.f32 0.0, %v4748
        %v4750 = vpop.f32.mrb[0].mxu0
        %v4751 = vadd.f32 0.0, %v4750
        %4752 = vmatprep.mubr.f32.mxu0 %v3413
        %4753 = vmatmul.mubr.f32.gmra.mrb[0].mxu0 %v3412
        %v4754 = vpop.f32.mrb[0].mxu0
        %v4755 = vadd.f32 0.0, %v4754
        %v4756 = vpop.f32.mrb[0].mxu0
        %v4757 = vadd.f32 0.0, %v4756
        %4758 = vmatprep.mubr.f32.mxu0 %v3415
        %4759 = vmatmul.mubr.f32.gmra.mrb[0].mxu0 %v3414
        %v4760 = vpop.f32.mrb[0].mxu0
        %v4761 = vadd.f32 0.0, %v4760
        %v4762 = vpop.f32.mrb[0].mxu0
        %v4763 = vadd.f32 0.0, %v4762
        %4764 = vmatprep.mubr.f32.mxu0 %v3417
        %4765 = vmatmul.mubr.f32.gmra.mrb[0].mxu0 %v3416
        %v4766 = vpop.f32.mrb[0].mxu0
        %v4767 = vadd.f32 0.0, %v4766
        %v4768 = vpop.f32.mrb[0].mxu0
        %v4769 = vadd.f32 0.0, %v4768
        %4770 = vmatprep.mubr.f32.mxu0 %v3419
        %4771 = vmatmul.mubr.f32.gmra.mrb[0].mxu0 %v3418
        %v4772 = vpop.f32.mrb[0].mxu0
        %v4773 = vadd.f32 0.0, %v4772
        %v4774 = vpop.f32.mrb[0].mxu0
        %v4775 = vadd.f32 0.0, %v4774
        %4776 = vmatprep.mubr.f32.mxu0 %v3421
        %4777 = vmatmul.mubr.f32.gmra.mrb[0].mxu0 %v3420
        %v4778 = vpop.f32.mrb[0].mxu0
        %v4779 = vadd.f32 0.0, %v4778
        %v4780 = vpop.f32.mrb[0].mxu0
        %v4781 = vadd.f32 0.0, %v4780
        %4782 = vmatprep.mubr.f32.mxu0 %v3423
        %4783 = vmatmul.mubr.f32.gmra.mrb[0].mxu0 %v3422
        %v4784 = vpop.f32.mrb[0].mxu0
        %v4785 = vadd.f32 0.0, %v4784
        %v4786 = vpop.f32.mrb[0].mxu0
        %v4787 = vadd.f32 0.0, %v4786
        %4788 = vmatprep.mubr.f32.mxu0 %v3425
        %4789 = vmatmul.mubr.f32.gmra.mrb[0].mxu0 %v3424
        %v4790 = vpop.f32.mrb[0].mxu0
        %v4791 = vadd.f32 0.0, %v4790
        %v4792 = vpop.f32.mrb[0].mxu0
        %v4793 = vadd.f32 0.0, %v4792
        %4794 = vmatprep.mubr.f32.mxu0 %v3427
        %4795 = vmatmul.mubr.f32.gmra.mrb[0].mxu0 %v3426
        %v4796 = vpop.f32.mrb[0].mxu0
        %v4797 = vadd.f32 0.0, %v4796
        %v4798 = vpop.f32.mrb[0].mxu0
        %v4799 = vadd.f32 0.0, %v4798
        %4800 = vmatprep.mubr.f32.mxu0 %v3429
        %4801 = vmatmul.mubr.f32.gmra.mrb[0].mxu0 %v3428
        %v4802 = vpop.f32.mrb[0].mxu0
        %v4803 = vadd.f32 0.0, %v4802
        %v4804 = vpop.f32.mrb[0].mxu0
        %v4805 = vadd.f32 0.0, %v4804
        %4806 = vmatprep.mubr.f32.mxu0 %v3431
        %4807 = vmatmul.mubr.f32.gmra.mrb[0].mxu0 %v3430
        %v4808 = vpop.f32.mrb[0].mxu0
        %v4809 = vadd.f32 0.0, %v4808
        %v4810 = vpop.f32.mrb[0].mxu0
        %v4811 = vadd.f32 0.0, %v4810
        %4812 = vmatprep.mubr.f32.mxu0 %v3433
        %4813 = vmatmul.mubr.f32.gmra.mrb[0].mxu0 %v3432
        %v4814 = vpop.f32.mrb[0].mxu0
        %v4815 = vadd.f32 0.0, %v4814
        %v4816 = vpop.f32.mrb[0].mxu0
        %v4817 = vadd.f32 0.0, %v4816
        %4818 = vmatprep.mubr.f32.mxu0 %v3435
        %4819 = vmatmul.mubr.f32.gmra.mrb[0].mxu0 %v3434
        %v4820 = vpop.f32.mrb[0].mxu0
        %v4821 = vadd.f32 0.0, %v4820
        %v4822 = vpop.f32.mrb[0].mxu0
        %v4823 = vadd.f32 0.0, %v4822
        %4824 = vmatprep.mubr.f32.mxu0 %v3437
        %4825 = vmatmul.mubr.f32.gmra.mrb[0].mxu0 %v3436
        %v4826 = vpop.f32.mrb[0].mxu0
        %v4827 = vadd.f32 0.0, %v4826
        %v4828 = vpop.f32.mrb[0].mxu0
        %v4829 = vadd.f32 0.0, %v4828
        %4830 = vmatprep.mubr.f32.mxu0 %v3439
        %4831 = vmatmul.mubr.f32.gmra.mrb[0].mxu0 %v3438
        %v4832 = vpop.f32.mrb[0].mxu0
        %v4833 = vadd.f32 0.0, %v4832
        %v4834 = vpop.f32.mrb[0].mxu0
        %v4835 = vadd.f32 0.0, %v4834
        %4836 = vmatprep.mubr.f32.mxu0 %v3441
        %4837 = vmatmul.mubr.f32.gmra.mrb[0].mxu0 %v3440
        %v4838 = vpop.f32.mrb[0].mxu0
        %v4839 = vadd.f32 0.0, %v4838
        %v4840 = vpop.f32.mrb[0].mxu0
        %v4841 = vadd.f32 0.0, %v4840
        %4842 = vmatprep.mubr.f32.mxu0 %v3443
        %4843 = vmatmul.mubr.f32.gmra.mrb[0].mxu0 %v3442
        %v4844 = vpop.f32.mrb[0].mxu0
        %v4845 = vadd.f32 0.0, %v4844
        %v4846 = vpop.f32.mrb[0].mxu0
        %v4847 = vadd.f32 0.0, %v4846
        %4848 = vmatprep.mubr.f32.mxu0 %v3445
        %4849 = vmatmul.mubr.f32.gmra.mrb[0].mxu0 %v3444
        %v4850 = vpop.f32.mrb[0].mxu0
        %v4851 = vadd.f32 0.0, %v4850
        %v4852 = vpop.f32.mrb[0].mxu0
        %v4853 = vadd.f32 0.0, %v4852
        %4854 = vmatprep.mubr.f32.mxu0 %v3447
        %4855 = vmatmul.mubr.f32.gmra.mrb[0].mxu0 %v3446
        %v4856 = vpop.f32.mrb[0].mxu0
        %v4857 = vadd.f32 0.0, %v4856
        %v4858 = vpop.f32.mrb[0].mxu0
        %v4859 = vadd.f32 0.0, %v4858
        %4860 = vmatprep.mubr.f32.mxu0 %v3449
        %4861 = vmatmul.mubr.f32.gmra.mrb[0].mxu0 %v3448
        %v4862 = vpop.f32.mrb[0].mxu0
        %v4863 = vadd.f32 0.0, %v4862
        %v4864 = vpop.f32.mrb[0].mxu0
        %v4865 = vadd.f32 0.0, %v4864
        %4866 = vmatprep.mubr.f32.mxu0 %v3451
        %4867 = vmatmul.mubr.f32.gmra.mrb[0].mxu0 %v3450
        %v4868 = vpop.f32.mrb[0].mxu0
        %v4869 = vadd.f32 0.0, %v4868
        %v4870 = vpop.f32.mrb[0].mxu0
        %v4871 = vadd.f32 0.0, %v4870
        %4872 = vmatprep.mubr.f32.mxu0 %v3453
        %4873 = vmatmul.mubr.f32.gmra.mrb[0].mxu0 %v3452
        %v4874 = vpop.f32.mrb[0].mxu0
        %v4875 = vadd.f32 0.0, %v4874
        %v4876 = vpop.f32.mrb[0].mxu0
        %v4877 = vadd.f32 0.0, %v4876
        %4878 = vmatprep.mubr.f32.mxu0 %v3455
        %4879 = vmatmul.mubr.f32.gmra.mrb[0].mxu0 %v3454
        %v4880 = vpop.f32.mrb[0].mxu0
        %v4881 = vadd.f32 0.0, %v4880
        %v4882 = vpop.f32.mrb[0].mxu0
        %v4883 = vadd.f32 0.0, %v4882
        %4884 = vmatprep.mubr.f32.mxu0 %v3457
        %4885 = vmatmul.mubr.f32.gmra.mrb[0].mxu0 %v3456
        %v4886 = vpop.f32.mrb[0].mxu0
        %v4887 = vadd.f32 0.0, %v4886
        %v4888 = vpop.f32.mrb[0].mxu0
        %v4889 = vadd.f32 0.0, %v4888
        %4890 = vmatprep.mubr.f32.mxu0 %v3459
        %4891 = vmatmul.mubr.f32.gmra.mrb[0].mxu0 %v3458
        %v4892 = vpop.f32.mrb[0].mxu0
        %v4893 = vadd.f32 0.0, %v4892
        %v4894 = vpop.f32.mrb[0].mxu0
        %v4895 = vadd.f32 0.0, %v4894
        %4896 = vmatprep.mubr.f32.mxu0 %v3461
        %4897 = vmatmul.mubr.f32.gmra.mrb[0].mxu0 %v3460
        %v4898 = vpop.f32.mrb[0].mxu0
        %v4899 = vadd.f32 0.0, %v4898
        %v4900 = vpop.f32.mrb[0].mxu0
        %v4901 = vadd.f32 0.0, %v4900
        %4902 = vmatprep.mubr.f32.mxu0 %v3463
        %4903 = vmatmul.mubr.f32.gmra.mrb[0].mxu0 %v3462
        %v4904 = vpop.f32.mrb[0].mxu0
        %v4905 = vadd.f32 0.0, %v4904
        %v4906 = vpop.f32.mrb[0].mxu0
        %v4907 = vadd.f32 0.0, %v4906
        %4908 = vdwg.mxu0
        %4909 = vmatprep.subr.mxu0 %v3950
        %4910 = vmatpush1.msra.mxu0 %v3948
        %4911 = vmatprep.subr.mxu0 %v3956
        %4912 = vmatpush1.msra.mxu0 %v3954
        %4913 = vmatprep.subr.mxu0 %v3962
        %4914 = vmatpush1.msra.mxu0 %v3960
        %4915 = vmatprep.subr.mxu0 %v3968
        %4916 = vmatpush1.msra.mxu0 %v3966
        %4917 = vmatprep.subr.mxu0 %v3974
        %4918 = vmatpush1.msra.mxu0 %v3972
        %4919 = vmatprep.subr.mxu0 %v3980
        %4920 = vmatpush1.msra.mxu0 %v3978
        %4921 = vmatprep.subr.mxu0 %v3986
        %4922 = vmatpush1.msra.mxu0 %v3984
        %4923 = vmatprep.subr.mxu0 %v3992
        %4924 = vmatpush1.msra.mxu0 %v3990
        %4925 = vmatprep.subr.mxu0 %v3998
        %4926 = vmatpush1.msra.mxu0 %v3996
        %4927 = vmatprep.subr.mxu0 %v4004
        %4928 = vmatpush1.msra.mxu0 %v4002
        %4929 = vmatprep.subr.mxu0 %v4010
        %4930 = vmatpush1.msra.mxu0 %v4008
        %4931 = vmatprep.subr.mxu0 %v4016
        %4932 = vmatpush1.msra.mxu0 %v4014
        %4933 = vmatprep.subr.mxu0 %v4022
        %4934 = vmatpush1.msra.mxu0 %v4020
        %4935 = vmatprep.subr.mxu0 %v4028
        %4936 = vmatpush1.msra.mxu0 %v4026
        %4937 = vmatprep.subr.mxu0 %v4034
        %4938 = vmatpush1.msra.mxu0 %v4032
        %4939 = vmatprep.subr.mxu0 %v4040
        %4940 = vmatpush1.msra.mxu0 %v4038
        %4941 = vmatprep.subr.mxu0 %v4046
        %4942 = vmatpush1.msra.mxu0 %v4044
        %4943 = vmatprep.subr.mxu0 %v4052
        %4944 = vmatpush1.msra.mxu0 %v4050
        %4945 = vmatprep.subr.mxu0 %v4058
        %4946 = vmatpush1.msra.mxu0 %v4056
        %4947 = vmatprep.subr.mxu0 %v4064
        %4948 = vmatpush1.msra.mxu0 %v4062
        %4949 = vmatprep.subr.mxu0 %v4070
        %4950 = vmatpush1.msra.mxu0 %v4068
        %4951 = vmatprep.subr.mxu0 %v4076
        %4952 = vmatpush1.msra.mxu0 %v4074
        %4953 = vmatprep.subr.mxu0 %v4082
        %4954 = vmatpush1.msra.mxu0 %v4080
        %4955 = vmatprep.subr.mxu0 %v4088
        %4956 = vmatpush1.msra.mxu0 %v4086
        %4957 = vmatprep.subr.mxu0 %v4094
        %4958 = vmatpush1.msra.mxu0 %v4092
        %4959 = vmatprep.subr.mxu0 %v4100
        %4960 = vmatpush1.msra.mxu0 %v4098
        %4961 = vmatprep.subr.mxu0 %v4106
        %4962 = vmatpush1.msra.mxu0 %v4104
        %4963 = vmatprep.subr.mxu0 %v4112
        %4964 = vmatpush1.msra.mxu0 %v4110
        %4965 = vmatprep.subr.mxu0 %v4118
        %4966 = vmatpush1.msra.mxu0 %v4116
        %4967 = vmatprep.subr.mxu0 %v4124
        %4968 = vmatpush1.msra.mxu0 %v4122
        %4969 = vmatprep.subr.mxu0 %v4130
        %4970 = vmatpush1.msra.mxu0 %v4128
        %4971 = vmatprep.subr.mxu0 %v4136
        %4972 = vmatpush1.msra.mxu0 %v4134
        %4973 = vmatprep.mubr.f32.mxu0 %v3401
        %4974 = vmatmul.mubr.f32.gmra.mrb[0].mxu0 %v3400
        %v4975 = vpop.f32.mrb[0].mxu0
        %v4976 = vadd.f32 0.0, %v4975
        %v4977 = vpop.f32.mrb[0].mxu0
        %v4978 = vadd.f32 0.0, %v4977
        %4979 = vmatprep.mubr.f32.mxu0 %v3403
        %4980 = vmatmul.mubr.f32.gmra.mrb[0].mxu0 %v3402
        %v4981 = vpop.f32.mrb[0].mxu0
        %v4982 = vadd.f32 0.0, %v4981
        %v4983 = vpop.f32.mrb[0].mxu0
        %v4984 = vadd.f32 0.0, %v4983
        %4985 = vmatprep.mubr.f32.mxu0 %v3405
        %4986 = vmatmul.mubr.f32.gmra.mrb[0].mxu0 %v3404
        %v4987 = vpop.f32.mrb[0].mxu0
        %v4988 = vadd.f32 0.0, %v4987
        %v4989 = vpop.f32.mrb[0].mxu0
        %v4990 = vadd.f32 0.0, %v4989
        %4991 = vmatprep.mubr.f32.mxu0 %v3407
        %4992 = vmatmul.mubr.f32.gmra.mrb[0].mxu0 %v3406
        %v4993 = vpop.f32.mrb[0].mxu0
        %v4994 = vadd.f32 0.0, %v4993
        %v4995 = vpop.f32.mrb[0].mxu0
        %v4996 = vadd.f32 0.0, %v4995
        %4997 = vmatprep.mubr.f32.mxu0 %v3409
        %4998 = vmatmul.mubr.f32.gmra.mrb[0].mxu0 %v3408
        %v4999 = vpop.f32.mrb[0].mxu0
        %v5000 = vadd.f32 0.0, %v4999
        %v5001 = vpop.f32.mrb[0].mxu0
        %v5002 = vadd.f32 0.0, %v5001
        %5003 = vmatprep.mubr.f32.mxu0 %v3411
        %5004 = vmatmul.mubr.f32.gmra.mrb[0].mxu0 %v3410
        %v5005 = vpop.f32.mrb[0].mxu0
        %v5006 = vadd.f32 0.0, %v5005
        %v5007 = vpop.f32.mrb[0].mxu0
        %v5008 = vadd.f32 0.0, %v5007
        %5009 = vmatprep.mubr.f32.mxu0 %v3413
        %5010 = vmatmul.mubr.f32.gmra.mrb[0].mxu0 %v3412
        %v5011 = vpop.f32.mrb[0].mxu0
        %v5012 = vadd.f32 0.0, %v5011
        %v5013 = vpop.f32.mrb[0].mxu0
        %v5014 = vadd.f32 0.0, %v5013
        %5015 = vmatprep.mubr.f32.mxu0 %v3415
        %5016 = vmatmul.mubr.f32.gmra.mrb[0].mxu0 %v3414
        %v5017 = vpop.f32.mrb[0].mxu0
        %v5018 = vadd.f32 0.0, %v5017
        %v5019 = vpop.f32.mrb[0].mxu0
        %v5020 = vadd.f32 0.0, %v5019
        %5021 = vmatprep.mubr.f32.mxu0 %v3417
        %5022 = vmatmul.mubr.f32.gmra.mrb[0].mxu0 %v3416
        %v5023 = vpop.f32.mrb[0].mxu0
        %v5024 = vadd.f32 0.0, %v5023
        %v5025 = vpop.f32.mrb[0].mxu0
        %v5026 = vadd.f32 0.0, %v5025
        %5027 = vmatprep.mubr.f32.mxu0 %v3419
        %5028 = vmatmul.mubr.f32.gmra.mrb[0].mxu0 %v3418
        %v5029 = vpop.f32.mrb[0].mxu0
        %v5030 = vadd.f32 0.0, %v5029
        %v5031 = vpop.f32.mrb[0].mxu0
        %v5032 = vadd.f32 0.0, %v5031
        %5033 = vmatprep.mubr.f32.mxu0 %v3421
        %5034 = vmatmul.mubr.f32.gmra.mrb[0].mxu0 %v3420
        %v5035 = vpop.f32.mrb[0].mxu0
        %v5036 = vadd.f32 0.0, %v5035
        %v5037 = vpop.f32.mrb[0].mxu0
        %v5038 = vadd.f32 0.0, %v5037
        %5039 = vmatprep.mubr.f32.mxu0 %v3423
        %5040 = vmatmul.mubr.f32.gmra.mrb[0].mxu0 %v3422
        %v5041 = vpop.f32.mrb[0].mxu0
        %v5042 = vadd.f32 0.0, %v5041
        %v5043 = vpop.f32.mrb[0].mxu0
        %v5044 = vadd.f32 0.0, %v5043
        %5045 = vmatprep.mubr.f32.mxu0 %v3425
        %5046 = vmatmul.mubr.f32.gmra.mrb[0].mxu0 %v3424
        %v5047 = vpop.f32.mrb[0].mxu0
        %v5048 = vadd.f32 0.0, %v5047
        %v5049 = vpop.f32.mrb[0].mxu0
        %v5050 = vadd.f32 0.0, %v5049
        %5051 = vmatprep.mubr.f32.mxu0 %v3427
        %5052 = vmatmul.mubr.f32.gmra.mrb[0].mxu0 %v3426
        %v5053 = vpop.f32.mrb[0].mxu0
        %v5054 = vadd.f32 0.0, %v5053
        %v5055 = vpop.f32.mrb[0].mxu0
        %v5056 = vadd.f32 0.0, %v5055
        %5057 = vmatprep.mubr.f32.mxu0 %v3429
        %5058 = vmatmul.mubr.f32.gmra.mrb[0].mxu0 %v3428
        %v5059 = vpop.f32.mrb[0].mxu0
        %v5060 = vadd.f32 0.0, %v5059
        %v5061 = vpop.f32.mrb[0].mxu0
        %v5062 = vadd.f32 0.0, %v5061
        %5063 = vmatprep.mubr.f32.mxu0 %v3431
        %5064 = vmatmul.mubr.f32.gmra.mrb[0].mxu0 %v3430
        %v5065 = vpop.f32.mrb[0].mxu0
        %v5066 = vadd.f32 0.0, %v5065
        %v5067 = vpop.f32.mrb[0].mxu0
        %v5068 = vadd.f32 0.0, %v5067
        %5069 = vmatprep.mubr.f32.mxu0 %v3433
        %5070 = vmatmul.mubr.f32.gmra.mrb[0].mxu0 %v3432
        %v5071 = vpop.f32.mrb[0].mxu0
        %v5072 = vadd.f32 0.0, %v5071
        %v5073 = vpop.f32.mrb[0].mxu0
        %v5074 = vadd.f32 0.0, %v5073
        %5075 = vmatprep.mubr.f32.mxu0 %v3435
        %5076 = vmatmul.mubr.f32.gmra.mrb[0].mxu0 %v3434
        %v5077 = vpop.f32.mrb[0].mxu0
        %v5078 = vadd.f32 0.0, %v5077
        %v5079 = vpop.f32.mrb[0].mxu0
        %v5080 = vadd.f32 0.0, %v5079
        %5081 = vmatprep.mubr.f32.mxu0 %v3437
        %5082 = vmatmul.mubr.f32.gmra.mrb[0].mxu0 %v3436
        %v5083 = vpop.f32.mrb[0].mxu0
        %v5084 = vadd.f32 0.0, %v5083
        %v5085 = vpop.f32.mrb[0].mxu0
        %v5086 = vadd.f32 0.0, %v5085
        %5087 = vmatprep.mubr.f32.mxu0 %v3439
        %5088 = vmatmul.mubr.f32.gmra.mrb[0].mxu0 %v3438
        %v5089 = vpop.f32.mrb[0].mxu0
        %v5090 = vadd.f32 0.0, %v5089
        %v5091 = vpop.f32.mrb[0].mxu0
        %v5092 = vadd.f32 0.0, %v5091
        %5093 = vmatprep.mubr.f32.mxu0 %v3441
        %5094 = vmatmul.mubr.f32.gmra.mrb[0].mxu0 %v3440
        %v5095 = vpop.f32.mrb[0].mxu0
        %v5096 = vadd.f32 0.0, %v5095
        %v5097 = vpop.f32.mrb[0].mxu0
        %v5098 = vadd.f32 0.0, %v5097
        %5099 = vmatprep.mubr.f32.mxu0 %v3443
        %5100 = vmatmul.mubr.f32.gmra.mrb[0].mxu0 %v3442
        %v5101 = vpop.f32.mrb[0].mxu0
        %v5102 = vadd.f32 0.0, %v5101
        %v5103 = vpop.f32.mrb[0].mxu0
        %v5104 = vadd.f32 0.0, %v5103
        %5105 = vmatprep.mubr.f32.mxu0 %v3445
        %5106 = vmatmul.mubr.f32.gmra.mrb[0].mxu0 %v3444
        %v5107 = vpop.f32.mrb[0].mxu0
        %v5108 = vadd.f32 0.0, %v5107
        %v5109 = vpop.f32.mrb[0].mxu0
        %v5110 = vadd.f32 0.0, %v5109
        %5111 = vmatprep.mubr.f32.mxu0 %v3447
        %5112 = vmatmul.mubr.f32.gmra.mrb[0].mxu0 %v3446
        %v5113 = vpop.f32.mrb[0].mxu0
        %v5114 = vadd.f32 0.0, %v5113
        %v5115 = vpop.f32.mrb[0].mxu0
        %v5116 = vadd.f32 0.0, %v5115
        %5117 = vmatprep.mubr.f32.mxu0 %v3449
        %5118 = vmatmul.mubr.f32.gmra.mrb[0].mxu0 %v3448
        %v5119 = vpop.f32.mrb[0].mxu0
        %v5120 = vadd.f32 0.0, %v5119
        %v5121 = vpop.f32.mrb[0].mxu0
        %v5122 = vadd.f32 0.0, %v5121
        %5123 = vmatprep.mubr.f32.mxu0 %v3451
        %5124 = vmatmul.mubr.f32.gmra.mrb[0].mxu0 %v3450
        %v5125 = vpop.f32.mrb[0].mxu0
        %v5126 = vadd.f32 0.0, %v5125
        %v5127 = vpop.f32.mrb[0].mxu0
        %v5128 = vadd.f32 0.0, %v5127
        %5129 = vmatprep.mubr.f32.mxu0 %v3453
        %5130 = vmatmul.mubr.f32.gmra.mrb[0].mxu0 %v3452
        %v5131 = vpop.f32.mrb[0].mxu0
        %v5132 = vadd.f32 0.0, %v5131
        %v5133 = vpop.f32.mrb[0].mxu0
        %v5134 = vadd.f32 0.0, %v5133
        %5135 = vmatprep.mubr.f32.mxu0 %v3455
        %5136 = vmatmul.mubr.f32.gmra.mrb[0].mxu0 %v3454
        %v5137 = vpop.f32.mrb[0].mxu0
        %v5138 = vadd.f32 0.0, %v5137
        %v5139 = vpop.f32.mrb[0].mxu0
        %v5140 = vadd.f32 0.0, %v5139
        %5141 = vmatprep.mubr.f32.mxu0 %v3457
        %5142 = vmatmul.mubr.f32.gmra.mrb[0].mxu0 %v3456
        %v5143 = vpop.f32.mrb[0].mxu0
        %v5144 = vadd.f32 0.0, %v5143
        %v5145 = vpop.f32.mrb[0].mxu0
        %v5146 = vadd.f32 0.0, %v5145
        %5147 = vmatprep.mubr.f32.mxu0 %v3459
        %5148 = vmatmul.mubr.f32.gmra.mrb[0].mxu0 %v3458
        %v5149 = vpop.f32.mrb[0].mxu0
        %v5150 = vadd.f32 0.0, %v5149
        %v5151 = vpop.f32.mrb[0].mxu0
        %v5152 = vadd.f32 0.0, %v5151
        %5153 = vmatprep.mubr.f32.mxu0 %v3461
        %5154 = vmatmul.mubr.f32.gmra.mrb[0].mxu0 %v3460
        %v5155 = vpop.f32.mrb[0].mxu0
        %v5156 = vadd.f32 0.0, %v5155
        %v5157 = vpop.f32.mrb[0].mxu0
        %v5158 = vadd.f32 0.0, %v5157
        %5159 = vmatprep.mubr.f32.mxu0 %v3463
        %5160 = vmatmul.mubr.f32.gmra.mrb[0].mxu0 %v3462
        %v5161 = vpop.f32.mrb[0].mxu0
        %v5162 = vadd.f32 0.0, %v5161
        %v5163 = vpop.f32.mrb[0].mxu0
        %v5164 = vadd.f32 0.0, %v5163
        %5165 = vdwg.mxu0
        %v5166 = vmul.f32 %v4205, %v4719
        %v5167 = vmul.f32 %v4207, %v4721
        %v5168 = vmul.f32 %v4462, %v4976
        %v5169 = vmul.f32 %v4464, %v4978
        %v5170 = vmul.f32 %v4211, %v4725
        %v5171 = vmul.f32 %v4213, %v4727
        %v5172 = vmul.f32 %v4468, %v4982
        %v5173 = vmul.f32 %v4470, %v4984
        %v5174 = vmul.f32 %v4217, %v4731
        %v5175 = vmul.f32 %v4219, %v4733
        %v5176 = vmul.f32 %v4474, %v4988
        %v5177 = vmul.f32 %v4476, %v4990
        %v5178 = vmul.f32 %v4223, %v4737
        %v5179 = vmul.f32 %v4225, %v4739
        %v5180 = vmul.f32 %v4480, %v4994
        %v5181 = vmul.f32 %v4482, %v4996
        %v5182 = vmul.f32 %v4229, %v4743
        %v5183 = vmul.f32 %v4231, %v4745
        %v5184 = vmul.f32 %v4486, %v5000
        %v5185 = vmul.f32 %v4488, %v5002
        %v5186 = vmul.f32 %v4235, %v4749
        %v5187 = vmul.f32 %v4237, %v4751
        %v5188 = vmul.f32 %v4492, %v5006
        %v5189 = vmul.f32 %v4494, %v5008
        %v5190 = vmul.f32 %v4241, %v4755
        %v5191 = vmul.f32 %v4243, %v4757
        %v5192 = vmul.f32 %v4498, %v5012
        %v5193 = vmul.f32 %v4500, %v5014
        %v5194 = vmul.f32 %v4247, %v4761
        %v5195 = vmul.f32 %v4249, %v4763
        %v5196 = vmul.f32 %v4504, %v5018
        %v5197 = vmul.f32 %v4506, %v5020
        %v5198 = vmul.f32 %v4253, %v4767
        %v5199 = vmul.f32 %v4255, %v4769
        %v5200 = vmul.f32 %v4510, %v5024
        %v5201 = vmul.f32 %v4512, %v5026
        %v5202 = vmul.f32 %v4259, %v4773
        %v5203 = vmul.f32 %v4261, %v4775
        %v5204 = vmul.f32 %v4516, %v5030
        %v5205 = vmul.f32 %v4518, %v5032
        %v5206 = vmul.f32 %v4265, %v4779
        %v5207 = vmul.f32 %v4267, %v4781
        %v5208 = vmul.f32 %v4522, %v5036
        %v5209 = vmul.f32 %v4524, %v5038
        %v5210 = vmul.f32 %v4271, %v4785
        %v5211 = vmul.f32 %v4273, %v4787
        %v5212 = vmul.f32 %v4528, %v5042
        %v5213 = vmul.f32 %v4530, %v5044
        %v5214 = vmul.f32 %v4277, %v4791
        %v5215 = vmul.f32 %v4279, %v4793
        %v5216 = vmul.f32 %v4534, %v5048
        %v5217 = vmul.f32 %v4536, %v5050
        %v5218 = vmul.f32 %v4283, %v4797
        %v5219 = vmul.f32 %v4285, %v4799
        %v5220 = vmul.f32 %v4540, %v5054
        %v5221 = vmul.f32 %v4542, %v5056
        %v5222 = vmul.f32 %v4289, %v4803
        %v5223 = vmul.f32 %v4291, %v4805
        %v5224 = vmul.f32 %v4546, %v5060
        %v5225 = vmul.f32 %v4548, %v5062
        %v5226 = vmul.f32 %v4295, %v4809
        %v5227 = vmul.f32 %v4297, %v4811
        %v5228 = vmul.f32 %v4552, %v5066
        %v5229 = vmul.f32 %v4554, %v5068
        %v5230 = vmul.f32 %v4301, %v4815
        %v5231 = vmul.f32 %v4303, %v4817
        %v5232 = vmul.f32 %v4558, %v5072
        %v5233 = vmul.f32 %v4560, %v5074
        %v5234 = vmul.f32 %v4307, %v4821
        %v5235 = vmul.f32 %v4309, %v4823
        %v5236 = vmul.f32 %v4564, %v5078
        %v5237 = vmul.f32 %v4566, %v5080
        %v5238 = vmul.f32 %v4313, %v4827
        %v5239 = vmul.f32 %v4315, %v4829
        %v5240 = vmul.f32 %v4570, %v5084
        %v5241 = vmul.f32 %v4572, %v5086
        %v5242 = vmul.f32 %v4319, %v4833
        %v5243 = vmul.f32 %v4321, %v4835
        %v5244 = vmul.f32 %v4576, %v5090
        %v5245 = vmul.f32 %v4578, %v5092
        %v5246 = vmul.f32 %v4325, %v4839
        %v5247 = vmul.f32 %v4327, %v4841
        %v5248 = vmul.f32 %v4582, %v5096
        %v5249 = vmul.f32 %v4584, %v5098
        %v5250 = vmul.f32 %v4331, %v4845
        %v5251 = vmul.f32 %v4333, %v4847
        %v5252 = vmul.f32 %v4588, %v5102
        %v5253 = vmul.f32 %v4590, %v5104
        %v5254 = vmul.f32 %v4337, %v4851
        %v5255 = vmul.f32 %v4339, %v4853
        %v5256 = vmul.f32 %v4594, %v5108
        %v5257 = vmul.f32 %v4596, %v5110
        %v5258 = vmul.f32 %v4343, %v4857
        %v5259 = vmul.f32 %v4345, %v4859
        %v5260 = vmul.f32 %v4600, %v5114
        %v5261 = vmul.f32 %v4602, %v5116
        %v5262 = vmul.f32 %v4349, %v4863
        %v5263 = vmul.f32 %v4351, %v4865
        %v5264 = vmul.f32 %v4606, %v5120
        %v5265 = vmul.f32 %v4608, %v5122
        %v5266 = vmul.f32 %v4355, %v4869
        %v5267 = vmul.f32 %v4357, %v4871
        %v5268 = vmul.f32 %v4612, %v5126
        %v5269 = vmul.f32 %v4614, %v5128
        %v5270 = vmul.f32 %v4361, %v4875
        %v5271 = vmul.f32 %v4363, %v4877
        %v5272 = vmul.f32 %v4618, %v5132
        %v5273 = vmul.f32 %v4620, %v5134
        %v5274 = vmul.f32 %v4367, %v4881
        %v5275 = vmul.f32 %v4369, %v4883
        %v5276 = vmul.f32 %v4624, %v5138
        %v5277 = vmul.f32 %v4626, %v5140
        %v5278 = vmul.f32 %v4373, %v4887
        %v5279 = vmul.f32 %v4375, %v4889
        %v5280 = vmul.f32 %v4630, %v5144
        %v5281 = vmul.f32 %v4632, %v5146
        %v5282 = vmul.f32 %v4379, %v4893
        %v5283 = vmul.f32 %v4381, %v4895
        %v5284 = vmul.f32 %v4636, %v5150
        %v5285 = vmul.f32 %v4638, %v5152
        %v5286 = vmul.f32 %v4385, %v4899
        %v5287 = vmul.f32 %v4387, %v4901
        %v5288 = vmul.f32 %v4642, %v5156
        %v5289 = vmul.f32 %v4644, %v5158
        %v5290 = vmul.f32 %v4391, %v4905
        %v5291 = vmul.f32 %v4393, %v4907
        %v5292 = vmul.f32 %v4648, %v5162
        %v5293 = vmul.f32 %v4650, %v5164
        %v5294 = vadd.f32 %v5166, %v5182
        %v5295 = vadd.f32 %v5294, %v5198
        %v5296 = vadd.f32 %v5295, %v5214
        %v5297 = vadd.f32 %v5296, %v5230
        %v5298 = vadd.f32 %v5297, %v5246
        %v5299 = vadd.f32 %v5298, %v5262
        %v5300 = vadd.f32 %v5299, %v5278
        %v5301 = vadd.f32 %v5167, %v5183
        %v5302 = vadd.f32 %v5301, %v5199
        %v5303 = vadd.f32 %v5302, %v5215
        %v5304 = vadd.f32 %v5303, %v5231
        %v5305 = vadd.f32 %v5304, %v5247
        %v5306 = vadd.f32 %v5305, %v5263
        %v5307 = vadd.f32 %v5306, %v5279
        %v5308 = vadd.f32 %v5168, %v5184
        %v5309 = vadd.f32 %v5308, %v5200
        %v5310 = vadd.f32 %v5309, %v5216
        %v5311 = vadd.f32 %v5310, %v5232
        %v5312 = vadd.f32 %v5311, %v5248
        %v5313 = vadd.f32 %v5312, %v5264
        %v5314 = vadd.f32 %v5313, %v5280
        %v5315 = vadd.f32 %v5169, %v5185
        %v5316 = vadd.f32 %v5315, %v5201
        %v5317 = vadd.f32 %v5316, %v5217
        %v5318 = vadd.f32 %v5317, %v5233
        %v5319 = vadd.f32 %v5318, %v5249
        %v5320 = vadd.f32 %v5319, %v5265
        %v5321 = vadd.f32 %v5320, %v5281
        %v5322 = vadd.f32 %v5170, %v5186
        %v5323 = vadd.f32 %v5322, %v5202
        %v5324 = vadd.f32 %v5323, %v5218
        %v5325 = vadd.f32 %v5324, %v5234
        %v5326 = vadd.f32 %v5325, %v5250
        %v5327 = vadd.f32 %v5326, %v5266
        %v5328 = vadd.f32 %v5327, %v5282
        %v5329 = vadd.f32 %v5171, %v5187
        %v5330 = vadd.f32 %v5329, %v5203
        %v5331 = vadd.f32 %v5330, %v5219
        %v5332 = vadd.f32 %v5331, %v5235
        %v5333 = vadd.f32 %v5332, %v5251
        %v5334 = vadd.f32 %v5333, %v5267
        %v5335 = vadd.f32 %v5334, %v5283
        %v5336 = vadd.f32 %v5172, %v5188
        %v5337 = vadd.f32 %v5336, %v5204
        %v5338 = vadd.f32 %v5337, %v5220
        %v5339 = vadd.f32 %v5338, %v5236
        %v5340 = vadd.f32 %v5339, %v5252
        %v5341 = vadd.f32 %v5340, %v5268
        %v5342 = vadd.f32 %v5341, %v5284
        %v5343 = vadd.f32 %v5173, %v5189
        %v5344 = vadd.f32 %v5343, %v5205
        %v5345 = vadd.f32 %v5344, %v5221
        %v5346 = vadd.f32 %v5345, %v5237
        %v5347 = vadd.f32 %v5346, %v5253
        %v5348 = vadd.f32 %v5347, %v5269
        %v5349 = vadd.f32 %v5348, %v5285
        %v5350 = vadd.f32 %v5174, %v5190
        %v5351 = vadd.f32 %v5350, %v5206
        %v5352 = vadd.f32 %v5351, %v5222
        %v5353 = vadd.f32 %v5352, %v5238
        %v5354 = vadd.f32 %v5353, %v5254
        %v5355 = vadd.f32 %v5354, %v5270
        %v5356 = vadd.f32 %v5355, %v5286
        %v5357 = vadd.f32 %v5175, %v5191
        %v5358 = vadd.f32 %v5357, %v5207
        %v5359 = vadd.f32 %v5358, %v5223
        %v5360 = vadd.f32 %v5359, %v5239
        %v5361 = vadd.f32 %v5360, %v5255
        %v5362 = vadd.f32 %v5361, %v5271
        %v5363 = vadd.f32 %v5362, %v5287
        %v5364 = vadd.f32 %v5176, %v5192
        %v5365 = vadd.f32 %v5364, %v5208
        %v5366 = vadd.f32 %v5365, %v5224
        %v5367 = vadd.f32 %v5366, %v5240
        %v5368 = vadd.f32 %v5367, %v5256
        %v5369 = vadd.f32 %v5368, %v5272
        %v5370 = vadd.f32 %v5369, %v5288
        %v5371 = vadd.f32 %v5177, %v5193
        %v5372 = vadd.f32 %v5371, %v5209
        %v5373 = vadd.f32 %v5372, %v5225
        %v5374 = vadd.f32 %v5373, %v5241
        %v5375 = vadd.f32 %v5374, %v5257
        %v5376 = vadd.f32 %v5375, %v5273
        %v5377 = vadd.f32 %v5376, %v5289
        %v5378 = vadd.f32 %v5178, %v5194
        %v5379 = vadd.f32 %v5378, %v5210
        %v5380 = vadd.f32 %v5379, %v5226
        %v5381 = vadd.f32 %v5380, %v5242
        %v5382 = vadd.f32 %v5381, %v5258
        %v5383 = vadd.f32 %v5382, %v5274
        %v5384 = vadd.f32 %v5383, %v5290
        %v5385 = vadd.f32 %v5179, %v5195
        %v5386 = vadd.f32 %v5385, %v5211
        %v5387 = vadd.f32 %v5386, %v5227
        %v5388 = vadd.f32 %v5387, %v5243
        %v5389 = vadd.f32 %v5388, %v5259
        %v5390 = vadd.f32 %v5389, %v5275
        %v5391 = vadd.f32 %v5390, %v5291
        %v5392 = vadd.f32 %v5180, %v5196
        %v5393 = vadd.f32 %v5392, %v5212
        %v5394 = vadd.f32 %v5393, %v5228
        %v5395 = vadd.f32 %v5394, %v5244
        %v5396 = vadd.f32 %v5395, %v5260
        %v5397 = vadd.f32 %v5396, %v5276
        %v5398 = vadd.f32 %v5397, %v5292
        %v5399 = vadd.f32 %v5181, %v5197
        %v5400 = vadd.f32 %v5399, %v5213
        %v5401 = vadd.f32 %v5400, %v5229
        %v5402 = vadd.f32 %v5401, %v5245
        %v5403 = vadd.f32 %v5402, %v5261
        %v5404 = vadd.f32 %v5403, %v5277
        %v5405 = vadd.f32 %v5404, %v5293
        %v5406 = vmul.f32 %v4719, %v4719
        %v5407 = vmul.f32 %v4721, %v4721
        %v5408 = vmul.f32 %v4976, %v4976
        %v5409 = vmul.f32 %v4978, %v4978
        %v5410 = vmul.f32 %v4725, %v4725
        %v5411 = vmul.f32 %v4727, %v4727
        %v5412 = vmul.f32 %v4982, %v4982
        %v5413 = vmul.f32 %v4984, %v4984
        %v5414 = vmul.f32 %v4731, %v4731
        %v5415 = vmul.f32 %v4733, %v4733
        %v5416 = vmul.f32 %v4988, %v4988
        %v5417 = vmul.f32 %v4990, %v4990
        %v5418 = vmul.f32 %v4737, %v4737
        %v5419 = vmul.f32 %v4739, %v4739
        %v5420 = vmul.f32 %v4994, %v4994
        %v5421 = vmul.f32 %v4996, %v4996
        %v5422 = vmul.f32 %v4743, %v4743
        %v5423 = vmul.f32 %v4745, %v4745
        %v5424 = vmul.f32 %v5000, %v5000
        %v5425 = vmul.f32 %v5002, %v5002
        %v5426 = vmul.f32 %v4749, %v4749
        %v5427 = vmul.f32 %v4751, %v4751
        %v5428 = vmul.f32 %v5006, %v5006
        %v5429 = vmul.f32 %v5008, %v5008
        %v5430 = vmul.f32 %v4755, %v4755
        %v5431 = vmul.f32 %v4757, %v4757
        %v5432 = vmul.f32 %v5012, %v5012
        %v5433 = vmul.f32 %v5014, %v5014
        %v5434 = vmul.f32 %v4761, %v4761
        %v5435 = vmul.f32 %v4763, %v4763
        %v5436 = vmul.f32 %v5018, %v5018
        %v5437 = vmul.f32 %v5020, %v5020
        %v5438 = vmul.f32 %v4767, %v4767
        %v5439 = vmul.f32 %v4769, %v4769
        %v5440 = vmul.f32 %v5024, %v5024
        %v5441 = vmul.f32 %v5026, %v5026
        %v5442 = vmul.f32 %v4773, %v4773
        %v5443 = vmul.f32 %v4775, %v4775
        %v5444 = vmul.f32 %v5030, %v5030
        %v5445 = vmul.f32 %v5032, %v5032
        %v5446 = vmul.f32 %v4779, %v4779
        %v5447 = vmul.f32 %v4781, %v4781
        %v5448 = vmul.f32 %v5036, %v5036
        %v5449 = vmul.f32 %v5038, %v5038
        %v5450 = vmul.f32 %v4785, %v4785
        %v5451 = vmul.f32 %v4787, %v4787
        %v5452 = vmul.f32 %v5042, %v5042
        %v5453 = vmul.f32 %v5044, %v5044
        %v5454 = vmul.f32 %v4791, %v4791
        %v5455 = vmul.f32 %v4793, %v4793
        %v5456 = vmul.f32 %v5048, %v5048
        %v5457 = vmul.f32 %v5050, %v5050
        %v5458 = vmul.f32 %v4797, %v4797
        %v5459 = vmul.f32 %v4799, %v4799
        %v5460 = vmul.f32 %v5054, %v5054
        %v5461 = vmul.f32 %v5056, %v5056
        %v5462 = vmul.f32 %v4803, %v4803
        %v5463 = vmul.f32 %v4805, %v4805
        %v5464 = vmul.f32 %v5060, %v5060
        %v5465 = vmul.f32 %v5062, %v5062
        %v5466 = vmul.f32 %v4809, %v4809
        %v5467 = vmul.f32 %v4811, %v4811
        %v5468 = vmul.f32 %v5066, %v5066
        %v5469 = vmul.f32 %v5068, %v5068
        %v5470 = vmul.f32 %v4815, %v4815
        %v5471 = vmul.f32 %v4817, %v4817
        %v5472 = vmul.f32 %v5072, %v5072
        %v5473 = vmul.f32 %v5074, %v5074
        %v5474 = vmul.f32 %v4821, %v4821
        %v5475 = vmul.f32 %v4823, %v4823
        %v5476 = vmul.f32 %v5078, %v5078
        %v5477 = vmul.f32 %v5080, %v5080
        %v5478 = vmul.f32 %v4827, %v4827
        %v5479 = vmul.f32 %v4829, %v4829
        %v5480 = vmul.f32 %v5084, %v5084
        %v5481 = vmul.f32 %v5086, %v5086
        %v5482 = vmul.f32 %v4833, %v4833
        %v5483 = vmul.f32 %v4835, %v4835
        %v5484 = vmul.f32 %v5090, %v5090
        %v5485 = vmul.f32 %v5092, %v5092
        %v5486 = vmul.f32 %v4839, %v4839
        %v5487 = vmul.f32 %v4841, %v4841
        %v5488 = vmul.f32 %v5096, %v5096
        %v5489 = vmul.f32 %v5098, %v5098
        %v5490 = vmul.f32 %v4845, %v4845
        %v5491 = vmul.f32 %v4847, %v4847
        %v5492 = vmul.f32 %v5102, %v5102
        %v5493 = vmul.f32 %v5104, %v5104
        %v5494 = vmul.f32 %v4851, %v4851
        %v5495 = vmul.f32 %v4853, %v4853
        %v5496 = vmul.f32 %v5108, %v5108
        %v5497 = vmul.f32 %v5110, %v5110
        %v5498 = vmul.f32 %v4857, %v4857
        %v5499 = vmul.f32 %v4859, %v4859
        %v5500 = vmul.f32 %v5114, %v5114
        %v5501 = vmul.f32 %v5116, %v5116
        %v5502 = vmul.f32 %v4863, %v4863
        %v5503 = vmul.f32 %v4865, %v4865
        %v5504 = vmul.f32 %v5120, %v5120
        %v5505 = vmul.f32 %v5122, %v5122
        %v5506 = vmul.f32 %v4869, %v4869
        %v5507 = vmul.f32 %v4871, %v4871
        %v5508 = vmul.f32 %v5126, %v5126
        %v5509 = vmul.f32 %v5128, %v5128
        %v5510 = vmul.f32 %v4875, %v4875
        %v5511 = vmul.f32 %v4877, %v4877
        %v5512 = vmul.f32 %v5132, %v5132
        %v5513 = vmul.f32 %v5134, %v5134
        %v5514 = vmul.f32 %v4881, %v4881
        %v5515 = vmul.f32 %v4883, %v4883
        %v5516 = vmul.f32 %v5138, %v5138
        %v5517 = vmul.f32 %v5140, %v5140
        %v5518 = vmul.f32 %v4887, %v4887
        %v5519 = vmul.f32 %v4889, %v4889
        %v5520 = vmul.f32 %v5144, %v5144
        %v5521 = vmul.f32 %v5146, %v5146
        %v5522 = vmul.f32 %v4893, %v4893
        %v5523 = vmul.f32 %v4895, %v4895
        %v5524 = vmul.f32 %v5150, %v5150
        %v5525 = vmul.f32 %v5152, %v5152
        %v5526 = vmul.f32 %v4899, %v4899
        %v5527 = vmul.f32 %v4901, %v4901
        %v5528 = vmul.f32 %v5156, %v5156
        %v5529 = vmul.f32 %v5158, %v5158
        %v5530 = vmul.f32 %v4905, %v4905
        %v5531 = vmul.f32 %v4907, %v4907
        %v5532 = vmul.f32 %v5162, %v5162
        %v5533 = vmul.f32 %v5164, %v5164
        %v5534 = vadd.f32 %v5406, %v5422
        %v5535 = vadd.f32 %v5534, %v5438
        %v5536 = vadd.f32 %v5535, %v5454
        %v5537 = vadd.f32 %v5536, %v5470
        %v5538 = vadd.f32 %v5537, %v5486
        %v5539 = vadd.f32 %v5538, %v5502
        %v5540 = vadd.f32 %v5539, %v5518
        %v5541 = vadd.f32 %v5407, %v5423
        %v5542 = vadd.f32 %v5541, %v5439
        %v5543 = vadd.f32 %v5542, %v5455
        %v5544 = vadd.f32 %v5543, %v5471
        %v5545 = vadd.f32 %v5544, %v5487
        %v5546 = vadd.f32 %v5545, %v5503
        %v5547 = vadd.f32 %v5546, %v5519
        %v5548 = vadd.f32 %v5408, %v5424
        %v5549 = vadd.f32 %v5548, %v5440
        %v5550 = vadd.f32 %v5549, %v5456
        %v5551 = vadd.f32 %v5550, %v5472
        %v5552 = vadd.f32 %v5551, %v5488
        %v5553 = vadd.f32 %v5552, %v5504
        %v5554 = vadd.f32 %v5553, %v5520
        %v5555 = vadd.f32 %v5409, %v5425
        %v5556 = vadd.f32 %v5555, %v5441
        %v5557 = vadd.f32 %v5556, %v5457
        %v5558 = vadd.f32 %v5557, %v5473
        %v5559 = vadd.f32 %v5558, %v5489
        %v5560 = vadd.f32 %v5559, %v5505
        %v5561 = vadd.f32 %v5560, %v5521
        %v5562 = vadd.f32 %v5410, %v5426
        %v5563 = vadd.f32 %v5562, %v5442
        %v5564 = vadd.f32 %v5563, %v5458
        %v5565 = vadd.f32 %v5564, %v5474
        %v5566 = vadd.f32 %v5565, %v5490
        %v5567 = vadd.f32 %v5566, %v5506
        %v5568 = vadd.f32 %v5567, %v5522
        %v5569 = vadd.f32 %v5411, %v5427
        %v5570 = vadd.f32 %v5569, %v5443
        %v5571 = vadd.f32 %v5570, %v5459
        %v5572 = vadd.f32 %v5571, %v5475
        %v5573 = vadd.f32 %v5572, %v5491
        %v5574 = vadd.f32 %v5573, %v5507
        %v5575 = vadd.f32 %v5574, %v5523
        %v5576 = vadd.f32 %v5412, %v5428
        %v5577 = vadd.f32 %v5576, %v5444
        %v5578 = vadd.f32 %v5577, %v5460
        %v5579 = vadd.f32 %v5578, %v5476
        %v5580 = vadd.f32 %v5579, %v5492
        %v5581 = vadd.f32 %v5580, %v5508
        %v5582 = vadd.f32 %v5581, %v5524
        %v5583 = vadd.f32 %v5413, %v5429
        %v5584 = vadd.f32 %v5583, %v5445
        %v5585 = vadd.f32 %v5584, %v5461
        %v5586 = vadd.f32 %v5585, %v5477
        %v5587 = vadd.f32 %v5586, %v5493
        %v5588 = vadd.f32 %v5587, %v5509
        %v5589 = vadd.f32 %v5588, %v5525
        %v5590 = vadd.f32 %v5414, %v5430
        %v5591 = vadd.f32 %v5590, %v5446
        %v5592 = vadd.f32 %v5591, %v5462
        %v5593 = vadd.f32 %v5592, %v5478
        %v5594 = vadd.f32 %v5593, %v5494
        %v5595 = vadd.f32 %v5594, %v5510
        %v5596 = vadd.f32 %v5595, %v5526
        %v5597 = vadd.f32 %v5415, %v5431
        %v5598 = vadd.f32 %v5597, %v5447
        %v5599 = vadd.f32 %v5598, %v5463
        %v5600 = vadd.f32 %v5599, %v5479
        %v5601 = vadd.f32 %v5600, %v5495
        %v5602 = vadd.f32 %v5601, %v5511
        %v5603 = vadd.f32 %v5602, %v5527
        %v5604 = vadd.f32 %v5416, %v5432
        %v5605 = vadd.f32 %v5604, %v5448
        %v5606 = vadd.f32 %v5605, %v5464
        %v5607 = vadd.f32 %v5606, %v5480
        %v5608 = vadd.f32 %v5607, %v5496
        %v5609 = vadd.f32 %v5608, %v5512
        %v5610 = vadd.f32 %v5609, %v5528
        %v5611 = vadd.f32 %v5417, %v5433
        %v5612 = vadd.f32 %v5611, %v5449
        %v5613 = vadd.f32 %v5612, %v5465
        %v5614 = vadd.f32 %v5613, %v5481
        %v5615 = vadd.f32 %v5614, %v5497
        %v5616 = vadd.f32 %v5615, %v5513
        %v5617 = vadd.f32 %v5616, %v5529
        %v5618 = vadd.f32 %v5418, %v5434
        %v5619 = vadd.f32 %v5618, %v5450
        %v5620 = vadd.f32 %v5619, %v5466
        %v5621 = vadd.f32 %v5620, %v5482
        %v5622 = vadd.f32 %v5621, %v5498
        %v5623 = vadd.f32 %v5622, %v5514
        %v5624 = vadd.f32 %v5623, %v5530
        %v5625 = vadd.f32 %v5419, %v5435
        %v5626 = vadd.f32 %v5625, %v5451
        %v5627 = vadd.f32 %v5626, %v5467
        %v5628 = vadd.f32 %v5627, %v5483
        %v5629 = vadd.f32 %v5628, %v5499
        %v5630 = vadd.f32 %v5629, %v5515
        %v5631 = vadd.f32 %v5630, %v5531
        %v5632 = vadd.f32 %v5420, %v5436
        %v5633 = vadd.f32 %v5632, %v5452
        %v5634 = vadd.f32 %v5633, %v5468
        %v5635 = vadd.f32 %v5634, %v5484
        %v5636 = vadd.f32 %v5635, %v5500
        %v5637 = vadd.f32 %v5636, %v5516
        %v5638 = vadd.f32 %v5637, %v5532
        %v5639 = vadd.f32 %v5421, %v5437
        %v5640 = vadd.f32 %v5639, %v5453
        %v5641 = vadd.f32 %v5640, %v5469
        %v5642 = vadd.f32 %v5641, %v5485
        %v5643 = vadd.f32 %v5642, %v5501
        %v5644 = vadd.f32 %v5643, %v5517
        %v5645 = vadd.f32 %v5644, %v5533
        %v5646 = vrcp.pop %v5540
        %v5647 = vrcp.pop %v5547
        %v5648 = vrcp.pop %v5554
        %v5649 = vrcp.pop %v5561
        %v5650 = vrcp.pop %v5568
        %v5651 = vrcp.pop %v5575
        %v5652 = vrcp.pop %v5582
        %v5653 = vrcp.pop %v5589
        %v5654 = vrcp.pop %v5596
        %v5655 = vrcp.pop %v5603
        %v5656 = vrcp.pop %v5610
        %v5657 = vrcp.pop %v5617
        %v5658 = vrcp.pop %v5624
        %v5659 = vrcp.pop %v5631
        %v5660 = vrcp.pop %v5638
        %v5661 = vrcp.pop %v5645
        %v5662 = vmul.f32 %v5300, %v5646
        %v5663 = vmul.f32 %v5307, %v5647
        %v5664 = vmul.f32 %v5314, %v5648
        %v5665 = vmul.f32 %v5321, %v5649
        %v5666 = vmul.f32 %v5328, %v5650
        %v5667 = vmul.f32 %v5335, %v5651
        %v5668 = vmul.f32 %v5342, %v5652
        %v5669 = vmul.f32 %v5349, %v5653
        %v5670 = vmul.f32 %v5356, %v5654
        %v5671 = vmul.f32 %v5363, %v5655
        %v5672 = vmul.f32 %v5370, %v5656
        %v5673 = vmul.f32 %v5377, %v5657
        %v5674 = vmul.f32 %v5384, %v5658
        %v5675 = vmul.f32 %v5391, %v5659
        %v5676 = vmul.f32 %v5398, %v5660
        %v5677 = vmul.f32 %v5405, %v5661
        %vm5678 = vcmp.gt.f32.partialorder %v5300, 0.0
        %vm5679 = vcmp.gt.f32.partialorder %v5307, 0.0
        %vm5680 = vcmp.gt.f32.partialorder %v5314, 0.0
        %vm5681 = vcmp.gt.f32.partialorder %v5321, 0.0
        %vm5682 = vcmp.gt.f32.partialorder %v5328, 0.0
        %vm5683 = vcmp.gt.f32.partialorder %v5335, 0.0
        %vm5684 = vcmp.gt.f32.partialorder %v5342, 0.0
        %vm5685 = vcmp.gt.f32.partialorder %v5349, 0.0
        %vm5686 = vcmp.gt.f32.partialorder %v5356, 0.0
        %vm5687 = vcmp.gt.f32.partialorder %v5363, 0.0
        %vm5688 = vcmp.gt.f32.partialorder %v5370, 0.0
        %vm5689 = vcmp.gt.f32.partialorder %v5377, 0.0
        %vm5690 = vcmp.gt.f32.partialorder %v5384, 0.0
        %vm5691 = vcmp.gt.f32.partialorder %v5391, 0.0
        %vm5692 = vcmp.gt.f32.partialorder %v5398, 0.0
        %vm5693 = vcmp.gt.f32.partialorder %v5405, 0.0
        %v5694 = vsel %vm5678, 0.0, %v5662
        %v5695 = vsel %vm5679, 0.0, %v5663
        %v5696 = vsel %vm5680, 0.0, %v5664
        %v5697 = vsel %vm5681, 0.0, %v5665
        %v5698 = vsel %vm5682, 0.0, %v5666
        %v5699 = vsel %vm5683, 0.0, %v5667
        %v5700 = vsel %vm5684, 0.0, %v5668
        %v5701 = vsel %vm5685, 0.0, %v5669
        %v5702 = vsel %vm5686, 0.0, %v5670
        %v5703 = vsel %vm5687, 0.0, %v5671
        %v5704 = vsel %vm5688, 0.0, %v5672
        %v5705 = vsel %vm5689, 0.0, %v5673
        %v5706 = vsel %vm5690, 0.0, %v5674
        %v5707 = vsel %vm5691, 0.0, %v5675
        %v5708 = vsel %vm5692, 0.0, %v5676
        %v5709 = vsel %vm5693, 0.0, %v5677
        %v5710 = vmul.f32 %v5694, %v4719
        %v5711 = vmul.f32 %v5695, %v4721
        %v5712 = vmul.f32 %v5696, %v4976
        %v5713 = vmul.f32 %v5697, %v4978
        %v5714 = vmul.f32 %v5698, %v4725
        %v5715 = vmul.f32 %v5699, %v4727
        %v5716 = vmul.f32 %v5700, %v4982
        %v5717 = vmul.f32 %v5701, %v4984
        %v5718 = vmul.f32 %v5702, %v4731
        %v5719 = vmul.f32 %v5703, %v4733
        %v5720 = vmul.f32 %v5704, %v4988
        %v5721 = vmul.f32 %v5705, %v4990
        %v5722 = vmul.f32 %v5706, %v4737
        %v5723 = vmul.f32 %v5707, %v4739
        %v5724 = vmul.f32 %v5708, %v4994
        %v5725 = vmul.f32 %v5709, %v4996
        %v5726 = vmul.f32 %v5694, %v4743
        %v5727 = vmul.f32 %v5695, %v4745
        %v5728 = vmul.f32 %v5696, %v5000
        %v5729 = vmul.f32 %v5697, %v5002
        %v5730 = vmul.f32 %v5698, %v4749
        %v5731 = vmul.f32 %v5699, %v4751
        %v5732 = vmul.f32 %v5700, %v5006
        %v5733 = vmul.f32 %v5701, %v5008
        %v5734 = vmul.f32 %v5702, %v4755
        %v5735 = vmul.f32 %v5703, %v4757
        %v5736 = vmul.f32 %v5704, %v5012
        %v5737 = vmul.f32 %v5705, %v5014
        %v5738 = vmul.f32 %v5706, %v4761
        %v5739 = vmul.f32 %v5707, %v4763
        %v5740 = vmul.f32 %v5708, %v5018
        %v5741 = vmul.f32 %v5709, %v5020
        %v5742 = vmul.f32 %v5694, %v4767
        %v5743 = vmul.f32 %v5695, %v4769
        %v5744 = vmul.f32 %v5696, %v5024
        %v5745 = vmul.f32 %v5697, %v5026
        %v5746 = vmul.f32 %v5698, %v4773
        %v5747 = vmul.f32 %v5699, %v4775
        %v5748 = vmul.f32 %v5700, %v5030
        %v5749 = vmul.f32 %v5701, %v5032
        %v5750 = vmul.f32 %v5702, %v4779
        %v5751 = vmul.f32 %v5703, %v4781
        %v5752 = vmul.f32 %v5704, %v5036
        %v5753 = vmul.f32 %v5705, %v5038
        %v5754 = vmul.f32 %v5706, %v4785
        %v5755 = vmul.f32 %v5707, %v4787
        %v5756 = vmul.f32 %v5708, %v5042
        %v5757 = vmul.f32 %v5709, %v5044
        %v5758 = vmul.f32 %v5694, %v4791
        %v5759 = vmul.f32 %v5695, %v4793
        %v5760 = vmul.f32 %v5696, %v5048
        %v5761 = vmul.f32 %v5697, %v5050
        %v5762 = vmul.f32 %v5698, %v4797
        %v5763 = vmul.f32 %v5699, %v4799
        %v5764 = vmul.f32 %v5700, %v5054
        %v5765 = vmul.f32 %v5701, %v5056
        %v5766 = vmul.f32 %v5702, %v4803
        %v5767 = vmul.f32 %v5703, %v4805
        %v5768 = vmul.f32 %v5704, %v5060
        %v5769 = vmul.f32 %v5705, %v5062
        %v5770 = vmul.f32 %v5706, %v4809
        %v5771 = vmul.f32 %v5707, %v4811
        %v5772 = vmul.f32 %v5708, %v5066
        %v5773 = vmul.f32 %v5709, %v5068
        %v5774 = vmul.f32 %v5694, %v4815
        %v5775 = vmul.f32 %v5695, %v4817
        %v5776 = vmul.f32 %v5696, %v5072
        %v5777 = vmul.f32 %v5697, %v5074
        %v5778 = vmul.f32 %v5698, %v4821
        %v5779 = vmul.f32 %v5699, %v4823
        %v5780 = vmul.f32 %v5700, %v5078
        %v5781 = vmul.f32 %v5701, %v5080
        %v5782 = vmul.f32 %v5702, %v4827
        %v5783 = vmul.f32 %v5703, %v4829
        %v5784 = vmul.f32 %v5704, %v5084
        %v5785 = vmul.f32 %v5705, %v5086
        %v5786 = vmul.f32 %v5706, %v4833
        %v5787 = vmul.f32 %v5707, %v4835
        %v5788 = vmul.f32 %v5708, %v5090
        %v5789 = vmul.f32 %v5709, %v5092
        %v5790 = vmul.f32 %v5694, %v4839
        %v5791 = vmul.f32 %v5695, %v4841
        %v5792 = vmul.f32 %v5696, %v5096
        %v5793 = vmul.f32 %v5697, %v5098
        %v5794 = vmul.f32 %v5698, %v4845
        %v5795 = vmul.f32 %v5699, %v4847
        %v5796 = vmul.f32 %v5700, %v5102
        %v5797 = vmul.f32 %v5701, %v5104
        %v5798 = vmul.f32 %v5702, %v4851
        %v5799 = vmul.f32 %v5703, %v4853
        %v5800 = vmul.f32 %v5704, %v5108
        %v5801 = vmul.f32 %v5705, %v5110
        %v5802 = vmul.f32 %v5706, %v4857
        %v5803 = vmul.f32 %v5707, %v4859
        %v5804 = vmul.f32 %v5708, %v5114
        %v5805 = vmul.f32 %v5709, %v5116
        %v5806 = vmul.f32 %v5694, %v4863
        %v5807 = vmul.f32 %v5695, %v4865
        %v5808 = vmul.f32 %v5696, %v5120
        %v5809 = vmul.f32 %v5697, %v5122
        %v5810 = vmul.f32 %v5698, %v4869
        %v5811 = vmul.f32 %v5699, %v4871
        %v5812 = vmul.f32 %v5700, %v5126
        %v5813 = vmul.f32 %v5701, %v5128
        %v5814 = vmul.f32 %v5702, %v4875
        %v5815 = vmul.f32 %v5703, %v4877
        %v5816 = vmul.f32 %v5704, %v5132
        %v5817 = vmul.f32 %v5705, %v5134
        %v5818 = vmul.f32 %v5706, %v4881
        %v5819 = vmul.f32 %v5707, %v4883
        %v5820 = vmul.f32 %v5708, %v5138
        %v5821 = vmul.f32 %v5709, %v5140
        %v5822 = vmul.f32 %v5694, %v4887
        %v5823 = vmul.f32 %v5695, %v4889
        %v5824 = vmul.f32 %v5696, %v5144
        %v5825 = vmul.f32 %v5697, %v5146
        %v5826 = vmul.f32 %v5698, %v4893
        %v5827 = vmul.f32 %v5699, %v4895
        %v5828 = vmul.f32 %v5700, %v5150
        %v5829 = vmul.f32 %v5701, %v5152
        %v5830 = vmul.f32 %v5702, %v4899
        %v5831 = vmul.f32 %v5703, %v4901
        %v5832 = vmul.f32 %v5704, %v5156
        %v5833 = vmul.f32 %v5705, %v5158
        %v5834 = vmul.f32 %v5706, %v4905
        %v5835 = vmul.f32 %v5707, %v4907
        %v5836 = vmul.f32 %v5708, %v5162
        %v5837 = vmul.f32 %v5709, %v5164
        %v5838 = vsub.f32 %v4205, %v5710
        %v5839 = vsub.f32 %v4207, %v5711
        %v5840 = vsub.f32 %v4462, %v5712
        %v5841 = vsub.f32 %v4464, %v5713
        %v5842 = vsub.f32 %v4211, %v5714
        %v5843 = vsub.f32 %v4213, %v5715
        %v5844 = vsub.f32 %v4468, %v5716
        %v5845 = vsub.f32 %v4470, %v5717
        %v5846 = vsub.f32 %v4217, %v5718
        %v5847 = vsub.f32 %v4219, %v5719
        %v5848 = vsub.f32 %v4474, %v5720
        %v5849 = vsub.f32 %v4476, %v5721
        %v5850 = vsub.f32 %v4223, %v5722
        %v5851 = vsub.f32 %v4225, %v5723
        %v5852 = vsub.f32 %v4480, %v5724
        %v5853 = vsub.f32 %v4482, %v5725
        %v5854 = vsub.f32 %v4229, %v5726
        %v5855 = vsub.f32 %v4231, %v5727
        %v5856 = vsub.f32 %v4486, %v5728
        %v5857 = vsub.f32 %v4488, %v5729
        %v5858 = vsub.f32 %v4235, %v5730
        %v5859 = vsub.f32 %v4237, %v5731
        %v5860 = vsub.f32 %v4492, %v5732
        %v5861 = vsub.f32 %v4494, %v5733
        %v5862 = vsub.f32 %v4241, %v5734
        %v5863 = vsub.f32 %v4243, %v5735
        %v5864 = vsub.f32 %v4498, %v5736
        %v5865 = vsub.f32 %v4500, %v5737
        %v5866 = vsub.f32 %v4247, %v5738
        %v5867 = vsub.f32 %v4249, %v5739
        %v5868 = vsub.f32 %v4504, %v5740
        %v5869 = vsub.f32 %v4506, %v5741
        %v5870 = vsub.f32 %v4253, %v5742
        %v5871 = vsub.f32 %v4255, %v5743
        %v5872 = vsub.f32 %v4510, %v5744
        %v5873 = vsub.f32 %v4512, %v5745
        %v5874 = vsub.f32 %v4259, %v5746
        %v5875 = vsub.f32 %v4261, %v5747
        %v5876 = vsub.f32 %v4516, %v5748
        %v5877 = vsub.f32 %v4518, %v5749
        %v5878 = vsub.f32 %v4265, %v5750
        %v5879 = vsub.f32 %v4267, %v5751
        %v5880 = vsub.f32 %v4522, %v5752
        %v5881 = vsub.f32 %v4524, %v5753
        %v5882 = vsub.f32 %v4271, %v5754
        %v5883 = vsub.f32 %v4273, %v5755
        %v5884 = vsub.f32 %v4528, %v5756
        %v5885 = vsub.f32 %v4530, %v5757
        %v5886 = vsub.f32 %v4277, %v5758
        %v5887 = vsub.f32 %v4279, %v5759
        %v5888 = vsub.f32 %v4534, %v5760
        %v5889 = vsub.f32 %v4536, %v5761
        %v5890 = vsub.f32 %v4283, %v5762
        %v5891 = vsub.f32 %v4285, %v5763
        %v5892 = vsub.f32 %v4540, %v5764
        %v5893 = vsub.f32 %v4542, %v5765
        %v5894 = vsub.f32 %v4289, %v5766
        %v5895 = vsub.f32 %v4291, %v5767
        %v5896 = vsub.f32 %v4546, %v5768
        %v5897 = vsub.f32 %v4548, %v5769
        %v5898 = vsub.f32 %v4295, %v5770
        %v5899 = vsub.f32 %v4297, %v5771
        %v5900 = vsub.f32 %v4552, %v5772
        %v5901 = vsub.f32 %v4554, %v5773
        %v5902 = vsub.f32 %v4301, %v5774
        %v5903 = vsub.f32 %v4303, %v5775
        %v5904 = vsub.f32 %v4558, %v5776
        %v5905 = vsub.f32 %v4560, %v5777
        %v5906 = vsub.f32 %v4307, %v5778
        %v5907 = vsub.f32 %v4309, %v5779
        %v5908 = vsub.f32 %v4564, %v5780
        %v5909 = vsub.f32 %v4566, %v5781
        %v5910 = vsub.f32 %v4313, %v5782
        %v5911 = vsub.f32 %v4315, %v5783
        %v5912 = vsub.f32 %v4570, %v5784
        %v5913 = vsub.f32 %v4572, %v5785
        %v5914 = vsub.f32 %v4319, %v5786
        %v5915 = vsub.f32 %v4321, %v5787
        %v5916 = vsub.f32 %v4576, %v5788
        %v5917 = vsub.f32 %v4578, %v5789
        %v5918 = vsub.f32 %v4325, %v5790
        %v5919 = vsub.f32 %v4327, %v5791
        %v5920 = vsub.f32 %v4582, %v5792
        %v5921 = vsub.f32 %v4584, %v5793
        %v5922 = vsub.f32 %v4331, %v5794
        %v5923 = vsub.f32 %v4333, %v5795
        %v5924 = vsub.f32 %v4588, %v5796
        %v5925 = vsub.f32 %v4590, %v5797
        %v5926 = vsub.f32 %v4337, %v5798
        %v5927 = vsub.f32 %v4339, %v5799
        %v5928 = vsub.f32 %v4594, %v5800
        %v5929 = vsub.f32 %v4596, %v5801
        %v5930 = vsub.f32 %v4343, %v5802
        %v5931 = vsub.f32 %v4345, %v5803
        %v5932 = vsub.f32 %v4600, %v5804
        %v5933 = vsub.f32 %v4602, %v5805
        %v5934 = vsub.f32 %v4349, %v5806
        %v5935 = vsub.f32 %v4351, %v5807
        %v5936 = vsub.f32 %v4606, %v5808
        %v5937 = vsub.f32 %v4608, %v5809
        %v5938 = vsub.f32 %v4355, %v5810
        %v5939 = vsub.f32 %v4357, %v5811
        %v5940 = vsub.f32 %v4612, %v5812
        %v5941 = vsub.f32 %v4614, %v5813
        %v5942 = vsub.f32 %v4361, %v5814
        %v5943 = vsub.f32 %v4363, %v5815
        %v5944 = vsub.f32 %v4618, %v5816
        %v5945 = vsub.f32 %v4620, %v5817
        %v5946 = vsub.f32 %v4367, %v5818
        %v5947 = vsub.f32 %v4369, %v5819
        %v5948 = vsub.f32 %v4624, %v5820
        %v5949 = vsub.f32 %v4626, %v5821
        %v5950 = vsub.f32 %v4373, %v5822
        %v5951 = vsub.f32 %v4375, %v5823
        %v5952 = vsub.f32 %v4630, %v5824
        %v5953 = vsub.f32 %v4632, %v5825
        %v5954 = vsub.f32 %v4379, %v5826
        %v5955 = vsub.f32 %v4381, %v5827
        %v5956 = vsub.f32 %v4636, %v5828
        %v5957 = vsub.f32 %v4638, %v5829
        %v5958 = vsub.f32 %v4385, %v5830
        %v5959 = vsub.f32 %v4387, %v5831
        %v5960 = vsub.f32 %v4642, %v5832
        %v5961 = vsub.f32 %v4644, %v5833
        %v5962 = vsub.f32 %v4391, %v5834
        %v5963 = vsub.f32 %v4393, %v5835
        %v5964 = vsub.f32 %v4648, %v5836
        %v5965 = vsub.f32 %v4650, %v5837
        %v5966 = vld [vmem:[%s9] sm:$0xff]
        %v5967 = vld [vmem:[%s9 + $0x8] sm:$0xff]
        %v5968 = vld [vmem:[%s9 + $0x10] sm:$0xff]
        %v5969 = vld [vmem:[%s9 + $0x18] sm:$0xff]
        %v5970 = vld [vmem:[%s9 + $0x20] sm:$0xff]
        %v5971 = vld [vmem:[%s9 + $0x28] sm:$0xff]
        %v5972 = vld [vmem:[%s9 + $0x30] sm:$0xff]
        %v5973 = vld [vmem:[%s9 + $0x38] sm:$0xff]
        %v5974 = vld [vmem:[%s9 + $0x40] sm:$0xff]
        %v5975 = vld [vmem:[%s9 + $0x48] sm:$0xff]
        %v5976 = vld [vmem:[%s9 + $0x50] sm:$0xff]
        %v5977 = vld [vmem:[%s9 + $0x58] sm:$0xff]
        %v5978 = vld [vmem:[%s9 + $0x60] sm:$0xff]
        %v5979 = vld [vmem:[%s9 + $0x68] sm:$0xff]
        %v5980 = vld [vmem:[%s9 + $0x70] sm:$0xff]
        %v5981 = vld [vmem:[%s9 + $0x78] sm:$0xff]
        %v5982 = vld [vmem:[%s10] sm:$0xff]
        %v5983 = vld [vmem:[%s10 + $0x8] sm:$0xff]
        %v5984 = vld [vmem:[%s10 + $0x10] sm:$0xff]
        %v5985 = vld [vmem:[%s10 + $0x18] sm:$0xff]
        %v5986 = vld [vmem:[%s10 + $0x20] sm:$0xff]
        %v5987 = vld [vmem:[%s10 + $0x28] sm:$0xff]
        %v5988 = vld [vmem:[%s10 + $0x30] sm:$0xff]
        %v5989 = vld [vmem:[%s10 + $0x38] sm:$0xff]
        %5991 = vset.pattern.permute.xlu0 0
        %5992 = vperm.xlu0 %5991, %v5982
        %v5993 = vpop.permute.xlu0 %5992
        %5996 = vset.pattern.permute.xlu0 0
        %5997 = vperm.xlu0 %5996, %v5983
        %v5998 = vpop.permute.xlu0 %5997
        %6001 = vset.pattern.permute.xlu0 0
        %6002 = vperm.xlu0 %6001, %v5984
        %v6003 = vpop.permute.xlu0 %6002
        %6006 = vset.pattern.permute.xlu0 0
        %6007 = vperm.xlu0 %6006, %v5985
        %v6008 = vpop.permute.xlu0 %6007
        %6011 = vset.pattern.permute.xlu0 0
        %6012 = vperm.xlu0 %6011, %v5986
        %v6013 = vpop.permute.xlu0 %6012
        %6016 = vset.pattern.permute.xlu0 0
        %6017 = vperm.xlu0 %6016, %v5987
        %v6018 = vpop.permute.xlu0 %6017
        %6021 = vset.pattern.permute.xlu0 0
        %6022 = vperm.xlu0 %6021, %v5988
        %v6023 = vpop.permute.xlu0 %6022
        %6026 = vset.pattern.permute.xlu0 0
        %6027 = vperm.xlu0 %6026, %v5989
        %v6028 = vpop.permute.xlu0 %6027
        %6030 = vmatprep.subr.mxu0 %v5839
        %6031 = vmatpush1.msra.mxu0 %v5838
        %6032 = vmatprep.subr.mxu0 %v5843
        %6033 = vmatpush1.msra.mxu0 %v5842
        %6034 = vmatprep.subr.mxu0 %v5847
        %6035 = vmatpush1.msra.mxu0 %v5846
        %6036 = vmatprep.subr.mxu0 %v5851
        %6037 = vmatpush1.msra.mxu0 %v5850
        %6038 = vmatprep.subr.mxu0 %v5855
        %6039 = vmatpush1.msra.mxu0 %v5854
        %6040 = vmatprep.subr.mxu0 %v5859
        %6041 = vmatpush1.msra.mxu0 %v5858
        %6042 = vmatprep.subr.mxu0 %v5863
        %6043 = vmatpush1.msra.mxu0 %v5862
        %6044 = vmatprep.subr.mxu0 %v5867
        %6045 = vmatpush1.msra.mxu0 %v5866
        %6046 = vmatprep.subr.mxu0 %v5871
        %6047 = vmatpush1.msra.mxu0 %v5870
        %6048 = vmatprep.subr.mxu0 %v5875
        %6049 = vmatpush1.msra.mxu0 %v5874
        %6050 = vmatprep.subr.mxu0 %v5879
        %6051 = vmatpush1.msra.mxu0 %v5878
        %6052 = vmatprep.subr.mxu0 %v5883
        %6053 = vmatpush1.msra.mxu0 %v5882
        %6054 = vmatprep.subr.mxu0 %v5887
        %6055 = vmatpush1.msra.mxu0 %v5886
        %6056 = vmatprep.subr.mxu0 %v5891
        %6057 = vmatpush1.msra.mxu0 %v5890
        %6058 = vmatprep.subr.mxu0 %v5895
        %6059 = vmatpush1.msra.mxu0 %v5894
        %6060 = vmatprep.subr.mxu0 %v5899
        %6061 = vmatpush1.msra.mxu0 %v5898
        %6062 = vmatprep.subr.mxu0 %v5903
        %6063 = vmatpush1.msra.mxu0 %v5902
        %6064 = vmatprep.subr.mxu0 %v5907
        %6065 = vmatpush1.msra.mxu0 %v5906
        %6066 = vmatprep.subr.mxu0 %v5911
        %6067 = vmatpush1.msra.mxu0 %v5910
        %6068 = vmatprep.subr.mxu0 %v5915
        %6069 = vmatpush1.msra.mxu0 %v5914
        %6070 = vmatprep.subr.mxu0 %v5919
        %6071 = vmatpush1.msra.mxu0 %v5918
        %6072 = vmatprep.subr.mxu0 %v5923
        %6073 = vmatpush1.msra.mxu0 %v5922
        %6074 = vmatprep.subr.mxu0 %v5927
        %6075 = vmatpush1.msra.mxu0 %v5926
        %6076 = vmatprep.subr.mxu0 %v5931
        %6077 = vmatpush1.msra.mxu0 %v5930
        %6078 = vmatprep.subr.mxu0 %v5935
        %6079 = vmatpush1.msra.mxu0 %v5934
        %6080 = vmatprep.subr.mxu0 %v5939
        %6081 = vmatpush1.msra.mxu0 %v5938
        %6082 = vmatprep.subr.mxu0 %v5943
        %6083 = vmatpush1.msra.mxu0 %v5942
        %6084 = vmatprep.subr.mxu0 %v5947
        %6085 = vmatpush1.msra.mxu0 %v5946
        %6086 = vmatprep.subr.mxu0 %v5951
        %6087 = vmatpush1.msra.mxu0 %v5950
        %6088 = vmatprep.subr.mxu0 %v5955
        %6089 = vmatpush1.msra.mxu0 %v5954
        %6090 = vmatprep.subr.mxu0 %v5959
        %6091 = vmatpush1.msra.mxu0 %v5958
        %6092 = vmatprep.subr.mxu0 %v5963
        %6093 = vmatpush1.msra.mxu0 %v5962
        %6094 = vmatprep.mubr.f32.mxu0 %v5967
        %6095 = vmatmul.mubr.f32.gmra.mrb[0].mxu0 %v5966
        %v6096 = vpop.f32.mrb[0].mxu0
        %v6097 = vadd.f32 %v5993, %v6096
        %v6098 = vpop.f32.mrb[0].mxu0
        %v6099 = vadd.f32 %v5993, %v6098
        %6100 = vmatprep.mubr.f32.mxu0 %v5969
        %6101 = vmatmul.mubr.f32.gmra.mrb[0].mxu0 %v5968
        %v6102 = vpop.f32.mrb[0].mxu0
        %v6103 = vadd.f32 %v5998, %v6102
        %v6104 = vpop.f32.mrb[0].mxu0
        %v6105 = vadd.f32 %v5998, %v6104
        %6106 = vmatprep.mubr.f32.mxu0 %v5971
        %6107 = vmatmul.mubr.f32.gmra.mrb[0].mxu0 %v5970
        %v6108 = vpop.f32.mrb[0].mxu0
        %v6109 = vadd.f32 %v6003, %v6108
        %v6110 = vpop.f32.mrb[0].mxu0
        %v6111 = vadd.f32 %v6003, %v6110
        %6112 = vmatprep.mubr.f32.mxu0 %v5973
        %6113 = vmatmul.mubr.f32.gmra.mrb[0].mxu0 %v5972
        %v6114 = vpop.f32.mrb[0].mxu0
        %v6115 = vadd.f32 %v6008, %v6114
        %v6116 = vpop.f32.mrb[0].mxu0
        %v6117 = vadd.f32 %v6008, %v6116
        %6118 = vmatprep.mubr.f32.mxu0 %v5975
        %6119 = vmatmul.mubr.f32.gmra.mrb[0].mxu0 %v5974
        %v6120 = vpop.f32.mrb[0].mxu0
        %v6121 = vadd.f32 %v6013, %v6120
        %v6122 = vpop.f32.mrb[0].mxu0
        %v6123 = vadd.f32 %v6013, %v6122
        %6124 = vmatprep.mubr.f32.mxu0 %v5977
        %6125 = vmatmul.mubr.f32.gmra.mrb[0].mxu0 %v5976
        %v6126 = vpop.f32.mrb[0].mxu0
        %v6127 = vadd.f32 %v6018, %v6126
        %v6128 = vpop.f32.mrb[0].mxu0
        %v6129 = vadd.f32 %v6018, %v6128
        %6130 = vmatprep.mubr.f32.mxu0 %v5979
        %6131 = vmatmul.mubr.f32.gmra.mrb[0].mxu0 %v5978
        %v6132 = vpop.f32.mrb[0].mxu0
        %v6133 = vadd.f32 %v6023, %v6132
        %v6134 = vpop.f32.mrb[0].mxu0
        %v6135 = vadd.f32 %v6023, %v6134
        %6136 = vmatprep.mubr.f32.mxu0 %v5981
        %6137 = vmatmul.mubr.f32.gmra.mrb[0].mxu0 %v5980
        %v6138 = vpop.f32.mrb[0].mxu0
        %v6139 = vadd.f32 %v6028, %v6138
        %v6140 = vpop.f32.mrb[0].mxu0
        %v6141 = vadd.f32 %v6028, %v6140
        %6142 = vdwg.mxu0
        %6143 = vmatprep.subr.mxu0 %v5841
        %6144 = vmatpush1.msra.mxu0 %v5840
        %6145 = vmatprep.subr.mxu0 %v5845
        %6146 = vmatpush1.msra.mxu0 %v5844
        %6147 = vmatprep.subr.mxu0 %v5849
        %6148 = vmatpush1.msra.mxu0 %v5848
        %6149 = vmatprep.subr.mxu0 %v5853
        %6150 = vmatpush1.msra.mxu0 %v5852
        %6151 = vmatprep.subr.mxu0 %v5857
        %6152 = vmatpush1.msra.mxu0 %v5856
        %6153 = vmatprep.subr.mxu0 %v5861
        %6154 = vmatpush1.msra.mxu0 %v5860
        %6155 = vmatprep.subr.mxu0 %v5865
        %6156 = vmatpush1.msra.mxu0 %v5864
        %6157 = vmatprep.subr.mxu0 %v5869
        %6158 = vmatpush1.msra.mxu0 %v5868
        %6159 = vmatprep.subr.mxu0 %v5873
        %6160 = vmatpush1.msra.mxu0 %v5872
        %6161 = vmatprep.subr.mxu0 %v5877
        %6162 = vmatpush1.msra.mxu0 %v5876
        %6163 = vmatprep.subr.mxu0 %v5881
        %6164 = vmatpush1.msra.mxu0 %v5880
        %6165 = vmatprep.subr.mxu0 %v5885
        %6166 = vmatpush1.msra.mxu0 %v5884
        %6167 = vmatprep.subr.mxu0 %v5889
        %6168 = vmatpush1.msra.mxu0 %v5888
        %6169 = vmatprep.subr.mxu0 %v5893
        %6170 = vmatpush1.msra.mxu0 %v5892
        %6171 = vmatprep.subr.mxu0 %v5897
        %6172 = vmatpush1.msra.mxu0 %v5896
        %6173 = vmatprep.subr.mxu0 %v5901
        %6174 = vmatpush1.msra.mxu0 %v5900
        %6175 = vmatprep.subr.mxu0 %v5905
        %6176 = vmatpush1.msra.mxu0 %v5904
        %6177 = vmatprep.subr.mxu0 %v5909
        %6178 = vmatpush1.msra.mxu0 %v5908
        %6179 = vmatprep.subr.mxu0 %v5913
        %6180 = vmatpush1.msra.mxu0 %v5912
        %6181 = vmatprep.subr.mxu0 %v5917
        %6182 = vmatpush1.msra.mxu0 %v5916
        %6183 = vmatprep.subr.mxu0 %v5921
        %6184 = vmatpush1.msra.mxu0 %v5920
        %6185 = vmatprep.subr.mxu0 %v5925
        %6186 = vmatpush1.msra.mxu0 %v5924
        %6187 = vmatprep.subr.mxu0 %v5929
        %6188 = vmatpush1.msra.mxu0 %v5928
        %6189 = vmatprep.subr.mxu0 %v5933
        %6190 = vmatpush1.msra.mxu0 %v5932
        %6191 = vmatprep.subr.mxu0 %v5937
        %6192 = vmatpush1.msra.mxu0 %v5936
        %6193 = vmatprep.subr.mxu0 %v5941
        %6194 = vmatpush1.msra.mxu0 %v5940
        %6195 = vmatprep.subr.mxu0 %v5945
        %6196 = vmatpush1.msra.mxu0 %v5944
        %6197 = vmatprep.subr.mxu0 %v5949
        %6198 = vmatpush1.msra.mxu0 %v5948
        %6199 = vmatprep.subr.mxu0 %v5953
        %6200 = vmatpush1.msra.mxu0 %v5952
        %6201 = vmatprep.subr.mxu0 %v5957
        %6202 = vmatpush1.msra.mxu0 %v5956
        %6203 = vmatprep.subr.mxu0 %v5961
        %6204 = vmatpush1.msra.mxu0 %v5960
        %6205 = vmatprep.subr.mxu0 %v5965
        %6206 = vmatpush1.msra.mxu0 %v5964
        %6207 = vmatprep.mubr.f32.mxu0 %v5967
        %6208 = vmatmul.mubr.f32.gmra.mrb[0].mxu0 %v5966
        %v6209 = vpop.f32.mrb[0].mxu0
        %v6210 = vadd.f32 %v5993, %v6209
        %v6211 = vpop.f32.mrb[0].mxu0
        %v6212 = vadd.f32 %v5993, %v6211
        %6213 = vmatprep.mubr.f32.mxu0 %v5969
        %6214 = vmatmul.mubr.f32.gmra.mrb[0].mxu0 %v5968
        %v6215 = vpop.f32.mrb[0].mxu0
        %v6216 = vadd.f32 %v5998, %v6215
        %v6217 = vpop.f32.mrb[0].mxu0
        %v6218 = vadd.f32 %v5998, %v6217
        %6219 = vmatprep.mubr.f32.mxu0 %v5971
        %6220 = vmatmul.mubr.f32.gmra.mrb[0].mxu0 %v5970
        %v6221 = vpop.f32.mrb[0].mxu0
        %v6222 = vadd.f32 %v6003, %v6221
        %v6223 = vpop.f32.mrb[0].mxu0
        %v6224 = vadd.f32 %v6003, %v6223
        %6225 = vmatprep.mubr.f32.mxu0 %v5973
        %6226 = vmatmul.mubr.f32.gmra.mrb[0].mxu0 %v5972
        %v6227 = vpop.f32.mrb[0].mxu0
        %v6228 = vadd.f32 %v6008, %v6227
        %v6229 = vpop.f32.mrb[0].mxu0
        %v6230 = vadd.f32 %v6008, %v6229
        %6231 = vmatprep.mubr.f32.mxu0 %v5975
        %6232 = vmatmul.mubr.f32.gmra.mrb[0].mxu0 %v5974
        %v6233 = vpop.f32.mrb[0].mxu0
        %v6234 = vadd.f32 %v6013, %v6233
        %v6235 = vpop.f32.mrb[0].mxu0
        %v6236 = vadd.f32 %v6013, %v6235
        %6237 = vmatprep.mubr.f32.mxu0 %v5977
        %6238 = vmatmul.mubr.f32.gmra.mrb[0].mxu0 %v5976
        %v6239 = vpop.f32.mrb[0].mxu0
        %v6240 = vadd.f32 %v6018, %v6239
        %v6241 = vpop.f32.mrb[0].mxu0
        %v6242 = vadd.f32 %v6018, %v6241
        %6243 = vmatprep.mubr.f32.mxu0 %v5979
        %6244 = vmatmul.mubr.f32.gmra.mrb[0].mxu0 %v5978
        %v6245 = vpop.f32.mrb[0].mxu0
        %v6246 = vadd.f32 %v6023, %v6245
        %v6247 = vpop.f32.mrb[0].mxu0
        %v6248 = vadd.f32 %v6023, %v6247
        %6249 = vmatprep.mubr.f32.mxu0 %v5981
        %6250 = vmatmul.mubr.f32.gmra.mrb[0].mxu0 %v5980
        %v6251 = vpop.f32.mrb[0].mxu0
        %v6252 = vadd.f32 %v6028, %v6251
        %v6253 = vpop.f32.mrb[0].mxu0
        %v6254 = vadd.f32 %v6028, %v6253
        %6255 = vdwg.mxu0
        %6256 = vst [vmem:[%s430] sm:$0xff] %v6097
        %6257 = vst [vmem:[%s430 + $0x8] sm:$0xff] %v6099
        %6258 = vst [vmem:[%s430 + $0x10] sm:$0xff] %v6210
        %6259 = vst [vmem:[%s430 + $0x18] sm:$0xff] %v6212
        %6260 = vst [vmem:[%s430 + $0x20] sm:$0xff] %v6103
        %6261 = vst [vmem:[%s430 + $0x28] sm:$0xff] %v6105
        %6262 = vst [vmem:[%s430 + $0x30] sm:$0xff] %v6216
        %6263 = vst [vmem:[%s430 + $0x38] sm:$0xff] %v6218
        %6264 = vst [vmem:[%s430 + $0x40] sm:$0xff] %v6109
        %6265 = vst [vmem:[%s430 + $0x48] sm:$0xff] %v6111
        %6266 = vst [vmem:[%s430 + $0x50] sm:$0xff] %v6222
        %6267 = vst [vmem:[%s430 + $0x58] sm:$0xff] %v6224
        %6268 = vst [vmem:[%s430 + $0x60] sm:$0xff] %v6115
        %6269 = vst [vmem:[%s430 + $0x68] sm:$0xff] %v6117
        %6270 = vst [vmem:[%s430 + $0x70] sm:$0xff] %v6228
        %6271 = vst [vmem:[%s430 + $0x78] sm:$0xff] %v6230
        %6272 = vst [vmem:[%s430 + $0x80] sm:$0xff] %v6121
        %6273 = vst [vmem:[%s430 + $0x88] sm:$0xff] %v6123
        %6274 = vst [vmem:[%s430 + $0x90] sm:$0xff] %v6234
        %6275 = vst [vmem:[%s430 + $0x98] sm:$0xff] %v6236
        %6276 = vst [vmem:[%s430 + $0xa0] sm:$0xff] %v6127
        %6277 = vst [vmem:[%s430 + $0xa8] sm:$0xff] %v6129
        %6278 = vst [vmem:[%s430 + $0xb0] sm:$0xff] %v6240
        %6279 = vst [vmem:[%s430 + $0xb8] sm:$0xff] %v6242
        %6280 = vst [vmem:[%s430 + $0xc0] sm:$0xff] %v6133
        %6281 = vst [vmem:[%s430 + $0xc8] sm:$0xff] %v6135
        %6282 = vst [vmem:[%s430 + $0xd0] sm:$0xff] %v6246
        %6283 = vst [vmem:[%s430 + $0xd8] sm:$0xff] %v6248
        %6284 = vst [vmem:[%s430 + $0xe0] sm:$0xff] %v6139
        %6285 = vst [vmem:[%s430 + $0xe8] sm:$0xff] %v6141
        %6286 = vst [vmem:[%s430 + $0xf0] sm:$0xff] %v6252
        %6287 = vst [vmem:[%s430 + $0xf8] sm:$0xff] %v6254
        %s6288 = sand.u32 %s266, 1
        %s6289 = sand.u32 %s266, 1
        %s6290 = smul.addr %s6289, 256
        %s6291 = scalar_lea.vmem [#allocation3], %s6290
        // Predicated region
        $region88: #{mvmlp_forward.1} parent=82 // pred_check
          %p6292 = pneg %p276
        $region89: #{mvmlp_forward.1} parent=82 // pred_check_branch
          %6294 = sbr.rel (%p6292) target = $region91
        $region90: #{mvmlp_forward.1} parent=82 // pred_region
          %s6295 = smul.u32 4, %s22
          %s6296 = smul.addr %s6295, 8
          %s6297 = scalar_lea.vmem %s11, %s6296
          // Predicated region
          $region92: #{mvmlp_forward.1} parent=90 // pred_check
            _
          $region93: #{mvmlp_forward.1} parent=90 // pred_check_branch
            %6299 = sbr.rel (0) target = $region95
          $region94: #{mvmlp_forward.1} parent=90 // pred_region
            // Predicated region
            $region96: #{mvmlp_forward.1} parent=94 // pred_check
              _
            $region97: #{mvmlp_forward.1} parent=94 // pred_check_branch
              %6301 = sbr.rel (0) target = $region99
            $region98: #{mvmlp_forward.1} parent=94 // pred_region
              loop: start=0, step=1, limit=1
              $region100: #{mvmlp_forward.1} parent=98 // loop_pre_header
                _
              $region101: #{mvmlp_forward.1} parent=98 // loop_header
                %s6303 = sphi 0, %s6307
                %p6304 = scmp.ge.s32.totalorder %s6303, 1
                %s6308 = sphi %s6291, %s6291
                %s6309 = sphi %s6297, %s6297
              $region102: #{mvmlp_forward.1} parent=98 // loop_header_branch
                %6306 = sbr.rel (%p6304) target = $region106
              $region103: #{mvmlp_forward.1} parent=98 // loop_body
                %v6310 = vld [vmem:[%s6308] sm:$0xff]
                %6311 = vst [vmem:[%s6309] sm:$0xff] %v6310
                %v6312 = vld [vmem:[%s6308 + $0x8] sm:$0xff]
                %6313 = vst [vmem:[%s6309 + $0x8] sm:$0xff] %v6312
                %v6314 = vld [vmem:[%s6308 + $0x10] sm:$0xff]
                %6315 = vst [vmem:[%s6309 + $0x10] sm:$0xff] %v6314
                %v6316 = vld [vmem:[%s6308 + $0x18] sm:$0xff]
                %6317 = vst [vmem:[%s6309 + $0x18] sm:$0xff] %v6316
                %v6318 = vld [vmem:[%s6308 + $0x20] sm:$0xff]
                %6319 = vst [vmem:[%s6309 + $0x40] sm:$0xff] %v6318
                %v6320 = vld [vmem:[%s6308 + $0x28] sm:$0xff]
                %6321 = vst [vmem:[%s6309 + $0x48] sm:$0xff] %v6320
                %v6322 = vld [vmem:[%s6308 + $0x30] sm:$0xff]
                %6323 = vst [vmem:[%s6309 + $0x50] sm:$0xff] %v6322
                %v6324 = vld [vmem:[%s6308 + $0x38] sm:$0xff]
                %6325 = vst [vmem:[%s6309 + $0x58] sm:$0xff] %v6324
                %v6326 = vld [vmem:[%s6308 + $0x40] sm:$0xff]
                %6327 = vst [vmem:[%s6309 + $0x80] sm:$0xff] %v6326
                %v6328 = vld [vmem:[%s6308 + $0x48] sm:$0xff]
                %6329 = vst [vmem:[%s6309 + $0x88] sm:$0xff] %v6328
                %v6330 = vld [vmem:[%s6308 + $0x50] sm:$0xff]
                %6331 = vst [vmem:[%s6309 + $0x90] sm:$0xff] %v6330
                %v6332 = vld [vmem:[%s6308 + $0x58] sm:$0xff]
                %6333 = vst [vmem:[%s6309 + $0x98] sm:$0xff] %v6332
                %v6334 = vld [vmem:[%s6308 + $0x60] sm:$0xff]
                %6335 = vst [vmem:[%s6309 + $0xc0] sm:$0xff] %v6334
                %v6336 = vld [vmem:[%s6308 + $0x68] sm:$0xff]
                %6337 = vst [vmem:[%s6309 + $0xc8] sm:$0xff] %v6336
                %v6338 = vld [vmem:[%s6308 + $0x70] sm:$0xff]
                %6339 = vst [vmem:[%s6309 + $0xd0] sm:$0xff] %v6338
                %v6340 = vld [vmem:[%s6308 + $0x78] sm:$0xff]
                %6341 = vst [vmem:[%s6309 + $0xd8] sm:$0xff] %v6340
                %v6342 = vld [vmem:[%s6308 + $0x80] sm:$0xff]
                %6343 = vst [vmem:[%s6309 + $0x100] sm:$0xff] %v6342
                %v6344 = vld [vmem:[%s6308 + $0x88] sm:$0xff]
                %6345 = vst [vmem:[%s6309 + $0x108] sm:$0xff] %v6344
                %v6346 = vld [vmem:[%s6308 + $0x90] sm:$0xff]
                %6347 = vst [vmem:[%s6309 + $0x110] sm:$0xff] %v6346
                %v6348 = vld [vmem:[%s6308 + $0x98] sm:$0xff]
                %6349 = vst [vmem:[%s6309 + $0x118] sm:$0xff] %v6348
                %v6350 = vld [vmem:[%s6308 + $0xa0] sm:$0xff]
                %6351 = vst [vmem:[%s6309 + $0x140] sm:$0xff] %v6350
                %v6352 = vld [vmem:[%s6308 + $0xa8] sm:$0xff]
                %6353 = vst [vmem:[%s6309 + $0x148] sm:$0xff] %v6352
                %v6354 = vld [vmem:[%s6308 + $0xb0] sm:$0xff]
                %6355 = vst [vmem:[%s6309 + $0x150] sm:$0xff] %v6354
                %v6356 = vld [vmem:[%s6308 + $0xb8] sm:$0xff]
                %6357 = vst [vmem:[%s6309 + $0x158] sm:$0xff] %v6356
                %v6358 = vld [vmem:[%s6308 + $0xc0] sm:$0xff]
                %6359 = vst [vmem:[%s6309 + $0x180] sm:$0xff] %v6358
                %v6360 = vld [vmem:[%s6308 + $0xc8] sm:$0xff]
                %6361 = vst [vmem:[%s6309 + $0x188] sm:$0xff] %v6360
                %v6362 = vld [vmem:[%s6308 + $0xd0] sm:$0xff]
                %6363 = vst [vmem:[%s6309 + $0x190] sm:$0xff] %v6362
                %v6364 = vld [vmem:[%s6308 + $0xd8] sm:$0xff]
                %6365 = vst [vmem:[%s6309 + $0x198] sm:$0xff] %v6364
                %v6366 = vld [vmem:[%s6308 + $0xe0] sm:$0xff]
                %6367 = vst [vmem:[%s6309 + $0x1c0] sm:$0xff] %v6366
                %v6368 = vld [vmem:[%s6308 + $0xe8] sm:$0xff]
                %6369 = vst [vmem:[%s6309 + $0x1c8] sm:$0xff] %v6368
                %v6370 = vld [vmem:[%s6308 + $0xf0] sm:$0xff]
                %6371 = vst [vmem:[%s6309 + $0x1d0] sm:$0xff] %v6370
                %v6372 = vld [vmem:[%s6308 + $0xf8] sm:$0xff]
                %6373 = vst [vmem:[%s6309 + $0x1d8] sm:$0xff] %v6372
              $region104: #{mvmlp_forward.1} parent=98 // loop_footer
                %s6307 = sadd.s32 1, %s6303
              $region105: #{mvmlp_forward.1} parent=98 // loop_footer_branch
                %6302 = sbr.rel target = $region101
              $region106: #{mvmlp_forward.1} parent=98 // loop_exit
                _
            $region99: #{mvmlp_forward.1} parent=94 // pred_fallthru
              _
            // Predicated region
            $region107: #{mvmlp_forward.1} parent=94 // pred_check
              _
            $region108: #{mvmlp_forward.1} parent=94 // pred_check_branch
              %6375 = sbr.rel target = $region110
            $region109: #{mvmlp_forward.1} parent=94 // pred_region
              _
            $region110: #{mvmlp_forward.1} parent=94 // pred_fallthru
              _
          $region95: #{mvmlp_forward.1} parent=90 // pred_fallthru
            _
          %6376 = vnop
        $region91: #{mvmlp_forward.1} parent=82 // pred_fallthru
          _
      $region83: #{mvmlp_forward.1} parent=5 // pred_fallthru
        _
      %p6377 = scmp.le.s32.totalorder 2, %s17
      // Predicated region
      $region111: #{mvmlp_forward.1} parent=5 // pred_check
        %p6378 = pneg %p6377
      $region112: #{mvmlp_forward.1} parent=5 // pred_check_branch
        %6380 = sbr.rel (%p6378) target = $region114
      $region113: #{mvmlp_forward.1} parent=5 // pred_region
        %s6381 = ssub.s32 %s17, 2
        // Predicated region
        $region115: #{mvmlp_forward.1} parent=113 // pred_check
          %p6382 = pneg %p282
        $region116: #{mvmlp_forward.1} parent=113 // pred_check_branch
          %6384 = sbr.rel (%p6382) target = $region118
        $region117: #{mvmlp_forward.1} parent=113 // pred_region
          %s6385 = sand.u32 %s267, 1
          %s6386 = sand.u32 %s267, 1
          %s6387 = smul.addr %s6386, 256
          %s6388 = scalar_lea.vmem [#allocation3], %s6387
        $region118: #{mvmlp_forward.1} parent=113 // pred_fallthru
          _
      $region114: #{mvmlp_forward.1} parent=5 // pred_fallthru
        _
    $region6: #{mvmlp_forward.1} parent=1 // loop_footer
      %s21 = sadd.s32 1, %s17
    $region7: #{mvmlp_forward.1} parent=1 // loop_footer_branch
      %16 = sbr.rel target = $region3
    $region8: #{mvmlp_forward.1} parent=1 // loop_exit
      _

</llo_original>
